<compile_context>
chip_gen: v6e
topology: v6e:2x2x1
jax: 0.10.0
libtpu: 0.0.40
codegen_flags: <defaults>
</compile_context>

<pallas_src>
import functools

import jax
import jax.numpy as jnp
from jax import lax
from jax.experimental import pallas as pl
from jax.experimental.pallas import tpu as pltpu


# ---------------------------------------------------------------------------
# Static sizes (MNIST variant)
# ---------------------------------------------------------------------------
_H = 28
_W = 28
_C1 = 16          # conv1 channels
_C2 = 32          # conv2 channels
_PR = 14          # pooled rows / cols
_K1 = 256         # conv1 contraction: 5 taps * 28 cols = 140, padded to 256
_K2 = 256         # pooled lanes: (14 w + 2 pad) * 16 ch
_L1 = 512         # conv1 out lanes: 2 col-parities * 256
_L2 = 512         # conv2 out lanes: (14 w + 2 pad) * 32 ch
_F1 = 128         # fc1 out, padded 120 -> 128
_NCLS = 10


def _pick_tile_b(n):
    """Power-of-two tile in [8, 32]; aims for >=2 grid steps (v7x megacore)."""
    target = max(8, (n + 1) // 2)
    t = 8
    while t < target and t < 32:
        t *= 2
    return t


# ---------------------------------------------------------------------------
# Kernels (all matmuls batched across the image tile; no per-image loops)
# ---------------------------------------------------------------------------
def _conv1_kernel(lhs_ref, w_ref, b_ref, y_ref, s_ref, *, tb, n_valid):
    """conv1(5x5,pad2)+bias for a tile, plus BN1 sum / sumsq partials.

    lhs_ref : (2, 14*tb, 256) bf16  shifted-window LHS (taps folded into K);
              parity 0/1 = even/odd conv output rows; row = r*tb + n_local.
    w_ref   : (256, 512) bf16  structured weight; cols = half*256 + w2*16 + co.
    y_ref   : (2, 14*tb, 512) bf16
    s_ref   : (1, 2, 512) f32  per-lane [sum, sumsq] over valid images.
    """
    i = pl.program_id(0)
    rows = lax.broadcasted_iota(jnp.int32, (_PR * tb, 1), 0)
    nloc = jnp.bitwise_and(rows, tb - 1)
    mask = ((i * tb + nloc) < n_valid).astype(jnp.float32)
    w = w_ref[...]
    bias = b_ref[...]
    sums = jnp.zeros((1, _L1), jnp.float32)
    sqs = jnp.zeros((1, _L1), jnp.float32)
    for p in range(2):                              # 2 batched matmuls / step
        res = jnp.dot(lhs_ref[p], w,
                      preferred_element_type=jnp.float32) + bias
        y_ref[p] = res.astype(jnp.bfloat16)
        rm = res * mask
        sums = sums + jnp.sum(rm, axis=0, keepdims=True)
        sqs = sqs + jnp.sum(res * rm, axis=0, keepdims=True)
    s_ref[0, 0:1, :] = sums
    s_ref[0, 1:2, :] = sqs


def _stage2_kernel(y1_ref, sc_ref, sh_ref, w_ref, b_ref, y2_ref, s_ref,
                   ppad_ref, *, tb, n_valid):
    """BN1 + ReLU + 2x2 maxpool + conv2(3x3,pad1)+bias, plus BN2 partials.

    y1_ref  : (2, 14*tb, 512) bf16
    sc/sh   : (1, 512) f32 per-lane BN1 scale / shift (zero on pad lanes).
    w_ref   : (768, 512) bf16 structured conv2 weight (3 taps * 256 rows).
    ppad_ref: (16*tb, 256) bf16 scratch: H-padded pooled activation (1 write/step).
    y2_ref  : (14*tb, 512) bf16
    s_ref   : (1, 2, 512) f32
    """
    i = pl.program_id(0)
    sc = sc_ref[...]
    sh = sh_ref[...]
    ae = jnp.maximum(y1_ref[0].astype(jnp.float32) * sc + sh, 0.0)
    ao = jnp.maximum(y1_ref[1].astype(jnp.float32) * sc + sh, 0.0)
    hm = jnp.maximum(ae, ao)                        # H-pool (even/odd rows)
    p = jnp.maximum(hm[:, 0:_K2], hm[:, _K2:_L1])   # W-pool (vreg-aligned halves)

    zrow = jnp.zeros((tb, _K2), jnp.bfloat16)
    ppad_ref[0:tb, :] = zrow
    ppad_ref[15 * tb:16 * tb, :] = zrow
    ppad_ref[tb:15 * tb, :] = p.astype(jnp.bfloat16)

    acc = jnp.zeros((_PR * tb, _L2), jnp.float32)
    for di in range(3):                             # 3 batched matmuls / step
        lhs = ppad_ref[di * tb:di * tb + _PR * tb, :]
        acc = acc + jnp.dot(lhs, w_ref[di * _K2:(di + 1) * _K2, :],
                            preferred_element_type=jnp.float32)
    y2 = acc + b_ref[...]

    rows = lax.broadcasted_iota(jnp.int32, (_PR * tb, 1), 0)
    nloc = jnp.bitwise_and(rows, tb - 1)
    mask = ((i * tb + nloc) < n_valid).astype(jnp.float32)
    rm = y2 * mask
    s_ref[0, 0:1, :] = jnp.sum(rm, axis=0, keepdims=True)
    s_ref[0, 1:2, :] = jnp.sum(y2 * rm, axis=0, keepdims=True)
    y2_ref[...] = y2.astype(jnp.bfloat16)


def _head_kernel(y2_ref, sc_ref, sh_ref, wfc1_ref, bfc1_ref, wfc2_ref,
                 bfc2_ref, out_ref, *, tb):
    """BN2 + ReLU + flatten + fc1 + ReLU + fc2.

    y2_ref   : (14*tb, 512) bf16  rows = r*tb + n_local.
    wfc1_ref : (7168, 128) bf16   VMEM-resident; NCHW-flatten order folded in.
    out_ref  : (tb, 10) f32
    """
    sc = sc_ref[...]
    sh = sh_ref[...]
    # TODO(synk): Dropout(0.5) is identity (eval-mode semantics).
    h = jnp.zeros((tb, _F1), jnp.float32) + bfc1_ref[...]
    for r in range(_PR):                            # 14 batched dots (M = tb)
        a = jnp.maximum(
            y2_ref[r * tb:(r + 1) * tb, :].astype(jnp.float32) * sc + sh, 0.0)
        h = h + jnp.dot(a.astype(jnp.bfloat16),
                        wfc1_ref[r * _L2:(r + 1) * _L2, :],
                        preferred_element_type=jnp.float32)
    h = jnp.maximum(h, 0.0)
    out_ref[...] = jnp.dot(h, wfc2_ref[...],
                           preferred_element_type=jnp.float32) + bfc2_ref[...]


# ---------------------------------------------------------------------------
# pallas_call wrappers (batch-tiled 1-D grid, "parallel")
# ---------------------------------------------------------------------------
def _conv1_call(lhs, w1s, b1l, n_valid, tb):
    rows_total = lhs.shape[1]
    nt = rows_total // (_PR * tb)
    return pl.pallas_call(
        functools.partial(_conv1_kernel, tb=tb, n_valid=n_valid),
        grid=(nt,),
        in_specs=[
            pl.BlockSpec((2, _PR * tb, _K1), lambda i: (0, i, 0)),
            pl.BlockSpec((_K1, _L1), lambda i: (0, 0)),
            pl.BlockSpec((1, _L1), lambda i: (0, 0)),
        ],
        out_specs=(
            pl.BlockSpec((2, _PR * tb, _L1), lambda i: (0, i, 0)),
            pl.BlockSpec((1, 2, _L1), lambda i: (i, 0, 0)),
        ),
        out_shape=(
            jax.ShapeDtypeStruct((2, rows_total, _L1), jnp.bfloat16),
            jax.ShapeDtypeStruct((nt, 2, _L1), jnp.float32),
        ),
        compiler_params=pltpu.CompilerParams(dimension_semantics=("parallel",)),
    )(lhs, w1s, b1l)


def _stage2_call(y1, sc1, sh1, w2s, b2l, n_valid, tb):
    rows_total = y1.shape[1]
    nt = rows_total // (_PR * tb)
    return pl.pallas_call(
        functools.partial(_stage2_kernel, tb=tb, n_valid=n_valid),
        grid=(nt,),
        in_specs=[
            pl.BlockSpec((2, _PR * tb, _L1), lambda i: (0, i, 0)),
            pl.BlockSpec((1, _L1), lambda i: (0, 0)),
            pl.BlockSpec((1, _L1), lambda i: (0, 0)),
            pl.BlockSpec((3 * _K2, _L2), lambda i: (0, 0)),
            pl.BlockSpec((1, _L2), lambda i: (0, 0)),
        ],
        out_specs=(
            pl.BlockSpec((_PR * tb, _L2), lambda i: (i, 0)),
            pl.BlockSpec((1, 2, _L2), lambda i: (i, 0, 0)),
        ),
        out_shape=(
            jax.ShapeDtypeStruct((rows_total, _L2), jnp.bfloat16),
            jax.ShapeDtypeStruct((nt, 2, _L2), jnp.float32),
        ),
        scratch_shapes=[pltpu.VMEM((16 * tb, _K2), jnp.bfloat16)],
        compiler_params=pltpu.CompilerParams(dimension_semantics=("parallel",)),
    )(y1, sc1, sh1, w2s, b2l)


def _head_call(y2, sc2, sh2, wfc1, bfc1, wfc2, bfc2, tb):
    rows_total = y2.shape[0]
    nt = rows_total // (_PR * tb)
    n_pad = nt * tb
    return pl.pallas_call(
        functools.partial(_head_kernel, tb=tb),
        grid=(nt,),
        in_specs=[
            pl.BlockSpec((_PR * tb, _L2), lambda i: (i, 0)),
            pl.BlockSpec((1, _L2), lambda i: (0, 0)),
            pl.BlockSpec((1, _L2), lambda i: (0, 0)),
            pl.BlockSpec((_PR * _L2, _F1), lambda i: (0, 0)),   # resident fc1
            pl.BlockSpec((1, _F1), lambda i: (0, 0)),
            pl.BlockSpec((_F1, _NCLS), lambda i: (0, 0)),
            pl.BlockSpec((1, _NCLS), lambda i: (0, 0)),
        ],
        out_specs=pl.BlockSpec((tb, _NCLS), lambda i: (i, 0)),
        out_shape=jax.ShapeDtypeStruct((n_pad, _NCLS), jnp.float32),
        compiler_params=pltpu.CompilerParams(dimension_semantics=("parallel",)),
    )(y2, sc2, sh2, wfc1, bfc1, wfc2, bfc2)


# ---------------------------------------------------------------------------
# One-time weight preparation (structured conv weights, folded layout perms)
# ---------------------------------------------------------------------------
def _conv1_structured_weight(w):
    """(16,1,5,5) -> (256, 512). rows = di*28 + w_in (pad to 256);
    cols = half*256 + w2*16 + co with w_out = 2*w2 + half (pad lanes zero)."""
    kh, kw, pad = 5, 5, 2
    win = jnp.arange(_W)[:, None]
    wout = jnp.arange(_W)[None, :]
    dj = win - wout + pad
    mask = ((dj >= 0) & (dj < kw)).astype(jnp.float32)
    djc = jnp.clip(dj, 0, kw - 1)
    wt = jnp.transpose(w[:, 0, :, :], (1, 2, 0))          # (kh, kw, co)
    m = wt[:, djc, :] * mask[None, :, :, None]            # (kh, w_in, w_out, co)
    m = m.reshape(kh, _W, _PR, 2, _C1)                    # w_out = 2*w2 + half
    m = jnp.transpose(m, (0, 1, 3, 2, 4))                 # (kh, w_in, half, w2, co)
    m = m.reshape(kh * _W, 2, _PR * _C1)                  # (140, 2, 224)
    m = jnp.pad(m, ((0, _K1 - kh * _W), (0, 0), (0, _K2 - _PR * _C1)))
    return m.reshape(_K1, _L1)


def _conv2_structured_weight(w):
    """(32,16,3,3) -> (768, 512). rows = di*256 + w_in*16 + ci (pads zero);
    cols = w_out*32 + co (pad lanes zero)."""
    cout, cin, kh, kw = w.shape
    pad = 1
    win = jnp.arange(_PR)[:, None]
    wout = jnp.arange(_PR)[None, :]
    dj = win - wout + pad
    mask = ((dj >= 0) & (dj < kw)).astype(jnp.float32)
    djc = jnp.clip(dj, 0, kw - 1)
    wt = jnp.transpose(w, (2, 3, 1, 0))                   # (kh, kw, ci, co)
    m = wt[:, djc, :, :] * mask[None, :, :, None, None]   # (kh, w_in, w_out, ci, co)
    m = jnp.transpose(m, (0, 1, 3, 2, 4))                 # (kh, w_in, ci, w_out, co)
    m = m.reshape(kh, _PR * cin, _PR * cout)              # (3, 224, 448)
    m = jnp.pad(m, ((0, 0), (0, _K2 - _PR * cin), (0, _L2 - _PR * cout)))
    return m.reshape(kh * _K2, _L2)


def _fc1_structured_weight(fc1_w):
    """(120, 6272) -> (7168, 128); row r*512 + w2g*32 + co holds the PyTorch
    NCHW-flatten row co*196 + r*14 + w2 of fc1_w.T (pad rows/cols zero)."""
    r_ = jnp.arange(_PR)
    w_ = jnp.arange(_PR)
    c_ = jnp.arange(_C2)
    src = (c_[None, None, :] * (_PR * _PR) + r_[:, None, None] * _PR
           + w_[None, :, None]).reshape(-1)               # (6272,)
    g = fc1_w.T[src, :]                                   # (6272, 120)
    g = g.reshape(_PR, _PR, _C2, 120)
    g = jnp.pad(g, ((0, 0), (0, 2), (0, 0), (0, _F1 - 120)))   # (14,16,32,128)
    return g.reshape(_PR * _L2, _F1)


def prepare_params(p):
    """Fold layout permutations into the weights once; matmul weights in bf16."""
    w1s = _conv1_structured_weight(p["conv1_w"]).astype(jnp.bfloat16)
    b1half = jnp.pad(jnp.tile(p["conv1_b"], _PR), (0, _K2 - _PR * _C1))
    b1l = jnp.concatenate([b1half, b1half]).reshape(1, _L1).astype(jnp.float32)
    w2s = _conv2_structured_weight(p["conv2_w"]).astype(jnp.bfloat16)
    b2l = jnp.pad(jnp.tile(p["conv2_b"], _PR),
                  (0, _L2 - _PR * _C2)).reshape(1, _L2).astype(jnp.float32)
    wfc1 = _fc1_structured_weight(p["fc1_w"]).astype(jnp.bfloat16)
    bfc1 = jnp.pad(p["fc1_b"], (0, _F1 - 120)).reshape(1, _F1).astype(jnp.float32)
    wfc2 = jnp.pad(p["fc2_w"].T, ((0, _F1 - 120), (0, 0))).astype(jnp.float32)
    bfc2 = p["fc2_b"].reshape(1, _NCLS).astype(jnp.float32)
    return dict(w1s=w1s, b1l=b1l, bn1_g=p["bn1_g"], bn1_b=p["bn1_b"],
                w2s=w2s, b2l=b2l, bn2_g=p["bn2_g"], bn2_b=p["bn2_b"],
                wfc1=wfc1, bfc1=bfc1, wfc2=wfc2, bfc2=bfc2)


# ---------------------------------------------------------------------------
# Forward-pass glue (small O(input) preprocessing + O(C) BN finalize)
# ---------------------------------------------------------------------------
def _preprocess_input(x_nchw, tb):
    """NCHW (N,1,28,28) -> conv1 LHS (2, nt*14*tb, 256) bf16 with the 5 row
    taps folded into K; block-local row = r*tb + n_local."""
    n = x_nchw.shape[0]
    nt = -(-n // tb)
    n_pad = nt * tb
    xs = x_nchw[:, 0, :, :].astype(jnp.float32)
    xp = jnp.pad(xs, ((0, n_pad - n), (2, 2), (0, 0)))            # (Npad,32,28)
    p_ = jnp.arange(2)
    r_ = jnp.arange(_PR)
    d_ = jnp.arange(5)
    rows = 2 * r_[None, :, None] + p_[:, None, None] + d_[None, None, :]
    g = xp[:, rows, :]                                            # (Npad,2,14,5,28)
    g = jnp.transpose(g, (1, 2, 0, 3, 4)).reshape(2, _PR, n_pad, 5 * _W)
    g = jnp.pad(g, ((0, 0), (0, 0), (0, 0), (0, _K1 - 5 * _W)))   # (2,14,Npad,256)
    g = g.reshape(2, _PR, nt, tb, _K1)
    g = jnp.transpose(g, (0, 2, 1, 3, 4)).reshape(2, nt * _PR * tb, _K1)
    return g.astype(jnp.bfloat16)


def _lane_vec(v_c, g_real, g_total, n_rep):
    gmask = (jnp.arange(g_total) < g_real).astype(v_c.dtype)
    flat = (gmask[:, None] * v_c[None, :]).reshape(-1)
    return jnp.tile(flat, n_rep).reshape(1, -1)


def _finalize_bn(s_tiles, count, gamma, beta, g_real, g_total, n_rep, eps=1e-5):
    """Combine per-tile per-lane partials into per-lane BN scale/shift
    (training-mode biased statistics, matching the PyTorch forward)."""
    n_ch = gamma.shape[0]
    s = jnp.sum(s_tiles.astype(jnp.float32), axis=0)     # (2, lanes)
    per = jnp.sum(s.reshape(2, -1, n_ch), axis=1)        # (2, n_ch); pad lanes are 0
    mean = per[0] / count
    var = jnp.maximum(per[1] / count - mean * mean, 0.0)
    scale_c = gamma * lax.rsqrt(var + eps)
    shift_c = beta - mean * scale_c
    return (_lane_vec(scale_c, g_real, g_total, n_rep),
            _lane_vec(shift_c, g_real, g_total, n_rep))


def method_cnn_mnist_forward(kparams, x_nchw):
    n = int(x_nchw.shape[0])
    tb = _pick_tile_b(n)
    lhs = _preprocess_input(x_nchw, tb)

    # conv1 + bias (+ BN1 partial sums)
    y1, s1 = _conv1_call(lhs, kparams["w1s"], kparams["b1l"], n, tb)
    sc1, sh1 = _finalize_bn(s1, float(n * _H * _W),
                            kparams["bn1_g"], kparams["bn1_b"],
                            g_real=_PR, g_total=16, n_rep=2)

    # BN1 + ReLU + maxpool(2,2) + conv2 + bias (+ BN2 partial sums)
    y2, s2 = _stage2_call(y1, sc1, sh1, kparams["w2s"], kparams["b2l"], n, tb)
    sc2, sh2 = _finalize_bn(s2, float(n * _PR * _PR),
                            kparams["bn2_g"], kparams["bn2_b"],
                            g_real=_PR, g_total=16, n_rep=1)

    # BN2 + ReLU + flatten + (dropout=identity) + fc1 + ReLU + fc2
    logits = _head_call(y2, sc2, sh2, kparams["wfc1"], kparams["bfc1"],
                        kparams["wfc2"], kparams["bfc2"], tb)
    return logits[:n]


# ---------------------------------------------------------------------------
# Parameter init (PyTorch layouts)
# ---------------------------------------------------------------------------
def init_params(key):
    ks = jax.random.split(key, 6)
    p = {}
    p["conv1_w"] = 0.1 * jax.random.normal(ks[0], (16, 1, 5, 5), jnp.float32)
    p["conv1_b"] = 0.01 * jax.random.normal(ks[1], (16,), jnp.float32)
    p["bn1_g"] = jnp.ones((16,), jnp.float32)
    p["bn1_b"] = jnp.zeros((16,), jnp.float32)
    p["conv2_w"] = 0.1 * jax.random.normal(ks[2], (32, 16, 3, 3), jnp.float32)
    p["conv2_b"] = 0.01 * jax.random.normal(ks[3], (32,), jnp.float32)
    p["bn2_g"] = jnp.ones((32,), jnp.float32)
    p["bn2_b"] = jnp.zeros((32,), jnp.float32)
    p["fc1_w"] = 0.02 * jax.random.normal(ks[4], (120, 6272), jnp.float32)
    p["fc1_b"] = jnp.zeros((120,), jnp.float32)
    p["fc2_w"] = 0.05 * jax.random.normal(ks[5], (10, 120), jnp.float32)
    p["fc2_b"] = jnp.zeros((10,), jnp.float32)
    return p


if __name__ == "__main__":
    key = jax.random.PRNGKey(0)
    pkey, xkey = jax.random.split(key)
    torch_params = init_params(pkey)
    kparams = prepare_params(torch_params)

    x = jax.random.normal(xkey, (2, 1, 28, 28), jnp.float32)  # MNIST-shaped input

    fwd = jax.jit(method_cnn_mnist_forward)
    logits = fwd(kparams, x)
    jax.block_until_ready(logits)
    assert logits.shape == (2, 10), logits.shape
    assert bool(jnp.all(jnp.isfinite(logits)))
    print("KERNEL_OK")
</pallas_src>

<mosaic_0001>
module attributes {stable_mosaic.version = 11 : i64} {
  func.func @_conv1_kernel(%arg0: i32, %arg1: memref<2x112x256xbf16, #tpu.memory_space<vmem>>, %arg2: memref<256x512xbf16, #tpu.memory_space<vmem>>, %arg3: memref<1x512xf32, #tpu.memory_space<vmem>>, %arg4: memref<2x112x512xbf16, #tpu.memory_space<vmem>>, %arg5: memref<1x2x512xf32, #tpu.memory_space<vmem>>) attributes {dimension_semantics = [#tpu.dimension_semantics<parallel>], iteration_bounds = array<i64: 1>, scalar_prefetch = 0 : i64, scratch_operands = 0 : i64, tpu.core_type = #tpu.core_type<tc>, window_params = [{transform_indices = @transform_0, window_bounds = array<i64: 2, 112, 256>}, {pipeline_mode = #tpu.pipeline_mode<synchronous>, transform_indices = @transform_1, window_bounds = array<i64: 256, 512>}, {pipeline_mode = #tpu.pipeline_mode<synchronous>, transform_indices = @transform_2, window_bounds = array<i64: 1, 512>}, {transform_indices = @transform_3, window_bounds = array<i64: 2, 112, 512>}, {transform_indices = @transform_4, window_bounds = array<i64: 1, 2, 512>}]} {
    %0 = tpu.iota {dimensions = array<i32: 0>} : vector<112x1xi32>
    %c7_i32 = arith.constant 7 : i32
    %1 = vector.broadcast %c7_i32 : i32 to vector<112x1xi32>
    %2 = arith.andi %0, %1 : vector<112x1xi32>
    %c8_i32 = arith.constant 8 : i32
    %3 = arith.muli %arg0, %c8_i32 : i32
    %4 = vector.broadcast %3 : i32 to vector<112x1xi32>
    %5 = arith.addi %4, %2 : vector<112x1xi32>
    %c2_i32 = arith.constant 2 : i32
    %6 = vector.broadcast %c2_i32 : i32 to vector<112x1xi32>
    %7 = arith.cmpi slt, %5, %6 : vector<112x1xi32>
    %8 = arith.extui %7 : vector<112x1xi1> to vector<112x1xi32>
    %9 = arith.sitofp %8 : vector<112x1xi32> to vector<112x1xf32>
    %c0 = arith.constant 0 : index
    %c0_0 = arith.constant 0 : index
    %10 = vector.load %arg2[%c0, %c0_0] : memref<256x512xbf16, #tpu.memory_space<vmem>>, vector<256x512xbf16>
    %c0_1 = arith.constant 0 : index
    %c0_2 = arith.constant 0 : index
    %11 = vector.load %arg3[%c0_1, %c0_2] : memref<1x512xf32, #tpu.memory_space<vmem>>, vector<1x512xf32>
    %cst = arith.constant 0.000000e+00 : f32
    %12 = vector.broadcast %cst : f32 to vector<1x512xf32>
    %cst_3 = arith.constant 0.000000e+00 : f32
    %13 = vector.broadcast %cst_3 : f32 to vector<1x512xf32>
    %c0_4 = arith.constant 0 : index
    %c0_5 = arith.constant 0 : index
    %c0_6 = arith.constant 0 : index
    %14 = vector.load %arg1[%c0_4, %c0_5, %c0_6] : memref<2x112x256xbf16, #tpu.memory_space<vmem>>, vector<1x112x256xbf16>
    %15 = vector.shape_cast %14 : vector<1x112x256xbf16> to vector<112x256xbf16>
    %cst_7 = arith.constant dense<0.000000e+00> : vector<112x512xf32>
    %16 = tpu.matmul %15, %10, %cst_7 {dimension_numbers = #tpu.dot_dimension_numbers<[1], [0], [0], [1], [0, 0, 1, 1], [], []>} : vector<112x256xbf16>, vector<256x512xbf16>, vector<112x512xf32> -> vector<112x512xf32>
    %17 = vector.broadcast %11 : vector<1x512xf32> to vector<112x512xf32>
    %18 = arith.addf %16, %17 : vector<112x512xf32>
    %19 = arith.truncf %18 : vector<112x512xf32> to vector<112x512xbf16>
    %c0_8 = arith.constant 0 : index
    %c0_9 = arith.constant 0 : index
    %c0_10 = arith.constant 0 : index
    %20 = vector.load %arg4[%c0_8, %c0_9, %c0_10] : memref<2x112x512xbf16, #tpu.memory_space<vmem>>, vector<1x112x512xbf16>
    %21 = vector.shape_cast %20 : vector<1x112x512xbf16> to vector<112x512xbf16>
    %22 = vector.shape_cast %19 : vector<112x512xbf16> to vector<1x112x512xbf16>
    tpu.vector_store %arg4[%c0_8, %c0_9, %c0_10], %22 {strides = array<i32>} : memref<2x112x512xbf16, #tpu.memory_space<vmem>>, vector<1x112x512xbf16>,
    %23 = vector.broadcast %9 : vector<112x1xf32> to vector<112x512xf32>
    %24 = arith.mulf %18, %23 : vector<112x512xf32>
    %cst_11 = arith.constant dense<0.000000e+00> : vector<512xf32>
    %25 = vector.multi_reduction <add>, %24, %cst_11 [0] : vector<112x512xf32> to vector<512xf32>
    %26 = vector.shape_cast %25 : vector<512xf32> to vector<1x512xf32>
    %27 = arith.addf %12, %26 : vector<1x512xf32>
    %28 = arith.mulf %18, %24 : vector<112x512xf32>
    %cst_12 = arith.constant dense<0.000000e+00> : vector<512xf32>
    %29 = vector.multi_reduction <add>, %28, %cst_12 [0] : vector<112x512xf32> to vector<512xf32>
    %30 = vector.shape_cast %29 : vector<512xf32> to vector<1x512xf32>
    %31 = arith.addf %13, %30 : vector<1x512xf32>
    %c1 = arith.constant 1 : index
    %c0_13 = arith.constant 0 : index
    %c0_14 = arith.constant 0 : index
    %32 = vector.load %arg1[%c1, %c0_13, %c0_14] : memref<2x112x256xbf16, #tpu.memory_space<vmem>>, vector<1x112x256xbf16>
    %33 = vector.shape_cast %32 : vector<1x112x256xbf16> to vector<112x256xbf16>
    %cst_15 = arith.constant dense<0.000000e+00> : vector<112x512xf32>
    %34 = tpu.matmul %33, %10, %cst_15 {dimension_numbers = #tpu.dot_dimension_numbers<[1], [0], [0], [1], [0, 0, 1, 1], [], []>} : vector<112x256xbf16>, vector<256x512xbf16>, vector<112x512xf32> -> vector<112x512xf32>
    %35 = vector.broadcast %11 : vector<1x512xf32> to vector<112x512xf32>
    %36 = arith.addf %34, %35 : vector<112x512xf32>
    %37 = arith.truncf %36 : vector<112x512xf32> to vector<112x512xbf16>
    %c1_16 = arith.constant 1 : index
    %c0_17 = arith.constant 0 : index
    %c0_18 = arith.constant 0 : index
    %38 = vector.load %arg4[%c1_16, %c0_17, %c0_18] : memref<2x112x512xbf16, #tpu.memory_space<vmem>>, vector<1x112x512xbf16>
    %39 = vector.shape_cast %38 : vector<1x112x512xbf16> to vector<112x512xbf16>
    %40 = vector.shape_cast %37 : vector<112x512xbf16> to vector<1x112x512xbf16>
    tpu.vector_store %arg4[%c1_16, %c0_17, %c0_18], %40 {strides = array<i32>} : memref<2x112x512xbf16, #tpu.memory_space<vmem>>, vector<1x112x512xbf16>,
    %41 = vector.broadcast %9 : vector<112x1xf32> to vector<112x512xf32>
    %42 = arith.mulf %36, %41 : vector<112x512xf32>
    %cst_19 = arith.constant dense<0.000000e+00> : vector<512xf32>
    %43 = vector.multi_reduction <add>, %42, %cst_19 [0] : vector<112x512xf32> to vector<512xf32>
    %44 = vector.shape_cast %43 : vector<512xf32> to vector<1x512xf32>
    %45 = arith.addf %27, %44 : vector<1x512xf32>
    %46 = arith.mulf %36, %42 : vector<112x512xf32>
    %cst_20 = arith.constant dense<0.000000e+00> : vector<512xf32>
    %47 = vector.multi_reduction <add>, %46, %cst_20 [0] : vector<112x512xf32> to vector<512xf32>
    %48 = vector.shape_cast %47 : vector<512xf32> to vector<1x512xf32>
    %49 = arith.addf %31, %48 : vector<1x512xf32>
    %c0_21 = arith.constant 0 : index
    %c0_22 = arith.constant 0 : index
    %c0_23 = arith.constant 0 : index
    %50 = vector.load %arg5[%c0_21, %c0_22, %c0_23] : memref<1x2x512xf32, #tpu.memory_space<vmem>>, vector<1x1x512xf32>
    %51 = vector.shape_cast %50 : vector<1x1x512xf32> to vector<1x512xf32>
    %52 = vector.shape_cast %45 : vector<1x512xf32> to vector<1x1x512xf32>
    tpu.vector_store %arg5[%c0_21, %c0_22, %c0_23], %52 {strides = array<i32>} : memref<1x2x512xf32, #tpu.memory_space<vmem>>, vector<1x1x512xf32>,
    %c0_24 = arith.constant 0 : index
    %c1_25 = arith.constant 1 : index
    %c0_26 = arith.constant 0 : index
    %53 = vector.load %arg5[%c0_24, %c1_25, %c0_26] : memref<1x2x512xf32, #tpu.memory_space<vmem>>, vector<1x1x512xf32>
    %54 = vector.shape_cast %53 : vector<1x1x512xf32> to vector<1x512xf32>
    %55 = vector.shape_cast %49 : vector<1x512xf32> to vector<1x1x512xf32>
    tpu.vector_store %arg5[%c0_24, %c1_25, %c0_26], %55 {strides = array<i32>} : memref<1x2x512xf32, #tpu.memory_space<vmem>>, vector<1x1x512xf32>,
    return
  }
  func.func @transform_0(%arg0: i32) -> (i32, i32, i32) {
    %c0_i32 = arith.constant 0 : i32
    %c0_i32_0 = arith.constant 0 : i32
    %c0_i32_1 = arith.constant 0 : i32
    return %c0_i32, %arg0, %c0_i32_0 : i32, i32, i32
  }
  func.func @transform_1(%arg0: i32) -> (i32, i32) {
    %c0_i32 = arith.constant 0 : i32
    %c0_i32_0 = arith.constant 0 : i32
    %c0_i32_1 = arith.constant 0 : i32
    return %c0_i32, %c0_i32_0 : i32, i32
  }
  func.func @transform_2(%arg0: i32) -> (i32, i32) {
    %c0_i32 = arith.constant 0 : i32
    %c0_i32_0 = arith.constant 0 : i32
    %c0_i32_1 = arith.constant 0 : i32
    return %c0_i32, %c0_i32_0 : i32, i32
  }
  func.func @transform_3(%arg0: i32) -> (i32, i32, i32) {
    %c0_i32 = arith.constant 0 : i32
    %c0_i32_0 = arith.constant 0 : i32
    %c0_i32_1 = arith.constant 0 : i32
    return %c0_i32, %arg0, %c0_i32_0 : i32, i32, i32
  }
  func.func @transform_4(%arg0: i32) -> (i32, i32, i32) {
    %c0_i32 = arith.constant 0 : i32
    %c0_i32_0 = arith.constant 0 : i32
    %c0_i32_1 = arith.constant 0 : i32
    return %arg0, %c0_i32, %c0_i32_0 : i32, i32, i32
  }
}

module attributes {stable_mosaic.version = 11 : i64} {
  func.func @_stage2_kernel(%arg0: i32, %arg1: memref<2x112x512xbf16, #tpu.memory_space<vmem>>, %arg2: memref<1x512xf32, #tpu.memory_space<vmem>>, %arg3: memref<1x512xf32, #tpu.memory_space<vmem>>, %arg4: memref<768x512xbf16, #tpu.memory_space<vmem>>, %arg5: memref<1x512xf32, #tpu.memory_space<vmem>>, %arg6: memref<112x512xbf16, #tpu.memory_space<vmem>>, %arg7: memref<1x2x512xf32, #tpu.memory_space<vmem>>, %arg8: memref<128x256xbf16, #tpu.memory_space<vmem>>) attributes {dimension_semantics = [#tpu.dimension_semantics<parallel>], iteration_bounds = array<i64: 1>, scalar_prefetch = 0 : i64, scratch_operands = 1 : i64, tpu.core_type = #tpu.core_type<tc>, window_params = [{transform_indices = @transform_0, window_bounds = array<i64: 2, 112, 512>}, {pipeline_mode = #tpu.pipeline_mode<synchronous>, transform_indices = @transform_1, window_bounds = array<i64: 1, 512>}, {pipeline_mode = #tpu.pipeline_mode<synchronous>, transform_indices = @transform_2, window_bounds = array<i64: 1, 512>}, {pipeline_mode = #tpu.pipeline_mode<synchronous>, transform_indices = @transform_3, window_bounds = array<i64: 768, 512>}, {pipeline_mode = #tpu.pipeline_mode<synchronous>, transform_indices = @transform_4, window_bounds = array<i64: 1, 512>}, {transform_indices = @transform_5, window_bounds = array<i64: 112, 512>}, {transform_indices = @transform_6, window_bounds = array<i64: 1, 2, 512>}]} {
    %c0 = arith.constant 0 : index
    %c0_0 = arith.constant 0 : index
    %0 = vector.load %arg2[%c0, %c0_0] : memref<1x512xf32, #tpu.memory_space<vmem>>, vector<1x512xf32>
    %c0_1 = arith.constant 0 : index
    %c0_2 = arith.constant 0 : index
    %1 = vector.load %arg3[%c0_1, %c0_2] : memref<1x512xf32, #tpu.memory_space<vmem>>, vector<1x512xf32>
    %c0_3 = arith.constant 0 : index
    %c0_4 = arith.constant 0 : index
    %c0_5 = arith.constant 0 : index
    %2 = vector.load %arg1[%c0_3, %c0_4, %c0_5] : memref<2x112x512xbf16, #tpu.memory_space<vmem>>, vector<1x112x512xbf16>
    %3 = vector.shape_cast %2 : vector<1x112x512xbf16> to vector<112x512xbf16>
    %4 = arith.extf %3 : vector<112x512xbf16> to vector<112x512xf32>
    %5 = vector.broadcast %0 : vector<1x512xf32> to vector<112x512xf32>
    %6 = arith.mulf %4, %5 : vector<112x512xf32>
    %7 = vector.broadcast %1 : vector<1x512xf32> to vector<112x512xf32>
    %8 = arith.addf %6, %7 : vector<112x512xf32>
    %cst = arith.constant 0.000000e+00 : f32
    %9 = vector.broadcast %cst : f32 to vector<112x512xf32>
    %10 = arith.maximumf %8, %9 : vector<112x512xf32>
    %c1 = arith.constant 1 : index
    %c0_6 = arith.constant 0 : index
    %c0_7 = arith.constant 0 : index
    %11 = vector.load %arg1[%c1, %c0_6, %c0_7] : memref<2x112x512xbf16, #tpu.memory_space<vmem>>, vector<1x112x512xbf16>
    %12 = vector.shape_cast %11 : vector<1x112x512xbf16> to vector<112x512xbf16>
    %13 = arith.extf %12 : vector<112x512xbf16> to vector<112x512xf32>
    %14 = vector.broadcast %0 : vector<1x512xf32> to vector<112x512xf32>
    %15 = arith.mulf %13, %14 : vector<112x512xf32>
    %16 = vector.broadcast %1 : vector<1x512xf32> to vector<112x512xf32>
    %17 = arith.addf %15, %16 : vector<112x512xf32>
    %cst_8 = arith.constant 0.000000e+00 : f32
    %18 = vector.broadcast %cst_8 : f32 to vector<112x512xf32>
    %19 = arith.maximumf %17, %18 : vector<112x512xf32>
    %20 = arith.maximumf %10, %19 : vector<112x512xf32>
    %21 = vector.extract_strided_slice %20 {offsets = [0, 0], sizes = [112, 256], strides = [1, 1]} : vector<112x512xf32> to vector<112x256xf32>
    %22 = vector.extract_strided_slice %20 {offsets = [0, 256], sizes = [112, 256], strides = [1, 1]} : vector<112x512xf32> to vector<112x256xf32>
    %23 = arith.maximumf %21, %22 : vector<112x256xf32>
    %cst_9 = arith.constant 0.000000e+00 : bf16
    %24 = vector.broadcast %cst_9 : bf16 to vector<8x256xbf16>
    %c0_10 = arith.constant 0 : index
    %c0_11 = arith.constant 0 : index
    %25 = vector.load %arg8[%c0_10, %c0_11] : memref<128x256xbf16, #tpu.memory_space<vmem>>, vector<8x256xbf16>
    tpu.vector_store %arg8[%c0_10, %c0_11], %24 {strides = array<i32>} : memref<128x256xbf16, #tpu.memory_space<vmem>>, vector<8x256xbf16>,
    %c120 = arith.constant 120 : index
    %c0_12 = arith.constant 0 : index
    %26 = vector.load %arg8[%c120, %c0_12] : memref<128x256xbf16, #tpu.memory_space<vmem>>, vector<8x256xbf16>
    tpu.vector_store %arg8[%c120, %c0_12], %24 {strides = array<i32>} : memref<128x256xbf16, #tpu.memory_space<vmem>>, vector<8x256xbf16>,
    %27 = arith.truncf %23 : vector<112x256xf32> to vector<112x256xbf16>
    %c8 = arith.constant 8 : index
    %c0_13 = arith.constant 0 : index
    %28 = vector.load %arg8[%c8, %c0_13] : memref<128x256xbf16, #tpu.memory_space<vmem>>, vector<112x256xbf16>
    tpu.vector_store %arg8[%c8, %c0_13], %27 {strides = array<i32>} : memref<128x256xbf16, #tpu.memory_space<vmem>>, vector<112x256xbf16>,
    %cst_14 = arith.constant 0.000000e+00 : f32
    %29 = vector.broadcast %cst_14 : f32 to vector<112x512xf32>
    %c0_15 = arith.constant 0 : index
    %c0_16 = arith.constant 0 : index
    %30 = vector.load %arg8[%c0_15, %c0_16] : memref<128x256xbf16, #tpu.memory_space<vmem>>, vector<112x256xbf16>
    %c0_17 = arith.constant 0 : index
    %c0_18 = arith.constant 0 : index
    %31 = vector.load %arg4[%c0_17, %c0_18] : memref<768x512xbf16, #tpu.memory_space<vmem>>, vector<256x512xbf16>
    %cst_19 = arith.constant dense<0.000000e+00> : vector<112x512xf32>
    %32 = tpu.matmul %30, %31, %cst_19 {dimension_numbers = #tpu.dot_dimension_numbers<[1], [0], [0], [1], [0, 0, 1, 1], [], []>} : vector<112x256xbf16>, vector<256x512xbf16>, vector<112x512xf32> -> vector<112x512xf32>
    %33 = arith.addf %29, %32 : vector<112x512xf32>
    %c8_20 = arith.constant 8 : index
    %c0_21 = arith.constant 0 : index
    %34 = vector.load %arg8[%c8_20, %c0_21] : memref<128x256xbf16, #tpu.memory_space<vmem>>, vector<112x256xbf16>
    %c256 = arith.constant 256 : index
    %c0_22 = arith.constant 0 : index
    %35 = vector.load %arg4[%c256, %c0_22] : memref<768x512xbf16, #tpu.memory_space<vmem>>, vector<256x512xbf16>
    %cst_23 = arith.constant dense<0.000000e+00> : vector<112x512xf32>
    %36 = tpu.matmul %34, %35, %cst_23 {dimension_numbers = #tpu.dot_dimension_numbers<[1], [0], [0], [1], [0, 0, 1, 1], [], []>} : vector<112x256xbf16>, vector<256x512xbf16>, vector<112x512xf32> -> vector<112x512xf32>
    %37 = arith.addf %33, %36 : vector<112x512xf32>
    %c16 = arith.constant 16 : index
    %c0_24 = arith.constant 0 : index
    %38 = vector.load %arg8[%c16, %c0_24] : memref<128x256xbf16, #tpu.memory_space<vmem>>, vector<112x256xbf16>
    %c512 = arith.constant 512 : index
    %c0_25 = arith.constant 0 : index
    %39 = vector.load %arg4[%c512, %c0_25] : memref<768x512xbf16, #tpu.memory_space<vmem>>, vector<256x512xbf16>
    %cst_26 = arith.constant dense<0.000000e+00> : vector<112x512xf32>
    %40 = tpu.matmul %38, %39, %cst_26 {dimension_numbers = #tpu.dot_dimension_numbers<[1], [0], [0], [1], [0, 0, 1, 1], [], []>} : vector<112x256xbf16>, vector<256x512xbf16>, vector<112x512xf32> -> vector<112x512xf32>
    %41 = arith.addf %37, %40 : vector<112x512xf32>
    %c0_27 = arith.constant 0 : index
    %c0_28 = arith.constant 0 : index
    %42 = vector.load %arg5[%c0_27, %c0_28] : memref<1x512xf32, #tpu.memory_space<vmem>>, vector<1x512xf32>
    %43 = vector.broadcast %42 : vector<1x512xf32> to vector<112x512xf32>
    %44 = arith.addf %41, %43 : vector<112x512xf32>
    %45 = tpu.iota {dimensions = array<i32: 0>} : vector<112x1xi32>
    %c7_i32 = arith.constant 7 : i32
    %46 = vector.broadcast %c7_i32 : i32 to vector<112x1xi32>
    %47 = arith.andi %45, %46 : vector<112x1xi32>
    %c8_i32 = arith.constant 8 : i32
    %48 = arith.muli %arg0, %c8_i32 : i32
    %49 = vector.broadcast %48 : i32 to vector<112x1xi32>
    %50 = arith.addi %49, %47 : vector<112x1xi32>
    %c2_i32 = arith.constant 2 : i32
    %51 = vector.broadcast %c2_i32 : i32 to vector<112x1xi32>
    %52 = arith.cmpi slt, %50, %51 : vector<112x1xi32>
    %53 = arith.extui %52 : vector<112x1xi1> to vector<112x1xi32>
    %54 = arith.sitofp %53 : vector<112x1xi32> to vector<112x1xf32>
    %55 = vector.broadcast %54 : vector<112x1xf32> to vector<112x512xf32>
    %56 = arith.mulf %44, %55 : vector<112x512xf32>
    %cst_29 = arith.constant dense<0.000000e+00> : vector<512xf32>
    %57 = vector.multi_reduction <add>, %56, %cst_29 [0] : vector<112x512xf32> to vector<512xf32>
    %58 = vector.shape_cast %57 : vector<512xf32> to vector<1x512xf32>
    %c0_30 = arith.constant 0 : index
    %c0_31 = arith.constant 0 : index
    %c0_32 = arith.constant 0 : index
    %59 = vector.load %arg7[%c0_30, %c0_31, %c0_32] : memref<1x2x512xf32, #tpu.memory_space<vmem>>, vector<1x1x512xf32>
    %60 = vector.shape_cast %59 : vector<1x1x512xf32> to vector<1x512xf32>
    %61 = vector.shape_cast %58 : vector<1x512xf32> to vector<1x1x512xf32>
    tpu.vector_store %arg7[%c0_30, %c0_31, %c0_32], %61 {strides = array<i32>} : memref<1x2x512xf32, #tpu.memory_space<vmem>>, vector<1x1x512xf32>,
    %62 = arith.mulf %44, %56 : vector<112x512xf32>
    %cst_33 = arith.constant dense<0.000000e+00> : vector<512xf32>
    %63 = vector.multi_reduction <add>, %62, %cst_33 [0] : vector<112x512xf32> to vector<512xf32>
    %64 = vector.shape_cast %63 : vector<512xf32> to vector<1x512xf32>
    %c0_34 = arith.constant 0 : index
    %c1_35 = arith.constant 1 : index
    %c0_36 = arith.constant 0 : index
    %65 = vector.load %arg7[%c0_34, %c1_35, %c0_36] : memref<1x2x512xf32, #tpu.memory_space<vmem>>, vector<1x1x512xf32>
    %66 = vector.shape_cast %65 : vector<1x1x512xf32> to vector<1x512xf32>
    %67 = vector.shape_cast %64 : vector<1x512xf32> to vector<1x1x512xf32>
    tpu.vector_store %arg7[%c0_34, %c1_35, %c0_36], %67 {strides = array<i32>} : memref<1x2x512xf32, #tpu.memory_space<vmem>>, vector<1x1x512xf32>,
    %68 = arith.truncf %44 : vector<112x512xf32> to vector<112x512xbf16>
    %c0_37 = arith.constant 0 : index
    %c0_38 = arith.constant 0 : index
    %69 = vector.load %arg6[%c0_37, %c0_38] : memref<112x512xbf16, #tpu.memory_space<vmem>>, vector<112x512xbf16>
    tpu.vector_store %arg6[%c0_37, %c0_38], %68 {strides = array<i32>} : memref<112x512xbf16, #tpu.memory_space<vmem>>, vector<112x512xbf16>,
    return
  }
  func.func @transform_0(%arg0: i32) -> (i32, i32, i32) {
    %c0_i32 = arith.constant 0 : i32
    %c0_i32_0 = arith.constant 0 : i32
    %c0_i32_1 = arith.constant 0 : i32
    return %c0_i32, %arg0, %c0_i32_0 : i32, i32, i32
  }
  func.func @transform_1(%arg0: i32) -> (i32, i32) {
    %c0_i32 = arith.constant 0 : i32
    %c0_i32_0 = arith.constant 0 : i32
    %c0_i32_1 = arith.constant 0 : i32
    return %c0_i32, %c0_i32_0 : i32, i32
  }
  func.func @transform_2(%arg0: i32) -> (i32, i32) {
    %c0_i32 = arith.constant 0 : i32
    %c0_i32_0 = arith.constant 0 : i32
    %c0_i32_1 = arith.constant 0 : i32
    return %c0_i32, %c0_i32_0 : i32, i32
  }
  func.func @transform_3(%arg0: i32) -> (i32, i32) {
    %c0_i32 = arith.constant 0 : i32
    %c0_i32_0 = arith.constant 0 : i32
    %c0_i32_1 = arith.constant 0 : i32
    return %c0_i32, %c0_i32_0 : i32, i32
  }
  func.func @transform_4(%arg0: i32) -> (i32, i32) {
    %c0_i32 = arith.constant 0 : i32
    %c0_i32_0 = arith.constant 0 : i32
    %c0_i32_1 = arith.constant 0 : i32
    return %c0_i32, %c0_i32_0 : i32, i32
  }
  func.func @transform_5(%arg0: i32) -> (i32, i32) {
    %c0_i32 = arith.constant 0 : i32
    %c0_i32_0 = arith.constant 0 : i32
    return %arg0, %c0_i32 : i32, i32
  }
  func.func @transform_6(%arg0: i32) -> (i32, i32, i32) {
    %c0_i32 = arith.constant 0 : i32
    %c0_i32_0 = arith.constant 0 : i32
    %c0_i32_1 = arith.constant 0 : i32
    return %arg0, %c0_i32, %c0_i32_0 : i32, i32, i32
  }
}

module attributes {stable_mosaic.version = 11 : i64} {
  func.func @_head_kernel(%arg0: i32, %arg1: memref<112x512xbf16, #tpu.memory_space<vmem>>, %arg2: memref<1x512xf32, #tpu.memory_space<vmem>>, %arg3: memref<1x512xf32, #tpu.memory_space<vmem>>, %arg4: memref<7168x128xbf16, #tpu.memory_space<vmem>>, %arg5: memref<1x128xf32, #tpu.memory_space<vmem>>, %arg6: memref<128x10xf32, #tpu.memory_space<vmem>>, %arg7: memref<1x10xf32, #tpu.memory_space<vmem>>, %arg8: memref<8x10xf32, #tpu.memory_space<vmem>>) attributes {dimension_semantics = [#tpu.dimension_semantics<parallel>], iteration_bounds = array<i64: 1>, scalar_prefetch = 0 : i64, scratch_operands = 0 : i64, tpu.core_type = #tpu.core_type<tc>, window_params = [{transform_indices = @transform_0, window_bounds = array<i64: 112, 512>}, {pipeline_mode = #tpu.pipeline_mode<synchronous>, transform_indices = @transform_1, window_bounds = array<i64: 1, 512>}, {pipeline_mode = #tpu.pipeline_mode<synchronous>, transform_indices = @transform_2, window_bounds = array<i64: 1, 512>}, {pipeline_mode = #tpu.pipeline_mode<synchronous>, transform_indices = @transform_3, window_bounds = array<i64: 7168, 128>}, {pipeline_mode = #tpu.pipeline_mode<synchronous>, transform_indices = @transform_4, window_bounds = array<i64: 1, 128>}, {pipeline_mode = #tpu.pipeline_mode<synchronous>, transform_indices = @transform_5, window_bounds = array<i64: 128, 10>}, {pipeline_mode = #tpu.pipeline_mode<synchronous>, transform_indices = @transform_6, window_bounds = array<i64: 1, 10>}, {transform_indices = @transform_7, window_bounds = array<i64: 8, 10>}]} {
    %c0 = arith.constant 0 : index
    %c0_0 = arith.constant 0 : index
    %0 = vector.load %arg2[%c0, %c0_0] : memref<1x512xf32, #tpu.memory_space<vmem>>, vector<1x512xf32>
    %c0_1 = arith.constant 0 : index
    %c0_2 = arith.constant 0 : index
    %1 = vector.load %arg3[%c0_1, %c0_2] : memref<1x512xf32, #tpu.memory_space<vmem>>, vector<1x512xf32>
    %cst = arith.constant 0.000000e+00 : f32
    %2 = vector.broadcast %cst : f32 to vector<8x128xf32>
    %c0_3 = arith.constant 0 : index
    %c0_4 = arith.constant 0 : index
    %3 = vector.load %arg5[%c0_3, %c0_4] : memref<1x128xf32, #tpu.memory_space<vmem>>, vector<1x128xf32>
    %4 = vector.broadcast %3 : vector<1x128xf32> to vector<8x128xf32>
    %5 = arith.addf %2, %4 : vector<8x128xf32>
    %c0_5 = arith.constant 0 : index
    %c0_6 = arith.constant 0 : index
    %6 = vector.load %arg1[%c0_5, %c0_6] : memref<112x512xbf16, #tpu.memory_space<vmem>>, vector<8x512xbf16>
    %7 = arith.extf %6 : vector<8x512xbf16> to vector<8x512xf32>
    %8 = vector.broadcast %0 : vector<1x512xf32> to vector<8x512xf32>
    %9 = arith.mulf %7, %8 : vector<8x512xf32>
    %10 = vector.broadcast %1 : vector<1x512xf32> to vector<8x512xf32>
    %11 = arith.addf %9, %10 : vector<8x512xf32>
    %cst_7 = arith.constant 0.000000e+00 : f32
    %12 = vector.broadcast %cst_7 : f32 to vector<8x512xf32>
    %13 = arith.maximumf %11, %12 : vector<8x512xf32>
    %14 = arith.truncf %13 : vector<8x512xf32> to vector<8x512xbf16>
    %c0_8 = arith.constant 0 : index
    %c0_9 = arith.constant 0 : index
    %15 = vector.load %arg4[%c0_8, %c0_9] : memref<7168x128xbf16, #tpu.memory_space<vmem>>, vector<512x128xbf16>
    %cst_10 = arith.constant dense<0.000000e+00> : vector<8x128xf32>
    %16 = tpu.matmul %14, %15, %cst_10 {dimension_numbers = #tpu.dot_dimension_numbers<[1], [0], [0], [1], [0, 0, 1, 1], [], []>} : vector<8x512xbf16>, vector<512x128xbf16>, vector<8x128xf32> -> vector<8x128xf32>
    %17 = arith.addf %5, %16 : vector<8x128xf32>
    %c8 = arith.constant 8 : index
    %c0_11 = arith.constant 0 : index
    %18 = vector.load %arg1[%c8, %c0_11] : memref<112x512xbf16, #tpu.memory_space<vmem>>, vector<8x512xbf16>
    %19 = arith.extf %18 : vector<8x512xbf16> to vector<8x512xf32>
    %20 = vector.broadcast %0 : vector<1x512xf32> to vector<8x512xf32>
    %21 = arith.mulf %19, %20 : vector<8x512xf32>
    %22 = vector.broadcast %1 : vector<1x512xf32> to vector<8x512xf32>
    %23 = arith.addf %21, %22 : vector<8x512xf32>
    %cst_12 = arith.constant 0.000000e+00 : f32
    %24 = vector.broadcast %cst_12 : f32 to vector<8x512xf32>
    %25 = arith.maximumf %23, %24 : vector<8x512xf32>
    %26 = arith.truncf %25 : vector<8x512xf32> to vector<8x512xbf16>
    %c512 = arith.constant 512 : index
    %c0_13 = arith.constant 0 : index
    %27 = vector.load %arg4[%c512, %c0_13] : memref<7168x128xbf16, #tpu.memory_space<vmem>>, vector<512x128xbf16>
    %cst_14 = arith.constant dense<0.000000e+00> : vector<8x128xf32>
    %28 = tpu.matmul %26, %27, %cst_14 {dimension_numbers = #tpu.dot_dimension_numbers<[1], [0], [0], [1], [0, 0, 1, 1], [], []>} : vector<8x512xbf16>, vector<512x128xbf16>, vector<8x128xf32> -> vector<8x128xf32>
    %29 = arith.addf %17, %28 : vector<8x128xf32>
    %c16 = arith.constant 16 : index
    %c0_15 = arith.constant 0 : index
    %30 = vector.load %arg1[%c16, %c0_15] : memref<112x512xbf16, #tpu.memory_space<vmem>>, vector<8x512xbf16>
    %31 = arith.extf %30 : vector<8x512xbf16> to vector<8x512xf32>
    %32 = vector.broadcast %0 : vector<1x512xf32> to vector<8x512xf32>
    %33 = arith.mulf %31, %32 : vector<8x512xf32>
    %34 = vector.broadcast %1 : vector<1x512xf32> to vector<8x512xf32>
    %35 = arith.addf %33, %34 : vector<8x512xf32>
    %cst_16 = arith.constant 0.000000e+00 : f32
    %36 = vector.broadcast %cst_16 : f32 to vector<8x512xf32>
    %37 = arith.maximumf %35, %36 : vector<8x512xf32>
    %38 = arith.truncf %37 : vector<8x512xf32> to vector<8x512xbf16>
    %c1024 = arith.constant 1024 : index
    %c0_17 = arith.constant 0 : index
    %39 = vector.load %arg4[%c1024, %c0_17] : memref<7168x128xbf16, #tpu.memory_space<vmem>>, vector<512x128xbf16>
    %cst_18 = arith.constant dense<0.000000e+00> : vector<8x128xf32>
    %40 = tpu.matmul %38, %39, %cst_18 {dimension_numbers = #tpu.dot_dimension_numbers<[1], [0], [0], [1], [0, 0, 1, 1], [], []>} : vector<8x512xbf16>, vector<512x128xbf16>, vector<8x128xf32> -> vector<8x128xf32>
    %41 = arith.addf %29, %40 : vector<8x128xf32>
    %c24 = arith.constant 24 : index
    %c0_19 = arith.constant 0 : index
    %42 = vector.load %arg1[%c24, %c0_19] : memref<112x512xbf16, #tpu.memory_space<vmem>>, vector<8x512xbf16>
    %43 = arith.extf %42 : vector<8x512xbf16> to vector<8x512xf32>
    %44 = vector.broadcast %0 : vector<1x512xf32> to vector<8x512xf32>
    %45 = arith.mulf %43, %44 : vector<8x512xf32>
    %46 = vector.broadcast %1 : vector<1x512xf32> to vector<8x512xf32>
    %47 = arith.addf %45, %46 : vector<8x512xf32>
    %cst_20 = arith.constant 0.000000e+00 : f32
    %48 = vector.broadcast %cst_20 : f32 to vector<8x512xf32>
    %49 = arith.maximumf %47, %48 : vector<8x512xf32>
    %50 = arith.truncf %49 : vector<8x512xf32> to vector<8x512xbf16>
    %c1536 = arith.constant 1536 : index
    %c0_21 = arith.constant 0 : index
    %51 = vector.load %arg4[%c1536, %c0_21] : memref<7168x128xbf16, #tpu.memory_space<vmem>>, vector<512x128xbf16>
    %cst_22 = arith.constant dense<0.000000e+00> : vector<8x128xf32>
    %52 = tpu.matmul %50, %51, %cst_22 {dimension_numbers = #tpu.dot_dimension_numbers<[1], [0], [0], [1], [0, 0, 1, 1], [], []>} : vector<8x512xbf16>, vector<512x128xbf16>, vector<8x128xf32> -> vector<8x128xf32>
    %53 = arith.addf %41, %52 : vector<8x128xf32>
    %c32 = arith.constant 32 : index
    %c0_23 = arith.constant 0 : index
    %54 = vector.load %arg1[%c32, %c0_23] : memref<112x512xbf16, #tpu.memory_space<vmem>>, vector<8x512xbf16>
    %55 = arith.extf %54 : vector<8x512xbf16> to vector<8x512xf32>
    %56 = vector.broadcast %0 : vector<1x512xf32> to vector<8x512xf32>
    %57 = arith.mulf %55, %56 : vector<8x512xf32>
    %58 = vector.broadcast %1 : vector<1x512xf32> to vector<8x512xf32>
    %59 = arith.addf %57, %58 : vector<8x512xf32>
    %cst_24 = arith.constant 0.000000e+00 : f32
    %60 = vector.broadcast %cst_24 : f32 to vector<8x512xf32>
    %61 = arith.maximumf %59, %60 : vector<8x512xf32>
    %62 = arith.truncf %61 : vector<8x512xf32> to vector<8x512xbf16>
    %c2048 = arith.constant 2048 : index
    %c0_25 = arith.constant 0 : index
    %63 = vector.load %arg4[%c2048, %c0_25] : memref<7168x128xbf16, #tpu.memory_space<vmem>>, vector<512x128xbf16>
    %cst_26 = arith.constant dense<0.000000e+00> : vector<8x128xf32>
    %64 = tpu.matmul %62, %63, %cst_26 {dimension_numbers = #tpu.dot_dimension_numbers<[1], [0], [0], [1], [0, 0, 1, 1], [], []>} : vector<8x512xbf16>, vector<512x128xbf16>, vector<8x128xf32> -> vector<8x128xf32>
    %65 = arith.addf %53, %64 : vector<8x128xf32>
    %c40 = arith.constant 40 : index
    %c0_27 = arith.constant 0 : index
    %66 = vector.load %arg1[%c40, %c0_27] : memref<112x512xbf16, #tpu.memory_space<vmem>>, vector<8x512xbf16>
    %67 = arith.extf %66 : vector<8x512xbf16> to vector<8x512xf32>
    %68 = vector.broadcast %0 : vector<1x512xf32> to vector<8x512xf32>
    %69 = arith.mulf %67, %68 : vector<8x512xf32>
    %70 = vector.broadcast %1 : vector<1x512xf32> to vector<8x512xf32>
    %71 = arith.addf %69, %70 : vector<8x512xf32>
    %cst_28 = arith.constant 0.000000e+00 : f32
    %72 = vector.broadcast %cst_28 : f32 to vector<8x512xf32>
    %73 = arith.maximumf %71, %72 : vector<8x512xf32>
    %74 = arith.truncf %73 : vector<8x512xf32> to vector<8x512xbf16>
    %c2560 = arith.constant 2560 : index
    %c0_29 = arith.constant 0 : index
    %75 = vector.load %arg4[%c2560, %c0_29] : memref<7168x128xbf16, #tpu.memory_space<vmem>>, vector<512x128xbf16>
    %cst_30 = arith.constant dense<0.000000e+00> : vector<8x128xf32>
    %76 = tpu.matmul %74, %75, %cst_30 {dimension_numbers = #tpu.dot_dimension_numbers<[1], [0], [0], [1], [0, 0, 1, 1], [], []>} : vector<8x512xbf16>, vector<512x128xbf16>, vector<8x128xf32> -> vector<8x128xf32>
    %77 = arith.addf %65, %76 : vector<8x128xf32>
    %c48 = arith.constant 48 : index
    %c0_31 = arith.constant 0 : index
    %78 = vector.load %arg1[%c48, %c0_31] : memref<112x512xbf16, #tpu.memory_space<vmem>>, vector<8x512xbf16>
    %79 = arith.extf %78 : vector<8x512xbf16> to vector<8x512xf32>
    %80 = vector.broadcast %0 : vector<1x512xf32> to vector<8x512xf32>
    %81 = arith.mulf %79, %80 : vector<8x512xf32>
    %82 = vector.broadcast %1 : vector<1x512xf32> to vector<8x512xf32>
    %83 = arith.addf %81, %82 : vector<8x512xf32>
    %cst_32 = arith.constant 0.000000e+00 : f32
    %84 = vector.broadcast %cst_32 : f32 to vector<8x512xf32>
    %85 = arith.maximumf %83, %84 : vector<8x512xf32>
    %86 = arith.truncf %85 : vector<8x512xf32> to vector<8x512xbf16>
    %c3072 = arith.constant 3072 : index
    %c0_33 = arith.constant 0 : index
    %87 = vector.load %arg4[%c3072, %c0_33] : memref<7168x128xbf16, #tpu.memory_space<vmem>>, vector<512x128xbf16>
    %cst_34 = arith.constant dense<0.000000e+00> : vector<8x128xf32>
    %88 = tpu.matmul %86, %87, %cst_34 {dimension_numbers = #tpu.dot_dimension_numbers<[1], [0], [0], [1], [0, 0, 1, 1], [], []>} : vector<8x512xbf16>, vector<512x128xbf16>, vector<8x128xf32> -> vector<8x128xf32>
    %89 = arith.addf %77, %88 : vector<8x128xf32>
    %c56 = arith.constant 56 : index
    %c0_35 = arith.constant 0 : index
    %90 = vector.load %arg1[%c56, %c0_35] : memref<112x512xbf16, #tpu.memory_space<vmem>>, vector<8x512xbf16>
    %91 = arith.extf %90 : vector<8x512xbf16> to vector<8x512xf32>
    %92 = vector.broadcast %0 : vector<1x512xf32> to vector<8x512xf32>
    %93 = arith.mulf %91, %92 : vector<8x512xf32>
    %94 = vector.broadcast %1 : vector<1x512xf32> to vector<8x512xf32>
    %95 = arith.addf %93, %94 : vector<8x512xf32>
    %cst_36 = arith.constant 0.000000e+00 : f32
    %96 = vector.broadcast %cst_36 : f32 to vector<8x512xf32>
    %97 = arith.maximumf %95, %96 : vector<8x512xf32>
    %98 = arith.truncf %97 : vector<8x512xf32> to vector<8x512xbf16>
    %c3584 = arith.constant 3584 : index
    %c0_37 = arith.constant 0 : index
    %99 = vector.load %arg4[%c3584, %c0_37] : memref<7168x128xbf16, #tpu.memory_space<vmem>>, vector<512x128xbf16>
    %cst_38 = arith.constant dense<0.000000e+00> : vector<8x128xf32>
    %100 = tpu.matmul %98, %99, %cst_38 {dimension_numbers = #tpu.dot_dimension_numbers<[1], [0], [0], [1], [0, 0, 1, 1], [], []>} : vector<8x512xbf16>, vector<512x128xbf16>, vector<8x128xf32> -> vector<8x128xf32>
    %101 = arith.addf %89, %100 : vector<8x128xf32>
    %c64 = arith.constant 64 : index
    %c0_39 = arith.constant 0 : index
    %102 = vector.load %arg1[%c64, %c0_39] : memref<112x512xbf16, #tpu.memory_space<vmem>>, vector<8x512xbf16>
    %103 = arith.extf %102 : vector<8x512xbf16> to vector<8x512xf32>
    %104 = vector.broadcast %0 : vector<1x512xf32> to vector<8x512xf32>
    %105 = arith.mulf %103, %104 : vector<8x512xf32>
    %106 = vector.broadcast %1 : vector<1x512xf32> to vector<8x512xf32>
    %107 = arith.addf %105, %106 : vector<8x512xf32>
    %cst_40 = arith.constant 0.000000e+00 : f32
    %108 = vector.broadcast %cst_40 : f32 to vector<8x512xf32>
    %109 = arith.maximumf %107, %108 : vector<8x512xf32>
    %110 = arith.truncf %109 : vector<8x512xf32> to vector<8x512xbf16>
    %c4096 = arith.constant 4096 : index
    %c0_41 = arith.constant 0 : index
    %111 = vector.load %arg4[%c4096, %c0_41] : memref<7168x128xbf16, #tpu.memory_space<vmem>>, vector<512x128xbf16>
    %cst_42 = arith.constant dense<0.000000e+00> : vector<8x128xf32>
    %112 = tpu.matmul %110, %111, %cst_42 {dimension_numbers = #tpu.dot_dimension_numbers<[1], [0], [0], [1], [0, 0, 1, 1], [], []>} : vector<8x512xbf16>, vector<512x128xbf16>, vector<8x128xf32> -> vector<8x128xf32>
    %113 = arith.addf %101, %112 : vector<8x128xf32>
    %c72 = arith.constant 72 : index
    %c0_43 = arith.constant 0 : index
    %114 = vector.load %arg1[%c72, %c0_43] : memref<112x512xbf16, #tpu.memory_space<vmem>>, vector<8x512xbf16>
    %115 = arith.extf %114 : vector<8x512xbf16> to vector<8x512xf32>
    %116 = vector.broadcast %0 : vector<1x512xf32> to vector<8x512xf32>
    %117 = arith.mulf %115, %116 : vector<8x512xf32>
    %118 = vector.broadcast %1 : vector<1x512xf32> to vector<8x512xf32>
    %119 = arith.addf %117, %118 : vector<8x512xf32>
    %cst_44 = arith.constant 0.000000e+00 : f32
    %120 = vector.broadcast %cst_44 : f32 to vector<8x512xf32>
    %121 = arith.maximumf %119, %120 : vector<8x512xf32>
    %122 = arith.truncf %121 : vector<8x512xf32> to vector<8x512xbf16>
    %c4608 = arith.constant 4608 : index
    %c0_45 = arith.constant 0 : index
    %123 = vector.load %arg4[%c4608, %c0_45] : memref<7168x128xbf16, #tpu.memory_space<vmem>>, vector<512x128xbf16>
    %cst_46 = arith.constant dense<0.000000e+00> : vector<8x128xf32>
    %124 = tpu.matmul %122, %123, %cst_46 {dimension_numbers = #tpu.dot_dimension_numbers<[1], [0], [0], [1], [0, 0, 1, 1], [], []>} : vector<8x512xbf16>, vector<512x128xbf16>, vector<8x128xf32> -> vector<8x128xf32>
    %125 = arith.addf %113, %124 : vector<8x128xf32>
    %c80 = arith.constant 80 : index
    %c0_47 = arith.constant 0 : index
    %126 = vector.load %arg1[%c80, %c0_47] : memref<112x512xbf16, #tpu.memory_space<vmem>>, vector<8x512xbf16>
    %127 = arith.extf %126 : vector<8x512xbf16> to vector<8x512xf32>
    %128 = vector.broadcast %0 : vector<1x512xf32> to vector<8x512xf32>
    %129 = arith.mulf %127, %128 : vector<8x512xf32>
    %130 = vector.broadcast %1 : vector<1x512xf32> to vector<8x512xf32>
    %131 = arith.addf %129, %130 : vector<8x512xf32>
    %cst_48 = arith.constant 0.000000e+00 : f32
    %132 = vector.broadcast %cst_48 : f32 to vector<8x512xf32>
    %133 = arith.maximumf %131, %132 : vector<8x512xf32>
    %134 = arith.truncf %133 : vector<8x512xf32> to vector<8x512xbf16>
    %c5120 = arith.constant 5120 : index
    %c0_49 = arith.constant 0 : index
    %135 = vector.load %arg4[%c5120, %c0_49] : memref<7168x128xbf16, #tpu.memory_space<vmem>>, vector<512x128xbf16>
    %cst_50 = arith.constant dense<0.000000e+00> : vector<8x128xf32>
    %136 = tpu.matmul %134, %135, %cst_50 {dimension_numbers = #tpu.dot_dimension_numbers<[1], [0], [0], [1], [0, 0, 1, 1], [], []>} : vector<8x512xbf16>, vector<512x128xbf16>, vector<8x128xf32> -> vector<8x128xf32>
    %137 = arith.addf %125, %136 : vector<8x128xf32>
    %c88 = arith.constant 88 : index
    %c0_51 = arith.constant 0 : index
    %138 = vector.load %arg1[%c88, %c0_51] : memref<112x512xbf16, #tpu.memory_space<vmem>>, vector<8x512xbf16>
    %139 = arith.extf %138 : vector<8x512xbf16> to vector<8x512xf32>
    %140 = vector.broadcast %0 : vector<1x512xf32> to vector<8x512xf32>
    %141 = arith.mulf %139, %140 : vector<8x512xf32>
    %142 = vector.broadcast %1 : vector<1x512xf32> to vector<8x512xf32>
    %143 = arith.addf %141, %142 : vector<8x512xf32>
    %cst_52 = arith.constant 0.000000e+00 : f32
    %144 = vector.broadcast %cst_52 : f32 to vector<8x512xf32>
    %145 = arith.maximumf %143, %144 : vector<8x512xf32>
    %146 = arith.truncf %145 : vector<8x512xf32> to vector<8x512xbf16>
    %c5632 = arith.constant 5632 : index
    %c0_53 = arith.constant 0 : index
    %147 = vector.load %arg4[%c5632, %c0_53] : memref<7168x128xbf16, #tpu.memory_space<vmem>>, vector<512x128xbf16>
    %cst_54 = arith.constant dense<0.000000e+00> : vector<8x128xf32>
    %148 = tpu.matmul %146, %147, %cst_54 {dimension_numbers = #tpu.dot_dimension_numbers<[1], [0], [0], [1], [0, 0, 1, 1], [], []>} : vector<8x512xbf16>, vector<512x128xbf16>, vector<8x128xf32> -> vector<8x128xf32>
    %149 = arith.addf %137, %148 : vector<8x128xf32>
    %c96 = arith.constant 96 : index
    %c0_55 = arith.constant 0 : index
    %150 = vector.load %arg1[%c96, %c0_55] : memref<112x512xbf16, #tpu.memory_space<vmem>>, vector<8x512xbf16>
    %151 = arith.extf %150 : vector<8x512xbf16> to vector<8x512xf32>
    %152 = vector.broadcast %0 : vector<1x512xf32> to vector<8x512xf32>
    %153 = arith.mulf %151, %152 : vector<8x512xf32>
    %154 = vector.broadcast %1 : vector<1x512xf32> to vector<8x512xf32>
    %155 = arith.addf %153, %154 : vector<8x512xf32>
    %cst_56 = arith.constant 0.000000e+00 : f32
    %156 = vector.broadcast %cst_56 : f32 to vector<8x512xf32>
    %157 = arith.maximumf %155, %156 : vector<8x512xf32>
    %158 = arith.truncf %157 : vector<8x512xf32> to vector<8x512xbf16>
    %c6144 = arith.constant 6144 : index
    %c0_57 = arith.constant 0 : index
    %159 = vector.load %arg4[%c6144, %c0_57] : memref<7168x128xbf16, #tpu.memory_space<vmem>>, vector<512x128xbf16>
    %cst_58 = arith.constant dense<0.000000e+00> : vector<8x128xf32>
    %160 = tpu.matmul %158, %159, %cst_58 {dimension_numbers = #tpu.dot_dimension_numbers<[1], [0], [0], [1], [0, 0, 1, 1], [], []>} : vector<8x512xbf16>, vector<512x128xbf16>, vector<8x128xf32> -> vector<8x128xf32>
    %161 = arith.addf %149, %160 : vector<8x128xf32>
    %c104 = arith.constant 104 : index
    %c0_59 = arith.constant 0 : index
    %162 = vector.load %arg1[%c104, %c0_59] : memref<112x512xbf16, #tpu.memory_space<vmem>>, vector<8x512xbf16>
    %163 = arith.extf %162 : vector<8x512xbf16> to vector<8x512xf32>
    %164 = vector.broadcast %0 : vector<1x512xf32> to vector<8x512xf32>
    %165 = arith.mulf %163, %164 : vector<8x512xf32>
    %166 = vector.broadcast %1 : vector<1x512xf32> to vector<8x512xf32>
    %167 = arith.addf %165, %166 : vector<8x512xf32>
    %cst_60 = arith.constant 0.000000e+00 : f32
    %168 = vector.broadcast %cst_60 : f32 to vector<8x512xf32>
    %169 = arith.maximumf %167, %168 : vector<8x512xf32>
    %170 = arith.truncf %169 : vector<8x512xf32> to vector<8x512xbf16>
    %c6656 = arith.constant 6656 : index
    %c0_61 = arith.constant 0 : index
    %171 = vector.load %arg4[%c6656, %c0_61] : memref<7168x128xbf16, #tpu.memory_space<vmem>>, vector<512x128xbf16>
    %cst_62 = arith.constant dense<0.000000e+00> : vector<8x128xf32>
    %172 = tpu.matmul %170, %171, %cst_62 {dimension_numbers = #tpu.dot_dimension_numbers<[1], [0], [0], [1], [0, 0, 1, 1], [], []>} : vector<8x512xbf16>, vector<512x128xbf16>, vector<8x128xf32> -> vector<8x128xf32>
    %173 = arith.addf %161, %172 : vector<8x128xf32>
    %cst_63 = arith.constant 0.000000e+00 : f32
    %174 = vector.broadcast %cst_63 : f32 to vector<8x128xf32>
    %175 = arith.maximumf %173, %174 : vector<8x128xf32>
    %c0_64 = arith.constant 0 : index
    %c0_65 = arith.constant 0 : index
    %176 = vector.load %arg6[%c0_64, %c0_65] : memref<128x10xf32, #tpu.memory_space<vmem>>, vector<128x10xf32>
    %cst_66 = arith.constant dense<0.000000e+00> : vector<8x10xf32>
    %177 = tpu.matmul %175, %176, %cst_66 {dimension_numbers = #tpu.dot_dimension_numbers<[1], [0], [0], [1], [0, 0, 1, 1], [], []>} : vector<8x128xf32>, vector<128x10xf32>, vector<8x10xf32> -> vector<8x10xf32>
    %c0_67 = arith.constant 0 : index
    %c0_68 = arith.constant 0 : index
    %178 = vector.load %arg7[%c0_67, %c0_68] : memref<1x10xf32, #tpu.memory_space<vmem>>, vector<1x10xf32>
    %179 = vector.broadcast %178 : vector<1x10xf32> to vector<8x10xf32>
    %180 = arith.addf %177, %179 : vector<8x10xf32>
    %c0_69 = arith.constant 0 : index
    %c0_70 = arith.constant 0 : index
    %181 = vector.load %arg8[%c0_69, %c0_70] : memref<8x10xf32, #tpu.memory_space<vmem>>, vector<8x10xf32>
    tpu.vector_store %arg8[%c0_69, %c0_70], %180 {strides = array<i32>} : memref<8x10xf32, #tpu.memory_space<vmem>>, vector<8x10xf32>,
    return
  }
  func.func @transform_0(%arg0: i32) -> (i32, i32) {
    %c0_i32 = arith.constant 0 : i32
    %c0_i32_0 = arith.constant 0 : i32
    return %arg0, %c0_i32 : i32, i32
  }
  func.func @transform_1(%arg0: i32) -> (i32, i32) {
    %c0_i32 = arith.constant 0 : i32
    %c0_i32_0 = arith.constant 0 : i32
    %c0_i32_1 = arith.constant 0 : i32
    return %c0_i32, %c0_i32_0 : i32, i32
  }
  func.func @transform_2(%arg0: i32) -> (i32, i32) {
    %c0_i32 = arith.constant 0 : i32
    %c0_i32_0 = arith.constant 0 : i32
    %c0_i32_1 = arith.constant 0 : i32
    return %c0_i32, %c0_i32_0 : i32, i32
  }
  func.func @transform_3(%arg0: i32) -> (i32, i32) {
    %c0_i32 = arith.constant 0 : i32
    %c0_i32_0 = arith.constant 0 : i32
    %c0_i32_1 = arith.constant 0 : i32
    return %c0_i32, %c0_i32_0 : i32, i32
  }
  func.func @transform_4(%arg0: i32) -> (i32, i32) {
    %c0_i32 = arith.constant 0 : i32
    %c0_i32_0 = arith.constant 0 : i32
    %c0_i32_1 = arith.constant 0 : i32
    return %c0_i32, %c0_i32_0 : i32, i32
  }
  func.func @transform_5(%arg0: i32) -> (i32, i32) {
    %c0_i32 = arith.constant 0 : i32
    %c0_i32_0 = arith.constant 0 : i32
    %c0_i32_1 = arith.constant 0 : i32
    return %c0_i32, %c0_i32_0 : i32, i32
  }
  func.func @transform_6(%arg0: i32) -> (i32, i32) {
    %c0_i32 = arith.constant 0 : i32
    %c0_i32_0 = arith.constant 0 : i32
    %c0_i32_1 = arith.constant 0 : i32
    return %c0_i32, %c0_i32_0 : i32, i32
  }
  func.func @transform_7(%arg0: i32) -> (i32, i32) {
    %c0_i32 = arith.constant 0 : i32
    %c0_i32_0 = arith.constant 0 : i32
    return %arg0, %c0_i32 : i32, i32
  }
}

</mosaic_0001>

<llo_original>
// kernel: method_cnn_mnist_forward.3
$region0: #{method_cnn_mnist_forward.3}
  #allocation0 [shape = 'u32[]', space=smem, size = 0x4, offset = 0x4, fixed_abs, tag = 'smem constant byte address 0x4 - core index']
  #allocation1 [shape = 'u32[144,128]{1,0:T(1,128)}', space=vmem, size = 0x12000, scoped, tag = 'internal scratch']
  %s0 = inlined_call_operand.vmem [shape: bf16[2,112,256], index: 0, kind: input, shape index: {}]
  %s1 = inlined_call_operand.vmem [shape: bf16[256,512], index: 1, kind: input, shape index: {}]
  %s2 = inlined_call_operand.vmem [shape: f32[1,512], index: 2, kind: input, shape index: {}]
  %s3 = inlined_call_operand.vmem [shape: bf16[2,112,512], index: 3, kind: output, shape index: {0}]
  %s4 = inlined_call_operand.vmem [shape: f32[1,2,512], index: 4, kind: output, shape index: {1}]
  %5 = xla_tuple %s3, %s4
  %s6 = sld [smem:[#allocation0]]
  $region30: #{method_cnn_mnist_forward.3} parent=0
    _
  %s8 = ssub.s32 1, %s6
  %s9 = scalar_select 0, %s8, %s6
  // Predicated region
  $region2: #{method_cnn_mnist_forward.3} parent=0 // pred_check
    _
  $region3: #{method_cnn_mnist_forward.3} parent=0 // pred_check_branch
    %11 = sbr.rel (0) target = $region5
  $region4: #{method_cnn_mnist_forward.3} parent=0 // pred_region
    _
  $region5: #{method_cnn_mnist_forward.3} parent=0 // pred_fallthru
    _
  // Predicated region
  $region6: #{method_cnn_mnist_forward.3} parent=0 // pred_check
    _
  $region7: #{method_cnn_mnist_forward.3} parent=0 // pred_check_branch
    %13 = sbr.rel (0) target = $region9
  $region8: #{method_cnn_mnist_forward.3} parent=0 // pred_region
    _
  $region9: #{method_cnn_mnist_forward.3} parent=0 // pred_fallthru
    _
  // Predicated region
  $region10: #{method_cnn_mnist_forward.3} parent=0 // pred_check
    _
  $region11: #{method_cnn_mnist_forward.3} parent=0 // pred_check_branch
    %15 = sbr.rel (0) target = $region13
  $region12: #{method_cnn_mnist_forward.3} parent=0 // pred_region
    _
  $region13: #{method_cnn_mnist_forward.3} parent=0 // pred_fallthru
    _
  %v16 = vlaneseq
  %v17 = vshrl.u32 %v16, 7
  %v18 = vadd.s32 %v17, 8
  %v19 = vadd.s32 %v17, 16
  %v20 = vadd.s32 %v17, 24
  %v21 = vadd.s32 %v17, 32
  %v22 = vadd.s32 %v17, 40
  %v23 = vadd.s32 %v17, 48
  %v24 = vadd.s32 %v17, 56
  %v25 = vadd.s32 %v17, 64
  %v26 = vadd.s32 %v17, 72
  %v27 = vadd.s32 %v17, 80
  %v28 = vadd.s32 %v17, 88
  %v29 = vadd.s32 %v17, 96
  %v30 = vadd.s32 %v17, 104
  %v31 = vand.u32 %v17, 7
  %v32 = vand.u32 %v18, 7
  %v33 = vand.u32 %v19, 7
  %v34 = vand.u32 %v20, 7
  %v35 = vand.u32 %v21, 7
  %v36 = vand.u32 %v22, 7
  %v37 = vand.u32 %v23, 7
  %v38 = vand.u32 %v24, 7
  %v39 = vand.u32 %v25, 7
  %v40 = vand.u32 %v26, 7
  %v41 = vand.u32 %v27, 7
  %v42 = vand.u32 %v28, 7
  %v43 = vand.u32 %v29, 7
  %v44 = vand.u32 %v30, 7
  %s45 = smul.u32 0, 8
  %v46 = vstv %s45
  %v47 = vadd.s32 %v46, %v31
  %v48 = vadd.s32 %v46, %v32
  %v49 = vadd.s32 %v46, %v33
  %v50 = vadd.s32 %v46, %v34
  %v51 = vadd.s32 %v46, %v35
  %v52 = vadd.s32 %v46, %v36
  %v53 = vadd.s32 %v46, %v37
  %v54 = vadd.s32 %v46, %v38
  %v55 = vadd.s32 %v46, %v39
  %v56 = vadd.s32 %v46, %v40
  %v57 = vadd.s32 %v46, %v41
  %v58 = vadd.s32 %v46, %v42
  %v59 = vadd.s32 %v46, %v43
  %v60 = vadd.s32 %v46, %v44
  %vm61 = vcmp.lt.s32.totalorder %v47, 2
  %vm62 = vcmp.lt.s32.totalorder %v48, 2
  %vm63 = vcmp.lt.s32.totalorder %v49, 2
  %vm64 = vcmp.lt.s32.totalorder %v50, 2
  %vm65 = vcmp.lt.s32.totalorder %v51, 2
  %vm66 = vcmp.lt.s32.totalorder %v52, 2
  %vm67 = vcmp.lt.s32.totalorder %v53, 2
  %vm68 = vcmp.lt.s32.totalorder %v54, 2
  %vm69 = vcmp.lt.s32.totalorder %v55, 2
  %vm70 = vcmp.lt.s32.totalorder %v56, 2
  %vm71 = vcmp.lt.s32.totalorder %v57, 2
  %vm72 = vcmp.lt.s32.totalorder %v58, 2
  %vm73 = vcmp.lt.s32.totalorder %v59, 2
  %vm74 = vcmp.lt.s32.totalorder %v60, 2
  %v75 = vsel %vm61, 1, 0
  %v76 = vsel %vm62, 1, 0
  %v77 = vsel %vm63, 1, 0
  %v78 = vsel %vm64, 1, 0
  %v79 = vsel %vm65, 1, 0
  %v80 = vsel %vm66, 1, 0
  %v81 = vsel %vm67, 1, 0
  %v82 = vsel %vm68, 1, 0
  %v83 = vsel %vm69, 1, 0
  %v84 = vsel %vm70, 1, 0
  %v85 = vsel %vm71, 1, 0
  %v86 = vsel %vm72, 1, 0
  %v87 = vsel %vm73, 1, 0
  %v88 = vsel %vm74, 1, 0
  %v89 = vcvt.s32.f32 %v75
  %v90 = vcvt.s32.f32 %v76
  %v91 = vcvt.s32.f32 %v77
  %v92 = vcvt.s32.f32 %v78
  %v93 = vcvt.s32.f32 %v79
  %v94 = vcvt.s32.f32 %v80
  %v95 = vcvt.s32.f32 %v81
  %v96 = vcvt.s32.f32 %v82
  %v97 = vcvt.s32.f32 %v83
  %v98 = vcvt.s32.f32 %v84
  %v99 = vcvt.s32.f32 %v85
  %v100 = vcvt.s32.f32 %v86
  %v101 = vcvt.s32.f32 %v87
  %v102 = vcvt.s32.f32 %v88
  %v103 = vld [vmem:[%s1] sm:$0xff]
  %v104 = vld [vmem:[%s1 + $0x8] sm:$0xff]
  %v105 = vld [vmem:[%s1 + $0x10] sm:$0xff]
  %v106 = vld [vmem:[%s1 + $0x18] sm:$0xff]
  %v107 = vld [vmem:[%s1 + $0x20] sm:$0xff]
  %v108 = vld [vmem:[%s1 + $0x28] sm:$0xff]
  %v109 = vld [vmem:[%s1 + $0x30] sm:$0xff]
  %v110 = vld [vmem:[%s1 + $0x38] sm:$0xff]
  %v111 = vld [vmem:[%s1 + $0x40] sm:$0xff]
  %v112 = vld [vmem:[%s1 + $0x48] sm:$0xff]
  %v113 = vld [vmem:[%s1 + $0x50] sm:$0xff]
  %v114 = vld [vmem:[%s1 + $0x58] sm:$0xff]
  %v115 = vld [vmem:[%s1 + $0x60] sm:$0xff]
  %v116 = vld [vmem:[%s1 + $0x68] sm:$0xff]
  %v117 = vld [vmem:[%s1 + $0x70] sm:$0xff]
  %v118 = vld [vmem:[%s1 + $0x78] sm:$0xff]
  %v119 = vld [vmem:[%s1 + $0x80] sm:$0xff]
  %v120 = vld [vmem:[%s1 + $0x88] sm:$0xff]
  %v121 = vld [vmem:[%s1 + $0x90] sm:$0xff]
  %v122 = vld [vmem:[%s1 + $0x98] sm:$0xff]
  %v123 = vld [vmem:[%s1 + $0xa0] sm:$0xff]
  %v124 = vld [vmem:[%s1 + $0xa8] sm:$0xff]
  %v125 = vld [vmem:[%s1 + $0xb0] sm:$0xff]
  %v126 = vld [vmem:[%s1 + $0xb8] sm:$0xff]
  %v127 = vld [vmem:[%s1 + $0xc0] sm:$0xff]
  %v128 = vld [vmem:[%s1 + $0xc8] sm:$0xff]
  %v129 = vld [vmem:[%s1 + $0xd0] sm:$0xff]
  %v130 = vld [vmem:[%s1 + $0xd8] sm:$0xff]
  %v131 = vld [vmem:[%s1 + $0xe0] sm:$0xff]
  %v132 = vld [vmem:[%s1 + $0xe8] sm:$0xff]
  %v133 = vld [vmem:[%s1 + $0xf0] sm:$0xff]
  %v134 = vld [vmem:[%s1 + $0xf8] sm:$0xff]
  %v135 = vld [vmem:[%s1 + $0x100] sm:$0xff]
  %v136 = vld [vmem:[%s1 + $0x108] sm:$0xff]
  %v137 = vld [vmem:[%s1 + $0x110] sm:$0xff]
  %v138 = vld [vmem:[%s1 + $0x118] sm:$0xff]
  %v139 = vld [vmem:[%s1 + $0x120] sm:$0xff]
  %v140 = vld [vmem:[%s1 + $0x128] sm:$0xff]
  %v141 = vld [vmem:[%s1 + $0x130] sm:$0xff]
  %v142 = vld [vmem:[%s1 + $0x138] sm:$0xff]
  %v143 = vld [vmem:[%s1 + $0x140] sm:$0xff]
  %v144 = vld [vmem:[%s1 + $0x148] sm:$0xff]
  %v145 = vld [vmem:[%s1 + $0x150] sm:$0xff]
  %v146 = vld [vmem:[%s1 + $0x158] sm:$0xff]
  %v147 = vld [vmem:[%s1 + $0x160] sm:$0xff]
  %v148 = vld [vmem:[%s1 + $0x168] sm:$0xff]
  %v149 = vld [vmem:[%s1 + $0x170] sm:$0xff]
  %v150 = vld [vmem:[%s1 + $0x178] sm:$0xff]
  %v151 = vld [vmem:[%s1 + $0x180] sm:$0xff]
  %v152 = vld [vmem:[%s1 + $0x188] sm:$0xff]
  %v153 = vld [vmem:[%s1 + $0x190] sm:$0xff]
  %v154 = vld [vmem:[%s1 + $0x198] sm:$0xff]
  %v155 = vld [vmem:[%s1 + $0x1a0] sm:$0xff]
  %v156 = vld [vmem:[%s1 + $0x1a8] sm:$0xff]
  %v157 = vld [vmem:[%s1 + $0x1b0] sm:$0xff]
  %v158 = vld [vmem:[%s1 + $0x1b8] sm:$0xff]
  %v159 = vld [vmem:[%s1 + $0x1c0] sm:$0xff]
  %v160 = vld [vmem:[%s1 + $0x1c8] sm:$0xff]
  %v161 = vld [vmem:[%s1 + $0x1d0] sm:$0xff]
  %v162 = vld [vmem:[%s1 + $0x1d8] sm:$0xff]
  %v163 = vld [vmem:[%s1 + $0x1e0] sm:$0xff]
  %v164 = vld [vmem:[%s1 + $0x1e8] sm:$0xff]
  %v165 = vld [vmem:[%s1 + $0x1f0] sm:$0xff]
  %v166 = vld [vmem:[%s1 + $0x1f8] sm:$0xff]
  %v167 = vld [vmem:[%s2] sm:$0xf]
  %v168 = vld [vmem:[%s0] sm:$0xff]
  %v169 = vld [vmem:[%s0 + $0x8] sm:$0xff]
  %v170 = vld [vmem:[%s0 + $0x10] sm:$0xff]
  %v171 = vld [vmem:[%s0 + $0x18] sm:$0xff]
  %v172 = vld [vmem:[%s0 + $0x20] sm:$0xff]
  %v173 = vld [vmem:[%s0 + $0x28] sm:$0xff]
  %v174 = vld [vmem:[%s0 + $0x30] sm:$0xff]
  %v175 = vld [vmem:[%s0 + $0x38] sm:$0xff]
  %v176 = vld [vmem:[%s0 + $0x40] sm:$0xff]
  %v177 = vld [vmem:[%s0 + $0x48] sm:$0xff]
  %v178 = vld [vmem:[%s0 + $0x50] sm:$0xff]
  %v179 = vld [vmem:[%s0 + $0x58] sm:$0xff]
  %v180 = vld [vmem:[%s0 + $0x60] sm:$0xff]
  %v181 = vld [vmem:[%s0 + $0x68] sm:$0xff]
  %v183 = vlaneseq
  %v184 = vshrl.u32 %v183, 7
  %v185 = vsub.s32 0, %v184
  %v186 = vrot.slane %v167, %v185
  %v187 = vlaneseq
  %v188 = vshrl.u32 %v187, 7
  %v189 = vsub.s32 1, %v188
  %v190 = vrot.slane %v167, %v189
  %v191 = vlaneseq
  %v192 = vshrl.u32 %v191, 7
  %v193 = vsub.s32 2, %v192
  %v194 = vrot.slane %v167, %v193
  %v195 = vlaneseq
  %v196 = vshrl.u32 %v195, 7
  %v197 = vsub.s32 3, %v196
  %v198 = vrot.slane %v167, %v197
  %v217 = vunpack.c.l.b16 %v168
  %v218 = vunpack.c.h.b16 %v168
  %v219 = vunpack.c.l.b16 %v169
  %v220 = vunpack.c.h.b16 %v169
  %v221 = vunpack.c.l.b16 %v170
  %v222 = vunpack.c.h.b16 %v170
  %v223 = vunpack.c.l.b16 %v171
  %v224 = vunpack.c.h.b16 %v171
  %v225 = vunpack.c.l.b16 %v172
  %v226 = vunpack.c.h.b16 %v172
  %v227 = vunpack.c.l.b16 %v173
  %v228 = vunpack.c.h.b16 %v173
  %v229 = vunpack.c.l.b16 %v174
  %v230 = vunpack.c.h.b16 %v174
  %v231 = vunpack.c.l.b16 %v175
  %v232 = vunpack.c.h.b16 %v175
  %v233 = vunpack.c.l.b16 %v176
  %v234 = vunpack.c.h.b16 %v176
  %v235 = vunpack.c.l.b16 %v177
  %v236 = vunpack.c.h.b16 %v177
  %v237 = vunpack.c.l.b16 %v178
  %v238 = vunpack.c.h.b16 %v178
  %v239 = vunpack.c.l.b16 %v179
  %v240 = vunpack.c.h.b16 %v179
  %v241 = vunpack.c.l.b16 %v180
  %v242 = vunpack.c.h.b16 %v180
  %v243 = vunpack.c.l.b16 %v181
  %v244 = vunpack.c.h.b16 %v181
  %v245 = vpack.c.b16 %v219, %v217
  %v246 = vpack.c.b16 %v220, %v218
  %v247 = vpack.c.b16 %v223, %v221
  %v248 = vpack.c.b16 %v224, %v222
  %v249 = vpack.c.b16 %v227, %v225
  %v250 = vpack.c.b16 %v228, %v226
  %v251 = vpack.c.b16 %v231, %v229
  %v252 = vpack.c.b16 %v232, %v230
  %v253 = vpack.c.b16 %v235, %v233
  %v254 = vpack.c.b16 %v236, %v234
  %v255 = vpack.c.b16 %v239, %v237
  %v256 = vpack.c.b16 %v240, %v238
  %v257 = vpack.c.b16 %v243, %v241
  %v258 = vpack.c.b16 %v244, %v242
  %v337 = vunpack.c.l.b16 %v103
  %v338 = vunpack.c.h.b16 %v103
  %v339 = vunpack.c.l.b16 %v104
  %v340 = vunpack.c.h.b16 %v104
  %v341 = vunpack.c.l.b16 %v105
  %v342 = vunpack.c.h.b16 %v105
  %v343 = vunpack.c.l.b16 %v106
  %v344 = vunpack.c.h.b16 %v106
  %v345 = vunpack.c.l.b16 %v107
  %v346 = vunpack.c.h.b16 %v107
  %v347 = vunpack.c.l.b16 %v108
  %v348 = vunpack.c.h.b16 %v108
  %v349 = vunpack.c.l.b16 %v109
  %v350 = vunpack.c.h.b16 %v109
  %v351 = vunpack.c.l.b16 %v110
  %v352 = vunpack.c.h.b16 %v110
  %v353 = vunpack.c.l.b16 %v111
  %v354 = vunpack.c.h.b16 %v111
  %v355 = vunpack.c.l.b16 %v112
  %v356 = vunpack.c.h.b16 %v112
  %v357 = vunpack.c.l.b16 %v113
  %v358 = vunpack.c.h.b16 %v113
  %v359 = vunpack.c.l.b16 %v114
  %v360 = vunpack.c.h.b16 %v114
  %v361 = vunpack.c.l.b16 %v115
  %v362 = vunpack.c.h.b16 %v115
  %v363 = vunpack.c.l.b16 %v116
  %v364 = vunpack.c.h.b16 %v116
  %v365 = vunpack.c.l.b16 %v117
  %v366 = vunpack.c.h.b16 %v117
  %v367 = vunpack.c.l.b16 %v118
  %v368 = vunpack.c.h.b16 %v118
  %v369 = vunpack.c.l.b16 %v119
  %v370 = vunpack.c.h.b16 %v119
  %v371 = vunpack.c.l.b16 %v120
  %v372 = vunpack.c.h.b16 %v120
  %v373 = vunpack.c.l.b16 %v121
  %v374 = vunpack.c.h.b16 %v121
  %v375 = vunpack.c.l.b16 %v122
  %v376 = vunpack.c.h.b16 %v122
  %v377 = vunpack.c.l.b16 %v123
  %v378 = vunpack.c.h.b16 %v123
  %v379 = vunpack.c.l.b16 %v124
  %v380 = vunpack.c.h.b16 %v124
  %v381 = vunpack.c.l.b16 %v125
  %v382 = vunpack.c.h.b16 %v125
  %v383 = vunpack.c.l.b16 %v126
  %v384 = vunpack.c.h.b16 %v126
  %v385 = vunpack.c.l.b16 %v127
  %v386 = vunpack.c.h.b16 %v127
  %v387 = vunpack.c.l.b16 %v128
  %v388 = vunpack.c.h.b16 %v128
  %v389 = vunpack.c.l.b16 %v129
  %v390 = vunpack.c.h.b16 %v129
  %v391 = vunpack.c.l.b16 %v130
  %v392 = vunpack.c.h.b16 %v130
  %v393 = vunpack.c.l.b16 %v131
  %v394 = vunpack.c.h.b16 %v131
  %v395 = vunpack.c.l.b16 %v132
  %v396 = vunpack.c.h.b16 %v132
  %v397 = vunpack.c.l.b16 %v133
  %v398 = vunpack.c.h.b16 %v133
  %v399 = vunpack.c.l.b16 %v134
  %v400 = vunpack.c.h.b16 %v134
  %v401 = vunpack.c.l.b16 %v135
  %v402 = vunpack.c.h.b16 %v135
  %v403 = vunpack.c.l.b16 %v136
  %v404 = vunpack.c.h.b16 %v136
  %v405 = vunpack.c.l.b16 %v137
  %v406 = vunpack.c.h.b16 %v137
  %v407 = vunpack.c.l.b16 %v138
  %v408 = vunpack.c.h.b16 %v138
  %v409 = vunpack.c.l.b16 %v139
  %v410 = vunpack.c.h.b16 %v139
  %v411 = vunpack.c.l.b16 %v140
  %v412 = vunpack.c.h.b16 %v140
  %v413 = vunpack.c.l.b16 %v141
  %v414 = vunpack.c.h.b16 %v141
  %v415 = vunpack.c.l.b16 %v142
  %v416 = vunpack.c.h.b16 %v142
  %v417 = vunpack.c.l.b16 %v143
  %v418 = vunpack.c.h.b16 %v143
  %v419 = vunpack.c.l.b16 %v144
  %v420 = vunpack.c.h.b16 %v144
  %v421 = vunpack.c.l.b16 %v145
  %v422 = vunpack.c.h.b16 %v145
  %v423 = vunpack.c.l.b16 %v146
  %v424 = vunpack.c.h.b16 %v146
  %v425 = vunpack.c.l.b16 %v147
  %v426 = vunpack.c.h.b16 %v147
  %v427 = vunpack.c.l.b16 %v148
  %v428 = vunpack.c.h.b16 %v148
  %v429 = vunpack.c.l.b16 %v149
  %v430 = vunpack.c.h.b16 %v149
  %v431 = vunpack.c.l.b16 %v150
  %v432 = vunpack.c.h.b16 %v150
  %v433 = vunpack.c.l.b16 %v151
  %v434 = vunpack.c.h.b16 %v151
  %v435 = vunpack.c.l.b16 %v152
  %v436 = vunpack.c.h.b16 %v152
  %v437 = vunpack.c.l.b16 %v153
  %v438 = vunpack.c.h.b16 %v153
  %v439 = vunpack.c.l.b16 %v154
  %v440 = vunpack.c.h.b16 %v154
  %v441 = vunpack.c.l.b16 %v155
  %v442 = vunpack.c.h.b16 %v155
  %v443 = vunpack.c.l.b16 %v156
  %v444 = vunpack.c.h.b16 %v156
  %v445 = vunpack.c.l.b16 %v157
  %v446 = vunpack.c.h.b16 %v157
  %v447 = vunpack.c.l.b16 %v158
  %v448 = vunpack.c.h.b16 %v158
  %v449 = vunpack.c.l.b16 %v159
  %v450 = vunpack.c.h.b16 %v159
  %v451 = vunpack.c.l.b16 %v160
  %v452 = vunpack.c.h.b16 %v160
  %v453 = vunpack.c.l.b16 %v161
  %v454 = vunpack.c.h.b16 %v161
  %v455 = vunpack.c.l.b16 %v162
  %v456 = vunpack.c.h.b16 %v162
  %v457 = vunpack.c.l.b16 %v163
  %v458 = vunpack.c.h.b16 %v163
  %v459 = vunpack.c.l.b16 %v164
  %v460 = vunpack.c.h.b16 %v164
  %v461 = vunpack.c.l.b16 %v165
  %v462 = vunpack.c.h.b16 %v165
  %v463 = vunpack.c.l.b16 %v166
  %v464 = vunpack.c.h.b16 %v166
  %v465 = vpack.c.b16 %v341, %v337
  %v466 = vpack.c.b16 %v342, %v338
  %v467 = vpack.c.b16 %v343, %v339
  %v468 = vpack.c.b16 %v344, %v340
  %v469 = vpack.c.b16 %v349, %v345
  %v470 = vpack.c.b16 %v350, %v346
  %v471 = vpack.c.b16 %v351, %v347
  %v472 = vpack.c.b16 %v352, %v348
  %v473 = vpack.c.b16 %v357, %v353
  %v474 = vpack.c.b16 %v358, %v354
  %v475 = vpack.c.b16 %v359, %v355
  %v476 = vpack.c.b16 %v360, %v356
  %v477 = vpack.c.b16 %v365, %v361
  %v478 = vpack.c.b16 %v366, %v362
  %v479 = vpack.c.b16 %v367, %v363
  %v480 = vpack.c.b16 %v368, %v364
  %v481 = vpack.c.b16 %v373, %v369
  %v482 = vpack.c.b16 %v374, %v370
  %v483 = vpack.c.b16 %v375, %v371
  %v484 = vpack.c.b16 %v376, %v372
  %v485 = vpack.c.b16 %v381, %v377
  %v486 = vpack.c.b16 %v382, %v378
  %v487 = vpack.c.b16 %v383, %v379
  %v488 = vpack.c.b16 %v384, %v380
  %v489 = vpack.c.b16 %v389, %v385
  %v490 = vpack.c.b16 %v390, %v386
  %v491 = vpack.c.b16 %v391, %v387
  %v492 = vpack.c.b16 %v392, %v388
  %v493 = vpack.c.b16 %v397, %v393
  %v494 = vpack.c.b16 %v398, %v394
  %v495 = vpack.c.b16 %v399, %v395
  %v496 = vpack.c.b16 %v400, %v396
  %v497 = vpack.c.b16 %v405, %v401
  %v498 = vpack.c.b16 %v406, %v402
  %v499 = vpack.c.b16 %v407, %v403
  %v500 = vpack.c.b16 %v408, %v404
  %v501 = vpack.c.b16 %v413, %v409
  %v502 = vpack.c.b16 %v414, %v410
  %v503 = vpack.c.b16 %v415, %v411
  %v504 = vpack.c.b16 %v416, %v412
  %v505 = vpack.c.b16 %v421, %v417
  %v506 = vpack.c.b16 %v422, %v418
  %v507 = vpack.c.b16 %v423, %v419
  %v508 = vpack.c.b16 %v424, %v420
  %v509 = vpack.c.b16 %v429, %v425
  %v510 = vpack.c.b16 %v430, %v426
  %v511 = vpack.c.b16 %v431, %v427
  %v512 = vpack.c.b16 %v432, %v428
  %v513 = vpack.c.b16 %v437, %v433
  %v514 = vpack.c.b16 %v438, %v434
  %v515 = vpack.c.b16 %v439, %v435
  %v516 = vpack.c.b16 %v440, %v436
  %v517 = vpack.c.b16 %v445, %v441
  %v518 = vpack.c.b16 %v446, %v442
  %v519 = vpack.c.b16 %v447, %v443
  %v520 = vpack.c.b16 %v448, %v444
  %v521 = vpack.c.b16 %v453, %v449
  %v522 = vpack.c.b16 %v454, %v450
  %v523 = vpack.c.b16 %v455, %v451
  %v524 = vpack.c.b16 %v456, %v452
  %v525 = vpack.c.b16 %v461, %v457
  %v526 = vpack.c.b16 %v462, %v458
  %v527 = vpack.c.b16 %v463, %v459
  %v528 = vpack.c.b16 %v464, %v460
  %593 = vmatprep.subr.bf16.mxu0 %v494
  %594 = vmatpush1.bf16.msra.mxu0 %v493
  %595 = vmatprep.subr.bf16.mxu0 %v490
  %596 = vmatpush1.bf16.msra.mxu0 %v489
  %597 = vmatprep.subr.bf16.mxu0 %v486
  %598 = vmatpush1.bf16.msra.mxu0 %v485
  %599 = vmatprep.subr.bf16.mxu0 %v482
  %600 = vmatpush1.bf16.msra.mxu0 %v481
  %601 = vmatprep.subr.bf16.mxu0 %v478
  %602 = vmatpush1.bf16.msra.mxu0 %v477
  %603 = vmatprep.subr.bf16.mxu0 %v474
  %604 = vmatpush1.bf16.msra.mxu0 %v473
  %605 = vmatprep.subr.bf16.mxu0 %v470
  %606 = vmatpush1.bf16.msra.mxu0 %v469
  %607 = vmatprep.subr.bf16.mxu0 %v466
  %608 = vmatpush1.bf16.msra.mxu0 %v465
  %609 = vmatprep.subr.bf16.mxu0 %v526
  %610 = vmatpush2.bf16.msra.mxu0 %v525
  %611 = vmatprep.subr.bf16.mxu0 %v522
  %612 = vmatpush2.bf16.msra.mxu0 %v521
  %613 = vmatprep.subr.bf16.mxu0 %v518
  %614 = vmatpush2.bf16.msra.mxu0 %v517
  %615 = vmatprep.subr.bf16.mxu0 %v514
  %616 = vmatpush2.bf16.msra.mxu0 %v513
  %617 = vmatprep.subr.bf16.mxu0 %v510
  %618 = vmatpush2.bf16.msra.mxu0 %v509
  %619 = vmatprep.subr.bf16.mxu0 %v506
  %620 = vmatpush2.bf16.msra.mxu0 %v505
  %621 = vmatprep.subr.bf16.mxu0 %v502
  %622 = vmatpush2.bf16.msra.mxu0 %v501
  %623 = vmatprep.subr.bf16.mxu0 %v498
  %624 = vmatpush2.bf16.msra.mxu0 %v497
  %625 = vmatprep.mubr.bf16.mxu0 %v246
  %626 = vmatmul.mubr.bf16.gmra.mxu0 %v245
  %v627 = vpop.f32.mrf.mxu0
  %v628 = vadd.f32 %v186, %v627
  %v629 = vpop.f32.mrf.mxu0
  %v630 = vadd.f32 %v190, %v629
  %v631 = vpop.f32.mrf.mxu0
  %v632 = vadd.f32 %v186, %v631
  %v633 = vpop.f32.mrf.mxu0
  %v634 = vadd.f32 %v190, %v633
  %635 = vmatprep.mubr.bf16.mxu0 %v248
  %636 = vmatmul.mubr.bf16.gmra.mxu0 %v247
  %v637 = vpop.f32.mrf.mxu0
  %v638 = vadd.f32 %v186, %v637
  %v639 = vpop.f32.mrf.mxu0
  %v640 = vadd.f32 %v190, %v639
  %v641 = vpop.f32.mrf.mxu0
  %v642 = vadd.f32 %v186, %v641
  %v643 = vpop.f32.mrf.mxu0
  %v644 = vadd.f32 %v190, %v643
  %645 = vmatprep.mubr.bf16.mxu0 %v250
  %646 = vmatmul.mubr.bf16.gmra.mxu0 %v249
  %v647 = vpop.f32.mrf.mxu0
  %v648 = vadd.f32 %v186, %v647
  %v649 = vpop.f32.mrf.mxu0
  %v650 = vadd.f32 %v190, %v649
  %v651 = vpop.f32.mrf.mxu0
  %v652 = vadd.f32 %v186, %v651
  %v653 = vpop.f32.mrf.mxu0
  %v654 = vadd.f32 %v190, %v653
  %655 = vmatprep.mubr.bf16.mxu0 %v252
  %656 = vmatmul.mubr.bf16.gmra.mxu0 %v251
  %v657 = vpop.f32.mrf.mxu0
  %v658 = vadd.f32 %v186, %v657
  %v659 = vpop.f32.mrf.mxu0
  %v660 = vadd.f32 %v190, %v659
  %v661 = vpop.f32.mrf.mxu0
  %v662 = vadd.f32 %v186, %v661
  %v663 = vpop.f32.mrf.mxu0
  %v664 = vadd.f32 %v190, %v663
  %665 = vmatprep.mubr.bf16.mxu0 %v254
  %666 = vmatmul.mubr.bf16.gmra.mxu0 %v253
  %v667 = vpop.f32.mrf.mxu0
  %v668 = vadd.f32 %v186, %v667
  %v669 = vpop.f32.mrf.mxu0
  %v670 = vadd.f32 %v190, %v669
  %v671 = vpop.f32.mrf.mxu0
  %v672 = vadd.f32 %v186, %v671
  %v673 = vpop.f32.mrf.mxu0
  %v674 = vadd.f32 %v190, %v673
  %675 = vmatprep.mubr.bf16.mxu0 %v256
  %676 = vmatmul.mubr.bf16.gmra.mxu0 %v255
  %v677 = vpop.f32.mrf.mxu0
  %v678 = vadd.f32 %v186, %v677
  %v679 = vpop.f32.mrf.mxu0
  %v680 = vadd.f32 %v190, %v679
  %v681 = vpop.f32.mrf.mxu0
  %v682 = vadd.f32 %v186, %v681
  %v683 = vpop.f32.mrf.mxu0
  %v684 = vadd.f32 %v190, %v683
  %685 = vmatprep.mubr.bf16.mxu0 %v258
  %686 = vmatmul.mubr.bf16.gmra.mxu0 %v257
  %v687 = vpop.f32.mrf.mxu0
  %v688 = vadd.f32 %v186, %v687
  %v689 = vpop.f32.mrf.mxu0
  %v690 = vadd.f32 %v190, %v689
  %v691 = vpop.f32.mrf.mxu0
  %v692 = vadd.f32 %v186, %v691
  %v693 = vpop.f32.mrf.mxu0
  %v694 = vadd.f32 %v190, %v693
  %695 = vdwg.mxu0
  %696 = vmatprep.subr.bf16.mxu0 %v496
  %697 = vmatpush1.bf16.msra.mxu0 %v495
  %698 = vmatprep.subr.bf16.mxu0 %v492
  %699 = vmatpush1.bf16.msra.mxu0 %v491
  %700 = vmatprep.subr.bf16.mxu0 %v488
  %701 = vmatpush1.bf16.msra.mxu0 %v487
  %702 = vmatprep.subr.bf16.mxu0 %v484
  %703 = vmatpush1.bf16.msra.mxu0 %v483
  %704 = vmatprep.subr.bf16.mxu0 %v480
  %705 = vmatpush1.bf16.msra.mxu0 %v479
  %706 = vmatprep.subr.bf16.mxu0 %v476
  %707 = vmatpush1.bf16.msra.mxu0 %v475
  %708 = vmatprep.subr.bf16.mxu0 %v472
  %709 = vmatpush1.bf16.msra.mxu0 %v471
  %710 = vmatprep.subr.bf16.mxu0 %v468
  %711 = vmatpush1.bf16.msra.mxu0 %v467
  %712 = vmatprep.subr.bf16.mxu0 %v528
  %713 = vmatpush2.bf16.msra.mxu0 %v527
  %714 = vmatprep.subr.bf16.mxu0 %v524
  %715 = vmatpush2.bf16.msra.mxu0 %v523
  %716 = vmatprep.subr.bf16.mxu0 %v520
  %717 = vmatpush2.bf16.msra.mxu0 %v519
  %718 = vmatprep.subr.bf16.mxu0 %v516
  %719 = vmatpush2.bf16.msra.mxu0 %v515
  %720 = vmatprep.subr.bf16.mxu0 %v512
  %721 = vmatpush2.bf16.msra.mxu0 %v511
  %722 = vmatprep.subr.bf16.mxu0 %v508
  %723 = vmatpush2.bf16.msra.mxu0 %v507
  %724 = vmatprep.subr.bf16.mxu0 %v504
  %725 = vmatpush2.bf16.msra.mxu0 %v503
  %726 = vmatprep.subr.bf16.mxu0 %v500
  %727 = vmatpush2.bf16.msra.mxu0 %v499
  %728 = vmatprep.mubr.bf16.mxu0 %v246
  %729 = vmatmul.mubr.bf16.gmra.mxu0 %v245
  %v730 = vpop.f32.mrf.mxu0
  %v731 = vadd.f32 %v194, %v730
  %v732 = vpop.f32.mrf.mxu0
  %v733 = vadd.f32 %v198, %v732
  %v734 = vpop.f32.mrf.mxu0
  %v735 = vadd.f32 %v194, %v734
  %v736 = vpop.f32.mrf.mxu0
  %v737 = vadd.f32 %v198, %v736
  %738 = vmatprep.mubr.bf16.mxu0 %v248
  %739 = vmatmul.mubr.bf16.gmra.mxu0 %v247
  %v740 = vpop.f32.mrf.mxu0
  %v741 = vadd.f32 %v194, %v740
  %v742 = vpop.f32.mrf.mxu0
  %v743 = vadd.f32 %v198, %v742
  %v744 = vpop.f32.mrf.mxu0
  %v745 = vadd.f32 %v194, %v744
  %v746 = vpop.f32.mrf.mxu0
  %v747 = vadd.f32 %v198, %v746
  %748 = vmatprep.mubr.bf16.mxu0 %v250
  %749 = vmatmul.mubr.bf16.gmra.mxu0 %v249
  %v750 = vpop.f32.mrf.mxu0
  %v751 = vadd.f32 %v194, %v750
  %v752 = vpop.f32.mrf.mxu0
  %v753 = vadd.f32 %v198, %v752
  %v754 = vpop.f32.mrf.mxu0
  %v755 = vadd.f32 %v194, %v754
  %v756 = vpop.f32.mrf.mxu0
  %v757 = vadd.f32 %v198, %v756
  %758 = vmatprep.mubr.bf16.mxu0 %v252
  %759 = vmatmul.mubr.bf16.gmra.mxu0 %v251
  %v760 = vpop.f32.mrf.mxu0
  %v761 = vadd.f32 %v194, %v760
  %v762 = vpop.f32.mrf.mxu0
  %v763 = vadd.f32 %v198, %v762
  %v764 = vpop.f32.mrf.mxu0
  %v765 = vadd.f32 %v194, %v764
  %v766 = vpop.f32.mrf.mxu0
  %v767 = vadd.f32 %v198, %v766
  %768 = vmatprep.mubr.bf16.mxu0 %v254
  %769 = vmatmul.mubr.bf16.gmra.mxu0 %v253
  %v770 = vpop.f32.mrf.mxu0
  %v771 = vadd.f32 %v194, %v770
  %v772 = vpop.f32.mrf.mxu0
  %v773 = vadd.f32 %v198, %v772
  %v774 = vpop.f32.mrf.mxu0
  %v775 = vadd.f32 %v194, %v774
  %v776 = vpop.f32.mrf.mxu0
  %v777 = vadd.f32 %v198, %v776
  %778 = vmatprep.mubr.bf16.mxu0 %v256
  %779 = vmatmul.mubr.bf16.gmra.mxu0 %v255
  %v780 = vpop.f32.mrf.mxu0
  %v781 = vadd.f32 %v194, %v780
  %v782 = vpop.f32.mrf.mxu0
  %v783 = vadd.f32 %v198, %v782
  %v784 = vpop.f32.mrf.mxu0
  %v785 = vadd.f32 %v194, %v784
  %v786 = vpop.f32.mrf.mxu0
  %v787 = vadd.f32 %v198, %v786
  %788 = vmatprep.mubr.bf16.mxu0 %v258
  %789 = vmatmul.mubr.bf16.gmra.mxu0 %v257
  %v790 = vpop.f32.mrf.mxu0
  %v791 = vadd.f32 %v194, %v790
  %v792 = vpop.f32.mrf.mxu0
  %v793 = vadd.f32 %v198, %v792
  %v794 = vpop.f32.mrf.mxu0
  %v795 = vadd.f32 %v194, %v794
  %v796 = vpop.f32.mrf.mxu0
  %v797 = vadd.f32 %v198, %v796
  %798 = vdwg.mxu0
  %v799 = vpack.c.bf16 %v632, %v628
  %v800 = vpack.c.bf16 %v634, %v630
  %v801 = vpack.c.bf16 %v735, %v731
  %v802 = vpack.c.bf16 %v737, %v733
  %v803 = vpack.c.bf16 %v642, %v638
  %v804 = vpack.c.bf16 %v644, %v640
  %v805 = vpack.c.bf16 %v745, %v741
  %v806 = vpack.c.bf16 %v747, %v743
  %v807 = vpack.c.bf16 %v652, %v648
  %v808 = vpack.c.bf16 %v654, %v650
  %v809 = vpack.c.bf16 %v755, %v751
  %v810 = vpack.c.bf16 %v757, %v753
  %v811 = vpack.c.bf16 %v662, %v658
  %v812 = vpack.c.bf16 %v664, %v660
  %v813 = vpack.c.bf16 %v765, %v761
  %v814 = vpack.c.bf16 %v767, %v763
  %v815 = vpack.c.bf16 %v672, %v668
  %v816 = vpack.c.bf16 %v674, %v670
  %v817 = vpack.c.bf16 %v775, %v771
  %v818 = vpack.c.bf16 %v777, %v773
  %v819 = vpack.c.bf16 %v682, %v678
  %v820 = vpack.c.bf16 %v684, %v680
  %v821 = vpack.c.bf16 %v785, %v781
  %v822 = vpack.c.bf16 %v787, %v783
  %v823 = vpack.c.bf16 %v692, %v688
  %v824 = vpack.c.bf16 %v694, %v690
  %v825 = vpack.c.bf16 %v795, %v791
  %v826 = vpack.c.bf16 %v797, %v793
  %v855 = vunpack.c.l.b16 %v799
  %v856 = vunpack.c.l.b16 %v800
  %v857 = vunpack.c.l.b16 %v801
  %v858 = vunpack.c.l.b16 %v802
  %v859 = vunpack.c.h.b16 %v799
  %v860 = vunpack.c.h.b16 %v800
  %v861 = vunpack.c.h.b16 %v801
  %v862 = vunpack.c.h.b16 %v802
  %v863 = vunpack.c.l.b16 %v803
  %v864 = vunpack.c.l.b16 %v804
  %v865 = vunpack.c.l.b16 %v805
  %v866 = vunpack.c.l.b16 %v806
  %v867 = vunpack.c.h.b16 %v803
  %v868 = vunpack.c.h.b16 %v804
  %v869 = vunpack.c.h.b16 %v805
  %v870 = vunpack.c.h.b16 %v806
  %v871 = vunpack.c.l.b16 %v807
  %v872 = vunpack.c.l.b16 %v808
  %v873 = vunpack.c.l.b16 %v809
  %v874 = vunpack.c.l.b16 %v810
  %v875 = vunpack.c.h.b16 %v807
  %v876 = vunpack.c.h.b16 %v808
  %v877 = vunpack.c.h.b16 %v809
  %v878 = vunpack.c.h.b16 %v810
  %v879 = vunpack.c.l.b16 %v811
  %v880 = vunpack.c.l.b16 %v812
  %v881 = vunpack.c.l.b16 %v813
  %v882 = vunpack.c.l.b16 %v814
  %v883 = vunpack.c.h.b16 %v811
  %v884 = vunpack.c.h.b16 %v812
  %v885 = vunpack.c.h.b16 %v813
  %v886 = vunpack.c.h.b16 %v814
  %v887 = vunpack.c.l.b16 %v815
  %v888 = vunpack.c.l.b16 %v816
  %v889 = vunpack.c.l.b16 %v817
  %v890 = vunpack.c.l.b16 %v818
  %v891 = vunpack.c.h.b16 %v815
  %v892 = vunpack.c.h.b16 %v816
  %v893 = vunpack.c.h.b16 %v817
  %v894 = vunpack.c.h.b16 %v818
  %v895 = vunpack.c.l.b16 %v819
  %v896 = vunpack.c.l.b16 %v820
  %v897 = vunpack.c.l.b16 %v821
  %v898 = vunpack.c.l.b16 %v822
  %v899 = vunpack.c.h.b16 %v819
  %v900 = vunpack.c.h.b16 %v820
  %v901 = vunpack.c.h.b16 %v821
  %v902 = vunpack.c.h.b16 %v822
  %v903 = vunpack.c.l.b16 %v823
  %v904 = vunpack.c.l.b16 %v824
  %v905 = vunpack.c.l.b16 %v825
  %v906 = vunpack.c.l.b16 %v826
  %v907 = vunpack.c.h.b16 %v823
  %v908 = vunpack.c.h.b16 %v824
  %v909 = vunpack.c.h.b16 %v825
  %v910 = vunpack.c.h.b16 %v826
  %v911 = vpack.c.b16 %v856, %v855
  %v912 = vpack.c.b16 %v858, %v857
  %v913 = vpack.c.b16 %v860, %v859
  %v914 = vpack.c.b16 %v862, %v861
  %v915 = vpack.c.b16 %v864, %v863
  %v916 = vpack.c.b16 %v866, %v865
  %v917 = vpack.c.b16 %v868, %v867
  %v918 = vpack.c.b16 %v870, %v869
  %v919 = vpack.c.b16 %v872, %v871
  %v920 = vpack.c.b16 %v874, %v873
  %v921 = vpack.c.b16 %v876, %v875
  %v922 = vpack.c.b16 %v878, %v877
  %v923 = vpack.c.b16 %v880, %v879
  %v924 = vpack.c.b16 %v882, %v881
  %v925 = vpack.c.b16 %v884, %v883
  %v926 = vpack.c.b16 %v886, %v885
  %v927 = vpack.c.b16 %v888, %v887
  %v928 = vpack.c.b16 %v890, %v889
  %v929 = vpack.c.b16 %v892, %v891
  %v930 = vpack.c.b16 %v894, %v893
  %v931 = vpack.c.b16 %v896, %v895
  %v932 = vpack.c.b16 %v898, %v897
  %v933 = vpack.c.b16 %v900, %v899
  %v934 = vpack.c.b16 %v902, %v901
  %v935 = vpack.c.b16 %v904, %v903
  %v936 = vpack.c.b16 %v906, %v905
  %v937 = vpack.c.b16 %v908, %v907
  %v938 = vpack.c.b16 %v910, %v909
  %967 = vst [vmem:[%s3] sm:$0xff] %v911
  %968 = vst [vmem:[%s3 + $0x8] sm:$0xff] %v912
  %969 = vst [vmem:[%s3 + $0x10] sm:$0xff] %v913
  %970 = vst [vmem:[%s3 + $0x18] sm:$0xff] %v914
  %971 = vst [vmem:[%s3 + $0x20] sm:$0xff] %v915
  %972 = vst [vmem:[%s3 + $0x28] sm:$0xff] %v916
  %973 = vst [vmem:[%s3 + $0x30] sm:$0xff] %v917
  %974 = vst [vmem:[%s3 + $0x38] sm:$0xff] %v918
  %975 = vst [vmem:[%s3 + $0x40] sm:$0xff] %v919
  %976 = vst [vmem:[%s3 + $0x48] sm:$0xff] %v920
  %977 = vst [vmem:[%s3 + $0x50] sm:$0xff] %v921
  %978 = vst [vmem:[%s3 + $0x58] sm:$0xff] %v922
  %979 = vst [vmem:[%s3 + $0x60] sm:$0xff] %v923
  %980 = vst [vmem:[%s3 + $0x68] sm:$0xff] %v924
  %981 = vst [vmem:[%s3 + $0x70] sm:$0xff] %v925
  %982 = vst [vmem:[%s3 + $0x78] sm:$0xff] %v926
  %983 = vst [vmem:[%s3 + $0x80] sm:$0xff] %v927
  %984 = vst [vmem:[%s3 + $0x88] sm:$0xff] %v928
  %985 = vst [vmem:[%s3 + $0x90] sm:$0xff] %v929
  %986 = vst [vmem:[%s3 + $0x98] sm:$0xff] %v930
  %987 = vst [vmem:[%s3 + $0xa0] sm:$0xff] %v931
  %988 = vst [vmem:[%s3 + $0xa8] sm:$0xff] %v932
  %989 = vst [vmem:[%s3 + $0xb0] sm:$0xff] %v933
  %990 = vst [vmem:[%s3 + $0xb8] sm:$0xff] %v934
  %991 = vst [vmem:[%s3 + $0xc0] sm:$0xff] %v935
  %992 = vst [vmem:[%s3 + $0xc8] sm:$0xff] %v936
  %993 = vst [vmem:[%s3 + $0xd0] sm:$0xff] %v937
  %994 = vst [vmem:[%s3 + $0xd8] sm:$0xff] %v938
  %v995 = vmul.f32 %v628, %v89
  %v996 = vmul.f32 %v630, %v89
  %v997 = vmul.f32 %v731, %v89
  %v998 = vmul.f32 %v733, %v89
  %v999 = vmul.f32 %v632, %v90
  %v1000 = vmul.f32 %v634, %v90
  %v1001 = vmul.f32 %v735, %v90
  %v1002 = vmul.f32 %v737, %v90
  %v1003 = vmul.f32 %v638, %v91
  %v1004 = vmul.f32 %v640, %v91
  %v1005 = vmul.f32 %v741, %v91
  %v1006 = vmul.f32 %v743, %v91
  %v1007 = vmul.f32 %v642, %v92
  %v1008 = vmul.f32 %v644, %v92
  %v1009 = vmul.f32 %v745, %v92
  %v1010 = vmul.f32 %v747, %v92
  %v1011 = vmul.f32 %v648, %v93
  %v1012 = vmul.f32 %v650, %v93
  %v1013 = vmul.f32 %v751, %v93
  %v1014 = vmul.f32 %v753, %v93
  %v1015 = vmul.f32 %v652, %v94
  %v1016 = vmul.f32 %v654, %v94
  %v1017 = vmul.f32 %v755, %v94
  %v1018 = vmul.f32 %v757, %v94
  %v1019 = vmul.f32 %v658, %v95
  %v1020 = vmul.f32 %v660, %v95
  %v1021 = vmul.f32 %v761, %v95
  %v1022 = vmul.f32 %v763, %v95
  %v1023 = vmul.f32 %v662, %v96
  %v1024 = vmul.f32 %v664, %v96
  %v1025 = vmul.f32 %v765, %v96
  %v1026 = vmul.f32 %v767, %v96
  %v1027 = vmul.f32 %v668, %v97
  %v1028 = vmul.f32 %v670, %v97
  %v1029 = vmul.f32 %v771, %v97
  %v1030 = vmul.f32 %v773, %v97
  %v1031 = vmul.f32 %v672, %v98
  %v1032 = vmul.f32 %v674, %v98
  %v1033 = vmul.f32 %v775, %v98
  %v1034 = vmul.f32 %v777, %v98
  %v1035 = vmul.f32 %v678, %v99
  %v1036 = vmul.f32 %v680, %v99
  %v1037 = vmul.f32 %v781, %v99
  %v1038 = vmul.f32 %v783, %v99
  %v1039 = vmul.f32 %v682, %v100
  %v1040 = vmul.f32 %v684, %v100
  %v1041 = vmul.f32 %v785, %v100
  %v1042 = vmul.f32 %v787, %v100
  %v1043 = vmul.f32 %v688, %v101
  %v1044 = vmul.f32 %v690, %v101
  %v1045 = vmul.f32 %v791, %v101
  %v1046 = vmul.f32 %v793, %v101
  %v1047 = vmul.f32 %v692, %v102
  %v1048 = vmul.f32 %v694, %v102
  %v1049 = vmul.f32 %v795, %v102
  %v1050 = vmul.f32 %v797, %v102
  %v1051 = vadd.f32 %v995, %v999
  %v1052 = vadd.f32 %v1051, %v1003
  %v1053 = vadd.f32 %v1052, %v1007
  %v1054 = vadd.f32 %v1053, %v1011
  %v1055 = vadd.f32 %v1054, %v1015
  %v1056 = vadd.f32 %v1055, %v1019
  %v1057 = vadd.f32 %v1056, %v1023
  %v1058 = vadd.f32 %v1057, %v1027
  %v1059 = vadd.f32 %v1058, %v1031
  %v1060 = vadd.f32 %v1059, %v1035
  %v1061 = vadd.f32 %v1060, %v1039
  %v1062 = vadd.f32 %v1061, %v1043
  %v1063 = vadd.f32 %v1062, %v1047
  %v1064 = vrot.slane %v1063, 4
  %v1065 = vadd.f32 %v1063, %v1064
  %v1066 = vrot.slane %v1065, 2
  %v1067 = vadd.f32 %v1065, %v1066
  %v1068 = vrot.slane %v1067, 1
  %v1069 = vadd.f32 %v1067, %v1068
  %v1070 = vadd.f32 %v996, %v1000
  %v1071 = vadd.f32 %v1070, %v1004
  %v1072 = vadd.f32 %v1071, %v1008
  %v1073 = vadd.f32 %v1072, %v1012
  %v1074 = vadd.f32 %v1073, %v1016
  %v1075 = vadd.f32 %v1074, %v1020
  %v1076 = vadd.f32 %v1075, %v1024
  %v1077 = vadd.f32 %v1076, %v1028
  %v1078 = vadd.f32 %v1077, %v1032
  %v1079 = vadd.f32 %v1078, %v1036
  %v1080 = vadd.f32 %v1079, %v1040
  %v1081 = vadd.f32 %v1080, %v1044
  %v1082 = vadd.f32 %v1081, %v1048
  %v1083 = vrot.slane %v1082, 4
  %v1084 = vadd.f32 %v1082, %v1083
  %v1085 = vrot.slane %v1084, 2
  %v1086 = vadd.f32 %v1084, %v1085
  %v1087 = vrot.slane %v1086, 1
  %v1088 = vadd.f32 %v1086, %v1087
  %v1089 = vadd.f32 %v997, %v1001
  %v1090 = vadd.f32 %v1089, %v1005
  %v1091 = vadd.f32 %v1090, %v1009
  %v1092 = vadd.f32 %v1091, %v1013
  %v1093 = vadd.f32 %v1092, %v1017
  %v1094 = vadd.f32 %v1093, %v1021
  %v1095 = vadd.f32 %v1094, %v1025
  %v1096 = vadd.f32 %v1095, %v1029
  %v1097 = vadd.f32 %v1096, %v1033
  %v1098 = vadd.f32 %v1097, %v1037
  %v1099 = vadd.f32 %v1098, %v1041
  %v1100 = vadd.f32 %v1099, %v1045
  %v1101 = vadd.f32 %v1100, %v1049
  %v1102 = vrot.slane %v1101, 4
  %v1103 = vadd.f32 %v1101, %v1102
  %v1104 = vrot.slane %v1103, 2
  %v1105 = vadd.f32 %v1103, %v1104
  %v1106 = vrot.slane %v1105, 1
  %v1107 = vadd.f32 %v1105, %v1106
  %v1108 = vadd.f32 %v998, %v1002
  %v1109 = vadd.f32 %v1108, %v1006
  %v1110 = vadd.f32 %v1109, %v1010
  %v1111 = vadd.f32 %v1110, %v1014
  %v1112 = vadd.f32 %v1111, %v1018
  %v1113 = vadd.f32 %v1112, %v1022
  %v1114 = vadd.f32 %v1113, %v1026
  %v1115 = vadd.f32 %v1114, %v1030
  %v1116 = vadd.f32 %v1115, %v1034
  %v1117 = vadd.f32 %v1116, %v1038
  %v1118 = vadd.f32 %v1117, %v1042
  %v1119 = vadd.f32 %v1118, %v1046
  %v1120 = vadd.f32 %v1119, %v1050
  %v1121 = vrot.slane %v1120, 4
  %v1122 = vadd.f32 %v1120, %v1121
  %v1123 = vrot.slane %v1122, 2
  %v1124 = vadd.f32 %v1122, %v1123
  %v1125 = vrot.slane %v1124, 1
  %v1126 = vadd.f32 %v1124, %v1125
  %v1127 = vadd.f32 %v1069, 0.0
  %v1128 = vadd.f32 %v1088, 0.0
  %v1129 = vadd.f32 %v1107, 0.0
  %v1130 = vadd.f32 %v1126, 0.0
  %v1131 = vmul.f32 %v628, %v995
  %v1132 = vmul.f32 %v630, %v996
  %v1133 = vmul.f32 %v731, %v997
  %v1134 = vmul.f32 %v733, %v998
  %v1135 = vmul.f32 %v632, %v999
  %v1136 = vmul.f32 %v634, %v1000
  %v1137 = vmul.f32 %v735, %v1001
  %v1138 = vmul.f32 %v737, %v1002
  %v1139 = vmul.f32 %v638, %v1003
  %v1140 = vmul.f32 %v640, %v1004
  %v1141 = vmul.f32 %v741, %v1005
  %v1142 = vmul.f32 %v743, %v1006
  %v1143 = vmul.f32 %v642, %v1007
  %v1144 = vmul.f32 %v644, %v1008
  %v1145 = vmul.f32 %v745, %v1009
  %v1146 = vmul.f32 %v747, %v1010
  %v1147 = vmul.f32 %v648, %v1011
  %v1148 = vmul.f32 %v650, %v1012
  %v1149 = vmul.f32 %v751, %v1013
  %v1150 = vmul.f32 %v753, %v1014
  %v1151 = vmul.f32 %v652, %v1015
  %v1152 = vmul.f32 %v654, %v1016
  %v1153 = vmul.f32 %v755, %v1017
  %v1154 = vmul.f32 %v757, %v1018
  %v1155 = vmul.f32 %v658, %v1019
  %v1156 = vmul.f32 %v660, %v1020
  %v1157 = vmul.f32 %v761, %v1021
  %v1158 = vmul.f32 %v763, %v1022
  %v1159 = vmul.f32 %v662, %v1023
  %v1160 = vmul.f32 %v664, %v1024
  %v1161 = vmul.f32 %v765, %v1025
  %v1162 = vmul.f32 %v767, %v1026
  %v1163 = vmul.f32 %v668, %v1027
  %v1164 = vmul.f32 %v670, %v1028
  %v1165 = vmul.f32 %v771, %v1029
  %v1166 = vmul.f32 %v773, %v1030
  %v1167 = vmul.f32 %v672, %v1031
  %v1168 = vmul.f32 %v674, %v1032
  %v1169 = vmul.f32 %v775, %v1033
  %v1170 = vmul.f32 %v777, %v1034
  %v1171 = vmul.f32 %v678, %v1035
  %v1172 = vmul.f32 %v680, %v1036
  %v1173 = vmul.f32 %v781, %v1037
  %v1174 = vmul.f32 %v783, %v1038
  %v1175 = vmul.f32 %v682, %v1039
  %v1176 = vmul.f32 %v684, %v1040
  %v1177 = vmul.f32 %v785, %v1041
  %v1178 = vmul.f32 %v787, %v1042
  %v1179 = vmul.f32 %v688, %v1043
  %v1180 = vmul.f32 %v690, %v1044
  %v1181 = vmul.f32 %v791, %v1045
  %v1182 = vmul.f32 %v793, %v1046
  %v1183 = vmul.f32 %v692, %v1047
  %v1184 = vmul.f32 %v694, %v1048
  %v1185 = vmul.f32 %v795, %v1049
  %v1186 = vmul.f32 %v797, %v1050
  %v1187 = vadd.f32 %v1131, %v1135
  %v1188 = vadd.f32 %v1187, %v1139
  %v1189 = vadd.f32 %v1188, %v1143
  %v1190 = vadd.f32 %v1189, %v1147
  %v1191 = vadd.f32 %v1190, %v1151
  %v1192 = vadd.f32 %v1191, %v1155
  %v1193 = vadd.f32 %v1192, %v1159
  %v1194 = vadd.f32 %v1193, %v1163
  %v1195 = vadd.f32 %v1194, %v1167
  %v1196 = vadd.f32 %v1195, %v1171
  %v1197 = vadd.f32 %v1196, %v1175
  %v1198 = vadd.f32 %v1197, %v1179
  %v1199 = vadd.f32 %v1198, %v1183
  %v1200 = vrot.slane %v1199, 4
  %v1201 = vadd.f32 %v1199, %v1200
  %v1202 = vrot.slane %v1201, 2
  %v1203 = vadd.f32 %v1201, %v1202
  %v1204 = vrot.slane %v1203, 1
  %v1205 = vadd.f32 %v1203, %v1204
  %v1206 = vadd.f32 %v1132, %v1136
  %v1207 = vadd.f32 %v1206, %v1140
  %v1208 = vadd.f32 %v1207, %v1144
  %v1209 = vadd.f32 %v1208, %v1148
  %v1210 = vadd.f32 %v1209, %v1152
  %v1211 = vadd.f32 %v1210, %v1156
  %v1212 = vadd.f32 %v1211, %v1160
  %v1213 = vadd.f32 %v1212, %v1164
  %v1214 = vadd.f32 %v1213, %v1168
  %v1215 = vadd.f32 %v1214, %v1172
  %v1216 = vadd.f32 %v1215, %v1176
  %v1217 = vadd.f32 %v1216, %v1180
  %v1218 = vadd.f32 %v1217, %v1184
  %v1219 = vrot.slane %v1218, 4
  %v1220 = vadd.f32 %v1218, %v1219
  %v1221 = vrot.slane %v1220, 2
  %v1222 = vadd.f32 %v1220, %v1221
  %v1223 = vrot.slane %v1222, 1
  %v1224 = vadd.f32 %v1222, %v1223
  %v1225 = vadd.f32 %v1133, %v1137
  %v1226 = vadd.f32 %v1225, %v1141
  %v1227 = vadd.f32 %v1226, %v1145
  %v1228 = vadd.f32 %v1227, %v1149
  %v1229 = vadd.f32 %v1228, %v1153
  %v1230 = vadd.f32 %v1229, %v1157
  %v1231 = vadd.f32 %v1230, %v1161
  %v1232 = vadd.f32 %v1231, %v1165
  %v1233 = vadd.f32 %v1232, %v1169
  %v1234 = vadd.f32 %v1233, %v1173
  %v1235 = vadd.f32 %v1234, %v1177
  %v1236 = vadd.f32 %v1235, %v1181
  %v1237 = vadd.f32 %v1236, %v1185
  %v1238 = vrot.slane %v1237, 4
  %v1239 = vadd.f32 %v1237, %v1238
  %v1240 = vrot.slane %v1239, 2
  %v1241 = vadd.f32 %v1239, %v1240
  %v1242 = vrot.slane %v1241, 1
  %v1243 = vadd.f32 %v1241, %v1242
  %v1244 = vadd.f32 %v1134, %v1138
  %v1245 = vadd.f32 %v1244, %v1142
  %v1246 = vadd.f32 %v1245, %v1146
  %v1247 = vadd.f32 %v1246, %v1150
  %v1248 = vadd.f32 %v1247, %v1154
  %v1249 = vadd.f32 %v1248, %v1158
  %v1250 = vadd.f32 %v1249, %v1162
  %v1251 = vadd.f32 %v1250, %v1166
  %v1252 = vadd.f32 %v1251, %v1170
  %v1253 = vadd.f32 %v1252, %v1174
  %v1254 = vadd.f32 %v1253, %v1178
  %v1255 = vadd.f32 %v1254, %v1182
  %v1256 = vadd.f32 %v1255, %v1186
  %v1257 = vrot.slane %v1256, 4
  %v1258 = vadd.f32 %v1256, %v1257
  %v1259 = vrot.slane %v1258, 2
  %v1260 = vadd.f32 %v1258, %v1259
  %v1261 = vrot.slane %v1260, 1
  %v1262 = vadd.f32 %v1260, %v1261
  %v1263 = vadd.f32 %v1205, 0.0
  %v1264 = vadd.f32 %v1224, 0.0
  %v1265 = vadd.f32 %v1243, 0.0
  %v1266 = vadd.f32 %v1262, 0.0
  %s1267 = scalar_lea.vmem %s0, 112
  %v1268 = vld [vmem:[%s1267] sm:$0xff]
  %v1269 = vld [vmem:[%s1267 + $0x8] sm:$0xff]
  %v1270 = vld [vmem:[%s1267 + $0x10] sm:$0xff]
  %v1271 = vld [vmem:[%s1267 + $0x18] sm:$0xff]
  %v1272 = vld [vmem:[%s1267 + $0x20] sm:$0xff]
  %v1273 = vld [vmem:[%s1267 + $0x28] sm:$0xff]
  %v1274 = vld [vmem:[%s1267 + $0x30] sm:$0xff]
  %v1275 = vld [vmem:[%s1267 + $0x38] sm:$0xff]
  %v1276 = vld [vmem:[%s1267 + $0x40] sm:$0xff]
  %v1277 = vld [vmem:[%s1267 + $0x48] sm:$0xff]
  %v1278 = vld [vmem:[%s1267 + $0x50] sm:$0xff]
  %v1279 = vld [vmem:[%s1267 + $0x58] sm:$0xff]
  %v1280 = vld [vmem:[%s1267 + $0x60] sm:$0xff]
  %v1281 = vld [vmem:[%s1267 + $0x68] sm:$0xff]
  %v1296 = vunpack.c.l.b16 %v1268
  %v1297 = vunpack.c.h.b16 %v1268
  %v1298 = vunpack.c.l.b16 %v1269
  %v1299 = vunpack.c.h.b16 %v1269
  %v1300 = vunpack.c.l.b16 %v1270
  %v1301 = vunpack.c.h.b16 %v1270
  %v1302 = vunpack.c.l.b16 %v1271
  %v1303 = vunpack.c.h.b16 %v1271
  %v1304 = vunpack.c.l.b16 %v1272
  %v1305 = vunpack.c.h.b16 %v1272
  %v1306 = vunpack.c.l.b16 %v1273
  %v1307 = vunpack.c.h.b16 %v1273
  %v1308 = vunpack.c.l.b16 %v1274
  %v1309 = vunpack.c.h.b16 %v1274
  %v1310 = vunpack.c.l.b16 %v1275
  %v1311 = vunpack.c.h.b16 %v1275
  %v1312 = vunpack.c.l.b16 %v1276
  %v1313 = vunpack.c.h.b16 %v1276
  %v1314 = vunpack.c.l.b16 %v1277
  %v1315 = vunpack.c.h.b16 %v1277
  %v1316 = vunpack.c.l.b16 %v1278
  %v1317 = vunpack.c.h.b16 %v1278
  %v1318 = vunpack.c.l.b16 %v1279
  %v1319 = vunpack.c.h.b16 %v1279
  %v1320 = vunpack.c.l.b16 %v1280
  %v1321 = vunpack.c.h.b16 %v1280
  %v1322 = vunpack.c.l.b16 %v1281
  %v1323 = vunpack.c.h.b16 %v1281
  %v1324 = vpack.c.b16 %v1298, %v1296
  %v1325 = vpack.c.b16 %v1299, %v1297
  %v1326 = vpack.c.b16 %v1302, %v1300
  %v1327 = vpack.c.b16 %v1303, %v1301
  %v1328 = vpack.c.b16 %v1306, %v1304
  %v1329 = vpack.c.b16 %v1307, %v1305
  %v1330 = vpack.c.b16 %v1310, %v1308
  %v1331 = vpack.c.b16 %v1311, %v1309
  %v1332 = vpack.c.b16 %v1314, %v1312
  %v1333 = vpack.c.b16 %v1315, %v1313
  %v1334 = vpack.c.b16 %v1318, %v1316
  %v1335 = vpack.c.b16 %v1319, %v1317
  %v1336 = vpack.c.b16 %v1322, %v1320
  %v1337 = vpack.c.b16 %v1323, %v1321
  %1352 = vmatprep.subr.bf16.mxu0 %v494
  %1353 = vmatpush1.bf16.msra.mxu0 %v493
  %1354 = vmatprep.subr.bf16.mxu0 %v490
  %1355 = vmatpush1.bf16.msra.mxu0 %v489
  %1356 = vmatprep.subr.bf16.mxu0 %v486
  %1357 = vmatpush1.bf16.msra.mxu0 %v485
  %1358 = vmatprep.subr.bf16.mxu0 %v482
  %1359 = vmatpush1.bf16.msra.mxu0 %v481
  %1360 = vmatprep.subr.bf16.mxu0 %v478
  %1361 = vmatpush1.bf16.msra.mxu0 %v477
  %1362 = vmatprep.subr.bf16.mxu0 %v474
  %1363 = vmatpush1.bf16.msra.mxu0 %v473
  %1364 = vmatprep.subr.bf16.mxu0 %v470
  %1365 = vmatpush1.bf16.msra.mxu0 %v469
  %1366 = vmatprep.subr.bf16.mxu0 %v466
  %1367 = vmatpush1.bf16.msra.mxu0 %v465
  %1368 = vmatprep.subr.bf16.mxu0 %v526
  %1369 = vmatpush2.bf16.msra.mxu0 %v525
  %1370 = vmatprep.subr.bf16.mxu0 %v522
  %1371 = vmatpush2.bf16.msra.mxu0 %v521
  %1372 = vmatprep.subr.bf16.mxu0 %v518
  %1373 = vmatpush2.bf16.msra.mxu0 %v517
  %1374 = vmatprep.subr.bf16.mxu0 %v514
  %1375 = vmatpush2.bf16.msra.mxu0 %v513
  %1376 = vmatprep.subr.bf16.mxu0 %v510
  %1377 = vmatpush2.bf16.msra.mxu0 %v509
  %1378 = vmatprep.subr.bf16.mxu0 %v506
  %1379 = vmatpush2.bf16.msra.mxu0 %v505
  %1380 = vmatprep.subr.bf16.mxu0 %v502
  %1381 = vmatpush2.bf16.msra.mxu0 %v501
  %1382 = vmatprep.subr.bf16.mxu0 %v498
  %1383 = vmatpush2.bf16.msra.mxu0 %v497
  %1384 = vmatprep.mubr.bf16.mxu0 %v1325
  %1385 = vmatmul.mubr.bf16.gmra.mxu0 %v1324
  %v1386 = vpop.f32.mrf.mxu0
  %v1387 = vadd.f32 %v186, %v1386
  %v1388 = vpop.f32.mrf.mxu0
  %v1389 = vadd.f32 %v190, %v1388
  %v1390 = vpop.f32.mrf.mxu0
  %v1391 = vadd.f32 %v186, %v1390
  %v1392 = vpop.f32.mrf.mxu0
  %v1393 = vadd.f32 %v190, %v1392
  %1394 = vmatprep.mubr.bf16.mxu0 %v1327
  %1395 = vmatmul.mubr.bf16.gmra.mxu0 %v1326
  %v1396 = vpop.f32.mrf.mxu0
  %v1397 = vadd.f32 %v186, %v1396
  %v1398 = vpop.f32.mrf.mxu0
  %v1399 = vadd.f32 %v190, %v1398
  %v1400 = vpop.f32.mrf.mxu0
  %v1401 = vadd.f32 %v186, %v1400
  %v1402 = vpop.f32.mrf.mxu0
  %v1403 = vadd.f32 %v190, %v1402
  %1404 = vmatprep.mubr.bf16.mxu0 %v1329
  %1405 = vmatmul.mubr.bf16.gmra.mxu0 %v1328
  %v1406 = vpop.f32.mrf.mxu0
  %v1407 = vadd.f32 %v186, %v1406
  %v1408 = vpop.f32.mrf.mxu0
  %v1409 = vadd.f32 %v190, %v1408
  %v1410 = vpop.f32.mrf.mxu0
  %v1411 = vadd.f32 %v186, %v1410
  %v1412 = vpop.f32.mrf.mxu0
  %v1413 = vadd.f32 %v190, %v1412
  %1414 = vmatprep.mubr.bf16.mxu0 %v1331
  %1415 = vmatmul.mubr.bf16.gmra.mxu0 %v1330
  %v1416 = vpop.f32.mrf.mxu0
  %v1417 = vadd.f32 %v186, %v1416
  %v1418 = vpop.f32.mrf.mxu0
  %v1419 = vadd.f32 %v190, %v1418
  %v1420 = vpop.f32.mrf.mxu0
  %v1421 = vadd.f32 %v186, %v1420
  %v1422 = vpop.f32.mrf.mxu0
  %v1423 = vadd.f32 %v190, %v1422
  %1424 = vmatprep.mubr.bf16.mxu0 %v1333
  %1425 = vmatmul.mubr.bf16.gmra.mxu0 %v1332
  %v1426 = vpop.f32.mrf.mxu0
  %v1427 = vadd.f32 %v186, %v1426
  %v1428 = vpop.f32.mrf.mxu0
  %v1429 = vadd.f32 %v190, %v1428
  %v1430 = vpop.f32.mrf.mxu0
  %v1431 = vadd.f32 %v186, %v1430
  %v1432 = vpop.f32.mrf.mxu0
  %v1433 = vadd.f32 %v190, %v1432
  %1434 = vmatprep.mubr.bf16.mxu0 %v1335
  %1435 = vmatmul.mubr.bf16.gmra.mxu0 %v1334
  %v1436 = vpop.f32.mrf.mxu0
  %v1437 = vadd.f32 %v186, %v1436
  %v1438 = vpop.f32.mrf.mxu0
  %v1439 = vadd.f32 %v190, %v1438
  %v1440 = vpop.f32.mrf.mxu0
  %v1441 = vadd.f32 %v186, %v1440
  %v1442 = vpop.f32.mrf.mxu0
  %v1443 = vadd.f32 %v190, %v1442
  %1444 = vmatprep.mubr.bf16.mxu0 %v1337
  %1445 = vmatmul.mubr.bf16.gmra.mxu0 %v1336
  %v1446 = vpop.f32.mrf.mxu0
  %v1447 = vadd.f32 %v186, %v1446
  %v1448 = vpop.f32.mrf.mxu0
  %v1449 = vadd.f32 %v190, %v1448
  %v1450 = vpop.f32.mrf.mxu0
  %v1451 = vadd.f32 %v186, %v1450
  %v1452 = vpop.f32.mrf.mxu0
  %v1453 = vadd.f32 %v190, %v1452
  %1454 = vdwg.mxu0
  %1455 = vmatprep.subr.bf16.mxu0 %v496
  %1456 = vmatpush1.bf16.msra.mxu0 %v495
  %1457 = vmatprep.subr.bf16.mxu0 %v492
  %1458 = vmatpush1.bf16.msra.mxu0 %v491
  %1459 = vmatprep.subr.bf16.mxu0 %v488
  %1460 = vmatpush1.bf16.msra.mxu0 %v487
  %1461 = vmatprep.subr.bf16.mxu0 %v484
  %1462 = vmatpush1.bf16.msra.mxu0 %v483
  %1463 = vmatprep.subr.bf16.mxu0 %v480
  %1464 = vmatpush1.bf16.msra.mxu0 %v479
  %1465 = vmatprep.subr.bf16.mxu0 %v476
  %1466 = vmatpush1.bf16.msra.mxu0 %v475
  %1467 = vmatprep.subr.bf16.mxu0 %v472
  %1468 = vmatpush1.bf16.msra.mxu0 %v471
  %1469 = vmatprep.subr.bf16.mxu0 %v468
  %1470 = vmatpush1.bf16.msra.mxu0 %v467
  %1471 = vmatprep.subr.bf16.mxu0 %v528
  %1472 = vmatpush2.bf16.msra.mxu0 %v527
  %1473 = vmatprep.subr.bf16.mxu0 %v524
  %1474 = vmatpush2.bf16.msra.mxu0 %v523
  %1475 = vmatprep.subr.bf16.mxu0 %v520
  %1476 = vmatpush2.bf16.msra.mxu0 %v519
  %1477 = vmatprep.subr.bf16.mxu0 %v516
  %1478 = vmatpush2.bf16.msra.mxu0 %v515
  %1479 = vmatprep.subr.bf16.mxu0 %v512
  %1480 = vmatpush2.bf16.msra.mxu0 %v511
  %1481 = vmatprep.subr.bf16.mxu0 %v508
  %1482 = vmatpush2.bf16.msra.mxu0 %v507
  %1483 = vmatprep.subr.bf16.mxu0 %v504
  %1484 = vmatpush2.bf16.msra.mxu0 %v503
  %1485 = vmatprep.subr.bf16.mxu0 %v500
  %1486 = vmatpush2.bf16.msra.mxu0 %v499
  %1487 = vmatprep.mubr.bf16.mxu0 %v1325
  %1488 = vmatmul.mubr.bf16.gmra.mxu0 %v1324
  %v1489 = vpop.f32.mrf.mxu0
  %v1490 = vadd.f32 %v194, %v1489
  %v1491 = vpop.f32.mrf.mxu0
  %v1492 = vadd.f32 %v198, %v1491
  %v1493 = vpop.f32.mrf.mxu0
  %v1494 = vadd.f32 %v194, %v1493
  %v1495 = vpop.f32.mrf.mxu0
  %v1496 = vadd.f32 %v198, %v1495
  %1497 = vmatprep.mubr.bf16.mxu0 %v1327
  %1498 = vmatmul.mubr.bf16.gmra.mxu0 %v1326
  %v1499 = vpop.f32.mrf.mxu0
  %v1500 = vadd.f32 %v194, %v1499
  %v1501 = vpop.f32.mrf.mxu0
  %v1502 = vadd.f32 %v198, %v1501
  %v1503 = vpop.f32.mrf.mxu0
  %v1504 = vadd.f32 %v194, %v1503
  %v1505 = vpop.f32.mrf.mxu0
  %v1506 = vadd.f32 %v198, %v1505
  %1507 = vmatprep.mubr.bf16.mxu0 %v1329
  %1508 = vmatmul.mubr.bf16.gmra.mxu0 %v1328
  %v1509 = vpop.f32.mrf.mxu0
  %v1510 = vadd.f32 %v194, %v1509
  %v1511 = vpop.f32.mrf.mxu0
  %v1512 = vadd.f32 %v198, %v1511
  %v1513 = vpop.f32.mrf.mxu0
  %v1514 = vadd.f32 %v194, %v1513
  %v1515 = vpop.f32.mrf.mxu0
  %v1516 = vadd.f32 %v198, %v1515
  %1517 = vmatprep.mubr.bf16.mxu0 %v1331
  %1518 = vmatmul.mubr.bf16.gmra.mxu0 %v1330
  %v1519 = vpop.f32.mrf.mxu0
  %v1520 = vadd.f32 %v194, %v1519
  %v1521 = vpop.f32.mrf.mxu0
  %v1522 = vadd.f32 %v198, %v1521
  %v1523 = vpop.f32.mrf.mxu0
  %v1524 = vadd.f32 %v194, %v1523
  %v1525 = vpop.f32.mrf.mxu0
  %v1526 = vadd.f32 %v198, %v1525
  %1527 = vmatprep.mubr.bf16.mxu0 %v1333
  %1528 = vmatmul.mubr.bf16.gmra.mxu0 %v1332
  %v1529 = vpop.f32.mrf.mxu0
  %v1530 = vadd.f32 %v194, %v1529
  %v1531 = vpop.f32.mrf.mxu0
  %v1532 = vadd.f32 %v198, %v1531
  %v1533 = vpop.f32.mrf.mxu0
  %v1534 = vadd.f32 %v194, %v1533
  %v1535 = vpop.f32.mrf.mxu0
  %v1536 = vadd.f32 %v198, %v1535
  %1537 = vmatprep.mubr.bf16.mxu0 %v1335
  %1538 = vmatmul.mubr.bf16.gmra.mxu0 %v1334
  %v1539 = vpop.f32.mrf.mxu0
  %v1540 = vadd.f32 %v194, %v1539
  %v1541 = vpop.f32.mrf.mxu0
  %v1542 = vadd.f32 %v198, %v1541
  %v1543 = vpop.f32.mrf.mxu0
  %v1544 = vadd.f32 %v194, %v1543
  %v1545 = vpop.f32.mrf.mxu0
  %v1546 = vadd.f32 %v198, %v1545
  %1547 = vmatprep.mubr.bf16.mxu0 %v1337
  %1548 = vmatmul.mubr.bf16.gmra.mxu0 %v1336
  %v1549 = vpop.f32.mrf.mxu0
  %v1550 = vadd.f32 %v194, %v1549
  %v1551 = vpop.f32.mrf.mxu0
  %v1552 = vadd.f32 %v198, %v1551
  %v1553 = vpop.f32.mrf.mxu0
  %v1554 = vadd.f32 %v194, %v1553
  %v1555 = vpop.f32.mrf.mxu0
  %v1556 = vadd.f32 %v198, %v1555
  %1557 = vdwg.mxu0
  %v1558 = vpack.c.bf16 %v1391, %v1387
  %v1559 = vpack.c.bf16 %v1393, %v1389
  %v1560 = vpack.c.bf16 %v1494, %v1490
  %v1561 = vpack.c.bf16 %v1496, %v1492
  %v1562 = vpack.c.bf16 %v1401, %v1397
  %v1563 = vpack.c.bf16 %v1403, %v1399
  %v1564 = vpack.c.bf16 %v1504, %v1500
  %v1565 = vpack.c.bf16 %v1506, %v1502
  %v1566 = vpack.c.bf16 %v1411, %v1407
  %v1567 = vpack.c.bf16 %v1413, %v1409
  %v1568 = vpack.c.bf16 %v1514, %v1510
  %v1569 = vpack.c.bf16 %v1516, %v1512
  %v1570 = vpack.c.bf16 %v1421, %v1417
  %v1571 = vpack.c.bf16 %v1423, %v1419
  %v1572 = vpack.c.bf16 %v1524, %v1520
  %v1573 = vpack.c.bf16 %v1526, %v1522
  %v1574 = vpack.c.bf16 %v1431, %v1427
  %v1575 = vpack.c.bf16 %v1433, %v1429
  %v1576 = vpack.c.bf16 %v1534, %v1530
  %v1577 = vpack.c.bf16 %v1536, %v1532
  %v1578 = vpack.c.bf16 %v1441, %v1437
  %v1579 = vpack.c.bf16 %v1443, %v1439
  %v1580 = vpack.c.bf16 %v1544, %v1540
  %v1581 = vpack.c.bf16 %v1546, %v1542
  %v1582 = vpack.c.bf16 %v1451, %v1447
  %v1583 = vpack.c.bf16 %v1453, %v1449
  %v1584 = vpack.c.bf16 %v1554, %v1550
  %v1585 = vpack.c.bf16 %v1556, %v1552
  %v1614 = vunpack.c.l.b16 %v1558
  %v1615 = vunpack.c.l.b16 %v1559
  %v1616 = vunpack.c.l.b16 %v1560
  %v1617 = vunpack.c.l.b16 %v1561
  %v1618 = vunpack.c.h.b16 %v1558
  %v1619 = vunpack.c.h.b16 %v1559
  %v1620 = vunpack.c.h.b16 %v1560
  %v1621 = vunpack.c.h.b16 %v1561
  %v1622 = vunpack.c.l.b16 %v1562
  %v1623 = vunpack.c.l.b16 %v1563
  %v1624 = vunpack.c.l.b16 %v1564
  %v1625 = vunpack.c.l.b16 %v1565
  %v1626 = vunpack.c.h.b16 %v1562
  %v1627 = vunpack.c.h.b16 %v1563
  %v1628 = vunpack.c.h.b16 %v1564
  %v1629 = vunpack.c.h.b16 %v1565
  %v1630 = vunpack.c.l.b16 %v1566
  %v1631 = vunpack.c.l.b16 %v1567
  %v1632 = vunpack.c.l.b16 %v1568
  %v1633 = vunpack.c.l.b16 %v1569
  %v1634 = vunpack.c.h.b16 %v1566
  %v1635 = vunpack.c.h.b16 %v1567
  %v1636 = vunpack.c.h.b16 %v1568
  %v1637 = vunpack.c.h.b16 %v1569
  %v1638 = vunpack.c.l.b16 %v1570
  %v1639 = vunpack.c.l.b16 %v1571
  %v1640 = vunpack.c.l.b16 %v1572
  %v1641 = vunpack.c.l.b16 %v1573
  %v1642 = vunpack.c.h.b16 %v1570
  %v1643 = vunpack.c.h.b16 %v1571
  %v1644 = vunpack.c.h.b16 %v1572
  %v1645 = vunpack.c.h.b16 %v1573
  %v1646 = vunpack.c.l.b16 %v1574
  %v1647 = vunpack.c.l.b16 %v1575
  %v1648 = vunpack.c.l.b16 %v1576
  %v1649 = vunpack.c.l.b16 %v1577
  %v1650 = vunpack.c.h.b16 %v1574
  %v1651 = vunpack.c.h.b16 %v1575
  %v1652 = vunpack.c.h.b16 %v1576
  %v1653 = vunpack.c.h.b16 %v1577
  %v1654 = vunpack.c.l.b16 %v1578
  %v1655 = vunpack.c.l.b16 %v1579
  %v1656 = vunpack.c.l.b16 %v1580
  %v1657 = vunpack.c.l.b16 %v1581
  %v1658 = vunpack.c.h.b16 %v1578
  %v1659 = vunpack.c.h.b16 %v1579
  %v1660 = vunpack.c.h.b16 %v1580
  %v1661 = vunpack.c.h.b16 %v1581
  %v1662 = vunpack.c.l.b16 %v1582
  %v1663 = vunpack.c.l.b16 %v1583
  %v1664 = vunpack.c.l.b16 %v1584
  %v1665 = vunpack.c.l.b16 %v1585
  %v1666 = vunpack.c.h.b16 %v1582
  %v1667 = vunpack.c.h.b16 %v1583
  %v1668 = vunpack.c.h.b16 %v1584
  %v1669 = vunpack.c.h.b16 %v1585
  %v1670 = vpack.c.b16 %v1615, %v1614
  %v1671 = vpack.c.b16 %v1617, %v1616
  %v1672 = vpack.c.b16 %v1619, %v1618
  %v1673 = vpack.c.b16 %v1621, %v1620
  %v1674 = vpack.c.b16 %v1623, %v1622
  %v1675 = vpack.c.b16 %v1625, %v1624
  %v1676 = vpack.c.b16 %v1627, %v1626
  %v1677 = vpack.c.b16 %v1629, %v1628
  %v1678 = vpack.c.b16 %v1631, %v1630
  %v1679 = vpack.c.b16 %v1633, %v1632
  %v1680 = vpack.c.b16 %v1635, %v1634
  %v1681 = vpack.c.b16 %v1637, %v1636
  %v1682 = vpack.c.b16 %v1639, %v1638
  %v1683 = vpack.c.b16 %v1641, %v1640
  %v1684 = vpack.c.b16 %v1643, %v1642
  %v1685 = vpack.c.b16 %v1645, %v1644
  %v1686 = vpack.c.b16 %v1647, %v1646
  %v1687 = vpack.c.b16 %v1649, %v1648
  %v1688 = vpack.c.b16 %v1651, %v1650
  %v1689 = vpack.c.b16 %v1653, %v1652
  %v1690 = vpack.c.b16 %v1655, %v1654
  %v1691 = vpack.c.b16 %v1657, %v1656
  %v1692 = vpack.c.b16 %v1659, %v1658
  %v1693 = vpack.c.b16 %v1661, %v1660
  %v1694 = vpack.c.b16 %v1663, %v1662
  %v1695 = vpack.c.b16 %v1665, %v1664
  %v1696 = vpack.c.b16 %v1667, %v1666
  %v1697 = vpack.c.b16 %v1669, %v1668
  %s1726 = scalar_lea.vmem %s3, 224
  %1727 = vst [vmem:[%s1726] sm:$0xff] %v1670
  %1728 = vst [vmem:[%s1726 + $0x8] sm:$0xff] %v1671
  %1729 = vst [vmem:[%s1726 + $0x10] sm:$0xff] %v1672
  %1730 = vst [vmem:[%s1726 + $0x18] sm:$0xff] %v1673
  %1731 = vst [vmem:[%s1726 + $0x20] sm:$0xff] %v1674
  %1732 = vst [vmem:[%s1726 + $0x28] sm:$0xff] %v1675
  %1733 = vst [vmem:[%s1726 + $0x30] sm:$0xff] %v1676
  %1734 = vst [vmem:[%s1726 + $0x38] sm:$0xff] %v1677
  %1735 = vst [vmem:[%s1726 + $0x40] sm:$0xff] %v1678
  %1736 = vst [vmem:[%s1726 + $0x48] sm:$0xff] %v1679
  %1737 = vst [vmem:[%s1726 + $0x50] sm:$0xff] %v1680
  %1738 = vst [vmem:[%s1726 + $0x58] sm:$0xff] %v1681
  %1739 = vst [vmem:[%s1726 + $0x60] sm:$0xff] %v1682
  %1740 = vst [vmem:[%s1726 + $0x68] sm:$0xff] %v1683
  %1741 = vst [vmem:[%s1726 + $0x70] sm:$0xff] %v1684
  %1742 = vst [vmem:[%s1726 + $0x78] sm:$0xff] %v1685
  %1743 = vst [vmem:[%s1726 + $0x80] sm:$0xff] %v1686
  %1744 = vst [vmem:[%s1726 + $0x88] sm:$0xff] %v1687
  %1745 = vst [vmem:[%s1726 + $0x90] sm:$0xff] %v1688
  %1746 = vst [vmem:[%s1726 + $0x98] sm:$0xff] %v1689
  %1747 = vst [vmem:[%s1726 + $0xa0] sm:$0xff] %v1690
  %1748 = vst [vmem:[%s1726 + $0xa8] sm:$0xff] %v1691
  %1749 = vst [vmem:[%s1726 + $0xb0] sm:$0xff] %v1692
  %1750 = vst [vmem:[%s1726 + $0xb8] sm:$0xff] %v1693
  %1751 = vst [vmem:[%s1726 + $0xc0] sm:$0xff] %v1694
  %1752 = vst [vmem:[%s1726 + $0xc8] sm:$0xff] %v1695
  %1753 = vst [vmem:[%s1726 + $0xd0] sm:$0xff] %v1696
  %1754 = vst [vmem:[%s1726 + $0xd8] sm:$0xff] %v1697
  %v1755 = vmul.f32 %v1387, %v89
  %v1756 = vmul.f32 %v1389, %v89
  %v1757 = vmul.f32 %v1490, %v89
  %v1758 = vmul.f32 %v1492, %v89
  %v1759 = vmul.f32 %v1391, %v90
  %v1760 = vmul.f32 %v1393, %v90
  %v1761 = vmul.f32 %v1494, %v90
  %v1762 = vmul.f32 %v1496, %v90
  %v1763 = vmul.f32 %v1397, %v91
  %v1764 = vmul.f32 %v1399, %v91
  %v1765 = vmul.f32 %v1500, %v91
  %v1766 = vmul.f32 %v1502, %v91
  %v1767 = vmul.f32 %v1401, %v92
  %v1768 = vmul.f32 %v1403, %v92
  %v1769 = vmul.f32 %v1504, %v92
  %v1770 = vmul.f32 %v1506, %v92
  %v1771 = vmul.f32 %v1407, %v93
  %v1772 = vmul.f32 %v1409, %v93
  %v1773 = vmul.f32 %v1510, %v93
  %v1774 = vmul.f32 %v1512, %v93
  %v1775 = vmul.f32 %v1411, %v94
  %v1776 = vmul.f32 %v1413, %v94
  %v1777 = vmul.f32 %v1514, %v94
  %v1778 = vmul.f32 %v1516, %v94
  %v1779 = vmul.f32 %v1417, %v95
  %v1780 = vmul.f32 %v1419, %v95
  %v1781 = vmul.f32 %v1520, %v95
  %v1782 = vmul.f32 %v1522, %v95
  %v1783 = vmul.f32 %v1421, %v96
  %v1784 = vmul.f32 %v1423, %v96
  %v1785 = vmul.f32 %v1524, %v96
  %v1786 = vmul.f32 %v1526, %v96
  %v1787 = vmul.f32 %v1427, %v97
  %v1788 = vmul.f32 %v1429, %v97
  %v1789 = vmul.f32 %v1530, %v97
  %v1790 = vmul.f32 %v1532, %v97
  %v1791 = vmul.f32 %v1431, %v98
  %v1792 = vmul.f32 %v1433, %v98
  %v1793 = vmul.f32 %v1534, %v98
  %v1794 = vmul.f32 %v1536, %v98
  %v1795 = vmul.f32 %v1437, %v99
  %v1796 = vmul.f32 %v1439, %v99
  %v1797 = vmul.f32 %v1540, %v99
  %v1798 = vmul.f32 %v1542, %v99
  %v1799 = vmul.f32 %v1441, %v100
  %v1800 = vmul.f32 %v1443, %v100
  %v1801 = vmul.f32 %v1544, %v100
  %v1802 = vmul.f32 %v1546, %v100
  %v1803 = vmul.f32 %v1447, %v101
  %v1804 = vmul.f32 %v1449, %v101
  %v1805 = vmul.f32 %v1550, %v101
  %v1806 = vmul.f32 %v1552, %v101
  %v1807 = vmul.f32 %v1451, %v102
  %v1808 = vmul.f32 %v1453, %v102
  %v1809 = vmul.f32 %v1554, %v102
  %v1810 = vmul.f32 %v1556, %v102
  %v1811 = vadd.f32 %v1755, %v1759
  %v1812 = vadd.f32 %v1811, %v1763
  %v1813 = vadd.f32 %v1812, %v1767
  %v1814 = vadd.f32 %v1813, %v1771
  %v1815 = vadd.f32 %v1814, %v1775
  %v1816 = vadd.f32 %v1815, %v1779
  %v1817 = vadd.f32 %v1816, %v1783
  %v1818 = vadd.f32 %v1817, %v1787
  %v1819 = vadd.f32 %v1818, %v1791
  %v1820 = vadd.f32 %v1819, %v1795
  %v1821 = vadd.f32 %v1820, %v1799
  %v1822 = vadd.f32 %v1821, %v1803
  %v1823 = vadd.f32 %v1822, %v1807
  %v1824 = vrot.slane %v1823, 4
  %v1825 = vadd.f32 %v1823, %v1824
  %v1826 = vrot.slane %v1825, 2
  %v1827 = vadd.f32 %v1825, %v1826
  %v1828 = vrot.slane %v1827, 1
  %v1829 = vadd.f32 %v1827, %v1828
  %v1830 = vadd.f32 %v1756, %v1760
  %v1831 = vadd.f32 %v1830, %v1764
  %v1832 = vadd.f32 %v1831, %v1768
  %v1833 = vadd.f32 %v1832, %v1772
  %v1834 = vadd.f32 %v1833, %v1776
  %v1835 = vadd.f32 %v1834, %v1780
  %v1836 = vadd.f32 %v1835, %v1784
  %v1837 = vadd.f32 %v1836, %v1788
  %v1838 = vadd.f32 %v1837, %v1792
  %v1839 = vadd.f32 %v1838, %v1796
  %v1840 = vadd.f32 %v1839, %v1800
  %v1841 = vadd.f32 %v1840, %v1804
  %v1842 = vadd.f32 %v1841, %v1808
  %v1843 = vrot.slane %v1842, 4
  %v1844 = vadd.f32 %v1842, %v1843
  %v1845 = vrot.slane %v1844, 2
  %v1846 = vadd.f32 %v1844, %v1845
  %v1847 = vrot.slane %v1846, 1
  %v1848 = vadd.f32 %v1846, %v1847
  %v1849 = vadd.f32 %v1757, %v1761
  %v1850 = vadd.f32 %v1849, %v1765
  %v1851 = vadd.f32 %v1850, %v1769
  %v1852 = vadd.f32 %v1851, %v1773
  %v1853 = vadd.f32 %v1852, %v1777
  %v1854 = vadd.f32 %v1853, %v1781
  %v1855 = vadd.f32 %v1854, %v1785
  %v1856 = vadd.f32 %v1855, %v1789
  %v1857 = vadd.f32 %v1856, %v1793
  %v1858 = vadd.f32 %v1857, %v1797
  %v1859 = vadd.f32 %v1858, %v1801
  %v1860 = vadd.f32 %v1859, %v1805
  %v1861 = vadd.f32 %v1860, %v1809
  %v1862 = vrot.slane %v1861, 4
  %v1863 = vadd.f32 %v1861, %v1862
  %v1864 = vrot.slane %v1863, 2
  %v1865 = vadd.f32 %v1863, %v1864
  %v1866 = vrot.slane %v1865, 1
  %v1867 = vadd.f32 %v1865, %v1866
  %v1868 = vadd.f32 %v1758, %v1762
  %v1869 = vadd.f32 %v1868, %v1766
  %v1870 = vadd.f32 %v1869, %v1770
  %v1871 = vadd.f32 %v1870, %v1774
  %v1872 = vadd.f32 %v1871, %v1778
  %v1873 = vadd.f32 %v1872, %v1782
  %v1874 = vadd.f32 %v1873, %v1786
  %v1875 = vadd.f32 %v1874, %v1790
  %v1876 = vadd.f32 %v1875, %v1794
  %v1877 = vadd.f32 %v1876, %v1798
  %v1878 = vadd.f32 %v1877, %v1802
  %v1879 = vadd.f32 %v1878, %v1806
  %v1880 = vadd.f32 %v1879, %v1810
  %v1881 = vrot.slane %v1880, 4
  %v1882 = vadd.f32 %v1880, %v1881
  %v1883 = vrot.slane %v1882, 2
  %v1884 = vadd.f32 %v1882, %v1883
  %v1885 = vrot.slane %v1884, 1
  %v1886 = vadd.f32 %v1884, %v1885
  %v1887 = vadd.f32 %v1127, %v1829
  %v1888 = vadd.f32 %v1128, %v1848
  %v1889 = vadd.f32 %v1129, %v1867
  %v1890 = vadd.f32 %v1130, %v1886
  %v1891 = vmul.f32 %v1387, %v1755
  %v1892 = vmul.f32 %v1389, %v1756
  %v1893 = vmul.f32 %v1490, %v1757
  %v1894 = vmul.f32 %v1492, %v1758
  %v1895 = vmul.f32 %v1391, %v1759
  %v1896 = vmul.f32 %v1393, %v1760
  %v1897 = vmul.f32 %v1494, %v1761
  %v1898 = vmul.f32 %v1496, %v1762
  %v1899 = vmul.f32 %v1397, %v1763
  %v1900 = vmul.f32 %v1399, %v1764
  %v1901 = vmul.f32 %v1500, %v1765
  %v1902 = vmul.f32 %v1502, %v1766
  %v1903 = vmul.f32 %v1401, %v1767
  %v1904 = vmul.f32 %v1403, %v1768
  %v1905 = vmul.f32 %v1504, %v1769
  %v1906 = vmul.f32 %v1506, %v1770
  %v1907 = vmul.f32 %v1407, %v1771
  %v1908 = vmul.f32 %v1409, %v1772
  %v1909 = vmul.f32 %v1510, %v1773
  %v1910 = vmul.f32 %v1512, %v1774
  %v1911 = vmul.f32 %v1411, %v1775
  %v1912 = vmul.f32 %v1413, %v1776
  %v1913 = vmul.f32 %v1514, %v1777
  %v1914 = vmul.f32 %v1516, %v1778
  %v1915 = vmul.f32 %v1417, %v1779
  %v1916 = vmul.f32 %v1419, %v1780
  %v1917 = vmul.f32 %v1520, %v1781
  %v1918 = vmul.f32 %v1522, %v1782
  %v1919 = vmul.f32 %v1421, %v1783
  %v1920 = vmul.f32 %v1423, %v1784
  %v1921 = vmul.f32 %v1524, %v1785
  %v1922 = vmul.f32 %v1526, %v1786
  %v1923 = vmul.f32 %v1427, %v1787
  %v1924 = vmul.f32 %v1429, %v1788
  %v1925 = vmul.f32 %v1530, %v1789
  %v1926 = vmul.f32 %v1532, %v1790
  %v1927 = vmul.f32 %v1431, %v1791
  %v1928 = vmul.f32 %v1433, %v1792
  %v1929 = vmul.f32 %v1534, %v1793
  %v1930 = vmul.f32 %v1536, %v1794
  %v1931 = vmul.f32 %v1437, %v1795
  %v1932 = vmul.f32 %v1439, %v1796
  %v1933 = vmul.f32 %v1540, %v1797
  %v1934 = vmul.f32 %v1542, %v1798
  %v1935 = vmul.f32 %v1441, %v1799
  %v1936 = vmul.f32 %v1443, %v1800
  %v1937 = vmul.f32 %v1544, %v1801
  %v1938 = vmul.f32 %v1546, %v1802
  %v1939 = vmul.f32 %v1447, %v1803
  %v1940 = vmul.f32 %v1449, %v1804
  %v1941 = vmul.f32 %v1550, %v1805
  %v1942 = vmul.f32 %v1552, %v1806
  %v1943 = vmul.f32 %v1451, %v1807
  %v1944 = vmul.f32 %v1453, %v1808
  %v1945 = vmul.f32 %v1554, %v1809
  %v1946 = vmul.f32 %v1556, %v1810
  %v1947 = vadd.f32 %v1891, %v1895
  %v1948 = vadd.f32 %v1947, %v1899
  %v1949 = vadd.f32 %v1948, %v1903
  %v1950 = vadd.f32 %v1949, %v1907
  %v1951 = vadd.f32 %v1950, %v1911
  %v1952 = vadd.f32 %v1951, %v1915
  %v1953 = vadd.f32 %v1952, %v1919
  %v1954 = vadd.f32 %v1953, %v1923
  %v1955 = vadd.f32 %v1954, %v1927
  %v1956 = vadd.f32 %v1955, %v1931
  %v1957 = vadd.f32 %v1956, %v1935
  %v1958 = vadd.f32 %v1957, %v1939
  %v1959 = vadd.f32 %v1958, %v1943
  %v1960 = vrot.slane %v1959, 4
  %v1961 = vadd.f32 %v1959, %v1960
  %v1962 = vrot.slane %v1961, 2
  %v1963 = vadd.f32 %v1961, %v1962
  %v1964 = vrot.slane %v1963, 1
  %v1965 = vadd.f32 %v1963, %v1964
  %v1966 = vadd.f32 %v1892, %v1896
  %v1967 = vadd.f32 %v1966, %v1900
  %v1968 = vadd.f32 %v1967, %v1904
  %v1969 = vadd.f32 %v1968, %v1908
  %v1970 = vadd.f32 %v1969, %v1912
  %v1971 = vadd.f32 %v1970, %v1916
  %v1972 = vadd.f32 %v1971, %v1920
  %v1973 = vadd.f32 %v1972, %v1924
  %v1974 = vadd.f32 %v1973, %v1928
  %v1975 = vadd.f32 %v1974, %v1932
  %v1976 = vadd.f32 %v1975, %v1936
  %v1977 = vadd.f32 %v1976, %v1940
  %v1978 = vadd.f32 %v1977, %v1944
  %v1979 = vrot.slane %v1978, 4
  %v1980 = vadd.f32 %v1978, %v1979
  %v1981 = vrot.slane %v1980, 2
  %v1982 = vadd.f32 %v1980, %v1981
  %v1983 = vrot.slane %v1982, 1
  %v1984 = vadd.f32 %v1982, %v1983
  %v1985 = vadd.f32 %v1893, %v1897
  %v1986 = vadd.f32 %v1985, %v1901
  %v1987 = vadd.f32 %v1986, %v1905
  %v1988 = vadd.f32 %v1987, %v1909
  %v1989 = vadd.f32 %v1988, %v1913
  %v1990 = vadd.f32 %v1989, %v1917
  %v1991 = vadd.f32 %v1990, %v1921
  %v1992 = vadd.f32 %v1991, %v1925
  %v1993 = vadd.f32 %v1992, %v1929
  %v1994 = vadd.f32 %v1993, %v1933
  %v1995 = vadd.f32 %v1994, %v1937
  %v1996 = vadd.f32 %v1995, %v1941
  %v1997 = vadd.f32 %v1996, %v1945
  %v1998 = vrot.slane %v1997, 4
  %v1999 = vadd.f32 %v1997, %v1998
  %v2000 = vrot.slane %v1999, 2
  %v2001 = vadd.f32 %v1999, %v2000
  %v2002 = vrot.slane %v2001, 1
  %v2003 = vadd.f32 %v2001, %v2002
  %v2004 = vadd.f32 %v1894, %v1898
  %v2005 = vadd.f32 %v2004, %v1902
  %v2006 = vadd.f32 %v2005, %v1906
  %v2007 = vadd.f32 %v2006, %v1910
  %v2008 = vadd.f32 %v2007, %v1914
  %v2009 = vadd.f32 %v2008, %v1918
  %v2010 = vadd.f32 %v2009, %v1922
  %v2011 = vadd.f32 %v2010, %v1926
  %v2012 = vadd.f32 %v2011, %v1930
  %v2013 = vadd.f32 %v2012, %v1934
  %v2014 = vadd.f32 %v2013, %v1938
  %v2015 = vadd.f32 %v2014, %v1942
  %v2016 = vadd.f32 %v2015, %v1946
  %v2017 = vrot.slane %v2016, 4
  %v2018 = vadd.f32 %v2016, %v2017
  %v2019 = vrot.slane %v2018, 2
  %v2020 = vadd.f32 %v2018, %v2019
  %v2021 = vrot.slane %v2020, 1
  %v2022 = vadd.f32 %v2020, %v2021
  %v2023 = vadd.f32 %v1263, %v1965
  %v2024 = vadd.f32 %v1264, %v1984
  %v2025 = vadd.f32 %v1265, %v2003
  %v2026 = vadd.f32 %v1266, %v2022
  %v2031 = vcombine.low %v1887, %v1888
  %v2032 = vcombine.low %v1889, %v1890
  %v2034 = vunpack.c.l.s4 1966171168
  %v2035 = vunpack.c.0.s8 %v2034
  %v2036 = vlaneseq
  %v2037 = vshrl.u32 %v2036, 7
  %v2038 = vsub.s32 %v2035, %v2037
  %v2039 = vrot.slane %v2031, %v2038
  %v2041 = vunpack.c.l.s4 1966171168
  %v2042 = vunpack.c.0.s8 %v2041
  %v2043 = vlaneseq
  %v2044 = vshrl.u32 %v2043, 7
  %v2045 = vsub.s32 %v2042, %v2044
  %v2046 = vrot.slane %v2032, %v2045
  %v2047 = vcombine.low %v2039, %v2046
  %v2049 = vunpack.c.l.s4 1966171168
  %v2050 = vunpack.c.0.s8 %v2049
  %v2051 = vlaneseq
  %v2052 = vshrl.u32 %v2051, 7
  %v2053 = vsub.s32 %v2050, %v2052
  %v2054 = vrot.slane %v2047, %v2053
  %v2056 = vlaneseq
  %vm2057 = vcmp.ge.s32.totalorder %v2056, 0
  %vm2058 = vcmp.lt.s32.totalorder %v2056, 512
  %vm2059 = vmand %vm2057, %vm2058
  %2060 = vst.msk [vmem:[%s4] ss:$2 sm:$0xf] %vm2059, %v2054
  %v2065 = vcombine.low %v2023, %v2024
  %v2066 = vcombine.low %v2025, %v2026
  %v2068 = vunpack.c.l.s4 1966171168
  %v2069 = vunpack.c.0.s8 %v2068
  %v2070 = vlaneseq
  %v2071 = vshrl.u32 %v2070, 7
  %v2072 = vsub.s32 %v2069, %v2071
  %v2073 = vrot.slane %v2065, %v2072
  %v2075 = vunpack.c.l.s4 1966171168
  %v2076 = vunpack.c.0.s8 %v2075
  %v2077 = vlaneseq
  %v2078 = vshrl.u32 %v2077, 7
  %v2079 = vsub.s32 %v2076, %v2078
  %v2080 = vrot.slane %v2066, %v2079
  %v2081 = vcombine.low %v2073, %v2080
  %v2083 = vunpack.c.l.s4 1966171168
  %v2084 = vunpack.c.0.s8 %v2083
  %v2085 = vlaneseq
  %v2086 = vshrl.u32 %v2085, 7
  %v2087 = vsub.s32 %v2084, %v2086
  %v2088 = vrot.slane %v2081, %v2087
  %s2090 = scalar_lea.vmem %s4, 1
  %2091 = vst.msk [vmem:[%s2090] ss:$2 sm:$0xf] %vm2059, %v2088
  // Predicated region
  $region14: #{method_cnn_mnist_forward.3} parent=0 // pred_check
    _
  $region15: #{method_cnn_mnist_forward.3} parent=0 // pred_check_branch
    %2093 = sbr.rel (0) target = $region17
  $region16: #{method_cnn_mnist_forward.3} parent=0 // pred_region
    _
  $region17: #{method_cnn_mnist_forward.3} parent=0 // pred_fallthru
    _
  // Predicated region
  $region18: #{method_cnn_mnist_forward.3} parent=0 // pred_check
    _
  $region19: #{method_cnn_mnist_forward.3} parent=0 // pred_check_branch
    %2095 = sbr.rel (0) target = $region21
  $region20: #{method_cnn_mnist_forward.3} parent=0 // pred_region
    _
  $region21: #{method_cnn_mnist_forward.3} parent=0 // pred_fallthru
    _
  // Predicated region
  $region22: #{method_cnn_mnist_forward.3} parent=0 // pred_check
    _
  $region23: #{method_cnn_mnist_forward.3} parent=0 // pred_check_branch
    %2097 = sbr.rel (0) target = $region25
  $region24: #{method_cnn_mnist_forward.3} parent=0 // pred_region
    _
  $region25: #{method_cnn_mnist_forward.3} parent=0 // pred_fallthru
    _
  // Predicated region
  $region26: #{method_cnn_mnist_forward.3} parent=0 // pred_check
    _
  $region27: #{method_cnn_mnist_forward.3} parent=0 // pred_check_branch
    %2099 = sbr.rel (0) target = $region29
  $region28: #{method_cnn_mnist_forward.3} parent=0 // pred_region
    _
  $region29: #{method_cnn_mnist_forward.3} parent=0 // pred_fallthru
    _

// kernel: method_cnn_mnist_forward.4
$region0: #{method_cnn_mnist_forward.4}
  #allocation0 [shape = 'u32[]', space=smem, size = 0x4, offset = 0x4, fixed_abs, tag = 'smem constant byte address 0x4 - core index']
  #allocation1 [shape = 'u32[144,128]{1,0:T(1,128)}', space=vmem, size = 0x12000, scoped, tag = 'internal scratch']
  #allocation2 [shape = 'bf16[128,256]{1,0:T(8,128)(2,1)}', space=vmem, size = 0x10000, scoped, tag = 'scratch operand']
  %s0 = inlined_call_operand.vmem [shape: bf16[2,112,512], index: 0, kind: input, shape index: {}]
  %s1 = inlined_call_operand.vmem [shape: f32[1,512], index: 1, kind: input, shape index: {}]
  %s2 = inlined_call_operand.vmem [shape: f32[1,512], index: 2, kind: input, shape index: {}]
  %s3 = inlined_call_operand.vmem [shape: bf16[768,512], index: 3, kind: input, shape index: {}]
  %s4 = inlined_call_operand.vmem [shape: f32[1,512], index: 4, kind: input, shape index: {}]
  %s5 = inlined_call_operand.vmem [shape: bf16[112,512], index: 5, kind: output, shape index: {0}]
  %s6 = inlined_call_operand.vmem [shape: f32[1,2,512], index: 6, kind: output, shape index: {1}]
  %7 = xla_tuple %s5, %s6
  %s8 = sld [smem:[#allocation0]]
  $region38: #{method_cnn_mnist_forward.4} parent=0
    _
  %s10 = ssub.s32 1, %s8
  %s11 = scalar_select 0, %s10, %s8
  // Predicated region
  $region2: #{method_cnn_mnist_forward.4} parent=0 // pred_check
    _
  $region3: #{method_cnn_mnist_forward.4} parent=0 // pred_check_branch
    %13 = sbr.rel (0) target = $region5
  $region4: #{method_cnn_mnist_forward.4} parent=0 // pred_region
    _
  $region5: #{method_cnn_mnist_forward.4} parent=0 // pred_fallthru
    _
  // Predicated region
  $region6: #{method_cnn_mnist_forward.4} parent=0 // pred_check
    _
  $region7: #{method_cnn_mnist_forward.4} parent=0 // pred_check_branch
    %15 = sbr.rel (0) target = $region9
  $region8: #{method_cnn_mnist_forward.4} parent=0 // pred_region
    _
  $region9: #{method_cnn_mnist_forward.4} parent=0 // pred_fallthru
    _
  // Predicated region
  $region10: #{method_cnn_mnist_forward.4} parent=0 // pred_check
    _
  $region11: #{method_cnn_mnist_forward.4} parent=0 // pred_check_branch
    %17 = sbr.rel (0) target = $region13
  $region12: #{method_cnn_mnist_forward.4} parent=0 // pred_region
    _
  $region13: #{method_cnn_mnist_forward.4} parent=0 // pred_fallthru
    _
  // Predicated region
  $region14: #{method_cnn_mnist_forward.4} parent=0 // pred_check
    _
  $region15: #{method_cnn_mnist_forward.4} parent=0 // pred_check_branch
    %19 = sbr.rel (0) target = $region17
  $region16: #{method_cnn_mnist_forward.4} parent=0 // pred_region
    _
  $region17: #{method_cnn_mnist_forward.4} parent=0 // pred_fallthru
    _
  // Predicated region
  $region18: #{method_cnn_mnist_forward.4} parent=0 // pred_check
    _
  $region19: #{method_cnn_mnist_forward.4} parent=0 // pred_check_branch
    %21 = sbr.rel (0) target = $region21
  $region20: #{method_cnn_mnist_forward.4} parent=0 // pred_region
    _
  $region21: #{method_cnn_mnist_forward.4} parent=0 // pred_fallthru
    _
  %v23 = vld [vmem:[%s1] sm:$0xf]
  %v24 = vld [vmem:[%s2] sm:$0xf]
  %v25 = vld [vmem:[%s0] sm:$0xff]
  %v26 = vld [vmem:[%s0 + $0x8] sm:$0xff]
  %v27 = vld [vmem:[%s0 + $0x10] sm:$0xff]
  %v28 = vld [vmem:[%s0 + $0x18] sm:$0xff]
  %v29 = vld [vmem:[%s0 + $0x20] sm:$0xff]
  %v30 = vld [vmem:[%s0 + $0x28] sm:$0xff]
  %v31 = vld [vmem:[%s0 + $0x30] sm:$0xff]
  %v32 = vld [vmem:[%s0 + $0x38] sm:$0xff]
  %v33 = vld [vmem:[%s0 + $0x40] sm:$0xff]
  %v34 = vld [vmem:[%s0 + $0x48] sm:$0xff]
  %v35 = vld [vmem:[%s0 + $0x50] sm:$0xff]
  %v36 = vld [vmem:[%s0 + $0x58] sm:$0xff]
  %v37 = vld [vmem:[%s0 + $0x60] sm:$0xff]
  %v38 = vld [vmem:[%s0 + $0x68] sm:$0xff]
  %v39 = vld [vmem:[%s0 + $0x70] sm:$0xff]
  %v40 = vld [vmem:[%s0 + $0x78] sm:$0xff]
  %v41 = vld [vmem:[%s0 + $0x80] sm:$0xff]
  %v42 = vld [vmem:[%s0 + $0x88] sm:$0xff]
  %v43 = vld [vmem:[%s0 + $0x90] sm:$0xff]
  %v44 = vld [vmem:[%s0 + $0x98] sm:$0xff]
  %v45 = vld [vmem:[%s0 + $0xa0] sm:$0xff]
  %v46 = vld [vmem:[%s0 + $0xa8] sm:$0xff]
  %v47 = vld [vmem:[%s0 + $0xb0] sm:$0xff]
  %v48 = vld [vmem:[%s0 + $0xb8] sm:$0xff]
  %v49 = vld [vmem:[%s0 + $0xc0] sm:$0xff]
  %v50 = vld [vmem:[%s0 + $0xc8] sm:$0xff]
  %v51 = vld [vmem:[%s0 + $0xd0] sm:$0xff]
  %v52 = vld [vmem:[%s0 + $0xd8] sm:$0xff]
  %v53 = vunpack.c.l.bf16 %v25
  %v54 = vunpack.c.h.bf16 %v25
  %v55 = vunpack.c.l.bf16 %v26
  %v56 = vunpack.c.h.bf16 %v26
  %v57 = vunpack.c.l.bf16 %v27
  %v58 = vunpack.c.h.bf16 %v27
  %v59 = vunpack.c.l.bf16 %v28
  %v60 = vunpack.c.h.bf16 %v28
  %v61 = vunpack.c.l.bf16 %v29
  %v62 = vunpack.c.h.bf16 %v29
  %v63 = vunpack.c.l.bf16 %v30
  %v64 = vunpack.c.h.bf16 %v30
  %v65 = vunpack.c.l.bf16 %v31
  %v66 = vunpack.c.h.bf16 %v31
  %v67 = vunpack.c.l.bf16 %v32
  %v68 = vunpack.c.h.bf16 %v32
  %v69 = vunpack.c.l.bf16 %v33
  %v70 = vunpack.c.h.bf16 %v33
  %v71 = vunpack.c.l.bf16 %v34
  %v72 = vunpack.c.h.bf16 %v34
  %v73 = vunpack.c.l.bf16 %v35
  %v74 = vunpack.c.h.bf16 %v35
  %v75 = vunpack.c.l.bf16 %v36
  %v76 = vunpack.c.h.bf16 %v36
  %v77 = vunpack.c.l.bf16 %v37
  %v78 = vunpack.c.h.bf16 %v37
  %v79 = vunpack.c.l.bf16 %v38
  %v80 = vunpack.c.h.bf16 %v38
  %v81 = vunpack.c.l.bf16 %v39
  %v82 = vunpack.c.h.bf16 %v39
  %v83 = vunpack.c.l.bf16 %v40
  %v84 = vunpack.c.h.bf16 %v40
  %v85 = vunpack.c.l.bf16 %v41
  %v86 = vunpack.c.h.bf16 %v41
  %v87 = vunpack.c.l.bf16 %v42
  %v88 = vunpack.c.h.bf16 %v42
  %v89 = vunpack.c.l.bf16 %v43
  %v90 = vunpack.c.h.bf16 %v43
  %v91 = vunpack.c.l.bf16 %v44
  %v92 = vunpack.c.h.bf16 %v44
  %v93 = vunpack.c.l.bf16 %v45
  %v94 = vunpack.c.h.bf16 %v45
  %v95 = vunpack.c.l.bf16 %v46
  %v96 = vunpack.c.h.bf16 %v46
  %v97 = vunpack.c.l.bf16 %v47
  %v98 = vunpack.c.h.bf16 %v47
  %v99 = vunpack.c.l.bf16 %v48
  %v100 = vunpack.c.h.bf16 %v48
  %v101 = vunpack.c.l.bf16 %v49
  %v102 = vunpack.c.h.bf16 %v49
  %v103 = vunpack.c.l.bf16 %v50
  %v104 = vunpack.c.h.bf16 %v50
  %v105 = vunpack.c.l.bf16 %v51
  %v106 = vunpack.c.h.bf16 %v51
  %v107 = vunpack.c.l.bf16 %v52
  %v108 = vunpack.c.h.bf16 %v52
  %v110 = vlaneseq
  %v111 = vshrl.u32 %v110, 7
  %v112 = vsub.s32 0, %v111
  %v113 = vrot.slane %v23, %v112
  %v114 = vlaneseq
  %v115 = vshrl.u32 %v114, 7
  %v116 = vsub.s32 1, %v115
  %v117 = vrot.slane %v23, %v116
  %v118 = vlaneseq
  %v119 = vshrl.u32 %v118, 7
  %v120 = vsub.s32 2, %v119
  %v121 = vrot.slane %v23, %v120
  %v122 = vlaneseq
  %v123 = vshrl.u32 %v122, 7
  %v124 = vsub.s32 3, %v123
  %v125 = vrot.slane %v23, %v124
  %v130 = vmul.f32 %v53, %v113
  %v131 = vmul.f32 %v54, %v117
  %v132 = vmul.f32 %v55, %v121
  %v133 = vmul.f32 %v56, %v125
  %v134 = vmul.f32 %v57, %v113
  %v135 = vmul.f32 %v58, %v117
  %v136 = vmul.f32 %v59, %v121
  %v137 = vmul.f32 %v60, %v125
  %v138 = vmul.f32 %v61, %v113
  %v139 = vmul.f32 %v62, %v117
  %v140 = vmul.f32 %v63, %v121
  %v141 = vmul.f32 %v64, %v125
  %v142 = vmul.f32 %v65, %v113
  %v143 = vmul.f32 %v66, %v117
  %v144 = vmul.f32 %v67, %v121
  %v145 = vmul.f32 %v68, %v125
  %v146 = vmul.f32 %v69, %v113
  %v147 = vmul.f32 %v70, %v117
  %v148 = vmul.f32 %v71, %v121
  %v149 = vmul.f32 %v72, %v125
  %v150 = vmul.f32 %v73, %v113
  %v151 = vmul.f32 %v74, %v117
  %v152 = vmul.f32 %v75, %v121
  %v153 = vmul.f32 %v76, %v125
  %v154 = vmul.f32 %v77, %v113
  %v155 = vmul.f32 %v78, %v117
  %v156 = vmul.f32 %v79, %v121
  %v157 = vmul.f32 %v80, %v125
  %v158 = vmul.f32 %v81, %v113
  %v159 = vmul.f32 %v82, %v117
  %v160 = vmul.f32 %v83, %v121
  %v161 = vmul.f32 %v84, %v125
  %v162 = vmul.f32 %v85, %v113
  %v163 = vmul.f32 %v86, %v117
  %v164 = vmul.f32 %v87, %v121
  %v165 = vmul.f32 %v88, %v125
  %v166 = vmul.f32 %v89, %v113
  %v167 = vmul.f32 %v90, %v117
  %v168 = vmul.f32 %v91, %v121
  %v169 = vmul.f32 %v92, %v125
  %v170 = vmul.f32 %v93, %v113
  %v171 = vmul.f32 %v94, %v117
  %v172 = vmul.f32 %v95, %v121
  %v173 = vmul.f32 %v96, %v125
  %v174 = vmul.f32 %v97, %v113
  %v175 = vmul.f32 %v98, %v117
  %v176 = vmul.f32 %v99, %v121
  %v177 = vmul.f32 %v100, %v125
  %v178 = vmul.f32 %v101, %v113
  %v179 = vmul.f32 %v102, %v117
  %v180 = vmul.f32 %v103, %v121
  %v181 = vmul.f32 %v104, %v125
  %v182 = vmul.f32 %v105, %v113
  %v183 = vmul.f32 %v106, %v117
  %v184 = vmul.f32 %v107, %v121
  %v185 = vmul.f32 %v108, %v125
  %v187 = vlaneseq
  %v188 = vshrl.u32 %v187, 7
  %v189 = vsub.s32 0, %v188
  %v190 = vrot.slane %v24, %v189
  %v191 = vlaneseq
  %v192 = vshrl.u32 %v191, 7
  %v193 = vsub.s32 1, %v192
  %v194 = vrot.slane %v24, %v193
  %v195 = vlaneseq
  %v196 = vshrl.u32 %v195, 7
  %v197 = vsub.s32 2, %v196
  %v198 = vrot.slane %v24, %v197
  %v199 = vlaneseq
  %v200 = vshrl.u32 %v199, 7
  %v201 = vsub.s32 3, %v200
  %v202 = vrot.slane %v24, %v201
  %v207 = vadd.f32 %v130, %v190
  %v208 = vadd.f32 %v131, %v194
  %v209 = vadd.f32 %v132, %v198
  %v210 = vadd.f32 %v133, %v202
  %v211 = vadd.f32 %v134, %v190
  %v212 = vadd.f32 %v135, %v194
  %v213 = vadd.f32 %v136, %v198
  %v214 = vadd.f32 %v137, %v202
  %v215 = vadd.f32 %v138, %v190
  %v216 = vadd.f32 %v139, %v194
  %v217 = vadd.f32 %v140, %v198
  %v218 = vadd.f32 %v141, %v202
  %v219 = vadd.f32 %v142, %v190
  %v220 = vadd.f32 %v143, %v194
  %v221 = vadd.f32 %v144, %v198
  %v222 = vadd.f32 %v145, %v202
  %v223 = vadd.f32 %v146, %v190
  %v224 = vadd.f32 %v147, %v194
  %v225 = vadd.f32 %v148, %v198
  %v226 = vadd.f32 %v149, %v202
  %v227 = vadd.f32 %v150, %v190
  %v228 = vadd.f32 %v151, %v194
  %v229 = vadd.f32 %v152, %v198
  %v230 = vadd.f32 %v153, %v202
  %v231 = vadd.f32 %v154, %v190
  %v232 = vadd.f32 %v155, %v194
  %v233 = vadd.f32 %v156, %v198
  %v234 = vadd.f32 %v157, %v202
  %v235 = vadd.f32 %v158, %v190
  %v236 = vadd.f32 %v159, %v194
  %v237 = vadd.f32 %v160, %v198
  %v238 = vadd.f32 %v161, %v202
  %v239 = vadd.f32 %v162, %v190
  %v240 = vadd.f32 %v163, %v194
  %v241 = vadd.f32 %v164, %v198
  %v242 = vadd.f32 %v165, %v202
  %v243 = vadd.f32 %v166, %v190
  %v244 = vadd.f32 %v167, %v194
  %v245 = vadd.f32 %v168, %v198
  %v246 = vadd.f32 %v169, %v202
  %v247 = vadd.f32 %v170, %v190
  %v248 = vadd.f32 %v171, %v194
  %v249 = vadd.f32 %v172, %v198
  %v250 = vadd.f32 %v173, %v202
  %v251 = vadd.f32 %v174, %v190
  %v252 = vadd.f32 %v175, %v194
  %v253 = vadd.f32 %v176, %v198
  %v254 = vadd.f32 %v177, %v202
  %v255 = vadd.f32 %v178, %v190
  %v256 = vadd.f32 %v179, %v194
  %v257 = vadd.f32 %v180, %v198
  %v258 = vadd.f32 %v181, %v202
  %v259 = vadd.f32 %v182, %v190
  %v260 = vadd.f32 %v183, %v194
  %v261 = vadd.f32 %v184, %v198
  %v262 = vadd.f32 %v185, %v202
  %v263 = vmax.f32 %v207, 0.0
  %v264 = vmax.f32 %v208, 0.0
  %v265 = vmax.f32 %v209, 0.0
  %v266 = vmax.f32 %v210, 0.0
  %v267 = vmax.f32 %v211, 0.0
  %v268 = vmax.f32 %v212, 0.0
  %v269 = vmax.f32 %v213, 0.0
  %v270 = vmax.f32 %v214, 0.0
  %v271 = vmax.f32 %v215, 0.0
  %v272 = vmax.f32 %v216, 0.0
  %v273 = vmax.f32 %v217, 0.0
  %v274 = vmax.f32 %v218, 0.0
  %v275 = vmax.f32 %v219, 0.0
  %v276 = vmax.f32 %v220, 0.0
  %v277 = vmax.f32 %v221, 0.0
  %v278 = vmax.f32 %v222, 0.0
  %v279 = vmax.f32 %v223, 0.0
  %v280 = vmax.f32 %v224, 0.0
  %v281 = vmax.f32 %v225, 0.0
  %v282 = vmax.f32 %v226, 0.0
  %v283 = vmax.f32 %v227, 0.0
  %v284 = vmax.f32 %v228, 0.0
  %v285 = vmax.f32 %v229, 0.0
  %v286 = vmax.f32 %v230, 0.0
  %v287 = vmax.f32 %v231, 0.0
  %v288 = vmax.f32 %v232, 0.0
  %v289 = vmax.f32 %v233, 0.0
  %v290 = vmax.f32 %v234, 0.0
  %v291 = vmax.f32 %v235, 0.0
  %v292 = vmax.f32 %v236, 0.0
  %v293 = vmax.f32 %v237, 0.0
  %v294 = vmax.f32 %v238, 0.0
  %v295 = vmax.f32 %v239, 0.0
  %v296 = vmax.f32 %v240, 0.0
  %v297 = vmax.f32 %v241, 0.0
  %v298 = vmax.f32 %v242, 0.0
  %v299 = vmax.f32 %v243, 0.0
  %v300 = vmax.f32 %v244, 0.0
  %v301 = vmax.f32 %v245, 0.0
  %v302 = vmax.f32 %v246, 0.0
  %v303 = vmax.f32 %v247, 0.0
  %v304 = vmax.f32 %v248, 0.0
  %v305 = vmax.f32 %v249, 0.0
  %v306 = vmax.f32 %v250, 0.0
  %v307 = vmax.f32 %v251, 0.0
  %v308 = vmax.f32 %v252, 0.0
  %v309 = vmax.f32 %v253, 0.0
  %v310 = vmax.f32 %v254, 0.0
  %v311 = vmax.f32 %v255, 0.0
  %v312 = vmax.f32 %v256, 0.0
  %v313 = vmax.f32 %v257, 0.0
  %v314 = vmax.f32 %v258, 0.0
  %v315 = vmax.f32 %v259, 0.0
  %v316 = vmax.f32 %v260, 0.0
  %v317 = vmax.f32 %v261, 0.0
  %v318 = vmax.f32 %v262, 0.0
  %s319 = scalar_lea.vmem %s0, 224
  %v320 = vld [vmem:[%s319] sm:$0xff]
  %v321 = vld [vmem:[%s319 + $0x8] sm:$0xff]
  %v322 = vld [vmem:[%s319 + $0x10] sm:$0xff]
  %v323 = vld [vmem:[%s319 + $0x18] sm:$0xff]
  %v324 = vld [vmem:[%s319 + $0x20] sm:$0xff]
  %v325 = vld [vmem:[%s319 + $0x28] sm:$0xff]
  %v326 = vld [vmem:[%s319 + $0x30] sm:$0xff]
  %v327 = vld [vmem:[%s319 + $0x38] sm:$0xff]
  %v328 = vld [vmem:[%s319 + $0x40] sm:$0xff]
  %v329 = vld [vmem:[%s319 + $0x48] sm:$0xff]
  %v330 = vld [vmem:[%s319 + $0x50] sm:$0xff]
  %v331 = vld [vmem:[%s319 + $0x58] sm:$0xff]
  %v332 = vld [vmem:[%s319 + $0x60] sm:$0xff]
  %v333 = vld [vmem:[%s319 + $0x68] sm:$0xff]
  %v334 = vld [vmem:[%s319 + $0x70] sm:$0xff]
  %v335 = vld [vmem:[%s319 + $0x78] sm:$0xff]
  %v336 = vld [vmem:[%s319 + $0x80] sm:$0xff]
  %v337 = vld [vmem:[%s319 + $0x88] sm:$0xff]
  %v338 = vld [vmem:[%s319 + $0x90] sm:$0xff]
  %v339 = vld [vmem:[%s319 + $0x98] sm:$0xff]
  %v340 = vld [vmem:[%s319 + $0xa0] sm:$0xff]
  %v341 = vld [vmem:[%s319 + $0xa8] sm:$0xff]
  %v342 = vld [vmem:[%s319 + $0xb0] sm:$0xff]
  %v343 = vld [vmem:[%s319 + $0xb8] sm:$0xff]
  %v344 = vld [vmem:[%s319 + $0xc0] sm:$0xff]
  %v345 = vld [vmem:[%s319 + $0xc8] sm:$0xff]
  %v346 = vld [vmem:[%s319 + $0xd0] sm:$0xff]
  %v347 = vld [vmem:[%s319 + $0xd8] sm:$0xff]
  %v348 = vunpack.c.l.bf16 %v320
  %v349 = vunpack.c.h.bf16 %v320
  %v350 = vunpack.c.l.bf16 %v321
  %v351 = vunpack.c.h.bf16 %v321
  %v352 = vunpack.c.l.bf16 %v322
  %v353 = vunpack.c.h.bf16 %v322
  %v354 = vunpack.c.l.bf16 %v323
  %v355 = vunpack.c.h.bf16 %v323
  %v356 = vunpack.c.l.bf16 %v324
  %v357 = vunpack.c.h.bf16 %v324
  %v358 = vunpack.c.l.bf16 %v325
  %v359 = vunpack.c.h.bf16 %v325
  %v360 = vunpack.c.l.bf16 %v326
  %v361 = vunpack.c.h.bf16 %v326
  %v362 = vunpack.c.l.bf16 %v327
  %v363 = vunpack.c.h.bf16 %v327
  %v364 = vunpack.c.l.bf16 %v328
  %v365 = vunpack.c.h.bf16 %v328
  %v366 = vunpack.c.l.bf16 %v329
  %v367 = vunpack.c.h.bf16 %v329
  %v368 = vunpack.c.l.bf16 %v330
  %v369 = vunpack.c.h.bf16 %v330
  %v370 = vunpack.c.l.bf16 %v331
  %v371 = vunpack.c.h.bf16 %v331
  %v372 = vunpack.c.l.bf16 %v332
  %v373 = vunpack.c.h.bf16 %v332
  %v374 = vunpack.c.l.bf16 %v333
  %v375 = vunpack.c.h.bf16 %v333
  %v376 = vunpack.c.l.bf16 %v334
  %v377 = vunpack.c.h.bf16 %v334
  %v378 = vunpack.c.l.bf16 %v335
  %v379 = vunpack.c.h.bf16 %v335
  %v380 = vunpack.c.l.bf16 %v336
  %v381 = vunpack.c.h.bf16 %v336
  %v382 = vunpack.c.l.bf16 %v337
  %v383 = vunpack.c.h.bf16 %v337
  %v384 = vunpack.c.l.bf16 %v338
  %v385 = vunpack.c.h.bf16 %v338
  %v386 = vunpack.c.l.bf16 %v339
  %v387 = vunpack.c.h.bf16 %v339
  %v388 = vunpack.c.l.bf16 %v340
  %v389 = vunpack.c.h.bf16 %v340
  %v390 = vunpack.c.l.bf16 %v341
  %v391 = vunpack.c.h.bf16 %v341
  %v392 = vunpack.c.l.bf16 %v342
  %v393 = vunpack.c.h.bf16 %v342
  %v394 = vunpack.c.l.bf16 %v343
  %v395 = vunpack.c.h.bf16 %v343
  %v396 = vunpack.c.l.bf16 %v344
  %v397 = vunpack.c.h.bf16 %v344
  %v398 = vunpack.c.l.bf16 %v345
  %v399 = vunpack.c.h.bf16 %v345
  %v400 = vunpack.c.l.bf16 %v346
  %v401 = vunpack.c.h.bf16 %v346
  %v402 = vunpack.c.l.bf16 %v347
  %v403 = vunpack.c.h.bf16 %v347
  %v404 = vmul.f32 %v348, %v113
  %v405 = vmul.f32 %v349, %v117
  %v406 = vmul.f32 %v350, %v121
  %v407 = vmul.f32 %v351, %v125
  %v408 = vmul.f32 %v352, %v113
  %v409 = vmul.f32 %v353, %v117
  %v410 = vmul.f32 %v354, %v121
  %v411 = vmul.f32 %v355, %v125
  %v412 = vmul.f32 %v356, %v113
  %v413 = vmul.f32 %v357, %v117
  %v414 = vmul.f32 %v358, %v121
  %v415 = vmul.f32 %v359, %v125
  %v416 = vmul.f32 %v360, %v113
  %v417 = vmul.f32 %v361, %v117
  %v418 = vmul.f32 %v362, %v121
  %v419 = vmul.f32 %v363, %v125
  %v420 = vmul.f32 %v364, %v113
  %v421 = vmul.f32 %v365, %v117
  %v422 = vmul.f32 %v366, %v121
  %v423 = vmul.f32 %v367, %v125
  %v424 = vmul.f32 %v368, %v113
  %v425 = vmul.f32 %v369, %v117
  %v426 = vmul.f32 %v370, %v121
  %v427 = vmul.f32 %v371, %v125
  %v428 = vmul.f32 %v372, %v113
  %v429 = vmul.f32 %v373, %v117
  %v430 = vmul.f32 %v374, %v121
  %v431 = vmul.f32 %v375, %v125
  %v432 = vmul.f32 %v376, %v113
  %v433 = vmul.f32 %v377, %v117
  %v434 = vmul.f32 %v378, %v121
  %v435 = vmul.f32 %v379, %v125
  %v436 = vmul.f32 %v380, %v113
  %v437 = vmul.f32 %v381, %v117
  %v438 = vmul.f32 %v382, %v121
  %v439 = vmul.f32 %v383, %v125
  %v440 = vmul.f32 %v384, %v113
  %v441 = vmul.f32 %v385, %v117
  %v442 = vmul.f32 %v386, %v121
  %v443 = vmul.f32 %v387, %v125
  %v444 = vmul.f32 %v388, %v113
  %v445 = vmul.f32 %v389, %v117
  %v446 = vmul.f32 %v390, %v121
  %v447 = vmul.f32 %v391, %v125
  %v448 = vmul.f32 %v392, %v113
  %v449 = vmul.f32 %v393, %v117
  %v450 = vmul.f32 %v394, %v121
  %v451 = vmul.f32 %v395, %v125
  %v452 = vmul.f32 %v396, %v113
  %v453 = vmul.f32 %v397, %v117
  %v454 = vmul.f32 %v398, %v121
  %v455 = vmul.f32 %v399, %v125
  %v456 = vmul.f32 %v400, %v113
  %v457 = vmul.f32 %v401, %v117
  %v458 = vmul.f32 %v402, %v121
  %v459 = vmul.f32 %v403, %v125
  %v460 = vadd.f32 %v404, %v190
  %v461 = vadd.f32 %v405, %v194
  %v462 = vadd.f32 %v406, %v198
  %v463 = vadd.f32 %v407, %v202
  %v464 = vadd.f32 %v408, %v190
  %v465 = vadd.f32 %v409, %v194
  %v466 = vadd.f32 %v410, %v198
  %v467 = vadd.f32 %v411, %v202
  %v468 = vadd.f32 %v412, %v190
  %v469 = vadd.f32 %v413, %v194
  %v470 = vadd.f32 %v414, %v198
  %v471 = vadd.f32 %v415, %v202
  %v472 = vadd.f32 %v416, %v190
  %v473 = vadd.f32 %v417, %v194
  %v474 = vadd.f32 %v418, %v198
  %v475 = vadd.f32 %v419, %v202
  %v476 = vadd.f32 %v420, %v190
  %v477 = vadd.f32 %v421, %v194
  %v478 = vadd.f32 %v422, %v198
  %v479 = vadd.f32 %v423, %v202
  %v480 = vadd.f32 %v424, %v190
  %v481 = vadd.f32 %v425, %v194
  %v482 = vadd.f32 %v426, %v198
  %v483 = vadd.f32 %v427, %v202
  %v484 = vadd.f32 %v428, %v190
  %v485 = vadd.f32 %v429, %v194
  %v486 = vadd.f32 %v430, %v198
  %v487 = vadd.f32 %v431, %v202
  %v488 = vadd.f32 %v432, %v190
  %v489 = vadd.f32 %v433, %v194
  %v490 = vadd.f32 %v434, %v198
  %v491 = vadd.f32 %v435, %v202
  %v492 = vadd.f32 %v436, %v190
  %v493 = vadd.f32 %v437, %v194
  %v494 = vadd.f32 %v438, %v198
  %v495 = vadd.f32 %v439, %v202
  %v496 = vadd.f32 %v440, %v190
  %v497 = vadd.f32 %v441, %v194
  %v498 = vadd.f32 %v442, %v198
  %v499 = vadd.f32 %v443, %v202
  %v500 = vadd.f32 %v444, %v190
  %v501 = vadd.f32 %v445, %v194
  %v502 = vadd.f32 %v446, %v198
  %v503 = vadd.f32 %v447, %v202
  %v504 = vadd.f32 %v448, %v190
  %v505 = vadd.f32 %v449, %v194
  %v506 = vadd.f32 %v450, %v198
  %v507 = vadd.f32 %v451, %v202
  %v508 = vadd.f32 %v452, %v190
  %v509 = vadd.f32 %v453, %v194
  %v510 = vadd.f32 %v454, %v198
  %v511 = vadd.f32 %v455, %v202
  %v512 = vadd.f32 %v456, %v190
  %v513 = vadd.f32 %v457, %v194
  %v514 = vadd.f32 %v458, %v198
  %v515 = vadd.f32 %v459, %v202
  %v516 = vmax.f32 %v460, 0.0
  %v517 = vmax.f32 %v461, 0.0
  %v518 = vmax.f32 %v462, 0.0
  %v519 = vmax.f32 %v463, 0.0
  %v520 = vmax.f32 %v464, 0.0
  %v521 = vmax.f32 %v465, 0.0
  %v522 = vmax.f32 %v466, 0.0
  %v523 = vmax.f32 %v467, 0.0
  %v524 = vmax.f32 %v468, 0.0
  %v525 = vmax.f32 %v469, 0.0
  %v526 = vmax.f32 %v470, 0.0
  %v527 = vmax.f32 %v471, 0.0
  %v528 = vmax.f32 %v472, 0.0
  %v529 = vmax.f32 %v473, 0.0
  %v530 = vmax.f32 %v474, 0.0
  %v531 = vmax.f32 %v475, 0.0
  %v532 = vmax.f32 %v476, 0.0
  %v533 = vmax.f32 %v477, 0.0
  %v534 = vmax.f32 %v478, 0.0
  %v535 = vmax.f32 %v479, 0.0
  %v536 = vmax.f32 %v480, 0.0
  %v537 = vmax.f32 %v481, 0.0
  %v538 = vmax.f32 %v482, 0.0
  %v539 = vmax.f32 %v483, 0.0
  %v540 = vmax.f32 %v484, 0.0
  %v541 = vmax.f32 %v485, 0.0
  %v542 = vmax.f32 %v486, 0.0
  %v543 = vmax.f32 %v487, 0.0
  %v544 = vmax.f32 %v488, 0.0
  %v545 = vmax.f32 %v489, 0.0
  %v546 = vmax.f32 %v490, 0.0
  %v547 = vmax.f32 %v491, 0.0
  %v548 = vmax.f32 %v492, 0.0
  %v549 = vmax.f32 %v493, 0.0
  %v550 = vmax.f32 %v494, 0.0
  %v551 = vmax.f32 %v495, 0.0
  %v552 = vmax.f32 %v496, 0.0
  %v553 = vmax.f32 %v497, 0.0
  %v554 = vmax.f32 %v498, 0.0
  %v555 = vmax.f32 %v499, 0.0
  %v556 = vmax.f32 %v500, 0.0
  %v557 = vmax.f32 %v501, 0.0
  %v558 = vmax.f32 %v502, 0.0
  %v559 = vmax.f32 %v503, 0.0
  %v560 = vmax.f32 %v504, 0.0
  %v561 = vmax.f32 %v505, 0.0
  %v562 = vmax.f32 %v506, 0.0
  %v563 = vmax.f32 %v507, 0.0
  %v564 = vmax.f32 %v508, 0.0
  %v565 = vmax.f32 %v509, 0.0
  %v566 = vmax.f32 %v510, 0.0
  %v567 = vmax.f32 %v511, 0.0
  %v568 = vmax.f32 %v512, 0.0
  %v569 = vmax.f32 %v513, 0.0
  %v570 = vmax.f32 %v514, 0.0
  %v571 = vmax.f32 %v515, 0.0
  %v572 = vmax.f32 %v263, %v516
  %v573 = vmax.f32 %v264, %v517
  %v574 = vmax.f32 %v265, %v518
  %v575 = vmax.f32 %v266, %v519
  %v576 = vmax.f32 %v267, %v520
  %v577 = vmax.f32 %v268, %v521
  %v578 = vmax.f32 %v269, %v522
  %v579 = vmax.f32 %v270, %v523
  %v580 = vmax.f32 %v271, %v524
  %v581 = vmax.f32 %v272, %v525
  %v582 = vmax.f32 %v273, %v526
  %v583 = vmax.f32 %v274, %v527
  %v584 = vmax.f32 %v275, %v528
  %v585 = vmax.f32 %v276, %v529
  %v586 = vmax.f32 %v277, %v530
  %v587 = vmax.f32 %v278, %v531
  %v588 = vmax.f32 %v279, %v532
  %v589 = vmax.f32 %v280, %v533
  %v590 = vmax.f32 %v281, %v534
  %v591 = vmax.f32 %v282, %v535
  %v592 = vmax.f32 %v283, %v536
  %v593 = vmax.f32 %v284, %v537
  %v594 = vmax.f32 %v285, %v538
  %v595 = vmax.f32 %v286, %v539
  %v596 = vmax.f32 %v287, %v540
  %v597 = vmax.f32 %v288, %v541
  %v598 = vmax.f32 %v289, %v542
  %v599 = vmax.f32 %v290, %v543
  %v600 = vmax.f32 %v291, %v544
  %v601 = vmax.f32 %v292, %v545
  %v602 = vmax.f32 %v293, %v546
  %v603 = vmax.f32 %v294, %v547
  %v604 = vmax.f32 %v295, %v548
  %v605 = vmax.f32 %v296, %v549
  %v606 = vmax.f32 %v297, %v550
  %v607 = vmax.f32 %v298, %v551
  %v608 = vmax.f32 %v299, %v552
  %v609 = vmax.f32 %v300, %v553
  %v610 = vmax.f32 %v301, %v554
  %v611 = vmax.f32 %v302, %v555
  %v612 = vmax.f32 %v303, %v556
  %v613 = vmax.f32 %v304, %v557
  %v614 = vmax.f32 %v305, %v558
  %v615 = vmax.f32 %v306, %v559
  %v616 = vmax.f32 %v307, %v560
  %v617 = vmax.f32 %v308, %v561
  %v618 = vmax.f32 %v309, %v562
  %v619 = vmax.f32 %v310, %v563
  %v620 = vmax.f32 %v311, %v564
  %v621 = vmax.f32 %v312, %v565
  %v622 = vmax.f32 %v313, %v566
  %v623 = vmax.f32 %v314, %v567
  %v624 = vmax.f32 %v315, %v568
  %v625 = vmax.f32 %v316, %v569
  %v626 = vmax.f32 %v317, %v570
  %v627 = vmax.f32 %v318, %v571
  %v628 = vmax.f32 %v572, %v574
  %v629 = vmax.f32 %v573, %v575
  %v630 = vmax.f32 %v576, %v578
  %v631 = vmax.f32 %v577, %v579
  %v632 = vmax.f32 %v580, %v582
  %v633 = vmax.f32 %v581, %v583
  %v634 = vmax.f32 %v584, %v586
  %v635 = vmax.f32 %v585, %v587
  %v636 = vmax.f32 %v588, %v590
  %v637 = vmax.f32 %v589, %v591
  %v638 = vmax.f32 %v592, %v594
  %v639 = vmax.f32 %v593, %v595
  %v640 = vmax.f32 %v596, %v598
  %v641 = vmax.f32 %v597, %v599
  %v642 = vmax.f32 %v600, %v602
  %v643 = vmax.f32 %v601, %v603
  %v644 = vmax.f32 %v604, %v606
  %v645 = vmax.f32 %v605, %v607
  %v646 = vmax.f32 %v608, %v610
  %v647 = vmax.f32 %v609, %v611
  %v648 = vmax.f32 %v612, %v614
  %v649 = vmax.f32 %v613, %v615
  %v650 = vmax.f32 %v616, %v618
  %v651 = vmax.f32 %v617, %v619
  %v652 = vmax.f32 %v620, %v622
  %v653 = vmax.f32 %v621, %v623
  %v654 = vmax.f32 %v624, %v626
  %v655 = vmax.f32 %v625, %v627
  %656 = vst [vmem:[#allocation2] sm:$0xff] 0
  %657 = vst [vmem:[#allocation2 + $0x78] sm:$0xff] 0
  %v658 = vpack.c.bf16 %v630, %v628
  %v659 = vpack.c.bf16 %v631, %v629
  %v660 = vpack.c.bf16 %v634, %v632
  %v661 = vpack.c.bf16 %v635, %v633
  %v662 = vpack.c.bf16 %v638, %v636
  %v663 = vpack.c.bf16 %v639, %v637
  %v664 = vpack.c.bf16 %v642, %v640
  %v665 = vpack.c.bf16 %v643, %v641
  %v666 = vpack.c.bf16 %v646, %v644
  %v667 = vpack.c.bf16 %v647, %v645
  %v668 = vpack.c.bf16 %v650, %v648
  %v669 = vpack.c.bf16 %v651, %v649
  %v670 = vpack.c.bf16 %v654, %v652
  %v671 = vpack.c.bf16 %v655, %v653
  %v686 = vunpack.c.l.b16 %v658
  %v687 = vunpack.c.l.b16 %v659
  %v688 = vunpack.c.h.b16 %v658
  %v689 = vunpack.c.h.b16 %v659
  %v690 = vunpack.c.l.b16 %v660
  %v691 = vunpack.c.l.b16 %v661
  %v692 = vunpack.c.h.b16 %v660
  %v693 = vunpack.c.h.b16 %v661
  %v694 = vunpack.c.l.b16 %v662
  %v695 = vunpack.c.l.b16 %v663
  %v696 = vunpack.c.h.b16 %v662
  %v697 = vunpack.c.h.b16 %v663
  %v698 = vunpack.c.l.b16 %v664
  %v699 = vunpack.c.l.b16 %v665
  %v700 = vunpack.c.h.b16 %v664
  %v701 = vunpack.c.h.b16 %v665
  %v702 = vunpack.c.l.b16 %v666
  %v703 = vunpack.c.l.b16 %v667
  %v704 = vunpack.c.h.b16 %v666
  %v705 = vunpack.c.h.b16 %v667
  %v706 = vunpack.c.l.b16 %v668
  %v707 = vunpack.c.l.b16 %v669
  %v708 = vunpack.c.h.b16 %v668
  %v709 = vunpack.c.h.b16 %v669
  %v710 = vunpack.c.l.b16 %v670
  %v711 = vunpack.c.l.b16 %v671
  %v712 = vunpack.c.h.b16 %v670
  %v713 = vunpack.c.h.b16 %v671
  %v714 = vpack.c.b16 %v687, %v686
  %v715 = vpack.c.b16 %v689, %v688
  %v716 = vpack.c.b16 %v691, %v690
  %v717 = vpack.c.b16 %v693, %v692
  %v718 = vpack.c.b16 %v695, %v694
  %v719 = vpack.c.b16 %v697, %v696
  %v720 = vpack.c.b16 %v699, %v698
  %v721 = vpack.c.b16 %v701, %v700
  %v722 = vpack.c.b16 %v703, %v702
  %v723 = vpack.c.b16 %v705, %v704
  %v724 = vpack.c.b16 %v707, %v706
  %v725 = vpack.c.b16 %v709, %v708
  %v726 = vpack.c.b16 %v711, %v710
  %v727 = vpack.c.b16 %v713, %v712
  %742 = vst [vmem:[#allocation2 + $0x8] sm:$0xff] %v714
  %743 = vst [vmem:[#allocation2 + $0x10] sm:$0xff] %v715
  %744 = vst [vmem:[#allocation2 + $0x18] sm:$0xff] %v716
  %745 = vst [vmem:[#allocation2 + $0x20] sm:$0xff] %v717
  %746 = vst [vmem:[#allocation2 + $0x28] sm:$0xff] %v718
  %747 = vst [vmem:[#allocation2 + $0x30] sm:$0xff] %v719
  %748 = vst [vmem:[#allocation2 + $0x38] sm:$0xff] %v720
  %749 = vst [vmem:[#allocation2 + $0x40] sm:$0xff] %v721
  %750 = vst [vmem:[#allocation2 + $0x48] sm:$0xff] %v722
  %751 = vst [vmem:[#allocation2 + $0x50] sm:$0xff] %v723
  %752 = vst [vmem:[#allocation2 + $0x58] sm:$0xff] %v724
  %753 = vst [vmem:[#allocation2 + $0x60] sm:$0xff] %v725
  %754 = vst [vmem:[#allocation2 + $0x68] sm:$0xff] %v726
  %755 = vst [vmem:[#allocation2 + $0x70] sm:$0xff] %v727
  %v756 = vld [vmem:[#allocation2] sm:$0xff]
  %v757 = vld [vmem:[#allocation2 + $0x8] sm:$0xff]
  %v758 = vld [vmem:[#allocation2 + $0x10] sm:$0xff]
  %v759 = vld [vmem:[#allocation2 + $0x18] sm:$0xff]
  %v760 = vld [vmem:[#allocation2 + $0x20] sm:$0xff]
  %v761 = vld [vmem:[#allocation2 + $0x28] sm:$0xff]
  %v762 = vld [vmem:[#allocation2 + $0x30] sm:$0xff]
  %v763 = vld [vmem:[#allocation2 + $0x38] sm:$0xff]
  %v764 = vld [vmem:[#allocation2 + $0x40] sm:$0xff]
  %v765 = vld [vmem:[#allocation2 + $0x48] sm:$0xff]
  %v766 = vld [vmem:[#allocation2 + $0x50] sm:$0xff]
  %v767 = vld [vmem:[#allocation2 + $0x58] sm:$0xff]
  %v768 = vld [vmem:[#allocation2 + $0x60] sm:$0xff]
  %v769 = vld [vmem:[#allocation2 + $0x68] sm:$0xff]
  %v770 = vld [vmem:[%s3] sm:$0xff]
  %v771 = vld [vmem:[%s3 + $0x8] sm:$0xff]
  %v772 = vld [vmem:[%s3 + $0x10] sm:$0xff]
  %v773 = vld [vmem:[%s3 + $0x18] sm:$0xff]
  %v774 = vld [vmem:[%s3 + $0x20] sm:$0xff]
  %v775 = vld [vmem:[%s3 + $0x28] sm:$0xff]
  %v776 = vld [vmem:[%s3 + $0x30] sm:$0xff]
  %v777 = vld [vmem:[%s3 + $0x38] sm:$0xff]
  %v778 = vld [vmem:[%s3 + $0x40] sm:$0xff]
  %v779 = vld [vmem:[%s3 + $0x48] sm:$0xff]
  %v780 = vld [vmem:[%s3 + $0x50] sm:$0xff]
  %v781 = vld [vmem:[%s3 + $0x58] sm:$0xff]
  %v782 = vld [vmem:[%s3 + $0x60] sm:$0xff]
  %v783 = vld [vmem:[%s3 + $0x68] sm:$0xff]
  %v784 = vld [vmem:[%s3 + $0x70] sm:$0xff]
  %v785 = vld [vmem:[%s3 + $0x78] sm:$0xff]
  %v786 = vld [vmem:[%s3 + $0x80] sm:$0xff]
  %v787 = vld [vmem:[%s3 + $0x88] sm:$0xff]
  %v788 = vld [vmem:[%s3 + $0x90] sm:$0xff]
  %v789 = vld [vmem:[%s3 + $0x98] sm:$0xff]
  %v790 = vld [vmem:[%s3 + $0xa0] sm:$0xff]
  %v791 = vld [vmem:[%s3 + $0xa8] sm:$0xff]
  %v792 = vld [vmem:[%s3 + $0xb0] sm:$0xff]
  %v793 = vld [vmem:[%s3 + $0xb8] sm:$0xff]
  %v794 = vld [vmem:[%s3 + $0xc0] sm:$0xff]
  %v795 = vld [vmem:[%s3 + $0xc8] sm:$0xff]
  %v796 = vld [vmem:[%s3 + $0xd0] sm:$0xff]
  %v797 = vld [vmem:[%s3 + $0xd8] sm:$0xff]
  %v798 = vld [vmem:[%s3 + $0xe0] sm:$0xff]
  %v799 = vld [vmem:[%s3 + $0xe8] sm:$0xff]
  %v800 = vld [vmem:[%s3 + $0xf0] sm:$0xff]
  %v801 = vld [vmem:[%s3 + $0xf8] sm:$0xff]
  %v802 = vld [vmem:[%s3 + $0x100] sm:$0xff]
  %v803 = vld [vmem:[%s3 + $0x108] sm:$0xff]
  %v804 = vld [vmem:[%s3 + $0x110] sm:$0xff]
  %v805 = vld [vmem:[%s3 + $0x118] sm:$0xff]
  %v806 = vld [vmem:[%s3 + $0x120] sm:$0xff]
  %v807 = vld [vmem:[%s3 + $0x128] sm:$0xff]
  %v808 = vld [vmem:[%s3 + $0x130] sm:$0xff]
  %v809 = vld [vmem:[%s3 + $0x138] sm:$0xff]
  %v810 = vld [vmem:[%s3 + $0x140] sm:$0xff]
  %v811 = vld [vmem:[%s3 + $0x148] sm:$0xff]
  %v812 = vld [vmem:[%s3 + $0x150] sm:$0xff]
  %v813 = vld [vmem:[%s3 + $0x158] sm:$0xff]
  %v814 = vld [vmem:[%s3 + $0x160] sm:$0xff]
  %v815 = vld [vmem:[%s3 + $0x168] sm:$0xff]
  %v816 = vld [vmem:[%s3 + $0x170] sm:$0xff]
  %v817 = vld [vmem:[%s3 + $0x178] sm:$0xff]
  %v818 = vld [vmem:[%s3 + $0x180] sm:$0xff]
  %v819 = vld [vmem:[%s3 + $0x188] sm:$0xff]
  %v820 = vld [vmem:[%s3 + $0x190] sm:$0xff]
  %v821 = vld [vmem:[%s3 + $0x198] sm:$0xff]
  %v822 = vld [vmem:[%s3 + $0x1a0] sm:$0xff]
  %v823 = vld [vmem:[%s3 + $0x1a8] sm:$0xff]
  %v824 = vld [vmem:[%s3 + $0x1b0] sm:$0xff]
  %v825 = vld [vmem:[%s3 + $0x1b8] sm:$0xff]
  %v826 = vld [vmem:[%s3 + $0x1c0] sm:$0xff]
  %v827 = vld [vmem:[%s3 + $0x1c8] sm:$0xff]
  %v828 = vld [vmem:[%s3 + $0x1d0] sm:$0xff]
  %v829 = vld [vmem:[%s3 + $0x1d8] sm:$0xff]
  %v830 = vld [vmem:[%s3 + $0x1e0] sm:$0xff]
  %v831 = vld [vmem:[%s3 + $0x1e8] sm:$0xff]
  %v832 = vld [vmem:[%s3 + $0x1f0] sm:$0xff]
  %v833 = vld [vmem:[%s3 + $0x1f8] sm:$0xff]
  %v834 = vld [vmem:[#allocation2 + $0x70] sm:$0xff]
  %v835 = vld [vmem:[%s3 + $0x200] sm:$0xff]
  %v836 = vld [vmem:[%s3 + $0x208] sm:$0xff]
  %v837 = vld [vmem:[%s3 + $0x210] sm:$0xff]
  %v838 = vld [vmem:[%s3 + $0x218] sm:$0xff]
  %v839 = vld [vmem:[%s3 + $0x220] sm:$0xff]
  %v840 = vld [vmem:[%s3 + $0x228] sm:$0xff]
  %v841 = vld [vmem:[%s3 + $0x230] sm:$0xff]
  %v842 = vld [vmem:[%s3 + $0x238] sm:$0xff]
  %v843 = vld [vmem:[%s3 + $0x240] sm:$0xff]
  %v844 = vld [vmem:[%s3 + $0x248] sm:$0xff]
  %v845 = vld [vmem:[%s3 + $0x250] sm:$0xff]
  %v846 = vld [vmem:[%s3 + $0x258] sm:$0xff]
  %v847 = vld [vmem:[%s3 + $0x260] sm:$0xff]
  %v848 = vld [vmem:[%s3 + $0x268] sm:$0xff]
  %v849 = vld [vmem:[%s3 + $0x270] sm:$0xff]
  %v850 = vld [vmem:[%s3 + $0x278] sm:$0xff]
  %v851 = vld [vmem:[%s3 + $0x280] sm:$0xff]
  %v852 = vld [vmem:[%s3 + $0x288] sm:$0xff]
  %v853 = vld [vmem:[%s3 + $0x290] sm:$0xff]
  %v854 = vld [vmem:[%s3 + $0x298] sm:$0xff]
  %v855 = vld [vmem:[%s3 + $0x2a0] sm:$0xff]
  %v856 = vld [vmem:[%s3 + $0x2a8] sm:$0xff]
  %v857 = vld [vmem:[%s3 + $0x2b0] sm:$0xff]
  %v858 = vld [vmem:[%s3 + $0x2b8] sm:$0xff]
  %v859 = vld [vmem:[%s3 + $0x2c0] sm:$0xff]
  %v860 = vld [vmem:[%s3 + $0x2c8] sm:$0xff]
  %v861 = vld [vmem:[%s3 + $0x2d0] sm:$0xff]
  %v862 = vld [vmem:[%s3 + $0x2d8] sm:$0xff]
  %v863 = vld [vmem:[%s3 + $0x2e0] sm:$0xff]
  %v864 = vld [vmem:[%s3 + $0x2e8] sm:$0xff]
  %v865 = vld [vmem:[%s3 + $0x2f0] sm:$0xff]
  %v866 = vld [vmem:[%s3 + $0x2f8] sm:$0xff]
  %v867 = vld [vmem:[%s3 + $0x300] sm:$0xff]
  %v868 = vld [vmem:[%s3 + $0x308] sm:$0xff]
  %v869 = vld [vmem:[%s3 + $0x310] sm:$0xff]
  %v870 = vld [vmem:[%s3 + $0x318] sm:$0xff]
  %v871 = vld [vmem:[%s3 + $0x320] sm:$0xff]
  %v872 = vld [vmem:[%s3 + $0x328] sm:$0xff]
  %v873 = vld [vmem:[%s3 + $0x330] sm:$0xff]
  %v874 = vld [vmem:[%s3 + $0x338] sm:$0xff]
  %v875 = vld [vmem:[%s3 + $0x340] sm:$0xff]
  %v876 = vld [vmem:[%s3 + $0x348] sm:$0xff]
  %v877 = vld [vmem:[%s3 + $0x350] sm:$0xff]
  %v878 = vld [vmem:[%s3 + $0x358] sm:$0xff]
  %v879 = vld [vmem:[%s3 + $0x360] sm:$0xff]
  %v880 = vld [vmem:[%s3 + $0x368] sm:$0xff]
  %v881 = vld [vmem:[%s3 + $0x370] sm:$0xff]
  %v882 = vld [vmem:[%s3 + $0x378] sm:$0xff]
  %v883 = vld [vmem:[%s3 + $0x380] sm:$0xff]
  %v884 = vld [vmem:[%s3 + $0x388] sm:$0xff]
  %v885 = vld [vmem:[%s3 + $0x390] sm:$0xff]
  %v886 = vld [vmem:[%s3 + $0x398] sm:$0xff]
  %v887 = vld [vmem:[%s3 + $0x3a0] sm:$0xff]
  %v888 = vld [vmem:[%s3 + $0x3a8] sm:$0xff]
  %v889 = vld [vmem:[%s3 + $0x3b0] sm:$0xff]
  %v890 = vld [vmem:[%s3 + $0x3b8] sm:$0xff]
  %v891 = vld [vmem:[%s3 + $0x3c0] sm:$0xff]
  %v892 = vld [vmem:[%s3 + $0x3c8] sm:$0xff]
  %v893 = vld [vmem:[%s3 + $0x3d0] sm:$0xff]
  %v894 = vld [vmem:[%s3 + $0x3d8] sm:$0xff]
  %v895 = vld [vmem:[%s3 + $0x3e0] sm:$0xff]
  %v896 = vld [vmem:[%s3 + $0x3e8] sm:$0xff]
  %v897 = vld [vmem:[%s3 + $0x3f0] sm:$0xff]
  %v898 = vld [vmem:[%s3 + $0x3f8] sm:$0xff]
  %v913 = vunpack.c.l.b16 %v757
  %v914 = vunpack.c.h.b16 %v757
  %v915 = vunpack.c.l.b16 %v758
  %v916 = vunpack.c.h.b16 %v758
  %v917 = vunpack.c.l.b16 %v759
  %v918 = vunpack.c.h.b16 %v759
  %v919 = vunpack.c.l.b16 %v760
  %v920 = vunpack.c.h.b16 %v760
  %v921 = vunpack.c.l.b16 %v761
  %v922 = vunpack.c.h.b16 %v761
  %v923 = vunpack.c.l.b16 %v762
  %v924 = vunpack.c.h.b16 %v762
  %v925 = vunpack.c.l.b16 %v763
  %v926 = vunpack.c.h.b16 %v763
  %v927 = vunpack.c.l.b16 %v764
  %v928 = vunpack.c.h.b16 %v764
  %v929 = vunpack.c.l.b16 %v765
  %v930 = vunpack.c.h.b16 %v765
  %v931 = vunpack.c.l.b16 %v766
  %v932 = vunpack.c.h.b16 %v766
  %v933 = vunpack.c.l.b16 %v767
  %v934 = vunpack.c.h.b16 %v767
  %v935 = vunpack.c.l.b16 %v768
  %v936 = vunpack.c.h.b16 %v768
  %v937 = vunpack.c.l.b16 %v769
  %v938 = vunpack.c.h.b16 %v769
  %v939 = vunpack.c.l.b16 %v834
  %v940 = vunpack.c.h.b16 %v834
  %v941 = vpack.c.b16 %v915, %v913
  %v942 = vpack.c.b16 %v916, %v914
  %v943 = vpack.c.b16 %v919, %v917
  %v944 = vpack.c.b16 %v920, %v918
  %v945 = vpack.c.b16 %v923, %v921
  %v946 = vpack.c.b16 %v924, %v922
  %v947 = vpack.c.b16 %v927, %v925
  %v948 = vpack.c.b16 %v928, %v926
  %v949 = vpack.c.b16 %v931, %v929
  %v950 = vpack.c.b16 %v932, %v930
  %v951 = vpack.c.b16 %v935, %v933
  %v952 = vpack.c.b16 %v936, %v934
  %v953 = vpack.c.b16 %v939, %v937
  %v954 = vpack.c.b16 %v940, %v938
  %v1033 = vunpack.c.l.b16 %v835
  %v1034 = vunpack.c.h.b16 %v835
  %v1035 = vunpack.c.l.b16 %v836
  %v1036 = vunpack.c.h.b16 %v836
  %v1037 = vunpack.c.l.b16 %v837
  %v1038 = vunpack.c.h.b16 %v837
  %v1039 = vunpack.c.l.b16 %v838
  %v1040 = vunpack.c.h.b16 %v838
  %v1041 = vunpack.c.l.b16 %v839
  %v1042 = vunpack.c.h.b16 %v839
  %v1043 = vunpack.c.l.b16 %v840
  %v1044 = vunpack.c.h.b16 %v840
  %v1045 = vunpack.c.l.b16 %v841
  %v1046 = vunpack.c.h.b16 %v841
  %v1047 = vunpack.c.l.b16 %v842
  %v1048 = vunpack.c.h.b16 %v842
  %v1049 = vunpack.c.l.b16 %v843
  %v1050 = vunpack.c.h.b16 %v843
  %v1051 = vunpack.c.l.b16 %v844
  %v1052 = vunpack.c.h.b16 %v844
  %v1053 = vunpack.c.l.b16 %v845
  %v1054 = vunpack.c.h.b16 %v845
  %v1055 = vunpack.c.l.b16 %v846
  %v1056 = vunpack.c.h.b16 %v846
  %v1057 = vunpack.c.l.b16 %v847
  %v1058 = vunpack.c.h.b16 %v847
  %v1059 = vunpack.c.l.b16 %v848
  %v1060 = vunpack.c.h.b16 %v848
  %v1061 = vunpack.c.l.b16 %v849
  %v1062 = vunpack.c.h.b16 %v849
  %v1063 = vunpack.c.l.b16 %v850
  %v1064 = vunpack.c.h.b16 %v850
  %v1065 = vunpack.c.l.b16 %v851
  %v1066 = vunpack.c.h.b16 %v851
  %v1067 = vunpack.c.l.b16 %v852
  %v1068 = vunpack.c.h.b16 %v852
  %v1069 = vunpack.c.l.b16 %v853
  %v1070 = vunpack.c.h.b16 %v853
  %v1071 = vunpack.c.l.b16 %v854
  %v1072 = vunpack.c.h.b16 %v854
  %v1073 = vunpack.c.l.b16 %v855
  %v1074 = vunpack.c.h.b16 %v855
  %v1075 = vunpack.c.l.b16 %v856
  %v1076 = vunpack.c.h.b16 %v856
  %v1077 = vunpack.c.l.b16 %v857
  %v1078 = vunpack.c.h.b16 %v857
  %v1079 = vunpack.c.l.b16 %v858
  %v1080 = vunpack.c.h.b16 %v858
  %v1081 = vunpack.c.l.b16 %v859
  %v1082 = vunpack.c.h.b16 %v859
  %v1083 = vunpack.c.l.b16 %v860
  %v1084 = vunpack.c.h.b16 %v860
  %v1085 = vunpack.c.l.b16 %v861
  %v1086 = vunpack.c.h.b16 %v861
  %v1087 = vunpack.c.l.b16 %v862
  %v1088 = vunpack.c.h.b16 %v862
  %v1089 = vunpack.c.l.b16 %v863
  %v1090 = vunpack.c.h.b16 %v863
  %v1091 = vunpack.c.l.b16 %v864
  %v1092 = vunpack.c.h.b16 %v864
  %v1093 = vunpack.c.l.b16 %v865
  %v1094 = vunpack.c.h.b16 %v865
  %v1095 = vunpack.c.l.b16 %v866
  %v1096 = vunpack.c.h.b16 %v866
  %v1097 = vunpack.c.l.b16 %v867
  %v1098 = vunpack.c.h.b16 %v867
  %v1099 = vunpack.c.l.b16 %v868
  %v1100 = vunpack.c.h.b16 %v868
  %v1101 = vunpack.c.l.b16 %v869
  %v1102 = vunpack.c.h.b16 %v869
  %v1103 = vunpack.c.l.b16 %v870
  %v1104 = vunpack.c.h.b16 %v870
  %v1105 = vunpack.c.l.b16 %v871
  %v1106 = vunpack.c.h.b16 %v871
  %v1107 = vunpack.c.l.b16 %v872
  %v1108 = vunpack.c.h.b16 %v872
  %v1109 = vunpack.c.l.b16 %v873
  %v1110 = vunpack.c.h.b16 %v873
  %v1111 = vunpack.c.l.b16 %v874
  %v1112 = vunpack.c.h.b16 %v874
  %v1113 = vunpack.c.l.b16 %v875
  %v1114 = vunpack.c.h.b16 %v875
  %v1115 = vunpack.c.l.b16 %v876
  %v1116 = vunpack.c.h.b16 %v876
  %v1117 = vunpack.c.l.b16 %v877
  %v1118 = vunpack.c.h.b16 %v877
  %v1119 = vunpack.c.l.b16 %v878
  %v1120 = vunpack.c.h.b16 %v878
  %v1121 = vunpack.c.l.b16 %v879
  %v1122 = vunpack.c.h.b16 %v879
  %v1123 = vunpack.c.l.b16 %v880
  %v1124 = vunpack.c.h.b16 %v880
  %v1125 = vunpack.c.l.b16 %v881
  %v1126 = vunpack.c.h.b16 %v881
  %v1127 = vunpack.c.l.b16 %v882
  %v1128 = vunpack.c.h.b16 %v882
  %v1129 = vunpack.c.l.b16 %v883
  %v1130 = vunpack.c.h.b16 %v883
  %v1131 = vunpack.c.l.b16 %v884
  %v1132 = vunpack.c.h.b16 %v884
  %v1133 = vunpack.c.l.b16 %v885
  %v1134 = vunpack.c.h.b16 %v885
  %v1135 = vunpack.c.l.b16 %v886
  %v1136 = vunpack.c.h.b16 %v886
  %v1137 = vunpack.c.l.b16 %v887
  %v1138 = vunpack.c.h.b16 %v887
  %v1139 = vunpack.c.l.b16 %v888
  %v1140 = vunpack.c.h.b16 %v888
  %v1141 = vunpack.c.l.b16 %v889
  %v1142 = vunpack.c.h.b16 %v889
  %v1143 = vunpack.c.l.b16 %v890
  %v1144 = vunpack.c.h.b16 %v890
  %v1145 = vunpack.c.l.b16 %v891
  %v1146 = vunpack.c.h.b16 %v891
  %v1147 = vunpack.c.l.b16 %v892
  %v1148 = vunpack.c.h.b16 %v892
  %v1149 = vunpack.c.l.b16 %v893
  %v1150 = vunpack.c.h.b16 %v893
  %v1151 = vunpack.c.l.b16 %v894
  %v1152 = vunpack.c.h.b16 %v894
  %v1153 = vunpack.c.l.b16 %v895
  %v1154 = vunpack.c.h.b16 %v895
  %v1155 = vunpack.c.l.b16 %v896
  %v1156 = vunpack.c.h.b16 %v896
  %v1157 = vunpack.c.l.b16 %v897
  %v1158 = vunpack.c.h.b16 %v897
  %v1159 = vunpack.c.l.b16 %v898
  %v1160 = vunpack.c.h.b16 %v898
  %v1161 = vpack.c.b16 %v1037, %v1033
  %v1162 = vpack.c.b16 %v1038, %v1034
  %v1163 = vpack.c.b16 %v1039, %v1035
  %v1164 = vpack.c.b16 %v1040, %v1036
  %v1165 = vpack.c.b16 %v1045, %v1041
  %v1166 = vpack.c.b16 %v1046, %v1042
  %v1167 = vpack.c.b16 %v1047, %v1043
  %v1168 = vpack.c.b16 %v1048, %v1044
  %v1169 = vpack.c.b16 %v1053, %v1049
  %v1170 = vpack.c.b16 %v1054, %v1050
  %v1171 = vpack.c.b16 %v1055, %v1051
  %v1172 = vpack.c.b16 %v1056, %v1052
  %v1173 = vpack.c.b16 %v1061, %v1057
  %v1174 = vpack.c.b16 %v1062, %v1058
  %v1175 = vpack.c.b16 %v1063, %v1059
  %v1176 = vpack.c.b16 %v1064, %v1060
  %v1177 = vpack.c.b16 %v1069, %v1065
  %v1178 = vpack.c.b16 %v1070, %v1066
  %v1179 = vpack.c.b16 %v1071, %v1067
  %v1180 = vpack.c.b16 %v1072, %v1068
  %v1181 = vpack.c.b16 %v1077, %v1073
  %v1182 = vpack.c.b16 %v1078, %v1074
  %v1183 = vpack.c.b16 %v1079, %v1075
  %v1184 = vpack.c.b16 %v1080, %v1076
  %v1185 = vpack.c.b16 %v1085, %v1081
  %v1186 = vpack.c.b16 %v1086, %v1082
  %v1187 = vpack.c.b16 %v1087, %v1083
  %v1188 = vpack.c.b16 %v1088, %v1084
  %v1189 = vpack.c.b16 %v1093, %v1089
  %v1190 = vpack.c.b16 %v1094, %v1090
  %v1191 = vpack.c.b16 %v1095, %v1091
  %v1192 = vpack.c.b16 %v1096, %v1092
  %v1193 = vpack.c.b16 %v1101, %v1097
  %v1194 = vpack.c.b16 %v1102, %v1098
  %v1195 = vpack.c.b16 %v1103, %v1099
  %v1196 = vpack.c.b16 %v1104, %v1100
  %v1197 = vpack.c.b16 %v1109, %v1105
  %v1198 = vpack.c.b16 %v1110, %v1106
  %v1199 = vpack.c.b16 %v1111, %v1107
  %v1200 = vpack.c.b16 %v1112, %v1108
  %v1201 = vpack.c.b16 %v1117, %v1113
  %v1202 = vpack.c.b16 %v1118, %v1114
  %v1203 = vpack.c.b16 %v1119, %v1115
  %v1204 = vpack.c.b16 %v1120, %v1116
  %v1205 = vpack.c.b16 %v1125, %v1121
  %v1206 = vpack.c.b16 %v1126, %v1122
  %v1207 = vpack.c.b16 %v1127, %v1123
  %v1208 = vpack.c.b16 %v1128, %v1124
  %v1209 = vpack.c.b16 %v1133, %v1129
  %v1210 = vpack.c.b16 %v1134, %v1130
  %v1211 = vpack.c.b16 %v1135, %v1131
  %v1212 = vpack.c.b16 %v1136, %v1132
  %v1213 = vpack.c.b16 %v1141, %v1137
  %v1214 = vpack.c.b16 %v1142, %v1138
  %v1215 = vpack.c.b16 %v1143, %v1139
  %v1216 = vpack.c.b16 %v1144, %v1140
  %v1217 = vpack.c.b16 %v1149, %v1145
  %v1218 = vpack.c.b16 %v1150, %v1146
  %v1219 = vpack.c.b16 %v1151, %v1147
  %v1220 = vpack.c.b16 %v1152, %v1148
  %v1221 = vpack.c.b16 %v1157, %v1153
  %v1222 = vpack.c.b16 %v1158, %v1154
  %v1223 = vpack.c.b16 %v1159, %v1155
  %v1224 = vpack.c.b16 %v1160, %v1156
  %1289 = vmatprep.subr.bf16.mxu0 %v1190
  %1290 = vmatpush1.bf16.msra.mxu0 %v1189
  %1291 = vmatprep.subr.bf16.mxu0 %v1186
  %1292 = vmatpush1.bf16.msra.mxu0 %v1185
  %1293 = vmatprep.subr.bf16.mxu0 %v1182
  %1294 = vmatpush1.bf16.msra.mxu0 %v1181
  %1295 = vmatprep.subr.bf16.mxu0 %v1178
  %1296 = vmatpush1.bf16.msra.mxu0 %v1177
  %1297 = vmatprep.subr.bf16.mxu0 %v1174
  %1298 = vmatpush1.bf16.msra.mxu0 %v1173
  %1299 = vmatprep.subr.bf16.mxu0 %v1170
  %1300 = vmatpush1.bf16.msra.mxu0 %v1169
  %1301 = vmatprep.subr.bf16.mxu0 %v1166
  %1302 = vmatpush1.bf16.msra.mxu0 %v1165
  %1303 = vmatprep.subr.bf16.mxu0 %v1162
  %1304 = vmatpush1.bf16.msra.mxu0 %v1161
  %1305 = vmatprep.subr.bf16.mxu0 %v1222
  %1306 = vmatpush2.bf16.msra.mxu0 %v1221
  %1307 = vmatprep.subr.bf16.mxu0 %v1218
  %1308 = vmatpush2.bf16.msra.mxu0 %v1217
  %1309 = vmatprep.subr.bf16.mxu0 %v1214
  %1310 = vmatpush2.bf16.msra.mxu0 %v1213
  %1311 = vmatprep.subr.bf16.mxu0 %v1210
  %1312 = vmatpush2.bf16.msra.mxu0 %v1209
  %1313 = vmatprep.subr.bf16.mxu0 %v1206
  %1314 = vmatpush2.bf16.msra.mxu0 %v1205
  %1315 = vmatprep.subr.bf16.mxu0 %v1202
  %1316 = vmatpush2.bf16.msra.mxu0 %v1201
  %1317 = vmatprep.subr.bf16.mxu0 %v1198
  %1318 = vmatpush2.bf16.msra.mxu0 %v1197
  %1319 = vmatprep.subr.bf16.mxu0 %v1194
  %1320 = vmatpush2.bf16.msra.mxu0 %v1193
  %1321 = vmatprep.mubr.bf16.mxu0 %v942
  %1322 = vmatmul.mubr.bf16.gmra.mxu0 %v941
  %v1323 = vpop.f32.mrf.mxu0
  %v1324 = vadd.f32 0.0, %v1323
  %v1325 = vpop.f32.mrf.mxu0
  %v1326 = vadd.f32 0.0, %v1325
  %v1327 = vpop.f32.mrf.mxu0
  %v1328 = vadd.f32 0.0, %v1327
  %v1329 = vpop.f32.mrf.mxu0
  %v1330 = vadd.f32 0.0, %v1329
  %1331 = vmatprep.mubr.bf16.mxu0 %v944
  %1332 = vmatmul.mubr.bf16.gmra.mxu0 %v943
  %v1333 = vpop.f32.mrf.mxu0
  %v1334 = vadd.f32 0.0, %v1333
  %v1335 = vpop.f32.mrf.mxu0
  %v1336 = vadd.f32 0.0, %v1335
  %v1337 = vpop.f32.mrf.mxu0
  %v1338 = vadd.f32 0.0, %v1337
  %v1339 = vpop.f32.mrf.mxu0
  %v1340 = vadd.f32 0.0, %v1339
  %1341 = vmatprep.mubr.bf16.mxu0 %v946
  %1342 = vmatmul.mubr.bf16.gmra.mxu0 %v945
  %v1343 = vpop.f32.mrf.mxu0
  %v1344 = vadd.f32 0.0, %v1343
  %v1345 = vpop.f32.mrf.mxu0
  %v1346 = vadd.f32 0.0, %v1345
  %v1347 = vpop.f32.mrf.mxu0
  %v1348 = vadd.f32 0.0, %v1347
  %v1349 = vpop.f32.mrf.mxu0
  %v1350 = vadd.f32 0.0, %v1349
  %1351 = vmatprep.mubr.bf16.mxu0 %v948
  %1352 = vmatmul.mubr.bf16.gmra.mxu0 %v947
  %v1353 = vpop.f32.mrf.mxu0
  %v1354 = vadd.f32 0.0, %v1353
  %v1355 = vpop.f32.mrf.mxu0
  %v1356 = vadd.f32 0.0, %v1355
  %v1357 = vpop.f32.mrf.mxu0
  %v1358 = vadd.f32 0.0, %v1357
  %v1359 = vpop.f32.mrf.mxu0
  %v1360 = vadd.f32 0.0, %v1359
  %1361 = vmatprep.mubr.bf16.mxu0 %v950
  %1362 = vmatmul.mubr.bf16.gmra.mxu0 %v949
  %v1363 = vpop.f32.mrf.mxu0
  %v1364 = vadd.f32 0.0, %v1363
  %v1365 = vpop.f32.mrf.mxu0
  %v1366 = vadd.f32 0.0, %v1365
  %v1367 = vpop.f32.mrf.mxu0
  %v1368 = vadd.f32 0.0, %v1367
  %v1369 = vpop.f32.mrf.mxu0
  %v1370 = vadd.f32 0.0, %v1369
  %1371 = vmatprep.mubr.bf16.mxu0 %v952
  %1372 = vmatmul.mubr.bf16.gmra.mxu0 %v951
  %v1373 = vpop.f32.mrf.mxu0
  %v1374 = vadd.f32 0.0, %v1373
  %v1375 = vpop.f32.mrf.mxu0
  %v1376 = vadd.f32 0.0, %v1375
  %v1377 = vpop.f32.mrf.mxu0
  %v1378 = vadd.f32 0.0, %v1377
  %v1379 = vpop.f32.mrf.mxu0
  %v1380 = vadd.f32 0.0, %v1379
  %1381 = vmatprep.mubr.bf16.mxu0 %v954
  %1382 = vmatmul.mubr.bf16.gmra.mxu0 %v953
  %v1383 = vpop.f32.mrf.mxu0
  %v1384 = vadd.f32 0.0, %v1383
  %v1385 = vpop.f32.mrf.mxu0
  %v1386 = vadd.f32 0.0, %v1385
  %v1387 = vpop.f32.mrf.mxu0
  %v1388 = vadd.f32 0.0, %v1387
  %v1389 = vpop.f32.mrf.mxu0
  %v1390 = vadd.f32 0.0, %v1389
  %1391 = vdwg.mxu0
  %1392 = vmatprep.subr.bf16.mxu0 %v1192
  %1393 = vmatpush1.bf16.msra.mxu0 %v1191
  %1394 = vmatprep.subr.bf16.mxu0 %v1188
  %1395 = vmatpush1.bf16.msra.mxu0 %v1187
  %1396 = vmatprep.subr.bf16.mxu0 %v1184
  %1397 = vmatpush1.bf16.msra.mxu0 %v1183
  %1398 = vmatprep.subr.bf16.mxu0 %v1180
  %1399 = vmatpush1.bf16.msra.mxu0 %v1179
  %1400 = vmatprep.subr.bf16.mxu0 %v1176
  %1401 = vmatpush1.bf16.msra.mxu0 %v1175
  %1402 = vmatprep.subr.bf16.mxu0 %v1172
  %1403 = vmatpush1.bf16.msra.mxu0 %v1171
  %1404 = vmatprep.subr.bf16.mxu0 %v1168
  %1405 = vmatpush1.bf16.msra.mxu0 %v1167
  %1406 = vmatprep.subr.bf16.mxu0 %v1164
  %1407 = vmatpush1.bf16.msra.mxu0 %v1163
  %1408 = vmatprep.subr.bf16.mxu0 %v1224
  %1409 = vmatpush2.bf16.msra.mxu0 %v1223
  %1410 = vmatprep.subr.bf16.mxu0 %v1220
  %1411 = vmatpush2.bf16.msra.mxu0 %v1219
  %1412 = vmatprep.subr.bf16.mxu0 %v1216
  %1413 = vmatpush2.bf16.msra.mxu0 %v1215
  %1414 = vmatprep.subr.bf16.mxu0 %v1212
  %1415 = vmatpush2.bf16.msra.mxu0 %v1211
  %1416 = vmatprep.subr.bf16.mxu0 %v1208
  %1417 = vmatpush2.bf16.msra.mxu0 %v1207
  %1418 = vmatprep.subr.bf16.mxu0 %v1204
  %1419 = vmatpush2.bf16.msra.mxu0 %v1203
  %1420 = vmatprep.subr.bf16.mxu0 %v1200
  %1421 = vmatpush2.bf16.msra.mxu0 %v1199
  %1422 = vmatprep.subr.bf16.mxu0 %v1196
  %1423 = vmatpush2.bf16.msra.mxu0 %v1195
  %1424 = vmatprep.mubr.bf16.mxu0 %v942
  %1425 = vmatmul.mubr.bf16.gmra.mxu0 %v941
  %v1426 = vpop.f32.mrf.mxu0
  %v1427 = vadd.f32 0.0, %v1426
  %v1428 = vpop.f32.mrf.mxu0
  %v1429 = vadd.f32 0.0, %v1428
  %v1430 = vpop.f32.mrf.mxu0
  %v1431 = vadd.f32 0.0, %v1430
  %v1432 = vpop.f32.mrf.mxu0
  %v1433 = vadd.f32 0.0, %v1432
  %1434 = vmatprep.mubr.bf16.mxu0 %v944
  %1435 = vmatmul.mubr.bf16.gmra.mxu0 %v943
  %v1436 = vpop.f32.mrf.mxu0
  %v1437 = vadd.f32 0.0, %v1436
  %v1438 = vpop.f32.mrf.mxu0
  %v1439 = vadd.f32 0.0, %v1438
  %v1440 = vpop.f32.mrf.mxu0
  %v1441 = vadd.f32 0.0, %v1440
  %v1442 = vpop.f32.mrf.mxu0
  %v1443 = vadd.f32 0.0, %v1442
  %1444 = vmatprep.mubr.bf16.mxu0 %v946
  %1445 = vmatmul.mubr.bf16.gmra.mxu0 %v945
  %v1446 = vpop.f32.mrf.mxu0
  %v1447 = vadd.f32 0.0, %v1446
  %v1448 = vpop.f32.mrf.mxu0
  %v1449 = vadd.f32 0.0, %v1448
  %v1450 = vpop.f32.mrf.mxu0
  %v1451 = vadd.f32 0.0, %v1450
  %v1452 = vpop.f32.mrf.mxu0
  %v1453 = vadd.f32 0.0, %v1452
  %1454 = vmatprep.mubr.bf16.mxu0 %v948
  %1455 = vmatmul.mubr.bf16.gmra.mxu0 %v947
  %v1456 = vpop.f32.mrf.mxu0
  %v1457 = vadd.f32 0.0, %v1456
  %v1458 = vpop.f32.mrf.mxu0
  %v1459 = vadd.f32 0.0, %v1458
  %v1460 = vpop.f32.mrf.mxu0
  %v1461 = vadd.f32 0.0, %v1460
  %v1462 = vpop.f32.mrf.mxu0
  %v1463 = vadd.f32 0.0, %v1462
  %1464 = vmatprep.mubr.bf16.mxu0 %v950
  %1465 = vmatmul.mubr.bf16.gmra.mxu0 %v949
  %v1466 = vpop.f32.mrf.mxu0
  %v1467 = vadd.f32 0.0, %v1466
  %v1468 = vpop.f32.mrf.mxu0
  %v1469 = vadd.f32 0.0, %v1468
  %v1470 = vpop.f32.mrf.mxu0
  %v1471 = vadd.f32 0.0, %v1470
  %v1472 = vpop.f32.mrf.mxu0
  %v1473 = vadd.f32 0.0, %v1472
  %1474 = vmatprep.mubr.bf16.mxu0 %v952
  %1475 = vmatmul.mubr.bf16.gmra.mxu0 %v951
  %v1476 = vpop.f32.mrf.mxu0
  %v1477 = vadd.f32 0.0, %v1476
  %v1478 = vpop.f32.mrf.mxu0
  %v1479 = vadd.f32 0.0, %v1478
  %v1480 = vpop.f32.mrf.mxu0
  %v1481 = vadd.f32 0.0, %v1480
  %v1482 = vpop.f32.mrf.mxu0
  %v1483 = vadd.f32 0.0, %v1482
  %1484 = vmatprep.mubr.bf16.mxu0 %v954
  %1485 = vmatmul.mubr.bf16.gmra.mxu0 %v953
  %v1486 = vpop.f32.mrf.mxu0
  %v1487 = vadd.f32 0.0, %v1486
  %v1488 = vpop.f32.mrf.mxu0
  %v1489 = vadd.f32 0.0, %v1488
  %v1490 = vpop.f32.mrf.mxu0
  %v1491 = vadd.f32 0.0, %v1490
  %v1492 = vpop.f32.mrf.mxu0
  %v1493 = vadd.f32 0.0, %v1492
  %1494 = vdwg.mxu0
  %v1496 = vunpack.c.l.b16 %v756
  %v1497 = vunpack.c.h.b16 %v756
  %v1498 = vpack.c.b16 %v913, %v1496
  %v1499 = vpack.c.b16 %v914, %v1497
  %v1500 = vpack.c.b16 %v917, %v915
  %v1501 = vpack.c.b16 %v918, %v916
  %v1502 = vpack.c.b16 %v921, %v919
  %v1503 = vpack.c.b16 %v922, %v920
  %v1504 = vpack.c.b16 %v925, %v923
  %v1505 = vpack.c.b16 %v926, %v924
  %v1506 = vpack.c.b16 %v929, %v927
  %v1507 = vpack.c.b16 %v930, %v928
  %v1508 = vpack.c.b16 %v933, %v931
  %v1509 = vpack.c.b16 %v934, %v932
  %v1510 = vpack.c.b16 %v937, %v935
  %v1511 = vpack.c.b16 %v938, %v936
  %v1590 = vunpack.c.l.b16 %v770
  %v1591 = vunpack.c.h.b16 %v770
  %v1592 = vunpack.c.l.b16 %v771
  %v1593 = vunpack.c.h.b16 %v771
  %v1594 = vunpack.c.l.b16 %v772
  %v1595 = vunpack.c.h.b16 %v772
  %v1596 = vunpack.c.l.b16 %v773
  %v1597 = vunpack.c.h.b16 %v773
  %v1598 = vunpack.c.l.b16 %v774
  %v1599 = vunpack.c.h.b16 %v774
  %v1600 = vunpack.c.l.b16 %v775
  %v1601 = vunpack.c.h.b16 %v775
  %v1602 = vunpack.c.l.b16 %v776
  %v1603 = vunpack.c.h.b16 %v776
  %v1604 = vunpack.c.l.b16 %v777
  %v1605 = vunpack.c.h.b16 %v777
  %v1606 = vunpack.c.l.b16 %v778
  %v1607 = vunpack.c.h.b16 %v778
  %v1608 = vunpack.c.l.b16 %v779
  %v1609 = vunpack.c.h.b16 %v779
  %v1610 = vunpack.c.l.b16 %v780
  %v1611 = vunpack.c.h.b16 %v780
  %v1612 = vunpack.c.l.b16 %v781
  %v1613 = vunpack.c.h.b16 %v781
  %v1614 = vunpack.c.l.b16 %v782
  %v1615 = vunpack.c.h.b16 %v782
  %v1616 = vunpack.c.l.b16 %v783
  %v1617 = vunpack.c.h.b16 %v783
  %v1618 = vunpack.c.l.b16 %v784
  %v1619 = vunpack.c.h.b16 %v784
  %v1620 = vunpack.c.l.b16 %v785
  %v1621 = vunpack.c.h.b16 %v785
  %v1622 = vunpack.c.l.b16 %v786
  %v1623 = vunpack.c.h.b16 %v786
  %v1624 = vunpack.c.l.b16 %v787
  %v1625 = vunpack.c.h.b16 %v787
  %v1626 = vunpack.c.l.b16 %v788
  %v1627 = vunpack.c.h.b16 %v788
  %v1628 = vunpack.c.l.b16 %v789
  %v1629 = vunpack.c.h.b16 %v789
  %v1630 = vunpack.c.l.b16 %v790
  %v1631 = vunpack.c.h.b16 %v790
  %v1632 = vunpack.c.l.b16 %v791
  %v1633 = vunpack.c.h.b16 %v791
  %v1634 = vunpack.c.l.b16 %v792
  %v1635 = vunpack.c.h.b16 %v792
  %v1636 = vunpack.c.l.b16 %v793
  %v1637 = vunpack.c.h.b16 %v793
  %v1638 = vunpack.c.l.b16 %v794
  %v1639 = vunpack.c.h.b16 %v794
  %v1640 = vunpack.c.l.b16 %v795
  %v1641 = vunpack.c.h.b16 %v795
  %v1642 = vunpack.c.l.b16 %v796
  %v1643 = vunpack.c.h.b16 %v796
  %v1644 = vunpack.c.l.b16 %v797
  %v1645 = vunpack.c.h.b16 %v797
  %v1646 = vunpack.c.l.b16 %v798
  %v1647 = vunpack.c.h.b16 %v798
  %v1648 = vunpack.c.l.b16 %v799
  %v1649 = vunpack.c.h.b16 %v799
  %v1650 = vunpack.c.l.b16 %v800
  %v1651 = vunpack.c.h.b16 %v800
  %v1652 = vunpack.c.l.b16 %v801
  %v1653 = vunpack.c.h.b16 %v801
  %v1654 = vunpack.c.l.b16 %v802
  %v1655 = vunpack.c.h.b16 %v802
  %v1656 = vunpack.c.l.b16 %v803
  %v1657 = vunpack.c.h.b16 %v803
  %v1658 = vunpack.c.l.b16 %v804
  %v1659 = vunpack.c.h.b16 %v804
  %v1660 = vunpack.c.l.b16 %v805
  %v1661 = vunpack.c.h.b16 %v805
  %v1662 = vunpack.c.l.b16 %v806
  %v1663 = vunpack.c.h.b16 %v806
  %v1664 = vunpack.c.l.b16 %v807
  %v1665 = vunpack.c.h.b16 %v807
  %v1666 = vunpack.c.l.b16 %v808
  %v1667 = vunpack.c.h.b16 %v808
  %v1668 = vunpack.c.l.b16 %v809
  %v1669 = vunpack.c.h.b16 %v809
  %v1670 = vunpack.c.l.b16 %v810
  %v1671 = vunpack.c.h.b16 %v810
  %v1672 = vunpack.c.l.b16 %v811
  %v1673 = vunpack.c.h.b16 %v811
  %v1674 = vunpack.c.l.b16 %v812
  %v1675 = vunpack.c.h.b16 %v812
  %v1676 = vunpack.c.l.b16 %v813
  %v1677 = vunpack.c.h.b16 %v813
  %v1678 = vunpack.c.l.b16 %v814
  %v1679 = vunpack.c.h.b16 %v814
  %v1680 = vunpack.c.l.b16 %v815
  %v1681 = vunpack.c.h.b16 %v815
  %v1682 = vunpack.c.l.b16 %v816
  %v1683 = vunpack.c.h.b16 %v816
  %v1684 = vunpack.c.l.b16 %v817
  %v1685 = vunpack.c.h.b16 %v817
  %v1686 = vunpack.c.l.b16 %v818
  %v1687 = vunpack.c.h.b16 %v818
  %v1688 = vunpack.c.l.b16 %v819
  %v1689 = vunpack.c.h.b16 %v819
  %v1690 = vunpack.c.l.b16 %v820
  %v1691 = vunpack.c.h.b16 %v820
  %v1692 = vunpack.c.l.b16 %v821
  %v1693 = vunpack.c.h.b16 %v821
  %v1694 = vunpack.c.l.b16 %v822
  %v1695 = vunpack.c.h.b16 %v822
  %v1696 = vunpack.c.l.b16 %v823
  %v1697 = vunpack.c.h.b16 %v823
  %v1698 = vunpack.c.l.b16 %v824
  %v1699 = vunpack.c.h.b16 %v824
  %v1700 = vunpack.c.l.b16 %v825
  %v1701 = vunpack.c.h.b16 %v825
  %v1702 = vunpack.c.l.b16 %v826
  %v1703 = vunpack.c.h.b16 %v826
  %v1704 = vunpack.c.l.b16 %v827
  %v1705 = vunpack.c.h.b16 %v827
  %v1706 = vunpack.c.l.b16 %v828
  %v1707 = vunpack.c.h.b16 %v828
  %v1708 = vunpack.c.l.b16 %v829
  %v1709 = vunpack.c.h.b16 %v829
  %v1710 = vunpack.c.l.b16 %v830
  %v1711 = vunpack.c.h.b16 %v830
  %v1712 = vunpack.c.l.b16 %v831
  %v1713 = vunpack.c.h.b16 %v831
  %v1714 = vunpack.c.l.b16 %v832
  %v1715 = vunpack.c.h.b16 %v832
  %v1716 = vunpack.c.l.b16 %v833
  %v1717 = vunpack.c.h.b16 %v833
  %v1718 = vpack.c.b16 %v1594, %v1590
  %v1719 = vpack.c.b16 %v1595, %v1591
  %v1720 = vpack.c.b16 %v1596, %v1592
  %v1721 = vpack.c.b16 %v1597, %v1593
  %v1722 = vpack.c.b16 %v1602, %v1598
  %v1723 = vpack.c.b16 %v1603, %v1599
  %v1724 = vpack.c.b16 %v1604, %v1600
  %v1725 = vpack.c.b16 %v1605, %v1601
  %v1726 = vpack.c.b16 %v1610, %v1606
  %v1727 = vpack.c.b16 %v1611, %v1607
  %v1728 = vpack.c.b16 %v1612, %v1608
  %v1729 = vpack.c.b16 %v1613, %v1609
  %v1730 = vpack.c.b16 %v1618, %v1614
  %v1731 = vpack.c.b16 %v1619, %v1615
  %v1732 = vpack.c.b16 %v1620, %v1616
  %v1733 = vpack.c.b16 %v1621, %v1617
  %v1734 = vpack.c.b16 %v1626, %v1622
  %v1735 = vpack.c.b16 %v1627, %v1623
  %v1736 = vpack.c.b16 %v1628, %v1624
  %v1737 = vpack.c.b16 %v1629, %v1625
  %v1738 = vpack.c.b16 %v1634, %v1630
  %v1739 = vpack.c.b16 %v1635, %v1631
  %v1740 = vpack.c.b16 %v1636, %v1632
  %v1741 = vpack.c.b16 %v1637, %v1633
  %v1742 = vpack.c.b16 %v1642, %v1638
  %v1743 = vpack.c.b16 %v1643, %v1639
  %v1744 = vpack.c.b16 %v1644, %v1640
  %v1745 = vpack.c.b16 %v1645, %v1641
  %v1746 = vpack.c.b16 %v1650, %v1646
  %v1747 = vpack.c.b16 %v1651, %v1647
  %v1748 = vpack.c.b16 %v1652, %v1648
  %v1749 = vpack.c.b16 %v1653, %v1649
  %v1750 = vpack.c.b16 %v1658, %v1654
  %v1751 = vpack.c.b16 %v1659, %v1655
  %v1752 = vpack.c.b16 %v1660, %v1656
  %v1753 = vpack.c.b16 %v1661, %v1657
  %v1754 = vpack.c.b16 %v1666, %v1662
  %v1755 = vpack.c.b16 %v1667, %v1663
  %v1756 = vpack.c.b16 %v1668, %v1664
  %v1757 = vpack.c.b16 %v1669, %v1665
  %v1758 = vpack.c.b16 %v1674, %v1670
  %v1759 = vpack.c.b16 %v1675, %v1671
  %v1760 = vpack.c.b16 %v1676, %v1672
  %v1761 = vpack.c.b16 %v1677, %v1673
  %v1762 = vpack.c.b16 %v1682, %v1678
  %v1763 = vpack.c.b16 %v1683, %v1679
  %v1764 = vpack.c.b16 %v1684, %v1680
  %v1765 = vpack.c.b16 %v1685, %v1681
  %v1766 = vpack.c.b16 %v1690, %v1686
  %v1767 = vpack.c.b16 %v1691, %v1687
  %v1768 = vpack.c.b16 %v1692, %v1688
  %v1769 = vpack.c.b16 %v1693, %v1689
  %v1770 = vpack.c.b16 %v1698, %v1694
  %v1771 = vpack.c.b16 %v1699, %v1695
  %v1772 = vpack.c.b16 %v1700, %v1696
  %v1773 = vpack.c.b16 %v1701, %v1697
  %v1774 = vpack.c.b16 %v1706, %v1702
  %v1775 = vpack.c.b16 %v1707, %v1703
  %v1776 = vpack.c.b16 %v1708, %v1704
  %v1777 = vpack.c.b16 %v1709, %v1705
  %v1778 = vpack.c.b16 %v1714, %v1710
  %v1779 = vpack.c.b16 %v1715, %v1711
  %v1780 = vpack.c.b16 %v1716, %v1712
  %v1781 = vpack.c.b16 %v1717, %v1713
  %1846 = vmatprep.subr.bf16.mxu0 %v1747
  %1847 = vmatpush1.bf16.msra.mxu0 %v1746
  %1848 = vmatprep.subr.bf16.mxu0 %v1743
  %1849 = vmatpush1.bf16.msra.mxu0 %v1742
  %1850 = vmatprep.subr.bf16.mxu0 %v1739
  %1851 = vmatpush1.bf16.msra.mxu0 %v1738
  %1852 = vmatprep.subr.bf16.mxu0 %v1735
  %1853 = vmatpush1.bf16.msra.mxu0 %v1734
  %1854 = vmatprep.subr.bf16.mxu0 %v1731
  %1855 = vmatpush1.bf16.msra.mxu0 %v1730
  %1856 = vmatprep.subr.bf16.mxu0 %v1727
  %1857 = vmatpush1.bf16.msra.mxu0 %v1726
  %1858 = vmatprep.subr.bf16.mxu0 %v1723
  %1859 = vmatpush1.bf16.msra.mxu0 %v1722
  %1860 = vmatprep.subr.bf16.mxu0 %v1719
  %1861 = vmatpush1.bf16.msra.mxu0 %v1718
  %1862 = vmatprep.subr.bf16.mxu0 %v1779
  %1863 = vmatpush2.bf16.msra.mxu0 %v1778
  %1864 = vmatprep.subr.bf16.mxu0 %v1775
  %1865 = vmatpush2.bf16.msra.mxu0 %v1774
  %1866 = vmatprep.subr.bf16.mxu0 %v1771
  %1867 = vmatpush2.bf16.msra.mxu0 %v1770
  %1868 = vmatprep.subr.bf16.mxu0 %v1767
  %1869 = vmatpush2.bf16.msra.mxu0 %v1766
  %1870 = vmatprep.subr.bf16.mxu0 %v1763
  %1871 = vmatpush2.bf16.msra.mxu0 %v1762
  %1872 = vmatprep.subr.bf16.mxu0 %v1759
  %1873 = vmatpush2.bf16.msra.mxu0 %v1758
  %1874 = vmatprep.subr.bf16.mxu0 %v1755
  %1875 = vmatpush2.bf16.msra.mxu0 %v1754
  %1876 = vmatprep.subr.bf16.mxu0 %v1751
  %1877 = vmatpush2.bf16.msra.mxu0 %v1750
  %1878 = vmatprep.mubr.bf16.mxu0 %v1499
  %1879 = vmatmul.mubr.bf16.gmra.mxu0 %v1498
  %v1880 = vpop.f32.mrf.mxu0
  %v1881 = vadd.f32 %v1324, %v1880
  %v1882 = vpop.f32.mrf.mxu0
  %v1883 = vadd.f32 %v1326, %v1882
  %v1884 = vpop.f32.mrf.mxu0
  %v1885 = vadd.f32 %v1328, %v1884
  %v1886 = vpop.f32.mrf.mxu0
  %v1887 = vadd.f32 %v1330, %v1886
  %1888 = vmatprep.mubr.bf16.mxu0 %v1501
  %1889 = vmatmul.mubr.bf16.gmra.mxu0 %v1500
  %v1890 = vpop.f32.mrf.mxu0
  %v1891 = vadd.f32 %v1334, %v1890
  %v1892 = vpop.f32.mrf.mxu0
  %v1893 = vadd.f32 %v1336, %v1892
  %v1894 = vpop.f32.mrf.mxu0
  %v1895 = vadd.f32 %v1338, %v1894
  %v1896 = vpop.f32.mrf.mxu0
  %v1897 = vadd.f32 %v1340, %v1896
  %1898 = vmatprep.mubr.bf16.mxu0 %v1503
  %1899 = vmatmul.mubr.bf16.gmra.mxu0 %v1502
  %v1900 = vpop.f32.mrf.mxu0
  %v1901 = vadd.f32 %v1344, %v1900
  %v1902 = vpop.f32.mrf.mxu0
  %v1903 = vadd.f32 %v1346, %v1902
  %v1904 = vpop.f32.mrf.mxu0
  %v1905 = vadd.f32 %v1348, %v1904
  %v1906 = vpop.f32.mrf.mxu0
  %v1907 = vadd.f32 %v1350, %v1906
  %1908 = vmatprep.mubr.bf16.mxu0 %v1505
  %1909 = vmatmul.mubr.bf16.gmra.mxu0 %v1504
  %v1910 = vpop.f32.mrf.mxu0
  %v1911 = vadd.f32 %v1354, %v1910
  %v1912 = vpop.f32.mrf.mxu0
  %v1913 = vadd.f32 %v1356, %v1912
  %v1914 = vpop.f32.mrf.mxu0
  %v1915 = vadd.f32 %v1358, %v1914
  %v1916 = vpop.f32.mrf.mxu0
  %v1917 = vadd.f32 %v1360, %v1916
  %1918 = vmatprep.mubr.bf16.mxu0 %v1507
  %1919 = vmatmul.mubr.bf16.gmra.mxu0 %v1506
  %v1920 = vpop.f32.mrf.mxu0
  %v1921 = vadd.f32 %v1364, %v1920
  %v1922 = vpop.f32.mrf.mxu0
  %v1923 = vadd.f32 %v1366, %v1922
  %v1924 = vpop.f32.mrf.mxu0
  %v1925 = vadd.f32 %v1368, %v1924
  %v1926 = vpop.f32.mrf.mxu0
  %v1927 = vadd.f32 %v1370, %v1926
  %1928 = vmatprep.mubr.bf16.mxu0 %v1509
  %1929 = vmatmul.mubr.bf16.gmra.mxu0 %v1508
  %v1930 = vpop.f32.mrf.mxu0
  %v1931 = vadd.f32 %v1374, %v1930
  %v1932 = vpop.f32.mrf.mxu0
  %v1933 = vadd.f32 %v1376, %v1932
  %v1934 = vpop.f32.mrf.mxu0
  %v1935 = vadd.f32 %v1378, %v1934
  %v1936 = vpop.f32.mrf.mxu0
  %v1937 = vadd.f32 %v1380, %v1936
  %1938 = vmatprep.mubr.bf16.mxu0 %v1511
  %1939 = vmatmul.mubr.bf16.gmra.mxu0 %v1510
  %v1940 = vpop.f32.mrf.mxu0
  %v1941 = vadd.f32 %v1384, %v1940
  %v1942 = vpop.f32.mrf.mxu0
  %v1943 = vadd.f32 %v1386, %v1942
  %v1944 = vpop.f32.mrf.mxu0
  %v1945 = vadd.f32 %v1388, %v1944
  %v1946 = vpop.f32.mrf.mxu0
  %v1947 = vadd.f32 %v1390, %v1946
  %1948 = vdwg.mxu0
  %1949 = vmatprep.subr.bf16.mxu0 %v1749
  %1950 = vmatpush1.bf16.msra.mxu0 %v1748
  %1951 = vmatprep.subr.bf16.mxu0 %v1745
  %1952 = vmatpush1.bf16.msra.mxu0 %v1744
  %1953 = vmatprep.subr.bf16.mxu0 %v1741
  %1954 = vmatpush1.bf16.msra.mxu0 %v1740
  %1955 = vmatprep.subr.bf16.mxu0 %v1737
  %1956 = vmatpush1.bf16.msra.mxu0 %v1736
  %1957 = vmatprep.subr.bf16.mxu0 %v1733
  %1958 = vmatpush1.bf16.msra.mxu0 %v1732
  %1959 = vmatprep.subr.bf16.mxu0 %v1729
  %1960 = vmatpush1.bf16.msra.mxu0 %v1728
  %1961 = vmatprep.subr.bf16.mxu0 %v1725
  %1962 = vmatpush1.bf16.msra.mxu0 %v1724
  %1963 = vmatprep.subr.bf16.mxu0 %v1721
  %1964 = vmatpush1.bf16.msra.mxu0 %v1720
  %1965 = vmatprep.subr.bf16.mxu0 %v1781
  %1966 = vmatpush2.bf16.msra.mxu0 %v1780
  %1967 = vmatprep.subr.bf16.mxu0 %v1777
  %1968 = vmatpush2.bf16.msra.mxu0 %v1776
  %1969 = vmatprep.subr.bf16.mxu0 %v1773
  %1970 = vmatpush2.bf16.msra.mxu0 %v1772
  %1971 = vmatprep.subr.bf16.mxu0 %v1769
  %1972 = vmatpush2.bf16.msra.mxu0 %v1768
  %1973 = vmatprep.subr.bf16.mxu0 %v1765
  %1974 = vmatpush2.bf16.msra.mxu0 %v1764
  %1975 = vmatprep.subr.bf16.mxu0 %v1761
  %1976 = vmatpush2.bf16.msra.mxu0 %v1760
  %1977 = vmatprep.subr.bf16.mxu0 %v1757
  %1978 = vmatpush2.bf16.msra.mxu0 %v1756
  %1979 = vmatprep.subr.bf16.mxu0 %v1753
  %1980 = vmatpush2.bf16.msra.mxu0 %v1752
  %1981 = vmatprep.mubr.bf16.mxu0 %v1499
  %1982 = vmatmul.mubr.bf16.gmra.mxu0 %v1498
  %v1983 = vpop.f32.mrf.mxu0
  %v1984 = vadd.f32 %v1427, %v1983
  %v1985 = vpop.f32.mrf.mxu0
  %v1986 = vadd.f32 %v1429, %v1985
  %v1987 = vpop.f32.mrf.mxu0
  %v1988 = vadd.f32 %v1431, %v1987
  %v1989 = vpop.f32.mrf.mxu0
  %v1990 = vadd.f32 %v1433, %v1989
  %1991 = vmatprep.mubr.bf16.mxu0 %v1501
  %1992 = vmatmul.mubr.bf16.gmra.mxu0 %v1500
  %v1993 = vpop.f32.mrf.mxu0
  %v1994 = vadd.f32 %v1437, %v1993
  %v1995 = vpop.f32.mrf.mxu0
  %v1996 = vadd.f32 %v1439, %v1995
  %v1997 = vpop.f32.mrf.mxu0
  %v1998 = vadd.f32 %v1441, %v1997
  %v1999 = vpop.f32.mrf.mxu0
  %v2000 = vadd.f32 %v1443, %v1999
  %2001 = vmatprep.mubr.bf16.mxu0 %v1503
  %2002 = vmatmul.mubr.bf16.gmra.mxu0 %v1502
  %v2003 = vpop.f32.mrf.mxu0
  %v2004 = vadd.f32 %v1447, %v2003
  %v2005 = vpop.f32.mrf.mxu0
  %v2006 = vadd.f32 %v1449, %v2005
  %v2007 = vpop.f32.mrf.mxu0
  %v2008 = vadd.f32 %v1451, %v2007
  %v2009 = vpop.f32.mrf.mxu0
  %v2010 = vadd.f32 %v1453, %v2009
  %2011 = vmatprep.mubr.bf16.mxu0 %v1505
  %2012 = vmatmul.mubr.bf16.gmra.mxu0 %v1504
  %v2013 = vpop.f32.mrf.mxu0
  %v2014 = vadd.f32 %v1457, %v2013
  %v2015 = vpop.f32.mrf.mxu0
  %v2016 = vadd.f32 %v1459, %v2015
  %v2017 = vpop.f32.mrf.mxu0
  %v2018 = vadd.f32 %v1461, %v2017
  %v2019 = vpop.f32.mrf.mxu0
  %v2020 = vadd.f32 %v1463, %v2019
  %2021 = vmatprep.mubr.bf16.mxu0 %v1507
  %2022 = vmatmul.mubr.bf16.gmra.mxu0 %v1506
  %v2023 = vpop.f32.mrf.mxu0
  %v2024 = vadd.f32 %v1467, %v2023
  %v2025 = vpop.f32.mrf.mxu0
  %v2026 = vadd.f32 %v1469, %v2025
  %v2027 = vpop.f32.mrf.mxu0
  %v2028 = vadd.f32 %v1471, %v2027
  %v2029 = vpop.f32.mrf.mxu0
  %v2030 = vadd.f32 %v1473, %v2029
  %2031 = vmatprep.mubr.bf16.mxu0 %v1509
  %2032 = vmatmul.mubr.bf16.gmra.mxu0 %v1508
  %v2033 = vpop.f32.mrf.mxu0
  %v2034 = vadd.f32 %v1477, %v2033
  %v2035 = vpop.f32.mrf.mxu0
  %v2036 = vadd.f32 %v1479, %v2035
  %v2037 = vpop.f32.mrf.mxu0
  %v2038 = vadd.f32 %v1481, %v2037
  %v2039 = vpop.f32.mrf.mxu0
  %v2040 = vadd.f32 %v1483, %v2039
  %2041 = vmatprep.mubr.bf16.mxu0 %v1511
  %2042 = vmatmul.mubr.bf16.gmra.mxu0 %v1510
  %v2043 = vpop.f32.mrf.mxu0
  %v2044 = vadd.f32 %v1487, %v2043
  %v2045 = vpop.f32.mrf.mxu0
  %v2046 = vadd.f32 %v1489, %v2045
  %v2047 = vpop.f32.mrf.mxu0
  %v2048 = vadd.f32 %v1491, %v2047
  %v2049 = vpop.f32.mrf.mxu0
  %v2050 = vadd.f32 %v1493, %v2049
  %2051 = vdwg.mxu0
  %v2052 = vld [vmem:[#allocation2 + $0x10] sm:$0xff]
  %v2053 = vld [vmem:[#allocation2 + $0x18] sm:$0xff]
  %v2054 = vld [vmem:[#allocation2 + $0x20] sm:$0xff]
  %v2055 = vld [vmem:[#allocation2 + $0x28] sm:$0xff]
  %v2056 = vld [vmem:[#allocation2 + $0x30] sm:$0xff]
  %v2057 = vld [vmem:[#allocation2 + $0x38] sm:$0xff]
  %v2058 = vld [vmem:[#allocation2 + $0x40] sm:$0xff]
  %v2059 = vld [vmem:[#allocation2 + $0x48] sm:$0xff]
  %v2060 = vld [vmem:[#allocation2 + $0x50] sm:$0xff]
  %v2061 = vld [vmem:[#allocation2 + $0x58] sm:$0xff]
  %v2062 = vld [vmem:[#allocation2 + $0x60] sm:$0xff]
  %v2063 = vld [vmem:[#allocation2 + $0x68] sm:$0xff]
  %v2064 = vld [vmem:[#allocation2 + $0x70] sm:$0xff]
  %v2065 = vld [vmem:[#allocation2 + $0x78] sm:$0xff]
  %v2066 = vld [vmem:[%s3 + $0x400] sm:$0xff]
  %v2067 = vld [vmem:[%s3 + $0x408] sm:$0xff]
  %v2068 = vld [vmem:[%s3 + $0x410] sm:$0xff]
  %v2069 = vld [vmem:[%s3 + $0x418] sm:$0xff]
  %v2070 = vld [vmem:[%s3 + $0x420] sm:$0xff]
  %v2071 = vld [vmem:[%s3 + $0x428] sm:$0xff]
  %v2072 = vld [vmem:[%s3 + $0x430] sm:$0xff]
  %v2073 = vld [vmem:[%s3 + $0x438] sm:$0xff]
  %v2074 = vld [vmem:[%s3 + $0x440] sm:$0xff]
  %v2075 = vld [vmem:[%s3 + $0x448] sm:$0xff]
  %v2076 = vld [vmem:[%s3 + $0x450] sm:$0xff]
  %v2077 = vld [vmem:[%s3 + $0x458] sm:$0xff]
  %v2078 = vld [vmem:[%s3 + $0x460] sm:$0xff]
  %v2079 = vld [vmem:[%s3 + $0x468] sm:$0xff]
  %v2080 = vld [vmem:[%s3 + $0x470] sm:$0xff]
  %v2081 = vld [vmem:[%s3 + $0x478] sm:$0xff]
  %v2082 = vld [vmem:[%s3 + $0x480] sm:$0xff]
  %v2083 = vld [vmem:[%s3 + $0x488] sm:$0xff]
  %v2084 = vld [vmem:[%s3 + $0x490] sm:$0xff]
  %v2085 = vld [vmem:[%s3 + $0x498] sm:$0xff]
  %v2086 = vld [vmem:[%s3 + $0x4a0] sm:$0xff]
  %v2087 = vld [vmem:[%s3 + $0x4a8] sm:$0xff]
  %v2088 = vld [vmem:[%s3 + $0x4b0] sm:$0xff]
  %v2089 = vld [vmem:[%s3 + $0x4b8] sm:$0xff]
  %v2090 = vld [vmem:[%s3 + $0x4c0] sm:$0xff]
  %v2091 = vld [vmem:[%s3 + $0x4c8] sm:$0xff]
  %v2092 = vld [vmem:[%s3 + $0x4d0] sm:$0xff]
  %v2093 = vld [vmem:[%s3 + $0x4d8] sm:$0xff]
  %v2094 = vld [vmem:[%s3 + $0x4e0] sm:$0xff]
  %v2095 = vld [vmem:[%s3 + $0x4e8] sm:$0xff]
  %v2096 = vld [vmem:[%s3 + $0x4f0] sm:$0xff]
  %v2097 = vld [vmem:[%s3 + $0x4f8] sm:$0xff]
  %v2098 = vld [vmem:[%s3 + $0x500] sm:$0xff]
  %v2099 = vld [vmem:[%s3 + $0x508] sm:$0xff]
  %v2100 = vld [vmem:[%s3 + $0x510] sm:$0xff]
  %v2101 = vld [vmem:[%s3 + $0x518] sm:$0xff]
  %v2102 = vld [vmem:[%s3 + $0x520] sm:$0xff]
  %v2103 = vld [vmem:[%s3 + $0x528] sm:$0xff]
  %v2104 = vld [vmem:[%s3 + $0x530] sm:$0xff]
  %v2105 = vld [vmem:[%s3 + $0x538] sm:$0xff]
  %v2106 = vld [vmem:[%s3 + $0x540] sm:$0xff]
  %v2107 = vld [vmem:[%s3 + $0x548] sm:$0xff]
  %v2108 = vld [vmem:[%s3 + $0x550] sm:$0xff]
  %v2109 = vld [vmem:[%s3 + $0x558] sm:$0xff]
  %v2110 = vld [vmem:[%s3 + $0x560] sm:$0xff]
  %v2111 = vld [vmem:[%s3 + $0x568] sm:$0xff]
  %v2112 = vld [vmem:[%s3 + $0x570] sm:$0xff]
  %v2113 = vld [vmem:[%s3 + $0x578] sm:$0xff]
  %v2114 = vld [vmem:[%s3 + $0x580] sm:$0xff]
  %v2115 = vld [vmem:[%s3 + $0x588] sm:$0xff]
  %v2116 = vld [vmem:[%s3 + $0x590] sm:$0xff]
  %v2117 = vld [vmem:[%s3 + $0x598] sm:$0xff]
  %v2118 = vld [vmem:[%s3 + $0x5a0] sm:$0xff]
  %v2119 = vld [vmem:[%s3 + $0x5a8] sm:$0xff]
  %v2120 = vld [vmem:[%s3 + $0x5b0] sm:$0xff]
  %v2121 = vld [vmem:[%s3 + $0x5b8] sm:$0xff]
  %v2122 = vld [vmem:[%s3 + $0x5c0] sm:$0xff]
  %v2123 = vld [vmem:[%s3 + $0x5c8] sm:$0xff]
  %v2124 = vld [vmem:[%s3 + $0x5d0] sm:$0xff]
  %v2125 = vld [vmem:[%s3 + $0x5d8] sm:$0xff]
  %v2126 = vld [vmem:[%s3 + $0x5e0] sm:$0xff]
  %v2127 = vld [vmem:[%s3 + $0x5e8] sm:$0xff]
  %v2128 = vld [vmem:[%s3 + $0x5f0] sm:$0xff]
  %v2129 = vld [vmem:[%s3 + $0x5f8] sm:$0xff]
  %v2144 = vunpack.c.l.b16 %v2052
  %v2145 = vunpack.c.h.b16 %v2052
  %v2146 = vunpack.c.l.b16 %v2053
  %v2147 = vunpack.c.h.b16 %v2053
  %v2148 = vunpack.c.l.b16 %v2054
  %v2149 = vunpack.c.h.b16 %v2054
  %v2150 = vunpack.c.l.b16 %v2055
  %v2151 = vunpack.c.h.b16 %v2055
  %v2152 = vunpack.c.l.b16 %v2056
  %v2153 = vunpack.c.h.b16 %v2056
  %v2154 = vunpack.c.l.b16 %v2057
  %v2155 = vunpack.c.h.b16 %v2057
  %v2156 = vunpack.c.l.b16 %v2058
  %v2157 = vunpack.c.h.b16 %v2058
  %v2158 = vunpack.c.l.b16 %v2059
  %v2159 = vunpack.c.h.b16 %v2059
  %v2160 = vunpack.c.l.b16 %v2060
  %v2161 = vunpack.c.h.b16 %v2060
  %v2162 = vunpack.c.l.b16 %v2061
  %v2163 = vunpack.c.h.b16 %v2061
  %v2164 = vunpack.c.l.b16 %v2062
  %v2165 = vunpack.c.h.b16 %v2062
  %v2166 = vunpack.c.l.b16 %v2063
  %v2167 = vunpack.c.h.b16 %v2063
  %v2168 = vunpack.c.l.b16 %v2064
  %v2169 = vunpack.c.h.b16 %v2064
  %v2170 = vunpack.c.l.b16 %v2065
  %v2171 = vunpack.c.h.b16 %v2065
  %v2172 = vpack.c.b16 %v2146, %v2144
  %v2173 = vpack.c.b16 %v2147, %v2145
  %v2174 = vpack.c.b16 %v2150, %v2148
  %v2175 = vpack.c.b16 %v2151, %v2149
  %v2176 = vpack.c.b16 %v2154, %v2152
  %v2177 = vpack.c.b16 %v2155, %v2153
  %v2178 = vpack.c.b16 %v2158, %v2156
  %v2179 = vpack.c.b16 %v2159, %v2157
  %v2180 = vpack.c.b16 %v2162, %v2160
  %v2181 = vpack.c.b16 %v2163, %v2161
  %v2182 = vpack.c.b16 %v2166, %v2164
  %v2183 = vpack.c.b16 %v2167, %v2165
  %v2184 = vpack.c.b16 %v2170, %v2168
  %v2185 = vpack.c.b16 %v2171, %v2169
  %v2264 = vunpack.c.l.b16 %v2066
  %v2265 = vunpack.c.h.b16 %v2066
  %v2266 = vunpack.c.l.b16 %v2067
  %v2267 = vunpack.c.h.b16 %v2067
  %v2268 = vunpack.c.l.b16 %v2068
  %v2269 = vunpack.c.h.b16 %v2068
  %v2270 = vunpack.c.l.b16 %v2069
  %v2271 = vunpack.c.h.b16 %v2069
  %v2272 = vunpack.c.l.b16 %v2070
  %v2273 = vunpack.c.h.b16 %v2070
  %v2274 = vunpack.c.l.b16 %v2071
  %v2275 = vunpack.c.h.b16 %v2071
  %v2276 = vunpack.c.l.b16 %v2072
  %v2277 = vunpack.c.h.b16 %v2072
  %v2278 = vunpack.c.l.b16 %v2073
  %v2279 = vunpack.c.h.b16 %v2073
  %v2280 = vunpack.c.l.b16 %v2074
  %v2281 = vunpack.c.h.b16 %v2074
  %v2282 = vunpack.c.l.b16 %v2075
  %v2283 = vunpack.c.h.b16 %v2075
  %v2284 = vunpack.c.l.b16 %v2076
  %v2285 = vunpack.c.h.b16 %v2076
  %v2286 = vunpack.c.l.b16 %v2077
  %v2287 = vunpack.c.h.b16 %v2077
  %v2288 = vunpack.c.l.b16 %v2078
  %v2289 = vunpack.c.h.b16 %v2078
  %v2290 = vunpack.c.l.b16 %v2079
  %v2291 = vunpack.c.h.b16 %v2079
  %v2292 = vunpack.c.l.b16 %v2080
  %v2293 = vunpack.c.h.b16 %v2080
  %v2294 = vunpack.c.l.b16 %v2081
  %v2295 = vunpack.c.h.b16 %v2081
  %v2296 = vunpack.c.l.b16 %v2082
  %v2297 = vunpack.c.h.b16 %v2082
  %v2298 = vunpack.c.l.b16 %v2083
  %v2299 = vunpack.c.h.b16 %v2083
  %v2300 = vunpack.c.l.b16 %v2084
  %v2301 = vunpack.c.h.b16 %v2084
  %v2302 = vunpack.c.l.b16 %v2085
  %v2303 = vunpack.c.h.b16 %v2085
  %v2304 = vunpack.c.l.b16 %v2086
  %v2305 = vunpack.c.h.b16 %v2086
  %v2306 = vunpack.c.l.b16 %v2087
  %v2307 = vunpack.c.h.b16 %v2087
  %v2308 = vunpack.c.l.b16 %v2088
  %v2309 = vunpack.c.h.b16 %v2088
  %v2310 = vunpack.c.l.b16 %v2089
  %v2311 = vunpack.c.h.b16 %v2089
  %v2312 = vunpack.c.l.b16 %v2090
  %v2313 = vunpack.c.h.b16 %v2090
  %v2314 = vunpack.c.l.b16 %v2091
  %v2315 = vunpack.c.h.b16 %v2091
  %v2316 = vunpack.c.l.b16 %v2092
  %v2317 = vunpack.c.h.b16 %v2092
  %v2318 = vunpack.c.l.b16 %v2093
  %v2319 = vunpack.c.h.b16 %v2093
  %v2320 = vunpack.c.l.b16 %v2094
  %v2321 = vunpack.c.h.b16 %v2094
  %v2322 = vunpack.c.l.b16 %v2095
  %v2323 = vunpack.c.h.b16 %v2095
  %v2324 = vunpack.c.l.b16 %v2096
  %v2325 = vunpack.c.h.b16 %v2096
  %v2326 = vunpack.c.l.b16 %v2097
  %v2327 = vunpack.c.h.b16 %v2097
  %v2328 = vunpack.c.l.b16 %v2098
  %v2329 = vunpack.c.h.b16 %v2098
  %v2330 = vunpack.c.l.b16 %v2099
  %v2331 = vunpack.c.h.b16 %v2099
  %v2332 = vunpack.c.l.b16 %v2100
  %v2333 = vunpack.c.h.b16 %v2100
  %v2334 = vunpack.c.l.b16 %v2101
  %v2335 = vunpack.c.h.b16 %v2101
  %v2336 = vunpack.c.l.b16 %v2102
  %v2337 = vunpack.c.h.b16 %v2102
  %v2338 = vunpack.c.l.b16 %v2103
  %v2339 = vunpack.c.h.b16 %v2103
  %v2340 = vunpack.c.l.b16 %v2104
  %v2341 = vunpack.c.h.b16 %v2104
  %v2342 = vunpack.c.l.b16 %v2105
  %v2343 = vunpack.c.h.b16 %v2105
  %v2344 = vunpack.c.l.b16 %v2106
  %v2345 = vunpack.c.h.b16 %v2106
  %v2346 = vunpack.c.l.b16 %v2107
  %v2347 = vunpack.c.h.b16 %v2107
  %v2348 = vunpack.c.l.b16 %v2108
  %v2349 = vunpack.c.h.b16 %v2108
  %v2350 = vunpack.c.l.b16 %v2109
  %v2351 = vunpack.c.h.b16 %v2109
  %v2352 = vunpack.c.l.b16 %v2110
  %v2353 = vunpack.c.h.b16 %v2110
  %v2354 = vunpack.c.l.b16 %v2111
  %v2355 = vunpack.c.h.b16 %v2111
  %v2356 = vunpack.c.l.b16 %v2112
  %v2357 = vunpack.c.h.b16 %v2112
  %v2358 = vunpack.c.l.b16 %v2113
  %v2359 = vunpack.c.h.b16 %v2113
  %v2360 = vunpack.c.l.b16 %v2114
  %v2361 = vunpack.c.h.b16 %v2114
  %v2362 = vunpack.c.l.b16 %v2115
  %v2363 = vunpack.c.h.b16 %v2115
  %v2364 = vunpack.c.l.b16 %v2116
  %v2365 = vunpack.c.h.b16 %v2116
  %v2366 = vunpack.c.l.b16 %v2117
  %v2367 = vunpack.c.h.b16 %v2117
  %v2368 = vunpack.c.l.b16 %v2118
  %v2369 = vunpack.c.h.b16 %v2118
  %v2370 = vunpack.c.l.b16 %v2119
  %v2371 = vunpack.c.h.b16 %v2119
  %v2372 = vunpack.c.l.b16 %v2120
  %v2373 = vunpack.c.h.b16 %v2120
  %v2374 = vunpack.c.l.b16 %v2121
  %v2375 = vunpack.c.h.b16 %v2121
  %v2376 = vunpack.c.l.b16 %v2122
  %v2377 = vunpack.c.h.b16 %v2122
  %v2378 = vunpack.c.l.b16 %v2123
  %v2379 = vunpack.c.h.b16 %v2123
  %v2380 = vunpack.c.l.b16 %v2124
  %v2381 = vunpack.c.h.b16 %v2124
  %v2382 = vunpack.c.l.b16 %v2125
  %v2383 = vunpack.c.h.b16 %v2125
  %v2384 = vunpack.c.l.b16 %v2126
  %v2385 = vunpack.c.h.b16 %v2126
  %v2386 = vunpack.c.l.b16 %v2127
  %v2387 = vunpack.c.h.b16 %v2127
  %v2388 = vunpack.c.l.b16 %v2128
  %v2389 = vunpack.c.h.b16 %v2128
  %v2390 = vunpack.c.l.b16 %v2129
  %v2391 = vunpack.c.h.b16 %v2129
  %v2392 = vpack.c.b16 %v2268, %v2264
  %v2393 = vpack.c.b16 %v2269, %v2265
  %v2394 = vpack.c.b16 %v2270, %v2266
  %v2395 = vpack.c.b16 %v2271, %v2267
  %v2396 = vpack.c.b16 %v2276, %v2272
  %v2397 = vpack.c.b16 %v2277, %v2273
  %v2398 = vpack.c.b16 %v2278, %v2274
  %v2399 = vpack.c.b16 %v2279, %v2275
  %v2400 = vpack.c.b16 %v2284, %v2280
  %v2401 = vpack.c.b16 %v2285, %v2281
  %v2402 = vpack.c.b16 %v2286, %v2282
  %v2403 = vpack.c.b16 %v2287, %v2283
  %v2404 = vpack.c.b16 %v2292, %v2288
  %v2405 = vpack.c.b16 %v2293, %v2289
  %v2406 = vpack.c.b16 %v2294, %v2290
  %v2407 = vpack.c.b16 %v2295, %v2291
  %v2408 = vpack.c.b16 %v2300, %v2296
  %v2409 = vpack.c.b16 %v2301, %v2297
  %v2410 = vpack.c.b16 %v2302, %v2298
  %v2411 = vpack.c.b16 %v2303, %v2299
  %v2412 = vpack.c.b16 %v2308, %v2304
  %v2413 = vpack.c.b16 %v2309, %v2305
  %v2414 = vpack.c.b16 %v2310, %v2306
  %v2415 = vpack.c.b16 %v2311, %v2307
  %v2416 = vpack.c.b16 %v2316, %v2312
  %v2417 = vpack.c.b16 %v2317, %v2313
  %v2418 = vpack.c.b16 %v2318, %v2314
  %v2419 = vpack.c.b16 %v2319, %v2315
  %v2420 = vpack.c.b16 %v2324, %v2320
  %v2421 = vpack.c.b16 %v2325, %v2321
  %v2422 = vpack.c.b16 %v2326, %v2322
  %v2423 = vpack.c.b16 %v2327, %v2323
  %v2424 = vpack.c.b16 %v2332, %v2328
  %v2425 = vpack.c.b16 %v2333, %v2329
  %v2426 = vpack.c.b16 %v2334, %v2330
  %v2427 = vpack.c.b16 %v2335, %v2331
  %v2428 = vpack.c.b16 %v2340, %v2336
  %v2429 = vpack.c.b16 %v2341, %v2337
  %v2430 = vpack.c.b16 %v2342, %v2338
  %v2431 = vpack.c.b16 %v2343, %v2339
  %v2432 = vpack.c.b16 %v2348, %v2344
  %v2433 = vpack.c.b16 %v2349, %v2345
  %v2434 = vpack.c.b16 %v2350, %v2346
  %v2435 = vpack.c.b16 %v2351, %v2347
  %v2436 = vpack.c.b16 %v2356, %v2352
  %v2437 = vpack.c.b16 %v2357, %v2353
  %v2438 = vpack.c.b16 %v2358, %v2354
  %v2439 = vpack.c.b16 %v2359, %v2355
  %v2440 = vpack.c.b16 %v2364, %v2360
  %v2441 = vpack.c.b16 %v2365, %v2361
  %v2442 = vpack.c.b16 %v2366, %v2362
  %v2443 = vpack.c.b16 %v2367, %v2363
  %v2444 = vpack.c.b16 %v2372, %v2368
  %v2445 = vpack.c.b16 %v2373, %v2369
  %v2446 = vpack.c.b16 %v2374, %v2370
  %v2447 = vpack.c.b16 %v2375, %v2371
  %v2448 = vpack.c.b16 %v2380, %v2376
  %v2449 = vpack.c.b16 %v2381, %v2377
  %v2450 = vpack.c.b16 %v2382, %v2378
  %v2451 = vpack.c.b16 %v2383, %v2379
  %v2452 = vpack.c.b16 %v2388, %v2384
  %v2453 = vpack.c.b16 %v2389, %v2385
  %v2454 = vpack.c.b16 %v2390, %v2386
  %v2455 = vpack.c.b16 %v2391, %v2387
  %2520 = vmatprep.subr.bf16.mxu0 %v2421
  %2521 = vmatpush1.bf16.msra.mxu0 %v2420
  %2522 = vmatprep.subr.bf16.mxu0 %v2417
  %2523 = vmatpush1.bf16.msra.mxu0 %v2416
  %2524 = vmatprep.subr.bf16.mxu0 %v2413
  %2525 = vmatpush1.bf16.msra.mxu0 %v2412
  %2526 = vmatprep.subr.bf16.mxu0 %v2409
  %2527 = vmatpush1.bf16.msra.mxu0 %v2408
  %2528 = vmatprep.subr.bf16.mxu0 %v2405
  %2529 = vmatpush1.bf16.msra.mxu0 %v2404
  %2530 = vmatprep.subr.bf16.mxu0 %v2401
  %2531 = vmatpush1.bf16.msra.mxu0 %v2400
  %2532 = vmatprep.subr.bf16.mxu0 %v2397
  %2533 = vmatpush1.bf16.msra.mxu0 %v2396
  %2534 = vmatprep.subr.bf16.mxu0 %v2393
  %2535 = vmatpush1.bf16.msra.mxu0 %v2392
  %2536 = vmatprep.subr.bf16.mxu0 %v2453
  %2537 = vmatpush2.bf16.msra.mxu0 %v2452
  %2538 = vmatprep.subr.bf16.mxu0 %v2449
  %2539 = vmatpush2.bf16.msra.mxu0 %v2448
  %2540 = vmatprep.subr.bf16.mxu0 %v2445
  %2541 = vmatpush2.bf16.msra.mxu0 %v2444
  %2542 = vmatprep.subr.bf16.mxu0 %v2441
  %2543 = vmatpush2.bf16.msra.mxu0 %v2440
  %2544 = vmatprep.subr.bf16.mxu0 %v2437
  %2545 = vmatpush2.bf16.msra.mxu0 %v2436
  %2546 = vmatprep.subr.bf16.mxu0 %v2433
  %2547 = vmatpush2.bf16.msra.mxu0 %v2432
  %2548 = vmatprep.subr.bf16.mxu0 %v2429
  %2549 = vmatpush2.bf16.msra.mxu0 %v2428
  %2550 = vmatprep.subr.bf16.mxu0 %v2425
  %2551 = vmatpush2.bf16.msra.mxu0 %v2424
  %2552 = vmatprep.mubr.bf16.mxu0 %v2173
  %2553 = vmatmul.mubr.bf16.gmra.mxu0 %v2172
  %v2554 = vpop.f32.mrf.mxu0
  %v2555 = vadd.f32 0.0, %v2554
  %v2556 = vpop.f32.mrf.mxu0
  %v2557 = vadd.f32 0.0, %v2556
  %v2558 = vpop.f32.mrf.mxu0
  %v2559 = vadd.f32 0.0, %v2558
  %v2560 = vpop.f32.mrf.mxu0
  %v2561 = vadd.f32 0.0, %v2560
  %2562 = vmatprep.mubr.bf16.mxu0 %v2175
  %2563 = vmatmul.mubr.bf16.gmra.mxu0 %v2174
  %v2564 = vpop.f32.mrf.mxu0
  %v2565 = vadd.f32 0.0, %v2564
  %v2566 = vpop.f32.mrf.mxu0
  %v2567 = vadd.f32 0.0, %v2566
  %v2568 = vpop.f32.mrf.mxu0
  %v2569 = vadd.f32 0.0, %v2568
  %v2570 = vpop.f32.mrf.mxu0
  %v2571 = vadd.f32 0.0, %v2570
  %2572 = vmatprep.mubr.bf16.mxu0 %v2177
  %2573 = vmatmul.mubr.bf16.gmra.mxu0 %v2176
  %v2574 = vpop.f32.mrf.mxu0
  %v2575 = vadd.f32 0.0, %v2574
  %v2576 = vpop.f32.mrf.mxu0
  %v2577 = vadd.f32 0.0, %v2576
  %v2578 = vpop.f32.mrf.mxu0
  %v2579 = vadd.f32 0.0, %v2578
  %v2580 = vpop.f32.mrf.mxu0
  %v2581 = vadd.f32 0.0, %v2580
  %2582 = vmatprep.mubr.bf16.mxu0 %v2179
  %2583 = vmatmul.mubr.bf16.gmra.mxu0 %v2178
  %v2584 = vpop.f32.mrf.mxu0
  %v2585 = vadd.f32 0.0, %v2584
  %v2586 = vpop.f32.mrf.mxu0
  %v2587 = vadd.f32 0.0, %v2586
  %v2588 = vpop.f32.mrf.mxu0
  %v2589 = vadd.f32 0.0, %v2588
  %v2590 = vpop.f32.mrf.mxu0
  %v2591 = vadd.f32 0.0, %v2590
  %2592 = vmatprep.mubr.bf16.mxu0 %v2181
  %2593 = vmatmul.mubr.bf16.gmra.mxu0 %v2180
  %v2594 = vpop.f32.mrf.mxu0
  %v2595 = vadd.f32 0.0, %v2594
  %v2596 = vpop.f32.mrf.mxu0
  %v2597 = vadd.f32 0.0, %v2596
  %v2598 = vpop.f32.mrf.mxu0
  %v2599 = vadd.f32 0.0, %v2598
  %v2600 = vpop.f32.mrf.mxu0
  %v2601 = vadd.f32 0.0, %v2600
  %2602 = vmatprep.mubr.bf16.mxu0 %v2183
  %2603 = vmatmul.mubr.bf16.gmra.mxu0 %v2182
  %v2604 = vpop.f32.mrf.mxu0
  %v2605 = vadd.f32 0.0, %v2604
  %v2606 = vpop.f32.mrf.mxu0
  %v2607 = vadd.f32 0.0, %v2606
  %v2608 = vpop.f32.mrf.mxu0
  %v2609 = vadd.f32 0.0, %v2608
  %v2610 = vpop.f32.mrf.mxu0
  %v2611 = vadd.f32 0.0, %v2610
  %2612 = vmatprep.mubr.bf16.mxu0 %v2185
  %2613 = vmatmul.mubr.bf16.gmra.mxu0 %v2184
  %v2614 = vpop.f32.mrf.mxu0
  %v2615 = vadd.f32 0.0, %v2614
  %v2616 = vpop.f32.mrf.mxu0
  %v2617 = vadd.f32 0.0, %v2616
  %v2618 = vpop.f32.mrf.mxu0
  %v2619 = vadd.f32 0.0, %v2618
  %v2620 = vpop.f32.mrf.mxu0
  %v2621 = vadd.f32 0.0, %v2620
  %2622 = vdwg.mxu0
  %2623 = vmatprep.subr.bf16.mxu0 %v2423
  %2624 = vmatpush1.bf16.msra.mxu0 %v2422
  %2625 = vmatprep.subr.bf16.mxu0 %v2419
  %2626 = vmatpush1.bf16.msra.mxu0 %v2418
  %2627 = vmatprep.subr.bf16.mxu0 %v2415
  %2628 = vmatpush1.bf16.msra.mxu0 %v2414
  %2629 = vmatprep.subr.bf16.mxu0 %v2411
  %2630 = vmatpush1.bf16.msra.mxu0 %v2410
  %2631 = vmatprep.subr.bf16.mxu0 %v2407
  %2632 = vmatpush1.bf16.msra.mxu0 %v2406
  %2633 = vmatprep.subr.bf16.mxu0 %v2403
  %2634 = vmatpush1.bf16.msra.mxu0 %v2402
  %2635 = vmatprep.subr.bf16.mxu0 %v2399
  %2636 = vmatpush1.bf16.msra.mxu0 %v2398
  %2637 = vmatprep.subr.bf16.mxu0 %v2395
  %2638 = vmatpush1.bf16.msra.mxu0 %v2394
  %2639 = vmatprep.subr.bf16.mxu0 %v2455
  %2640 = vmatpush2.bf16.msra.mxu0 %v2454
  %2641 = vmatprep.subr.bf16.mxu0 %v2451
  %2642 = vmatpush2.bf16.msra.mxu0 %v2450
  %2643 = vmatprep.subr.bf16.mxu0 %v2447
  %2644 = vmatpush2.bf16.msra.mxu0 %v2446
  %2645 = vmatprep.subr.bf16.mxu0 %v2443
  %2646 = vmatpush2.bf16.msra.mxu0 %v2442
  %2647 = vmatprep.subr.bf16.mxu0 %v2439
  %2648 = vmatpush2.bf16.msra.mxu0 %v2438
  %2649 = vmatprep.subr.bf16.mxu0 %v2435
  %2650 = vmatpush2.bf16.msra.mxu0 %v2434
  %2651 = vmatprep.subr.bf16.mxu0 %v2431
  %2652 = vmatpush2.bf16.msra.mxu0 %v2430
  %2653 = vmatprep.subr.bf16.mxu0 %v2427
  %2654 = vmatpush2.bf16.msra.mxu0 %v2426
  %2655 = vmatprep.mubr.bf16.mxu0 %v2173
  %2656 = vmatmul.mubr.bf16.gmra.mxu0 %v2172
  %v2657 = vpop.f32.mrf.mxu0
  %v2658 = vadd.f32 0.0, %v2657
  %v2659 = vpop.f32.mrf.mxu0
  %v2660 = vadd.f32 0.0, %v2659
  %v2661 = vpop.f32.mrf.mxu0
  %v2662 = vadd.f32 0.0, %v2661
  %v2663 = vpop.f32.mrf.mxu0
  %v2664 = vadd.f32 0.0, %v2663
  %2665 = vmatprep.mubr.bf16.mxu0 %v2175
  %2666 = vmatmul.mubr.bf16.gmra.mxu0 %v2174
  %v2667 = vpop.f32.mrf.mxu0
  %v2668 = vadd.f32 0.0, %v2667
  %v2669 = vpop.f32.mrf.mxu0
  %v2670 = vadd.f32 0.0, %v2669
  %v2671 = vpop.f32.mrf.mxu0
  %v2672 = vadd.f32 0.0, %v2671
  %v2673 = vpop.f32.mrf.mxu0
  %v2674 = vadd.f32 0.0, %v2673
  %2675 = vmatprep.mubr.bf16.mxu0 %v2177
  %2676 = vmatmul.mubr.bf16.gmra.mxu0 %v2176
  %v2677 = vpop.f32.mrf.mxu0
  %v2678 = vadd.f32 0.0, %v2677
  %v2679 = vpop.f32.mrf.mxu0
  %v2680 = vadd.f32 0.0, %v2679
  %v2681 = vpop.f32.mrf.mxu0
  %v2682 = vadd.f32 0.0, %v2681
  %v2683 = vpop.f32.mrf.mxu0
  %v2684 = vadd.f32 0.0, %v2683
  %2685 = vmatprep.mubr.bf16.mxu0 %v2179
  %2686 = vmatmul.mubr.bf16.gmra.mxu0 %v2178
  %v2687 = vpop.f32.mrf.mxu0
  %v2688 = vadd.f32 0.0, %v2687
  %v2689 = vpop.f32.mrf.mxu0
  %v2690 = vadd.f32 0.0, %v2689
  %v2691 = vpop.f32.mrf.mxu0
  %v2692 = vadd.f32 0.0, %v2691
  %v2693 = vpop.f32.mrf.mxu0
  %v2694 = vadd.f32 0.0, %v2693
  %2695 = vmatprep.mubr.bf16.mxu0 %v2181
  %2696 = vmatmul.mubr.bf16.gmra.mxu0 %v2180
  %v2697 = vpop.f32.mrf.mxu0
  %v2698 = vadd.f32 0.0, %v2697
  %v2699 = vpop.f32.mrf.mxu0
  %v2700 = vadd.f32 0.0, %v2699
  %v2701 = vpop.f32.mrf.mxu0
  %v2702 = vadd.f32 0.0, %v2701
  %v2703 = vpop.f32.mrf.mxu0
  %v2704 = vadd.f32 0.0, %v2703
  %2705 = vmatprep.mubr.bf16.mxu0 %v2183
  %2706 = vmatmul.mubr.bf16.gmra.mxu0 %v2182
  %v2707 = vpop.f32.mrf.mxu0
  %v2708 = vadd.f32 0.0, %v2707
  %v2709 = vpop.f32.mrf.mxu0
  %v2710 = vadd.f32 0.0, %v2709
  %v2711 = vpop.f32.mrf.mxu0
  %v2712 = vadd.f32 0.0, %v2711
  %v2713 = vpop.f32.mrf.mxu0
  %v2714 = vadd.f32 0.0, %v2713
  %2715 = vmatprep.mubr.bf16.mxu0 %v2185
  %2716 = vmatmul.mubr.bf16.gmra.mxu0 %v2184
  %v2717 = vpop.f32.mrf.mxu0
  %v2718 = vadd.f32 0.0, %v2717
  %v2719 = vpop.f32.mrf.mxu0
  %v2720 = vadd.f32 0.0, %v2719
  %v2721 = vpop.f32.mrf.mxu0
  %v2722 = vadd.f32 0.0, %v2721
  %v2723 = vpop.f32.mrf.mxu0
  %v2724 = vadd.f32 0.0, %v2723
  %2725 = vdwg.mxu0
  %v2726 = vadd.f32 %v1881, %v2555
  %v2727 = vadd.f32 %v1883, %v2557
  %v2728 = vadd.f32 %v1984, %v2658
  %v2729 = vadd.f32 %v1986, %v2660
  %v2730 = vadd.f32 %v1885, %v2559
  %v2731 = vadd.f32 %v1887, %v2561
  %v2732 = vadd.f32 %v1988, %v2662
  %v2733 = vadd.f32 %v1990, %v2664
  %v2734 = vadd.f32 %v1891, %v2565
  %v2735 = vadd.f32 %v1893, %v2567
  %v2736 = vadd.f32 %v1994, %v2668
  %v2737 = vadd.f32 %v1996, %v2670
  %v2738 = vadd.f32 %v1895, %v2569
  %v2739 = vadd.f32 %v1897, %v2571
  %v2740 = vadd.f32 %v1998, %v2672
  %v2741 = vadd.f32 %v2000, %v2674
  %v2742 = vadd.f32 %v1901, %v2575
  %v2743 = vadd.f32 %v1903, %v2577
  %v2744 = vadd.f32 %v2004, %v2678
  %v2745 = vadd.f32 %v2006, %v2680
  %v2746 = vadd.f32 %v1905, %v2579
  %v2747 = vadd.f32 %v1907, %v2581
  %v2748 = vadd.f32 %v2008, %v2682
  %v2749 = vadd.f32 %v2010, %v2684
  %v2750 = vadd.f32 %v1911, %v2585
  %v2751 = vadd.f32 %v1913, %v2587
  %v2752 = vadd.f32 %v2014, %v2688
  %v2753 = vadd.f32 %v2016, %v2690
  %v2754 = vadd.f32 %v1915, %v2589
  %v2755 = vadd.f32 %v1917, %v2591
  %v2756 = vadd.f32 %v2018, %v2692
  %v2757 = vadd.f32 %v2020, %v2694
  %v2758 = vadd.f32 %v1921, %v2595
  %v2759 = vadd.f32 %v1923, %v2597
  %v2760 = vadd.f32 %v2024, %v2698
  %v2761 = vadd.f32 %v2026, %v2700
  %v2762 = vadd.f32 %v1925, %v2599
  %v2763 = vadd.f32 %v1927, %v2601
  %v2764 = vadd.f32 %v2028, %v2702
  %v2765 = vadd.f32 %v2030, %v2704
  %v2766 = vadd.f32 %v1931, %v2605
  %v2767 = vadd.f32 %v1933, %v2607
  %v2768 = vadd.f32 %v2034, %v2708
  %v2769 = vadd.f32 %v2036, %v2710
  %v2770 = vadd.f32 %v1935, %v2609
  %v2771 = vadd.f32 %v1937, %v2611
  %v2772 = vadd.f32 %v2038, %v2712
  %v2773 = vadd.f32 %v2040, %v2714
  %v2774 = vadd.f32 %v1941, %v2615
  %v2775 = vadd.f32 %v1943, %v2617
  %v2776 = vadd.f32 %v2044, %v2718
  %v2777 = vadd.f32 %v2046, %v2720
  %v2778 = vadd.f32 %v1945, %v2619
  %v2779 = vadd.f32 %v1947, %v2621
  %v2780 = vadd.f32 %v2048, %v2722
  %v2781 = vadd.f32 %v2050, %v2724
  %v2782 = vld [vmem:[%s4] sm:$0xf]
  %v2784 = vlaneseq
  %v2785 = vshrl.u32 %v2784, 7
  %v2786 = vsub.s32 0, %v2785
  %v2787 = vrot.slane %v2782, %v2786
  %v2788 = vlaneseq
  %v2789 = vshrl.u32 %v2788, 7
  %v2790 = vsub.s32 1, %v2789
  %v2791 = vrot.slane %v2782, %v2790
  %v2792 = vlaneseq
  %v2793 = vshrl.u32 %v2792, 7
  %v2794 = vsub.s32 2, %v2793
  %v2795 = vrot.slane %v2782, %v2794
  %v2796 = vlaneseq
  %v2797 = vshrl.u32 %v2796, 7
  %v2798 = vsub.s32 3, %v2797
  %v2799 = vrot.slane %v2782, %v2798
  %v2804 = vadd.f32 %v2726, %v2787
  %v2805 = vadd.f32 %v2727, %v2791
  %v2806 = vadd.f32 %v2728, %v2795
  %v2807 = vadd.f32 %v2729, %v2799
  %v2808 = vadd.f32 %v2730, %v2787
  %v2809 = vadd.f32 %v2731, %v2791
  %v2810 = vadd.f32 %v2732, %v2795
  %v2811 = vadd.f32 %v2733, %v2799
  %v2812 = vadd.f32 %v2734, %v2787
  %v2813 = vadd.f32 %v2735, %v2791
  %v2814 = vadd.f32 %v2736, %v2795
  %v2815 = vadd.f32 %v2737, %v2799
  %v2816 = vadd.f32 %v2738, %v2787
  %v2817 = vadd.f32 %v2739, %v2791
  %v2818 = vadd.f32 %v2740, %v2795
  %v2819 = vadd.f32 %v2741, %v2799
  %v2820 = vadd.f32 %v2742, %v2787
  %v2821 = vadd.f32 %v2743, %v2791
  %v2822 = vadd.f32 %v2744, %v2795
  %v2823 = vadd.f32 %v2745, %v2799
  %v2824 = vadd.f32 %v2746, %v2787
  %v2825 = vadd.f32 %v2747, %v2791
  %v2826 = vadd.f32 %v2748, %v2795
  %v2827 = vadd.f32 %v2749, %v2799
  %v2828 = vadd.f32 %v2750, %v2787
  %v2829 = vadd.f32 %v2751, %v2791
  %v2830 = vadd.f32 %v2752, %v2795
  %v2831 = vadd.f32 %v2753, %v2799
  %v2832 = vadd.f32 %v2754, %v2787
  %v2833 = vadd.f32 %v2755, %v2791
  %v2834 = vadd.f32 %v2756, %v2795
  %v2835 = vadd.f32 %v2757, %v2799
  %v2836 = vadd.f32 %v2758, %v2787
  %v2837 = vadd.f32 %v2759, %v2791
  %v2838 = vadd.f32 %v2760, %v2795
  %v2839 = vadd.f32 %v2761, %v2799
  %v2840 = vadd.f32 %v2762, %v2787
  %v2841 = vadd.f32 %v2763, %v2791
  %v2842 = vadd.f32 %v2764, %v2795
  %v2843 = vadd.f32 %v2765, %v2799
  %v2844 = vadd.f32 %v2766, %v2787
  %v2845 = vadd.f32 %v2767, %v2791
  %v2846 = vadd.f32 %v2768, %v2795
  %v2847 = vadd.f32 %v2769, %v2799
  %v2848 = vadd.f32 %v2770, %v2787
  %v2849 = vadd.f32 %v2771, %v2791
  %v2850 = vadd.f32 %v2772, %v2795
  %v2851 = vadd.f32 %v2773, %v2799
  %v2852 = vadd.f32 %v2774, %v2787
  %v2853 = vadd.f32 %v2775, %v2791
  %v2854 = vadd.f32 %v2776, %v2795
  %v2855 = vadd.f32 %v2777, %v2799
  %v2856 = vadd.f32 %v2778, %v2787
  %v2857 = vadd.f32 %v2779, %v2791
  %v2858 = vadd.f32 %v2780, %v2795
  %v2859 = vadd.f32 %v2781, %v2799
  %v2860 = vlaneseq
  %v2861 = vshrl.u32 %v2860, 7
  %v2862 = vadd.s32 %v2861, 8
  %v2863 = vadd.s32 %v2861, 16
  %v2864 = vadd.s32 %v2861, 24
  %v2865 = vadd.s32 %v2861, 32
  %v2866 = vadd.s32 %v2861, 40
  %v2867 = vadd.s32 %v2861, 48
  %v2868 = vadd.s32 %v2861, 56
  %v2869 = vadd.s32 %v2861, 64
  %v2870 = vadd.s32 %v2861, 72
  %v2871 = vadd.s32 %v2861, 80
  %v2872 = vadd.s32 %v2861, 88
  %v2873 = vadd.s32 %v2861, 96
  %v2874 = vadd.s32 %v2861, 104
  %v2875 = vand.u32 %v2861, 7
  %v2876 = vand.u32 %v2862, 7
  %v2877 = vand.u32 %v2863, 7
  %v2878 = vand.u32 %v2864, 7
  %v2879 = vand.u32 %v2865, 7
  %v2880 = vand.u32 %v2866, 7
  %v2881 = vand.u32 %v2867, 7
  %v2882 = vand.u32 %v2868, 7
  %v2883 = vand.u32 %v2869, 7
  %v2884 = vand.u32 %v2870, 7
  %v2885 = vand.u32 %v2871, 7
  %v2886 = vand.u32 %v2872, 7
  %v2887 = vand.u32 %v2873, 7
  %v2888 = vand.u32 %v2874, 7
  %s2889 = smul.u32 0, 8
  %v2890 = vstv %s2889
  %v2891 = vadd.s32 %v2890, %v2875
  %v2892 = vadd.s32 %v2890, %v2876
  %v2893 = vadd.s32 %v2890, %v2877
  %v2894 = vadd.s32 %v2890, %v2878
  %v2895 = vadd.s32 %v2890, %v2879
  %v2896 = vadd.s32 %v2890, %v2880
  %v2897 = vadd.s32 %v2890, %v2881
  %v2898 = vadd.s32 %v2890, %v2882
  %v2899 = vadd.s32 %v2890, %v2883
  %v2900 = vadd.s32 %v2890, %v2884
  %v2901 = vadd.s32 %v2890, %v2885
  %v2902 = vadd.s32 %v2890, %v2886
  %v2903 = vadd.s32 %v2890, %v2887
  %v2904 = vadd.s32 %v2890, %v2888
  %vm2905 = vcmp.lt.s32.totalorder %v2891, 2
  %vm2906 = vcmp.lt.s32.totalorder %v2892, 2
  %vm2907 = vcmp.lt.s32.totalorder %v2893, 2
  %vm2908 = vcmp.lt.s32.totalorder %v2894, 2
  %vm2909 = vcmp.lt.s32.totalorder %v2895, 2
  %vm2910 = vcmp.lt.s32.totalorder %v2896, 2
  %vm2911 = vcmp.lt.s32.totalorder %v2897, 2
  %vm2912 = vcmp.lt.s32.totalorder %v2898, 2
  %vm2913 = vcmp.lt.s32.totalorder %v2899, 2
  %vm2914 = vcmp.lt.s32.totalorder %v2900, 2
  %vm2915 = vcmp.lt.s32.totalorder %v2901, 2
  %vm2916 = vcmp.lt.s32.totalorder %v2902, 2
  %vm2917 = vcmp.lt.s32.totalorder %v2903, 2
  %vm2918 = vcmp.lt.s32.totalorder %v2904, 2
  %v2919 = vsel %vm2905, 1, 0
  %v2920 = vsel %vm2906, 1, 0
  %v2921 = vsel %vm2907, 1, 0
  %v2922 = vsel %vm2908, 1, 0
  %v2923 = vsel %vm2909, 1, 0
  %v2924 = vsel %vm2910, 1, 0
  %v2925 = vsel %vm2911, 1, 0
  %v2926 = vsel %vm2912, 1, 0
  %v2927 = vsel %vm2913, 1, 0
  %v2928 = vsel %vm2914, 1, 0
  %v2929 = vsel %vm2915, 1, 0
  %v2930 = vsel %vm2916, 1, 0
  %v2931 = vsel %vm2917, 1, 0
  %v2932 = vsel %vm2918, 1, 0
  %v2933 = vcvt.s32.f32 %v2919
  %v2934 = vcvt.s32.f32 %v2920
  %v2935 = vcvt.s32.f32 %v2921
  %v2936 = vcvt.s32.f32 %v2922
  %v2937 = vcvt.s32.f32 %v2923
  %v2938 = vcvt.s32.f32 %v2924
  %v2939 = vcvt.s32.f32 %v2925
  %v2940 = vcvt.s32.f32 %v2926
  %v2941 = vcvt.s32.f32 %v2927
  %v2942 = vcvt.s32.f32 %v2928
  %v2943 = vcvt.s32.f32 %v2929
  %v2944 = vcvt.s32.f32 %v2930
  %v2945 = vcvt.s32.f32 %v2931
  %v2946 = vcvt.s32.f32 %v2932
  %v2947 = vmul.f32 %v2804, %v2933
  %v2948 = vmul.f32 %v2805, %v2933
  %v2949 = vmul.f32 %v2806, %v2933
  %v2950 = vmul.f32 %v2807, %v2933
  %v2951 = vmul.f32 %v2808, %v2934
  %v2952 = vmul.f32 %v2809, %v2934
  %v2953 = vmul.f32 %v2810, %v2934
  %v2954 = vmul.f32 %v2811, %v2934
  %v2955 = vmul.f32 %v2812, %v2935
  %v2956 = vmul.f32 %v2813, %v2935
  %v2957 = vmul.f32 %v2814, %v2935
  %v2958 = vmul.f32 %v2815, %v2935
  %v2959 = vmul.f32 %v2816, %v2936
  %v2960 = vmul.f32 %v2817, %v2936
  %v2961 = vmul.f32 %v2818, %v2936
  %v2962 = vmul.f32 %v2819, %v2936
  %v2963 = vmul.f32 %v2820, %v2937
  %v2964 = vmul.f32 %v2821, %v2937
  %v2965 = vmul.f32 %v2822, %v2937
  %v2966 = vmul.f32 %v2823, %v2937
  %v2967 = vmul.f32 %v2824, %v2938
  %v2968 = vmul.f32 %v2825, %v2938
  %v2969 = vmul.f32 %v2826, %v2938
  %v2970 = vmul.f32 %v2827, %v2938
  %v2971 = vmul.f32 %v2828, %v2939
  %v2972 = vmul.f32 %v2829, %v2939
  %v2973 = vmul.f32 %v2830, %v2939
  %v2974 = vmul.f32 %v2831, %v2939
  %v2975 = vmul.f32 %v2832, %v2940
  %v2976 = vmul.f32 %v2833, %v2940
  %v2977 = vmul.f32 %v2834, %v2940
  %v2978 = vmul.f32 %v2835, %v2940
  %v2979 = vmul.f32 %v2836, %v2941
  %v2980 = vmul.f32 %v2837, %v2941
  %v2981 = vmul.f32 %v2838, %v2941
  %v2982 = vmul.f32 %v2839, %v2941
  %v2983 = vmul.f32 %v2840, %v2942
  %v2984 = vmul.f32 %v2841, %v2942
  %v2985 = vmul.f32 %v2842, %v2942
  %v2986 = vmul.f32 %v2843, %v2942
  %v2987 = vmul.f32 %v2844, %v2943
  %v2988 = vmul.f32 %v2845, %v2943
  %v2989 = vmul.f32 %v2846, %v2943
  %v2990 = vmul.f32 %v2847, %v2943
  %v2991 = vmul.f32 %v2848, %v2944
  %v2992 = vmul.f32 %v2849, %v2944
  %v2993 = vmul.f32 %v2850, %v2944
  %v2994 = vmul.f32 %v2851, %v2944
  %v2995 = vmul.f32 %v2852, %v2945
  %v2996 = vmul.f32 %v2853, %v2945
  %v2997 = vmul.f32 %v2854, %v2945
  %v2998 = vmul.f32 %v2855, %v2945
  %v2999 = vmul.f32 %v2856, %v2946
  %v3000 = vmul.f32 %v2857, %v2946
  %v3001 = vmul.f32 %v2858, %v2946
  %v3002 = vmul.f32 %v2859, %v2946
  %v3003 = vadd.f32 %v2947, %v2951
  %v3004 = vadd.f32 %v3003, %v2955
  %v3005 = vadd.f32 %v3004, %v2959
  %v3006 = vadd.f32 %v3005, %v2963
  %v3007 = vadd.f32 %v3006, %v2967
  %v3008 = vadd.f32 %v3007, %v2971
  %v3009 = vadd.f32 %v3008, %v2975
  %v3010 = vadd.f32 %v3009, %v2979
  %v3011 = vadd.f32 %v3010, %v2983
  %v3012 = vadd.f32 %v3011, %v2987
  %v3013 = vadd.f32 %v3012, %v2991
  %v3014 = vadd.f32 %v3013, %v2995
  %v3015 = vadd.f32 %v3014, %v2999
  %v3016 = vrot.slane %v3015, 4
  %v3017 = vadd.f32 %v3015, %v3016
  %v3018 = vrot.slane %v3017, 2
  %v3019 = vadd.f32 %v3017, %v3018
  %v3020 = vrot.slane %v3019, 1
  %v3021 = vadd.f32 %v3019, %v3020
  %v3022 = vadd.f32 %v2948, %v2952
  %v3023 = vadd.f32 %v3022, %v2956
  %v3024 = vadd.f32 %v3023, %v2960
  %v3025 = vadd.f32 %v3024, %v2964
  %v3026 = vadd.f32 %v3025, %v2968
  %v3027 = vadd.f32 %v3026, %v2972
  %v3028 = vadd.f32 %v3027, %v2976
  %v3029 = vadd.f32 %v3028, %v2980
  %v3030 = vadd.f32 %v3029, %v2984
  %v3031 = vadd.f32 %v3030, %v2988
  %v3032 = vadd.f32 %v3031, %v2992
  %v3033 = vadd.f32 %v3032, %v2996
  %v3034 = vadd.f32 %v3033, %v3000
  %v3035 = vrot.slane %v3034, 4
  %v3036 = vadd.f32 %v3034, %v3035
  %v3037 = vrot.slane %v3036, 2
  %v3038 = vadd.f32 %v3036, %v3037
  %v3039 = vrot.slane %v3038, 1
  %v3040 = vadd.f32 %v3038, %v3039
  %v3041 = vadd.f32 %v2949, %v2953
  %v3042 = vadd.f32 %v3041, %v2957
  %v3043 = vadd.f32 %v3042, %v2961
  %v3044 = vadd.f32 %v3043, %v2965
  %v3045 = vadd.f32 %v3044, %v2969
  %v3046 = vadd.f32 %v3045, %v2973
  %v3047 = vadd.f32 %v3046, %v2977
  %v3048 = vadd.f32 %v3047, %v2981
  %v3049 = vadd.f32 %v3048, %v2985
  %v3050 = vadd.f32 %v3049, %v2989
  %v3051 = vadd.f32 %v3050, %v2993
  %v3052 = vadd.f32 %v3051, %v2997
  %v3053 = vadd.f32 %v3052, %v3001
  %v3054 = vrot.slane %v3053, 4
  %v3055 = vadd.f32 %v3053, %v3054
  %v3056 = vrot.slane %v3055, 2
  %v3057 = vadd.f32 %v3055, %v3056
  %v3058 = vrot.slane %v3057, 1
  %v3059 = vadd.f32 %v3057, %v3058
  %v3060 = vadd.f32 %v2950, %v2954
  %v3061 = vadd.f32 %v3060, %v2958
  %v3062 = vadd.f32 %v3061, %v2962
  %v3063 = vadd.f32 %v3062, %v2966
  %v3064 = vadd.f32 %v3063, %v2970
  %v3065 = vadd.f32 %v3064, %v2974
  %v3066 = vadd.f32 %v3065, %v2978
  %v3067 = vadd.f32 %v3066, %v2982
  %v3068 = vadd.f32 %v3067, %v2986
  %v3069 = vadd.f32 %v3068, %v2990
  %v3070 = vadd.f32 %v3069, %v2994
  %v3071 = vadd.f32 %v3070, %v2998
  %v3072 = vadd.f32 %v3071, %v3002
  %v3073 = vrot.slane %v3072, 4
  %v3074 = vadd.f32 %v3072, %v3073
  %v3075 = vrot.slane %v3074, 2
  %v3076 = vadd.f32 %v3074, %v3075
  %v3077 = vrot.slane %v3076, 1
  %v3078 = vadd.f32 %v3076, %v3077
  %v3083 = vcombine.low %v3021, %v3040
  %v3084 = vcombine.low %v3059, %v3078
  %v3086 = vunpack.c.l.s4 1966171168
  %v3087 = vunpack.c.0.s8 %v3086
  %v3088 = vlaneseq
  %v3089 = vshrl.u32 %v3088, 7
  %v3090 = vsub.s32 %v3087, %v3089
  %v3091 = vrot.slane %v3083, %v3090
  %v3093 = vunpack.c.l.s4 1966171168
  %v3094 = vunpack.c.0.s8 %v3093
  %v3095 = vlaneseq
  %v3096 = vshrl.u32 %v3095, 7
  %v3097 = vsub.s32 %v3094, %v3096
  %v3098 = vrot.slane %v3084, %v3097
  %v3099 = vcombine.low %v3091, %v3098
  %v3101 = vunpack.c.l.s4 1966171168
  %v3102 = vunpack.c.0.s8 %v3101
  %v3103 = vlaneseq
  %v3104 = vshrl.u32 %v3103, 7
  %v3105 = vsub.s32 %v3102, %v3104
  %v3106 = vrot.slane %v3099, %v3105
  %v3108 = vlaneseq
  %vm3109 = vcmp.ge.s32.totalorder %v3108, 0
  %vm3110 = vcmp.lt.s32.totalorder %v3108, 512
  %vm3111 = vmand %vm3109, %vm3110
  %3112 = vst.msk [vmem:[%s6] ss:$2 sm:$0xf] %vm3111, %v3106
  %v3113 = vmul.f32 %v2804, %v2947
  %v3114 = vmul.f32 %v2805, %v2948
  %v3115 = vmul.f32 %v2806, %v2949
  %v3116 = vmul.f32 %v2807, %v2950
  %v3117 = vmul.f32 %v2808, %v2951
  %v3118 = vmul.f32 %v2809, %v2952
  %v3119 = vmul.f32 %v2810, %v2953
  %v3120 = vmul.f32 %v2811, %v2954
  %v3121 = vmul.f32 %v2812, %v2955
  %v3122 = vmul.f32 %v2813, %v2956
  %v3123 = vmul.f32 %v2814, %v2957
  %v3124 = vmul.f32 %v2815, %v2958
  %v3125 = vmul.f32 %v2816, %v2959
  %v3126 = vmul.f32 %v2817, %v2960
  %v3127 = vmul.f32 %v2818, %v2961
  %v3128 = vmul.f32 %v2819, %v2962
  %v3129 = vmul.f32 %v2820, %v2963
  %v3130 = vmul.f32 %v2821, %v2964
  %v3131 = vmul.f32 %v2822, %v2965
  %v3132 = vmul.f32 %v2823, %v2966
  %v3133 = vmul.f32 %v2824, %v2967
  %v3134 = vmul.f32 %v2825, %v2968
  %v3135 = vmul.f32 %v2826, %v2969
  %v3136 = vmul.f32 %v2827, %v2970
  %v3137 = vmul.f32 %v2828, %v2971
  %v3138 = vmul.f32 %v2829, %v2972
  %v3139 = vmul.f32 %v2830, %v2973
  %v3140 = vmul.f32 %v2831, %v2974
  %v3141 = vmul.f32 %v2832, %v2975
  %v3142 = vmul.f32 %v2833, %v2976
  %v3143 = vmul.f32 %v2834, %v2977
  %v3144 = vmul.f32 %v2835, %v2978
  %v3145 = vmul.f32 %v2836, %v2979
  %v3146 = vmul.f32 %v2837, %v2980
  %v3147 = vmul.f32 %v2838, %v2981
  %v3148 = vmul.f32 %v2839, %v2982
  %v3149 = vmul.f32 %v2840, %v2983
  %v3150 = vmul.f32 %v2841, %v2984
  %v3151 = vmul.f32 %v2842, %v2985
  %v3152 = vmul.f32 %v2843, %v2986
  %v3153 = vmul.f32 %v2844, %v2987
  %v3154 = vmul.f32 %v2845, %v2988
  %v3155 = vmul.f32 %v2846, %v2989
  %v3156 = vmul.f32 %v2847, %v2990
  %v3157 = vmul.f32 %v2848, %v2991
  %v3158 = vmul.f32 %v2849, %v2992
  %v3159 = vmul.f32 %v2850, %v2993
  %v3160 = vmul.f32 %v2851, %v2994
  %v3161 = vmul.f32 %v2852, %v2995
  %v3162 = vmul.f32 %v2853, %v2996
  %v3163 = vmul.f32 %v2854, %v2997
  %v3164 = vmul.f32 %v2855, %v2998
  %v3165 = vmul.f32 %v2856, %v2999
  %v3166 = vmul.f32 %v2857, %v3000
  %v3167 = vmul.f32 %v2858, %v3001
  %v3168 = vmul.f32 %v2859, %v3002
  %v3169 = vadd.f32 %v3113, %v3117
  %v3170 = vadd.f32 %v3169, %v3121
  %v3171 = vadd.f32 %v3170, %v3125
  %v3172 = vadd.f32 %v3171, %v3129
  %v3173 = vadd.f32 %v3172, %v3133
  %v3174 = vadd.f32 %v3173, %v3137
  %v3175 = vadd.f32 %v3174, %v3141
  %v3176 = vadd.f32 %v3175, %v3145
  %v3177 = vadd.f32 %v3176, %v3149
  %v3178 = vadd.f32 %v3177, %v3153
  %v3179 = vadd.f32 %v3178, %v3157
  %v3180 = vadd.f32 %v3179, %v3161
  %v3181 = vadd.f32 %v3180, %v3165
  %v3182 = vrot.slane %v3181, 4
  %v3183 = vadd.f32 %v3181, %v3182
  %v3184 = vrot.slane %v3183, 2
  %v3185 = vadd.f32 %v3183, %v3184
  %v3186 = vrot.slane %v3185, 1
  %v3187 = vadd.f32 %v3185, %v3186
  %v3188 = vadd.f32 %v3114, %v3118
  %v3189 = vadd.f32 %v3188, %v3122
  %v3190 = vadd.f32 %v3189, %v3126
  %v3191 = vadd.f32 %v3190, %v3130
  %v3192 = vadd.f32 %v3191, %v3134
  %v3193 = vadd.f32 %v3192, %v3138
  %v3194 = vadd.f32 %v3193, %v3142
  %v3195 = vadd.f32 %v3194, %v3146
  %v3196 = vadd.f32 %v3195, %v3150
  %v3197 = vadd.f32 %v3196, %v3154
  %v3198 = vadd.f32 %v3197, %v3158
  %v3199 = vadd.f32 %v3198, %v3162
  %v3200 = vadd.f32 %v3199, %v3166
  %v3201 = vrot.slane %v3200, 4
  %v3202 = vadd.f32 %v3200, %v3201
  %v3203 = vrot.slane %v3202, 2
  %v3204 = vadd.f32 %v3202, %v3203
  %v3205 = vrot.slane %v3204, 1
  %v3206 = vadd.f32 %v3204, %v3205
  %v3207 = vadd.f32 %v3115, %v3119
  %v3208 = vadd.f32 %v3207, %v3123
  %v3209 = vadd.f32 %v3208, %v3127
  %v3210 = vadd.f32 %v3209, %v3131
  %v3211 = vadd.f32 %v3210, %v3135
  %v3212 = vadd.f32 %v3211, %v3139
  %v3213 = vadd.f32 %v3212, %v3143
  %v3214 = vadd.f32 %v3213, %v3147
  %v3215 = vadd.f32 %v3214, %v3151
  %v3216 = vadd.f32 %v3215, %v3155
  %v3217 = vadd.f32 %v3216, %v3159
  %v3218 = vadd.f32 %v3217, %v3163
  %v3219 = vadd.f32 %v3218, %v3167
  %v3220 = vrot.slane %v3219, 4
  %v3221 = vadd.f32 %v3219, %v3220
  %v3222 = vrot.slane %v3221, 2
  %v3223 = vadd.f32 %v3221, %v3222
  %v3224 = vrot.slane %v3223, 1
  %v3225 = vadd.f32 %v3223, %v3224
  %v3226 = vadd.f32 %v3116, %v3120
  %v3227 = vadd.f32 %v3226, %v3124
  %v3228 = vadd.f32 %v3227, %v3128
  %v3229 = vadd.f32 %v3228, %v3132
  %v3230 = vadd.f32 %v3229, %v3136
  %v3231 = vadd.f32 %v3230, %v3140
  %v3232 = vadd.f32 %v3231, %v3144
  %v3233 = vadd.f32 %v3232, %v3148
  %v3234 = vadd.f32 %v3233, %v3152
  %v3235 = vadd.f32 %v3234, %v3156
  %v3236 = vadd.f32 %v3235, %v3160
  %v3237 = vadd.f32 %v3236, %v3164
  %v3238 = vadd.f32 %v3237, %v3168
  %v3239 = vrot.slane %v3238, 4
  %v3240 = vadd.f32 %v3238, %v3239
  %v3241 = vrot.slane %v3240, 2
  %v3242 = vadd.f32 %v3240, %v3241
  %v3243 = vrot.slane %v3242, 1
  %v3244 = vadd.f32 %v3242, %v3243
  %v3249 = vcombine.low %v3187, %v3206
  %v3250 = vcombine.low %v3225, %v3244
  %v3252 = vunpack.c.l.s4 1966171168
  %v3253 = vunpack.c.0.s8 %v3252
  %v3254 = vlaneseq
  %v3255 = vshrl.u32 %v3254, 7
  %v3256 = vsub.s32 %v3253, %v3255
  %v3257 = vrot.slane %v3249, %v3256
  %v3259 = vunpack.c.l.s4 1966171168
  %v3260 = vunpack.c.0.s8 %v3259
  %v3261 = vlaneseq
  %v3262 = vshrl.u32 %v3261, 7
  %v3263 = vsub.s32 %v3260, %v3262
  %v3264 = vrot.slane %v3250, %v3263
  %v3265 = vcombine.low %v3257, %v3264
  %v3267 = vunpack.c.l.s4 1966171168
  %v3268 = vunpack.c.0.s8 %v3267
  %v3269 = vlaneseq
  %v3270 = vshrl.u32 %v3269, 7
  %v3271 = vsub.s32 %v3268, %v3270
  %v3272 = vrot.slane %v3265, %v3271
  %s3274 = scalar_lea.vmem %s6, 1
  %3275 = vst.msk [vmem:[%s3274] ss:$2 sm:$0xf] %vm3111, %v3272
  %v3276 = vpack.c.bf16 %v2808, %v2804
  %v3277 = vpack.c.bf16 %v2809, %v2805
  %v3278 = vpack.c.bf16 %v2810, %v2806
  %v3279 = vpack.c.bf16 %v2811, %v2807
  %v3280 = vpack.c.bf16 %v2816, %v2812
  %v3281 = vpack.c.bf16 %v2817, %v2813
  %v3282 = vpack.c.bf16 %v2818, %v2814
  %v3283 = vpack.c.bf16 %v2819, %v2815
  %v3284 = vpack.c.bf16 %v2824, %v2820
  %v3285 = vpack.c.bf16 %v2825, %v2821
  %v3286 = vpack.c.bf16 %v2826, %v2822
  %v3287 = vpack.c.bf16 %v2827, %v2823
  %v3288 = vpack.c.bf16 %v2832, %v2828
  %v3289 = vpack.c.bf16 %v2833, %v2829
  %v3290 = vpack.c.bf16 %v2834, %v2830
  %v3291 = vpack.c.bf16 %v2835, %v2831
  %v3292 = vpack.c.bf16 %v2840, %v2836
  %v3293 = vpack.c.bf16 %v2841, %v2837
  %v3294 = vpack.c.bf16 %v2842, %v2838
  %v3295 = vpack.c.bf16 %v2843, %v2839
  %v3296 = vpack.c.bf16 %v2848, %v2844
  %v3297 = vpack.c.bf16 %v2849, %v2845
  %v3298 = vpack.c.bf16 %v2850, %v2846
  %v3299 = vpack.c.bf16 %v2851, %v2847
  %v3300 = vpack.c.bf16 %v2856, %v2852
  %v3301 = vpack.c.bf16 %v2857, %v2853
  %v3302 = vpack.c.bf16 %v2858, %v2854
  %v3303 = vpack.c.bf16 %v2859, %v2855
  %v3332 = vunpack.c.l.b16 %v3276
  %v3333 = vunpack.c.l.b16 %v3277
  %v3334 = vunpack.c.l.b16 %v3278
  %v3335 = vunpack.c.l.b16 %v3279
  %v3336 = vunpack.c.h.b16 %v3276
  %v3337 = vunpack.c.h.b16 %v3277
  %v3338 = vunpack.c.h.b16 %v3278
  %v3339 = vunpack.c.h.b16 %v3279
  %v3340 = vunpack.c.l.b16 %v3280
  %v3341 = vunpack.c.l.b16 %v3281
  %v3342 = vunpack.c.l.b16 %v3282
  %v3343 = vunpack.c.l.b16 %v3283
  %v3344 = vunpack.c.h.b16 %v3280
  %v3345 = vunpack.c.h.b16 %v3281
  %v3346 = vunpack.c.h.b16 %v3282
  %v3347 = vunpack.c.h.b16 %v3283
  %v3348 = vunpack.c.l.b16 %v3284
  %v3349 = vunpack.c.l.b16 %v3285
  %v3350 = vunpack.c.l.b16 %v3286
  %v3351 = vunpack.c.l.b16 %v3287
  %v3352 = vunpack.c.h.b16 %v3284
  %v3353 = vunpack.c.h.b16 %v3285
  %v3354 = vunpack.c.h.b16 %v3286
  %v3355 = vunpack.c.h.b16 %v3287
  %v3356 = vunpack.c.l.b16 %v3288
  %v3357 = vunpack.c.l.b16 %v3289
  %v3358 = vunpack.c.l.b16 %v3290
  %v3359 = vunpack.c.l.b16 %v3291
  %v3360 = vunpack.c.h.b16 %v3288
  %v3361 = vunpack.c.h.b16 %v3289
  %v3362 = vunpack.c.h.b16 %v3290
  %v3363 = vunpack.c.h.b16 %v3291
  %v3364 = vunpack.c.l.b16 %v3292
  %v3365 = vunpack.c.l.b16 %v3293
  %v3366 = vunpack.c.l.b16 %v3294
  %v3367 = vunpack.c.l.b16 %v3295
  %v3368 = vunpack.c.h.b16 %v3292
  %v3369 = vunpack.c.h.b16 %v3293
  %v3370 = vunpack.c.h.b16 %v3294
  %v3371 = vunpack.c.h.b16 %v3295
  %v3372 = vunpack.c.l.b16 %v3296
  %v3373 = vunpack.c.l.b16 %v3297
  %v3374 = vunpack.c.l.b16 %v3298
  %v3375 = vunpack.c.l.b16 %v3299
  %v3376 = vunpack.c.h.b16 %v3296
  %v3377 = vunpack.c.h.b16 %v3297
  %v3378 = vunpack.c.h.b16 %v3298
  %v3379 = vunpack.c.h.b16 %v3299
  %v3380 = vunpack.c.l.b16 %v3300
  %v3381 = vunpack.c.l.b16 %v3301
  %v3382 = vunpack.c.l.b16 %v3302
  %v3383 = vunpack.c.l.b16 %v3303
  %v3384 = vunpack.c.h.b16 %v3300
  %v3385 = vunpack.c.h.b16 %v3301
  %v3386 = vunpack.c.h.b16 %v3302
  %v3387 = vunpack.c.h.b16 %v3303
  %v3388 = vpack.c.b16 %v3333, %v3332
  %v3389 = vpack.c.b16 %v3335, %v3334
  %v3390 = vpack.c.b16 %v3337, %v3336
  %v3391 = vpack.c.b16 %v3339, %v3338
  %v3392 = vpack.c.b16 %v3341, %v3340
  %v3393 = vpack.c.b16 %v3343, %v3342
  %v3394 = vpack.c.b16 %v3345, %v3344
  %v3395 = vpack.c.b16 %v3347, %v3346
  %v3396 = vpack.c.b16 %v3349, %v3348
  %v3397 = vpack.c.b16 %v3351, %v3350
  %v3398 = vpack.c.b16 %v3353, %v3352
  %v3399 = vpack.c.b16 %v3355, %v3354
  %v3400 = vpack.c.b16 %v3357, %v3356
  %v3401 = vpack.c.b16 %v3359, %v3358
  %v3402 = vpack.c.b16 %v3361, %v3360
  %v3403 = vpack.c.b16 %v3363, %v3362
  %v3404 = vpack.c.b16 %v3365, %v3364
  %v3405 = vpack.c.b16 %v3367, %v3366
  %v3406 = vpack.c.b16 %v3369, %v3368
  %v3407 = vpack.c.b16 %v3371, %v3370
  %v3408 = vpack.c.b16 %v3373, %v3372
  %v3409 = vpack.c.b16 %v3375, %v3374
  %v3410 = vpack.c.b16 %v3377, %v3376
  %v3411 = vpack.c.b16 %v3379, %v3378
  %v3412 = vpack.c.b16 %v3381, %v3380
  %v3413 = vpack.c.b16 %v3383, %v3382
  %v3414 = vpack.c.b16 %v3385, %v3384
  %v3415 = vpack.c.b16 %v3387, %v3386
  %3444 = vst [vmem:[%s5] sm:$0xff] %v3388
  %3445 = vst [vmem:[%s5 + $0x8] sm:$0xff] %v3389
  %3446 = vst [vmem:[%s5 + $0x10] sm:$0xff] %v3390
  %3447 = vst [vmem:[%s5 + $0x18] sm:$0xff] %v3391
  %3448 = vst [vmem:[%s5 + $0x20] sm:$0xff] %v3392
  %3449 = vst [vmem:[%s5 + $0x28] sm:$0xff] %v3393
  %3450 = vst [vmem:[%s5 + $0x30] sm:$0xff] %v3394
  %3451 = vst [vmem:[%s5 + $0x38] sm:$0xff] %v3395
  %3452 = vst [vmem:[%s5 + $0x40] sm:$0xff] %v3396
  %3453 = vst [vmem:[%s5 + $0x48] sm:$0xff] %v3397
  %3454 = vst [vmem:[%s5 + $0x50] sm:$0xff] %v3398
  %3455 = vst [vmem:[%s5 + $0x58] sm:$0xff] %v3399
  %3456 = vst [vmem:[%s5 + $0x60] sm:$0xff] %v3400
  %3457 = vst [vmem:[%s5 + $0x68] sm:$0xff] %v3401
  %3458 = vst [vmem:[%s5 + $0x70] sm:$0xff] %v3402
  %3459 = vst [vmem:[%s5 + $0x78] sm:$0xff] %v3403
  %3460 = vst [vmem:[%s5 + $0x80] sm:$0xff] %v3404
  %3461 = vst [vmem:[%s5 + $0x88] sm:$0xff] %v3405
  %3462 = vst [vmem:[%s5 + $0x90] sm:$0xff] %v3406
  %3463 = vst [vmem:[%s5 + $0x98] sm:$0xff] %v3407
  %3464 = vst [vmem:[%s5 + $0xa0] sm:$0xff] %v3408
  %3465 = vst [vmem:[%s5 + $0xa8] sm:$0xff] %v3409
  %3466 = vst [vmem:[%s5 + $0xb0] sm:$0xff] %v3410
  %3467 = vst [vmem:[%s5 + $0xb8] sm:$0xff] %v3411
  %3468 = vst [vmem:[%s5 + $0xc0] sm:$0xff] %v3412
  %3469 = vst [vmem:[%s5 + $0xc8] sm:$0xff] %v3413
  %3470 = vst [vmem:[%s5 + $0xd0] sm:$0xff] %v3414
  %3471 = vst [vmem:[%s5 + $0xd8] sm:$0xff] %v3415
  // Predicated region
  $region22: #{method_cnn_mnist_forward.4} parent=0 // pred_check
    _
  $region23: #{method_cnn_mnist_forward.4} parent=0 // pred_check_branch
    %3473 = sbr.rel (0) target = $region25
  $region24: #{method_cnn_mnist_forward.4} parent=0 // pred_region
    _
  $region25: #{method_cnn_mnist_forward.4} parent=0 // pred_fallthru
    _
  // Predicated region
  $region26: #{method_cnn_mnist_forward.4} parent=0 // pred_check
    _
  $region27: #{method_cnn_mnist_forward.4} parent=0 // pred_check_branch
    %3475 = sbr.rel (0) target = $region29
  $region28: #{method_cnn_mnist_forward.4} parent=0 // pred_region
    _
  $region29: #{method_cnn_mnist_forward.4} parent=0 // pred_fallthru
    _
  // Predicated region
  $region30: #{method_cnn_mnist_forward.4} parent=0 // pred_check
    _
  $region31: #{method_cnn_mnist_forward.4} parent=0 // pred_check_branch
    %3477 = sbr.rel (0) target = $region33
  $region32: #{method_cnn_mnist_forward.4} parent=0 // pred_region
    _
  $region33: #{method_cnn_mnist_forward.4} parent=0 // pred_fallthru
    _
  // Predicated region
  $region34: #{method_cnn_mnist_forward.4} parent=0 // pred_check
    _
  $region35: #{method_cnn_mnist_forward.4} parent=0 // pred_check_branch
    %3479 = sbr.rel (0) target = $region37
  $region36: #{method_cnn_mnist_forward.4} parent=0 // pred_region
    _
  $region37: #{method_cnn_mnist_forward.4} parent=0 // pred_fallthru
    _

// kernel: method_cnn_mnist_forward.5
$region0: #{method_cnn_mnist_forward.5}
  #allocation0 [shape = 'u32[]', space=smem, size = 0x4, offset = 0x4, fixed_abs, tag = 'smem constant byte address 0x4 - core index']
  #allocation1 [shape = 'u32[144,128]{1,0:T(1,128)}', space=vmem, size = 0x12000, scoped, tag = 'internal scratch']
  %s0 = inlined_call_operand.vmem [shape: bf16[112,512], index: 0, kind: input, shape index: {}]
  %s1 = inlined_call_operand.vmem [shape: f32[1,512], index: 1, kind: input, shape index: {}]
  %s2 = inlined_call_operand.vmem [shape: f32[1,512], index: 2, kind: input, shape index: {}]
  %s3 = inlined_call_operand.vmem [shape: bf16[7168,128], index: 3, kind: input, shape index: {}]
  %s4 = inlined_call_operand.vmem [shape: f32[1,128], index: 4, kind: input, shape index: {}]
  %s5 = inlined_call_operand.vmem [shape: f32[128,10], index: 5, kind: input, shape index: {}]
  %s6 = inlined_call_operand.vmem [shape: f32[1,10], index: 6, kind: input, shape index: {}]
  %s7 = inlined_call_operand.vmem [shape: f32[8,10], index: 7, kind: output, shape index: {}]
  %s8 = sld [smem:[#allocation0]]
  $region38: #{method_cnn_mnist_forward.5} parent=0
    _
  %s10 = ssub.s32 1, %s8
  %s11 = scalar_select 0, %s10, %s8
  // Predicated region
  $region2: #{method_cnn_mnist_forward.5} parent=0 // pred_check
    _
  $region3: #{method_cnn_mnist_forward.5} parent=0 // pred_check_branch
    %13 = sbr.rel (0) target = $region5
  $region4: #{method_cnn_mnist_forward.5} parent=0 // pred_region
    _
  $region5: #{method_cnn_mnist_forward.5} parent=0 // pred_fallthru
    _
  // Predicated region
  $region6: #{method_cnn_mnist_forward.5} parent=0 // pred_check
    _
  $region7: #{method_cnn_mnist_forward.5} parent=0 // pred_check_branch
    %15 = sbr.rel (0) target = $region9
  $region8: #{method_cnn_mnist_forward.5} parent=0 // pred_region
    _
  $region9: #{method_cnn_mnist_forward.5} parent=0 // pred_fallthru
    _
  // Predicated region
  $region10: #{method_cnn_mnist_forward.5} parent=0 // pred_check
    _
  $region11: #{method_cnn_mnist_forward.5} parent=0 // pred_check_branch
    %17 = sbr.rel (0) target = $region13
  $region12: #{method_cnn_mnist_forward.5} parent=0 // pred_region
    _
  $region13: #{method_cnn_mnist_forward.5} parent=0 // pred_fallthru
    _
  // Predicated region
  $region14: #{method_cnn_mnist_forward.5} parent=0 // pred_check
    _
  $region15: #{method_cnn_mnist_forward.5} parent=0 // pred_check_branch
    %19 = sbr.rel (0) target = $region17
  $region16: #{method_cnn_mnist_forward.5} parent=0 // pred_region
    _
  $region17: #{method_cnn_mnist_forward.5} parent=0 // pred_fallthru
    _
  // Predicated region
  $region18: #{method_cnn_mnist_forward.5} parent=0 // pred_check
    _
  $region19: #{method_cnn_mnist_forward.5} parent=0 // pred_check_branch
    %21 = sbr.rel (0) target = $region21
  $region20: #{method_cnn_mnist_forward.5} parent=0 // pred_region
    _
  $region21: #{method_cnn_mnist_forward.5} parent=0 // pred_fallthru
    _
  // Predicated region
  $region22: #{method_cnn_mnist_forward.5} parent=0 // pred_check
    _
  $region23: #{method_cnn_mnist_forward.5} parent=0 // pred_check_branch
    %23 = sbr.rel (0) target = $region25
  $region24: #{method_cnn_mnist_forward.5} parent=0 // pred_region
    _
  $region25: #{method_cnn_mnist_forward.5} parent=0 // pred_fallthru
    _
  // Predicated region
  $region26: #{method_cnn_mnist_forward.5} parent=0 // pred_check
    _
  $region27: #{method_cnn_mnist_forward.5} parent=0 // pred_check_branch
    %25 = sbr.rel (0) target = $region29
  $region28: #{method_cnn_mnist_forward.5} parent=0 // pred_region
    _
  $region29: #{method_cnn_mnist_forward.5} parent=0 // pred_fallthru
    _
  %v27 = vld [vmem:[%s1] sm:$0xf]
  %v28 = vld [vmem:[%s2] sm:$0xf]
  %v29 = vld [vmem:[%s4] sm:$0x1]
  %v31 = vlaneseq
  %v32 = vshrl.u32 %v31, 7
  %v33 = vsub.s32 0, %v32
  %v34 = vrot.slane %v29, %v33
  %v36 = vadd.f32 %v34, 0.0
  %v37 = vld [vmem:[%s0] sm:$0xff]
  %v38 = vld [vmem:[%s0 + $0x8] sm:$0xff]
  %v39 = vunpack.c.l.bf16 %v37
  %v40 = vunpack.c.h.bf16 %v37
  %v41 = vunpack.c.l.bf16 %v38
  %v42 = vunpack.c.h.bf16 %v38
  %v44 = vlaneseq
  %v45 = vshrl.u32 %v44, 7
  %v46 = vsub.s32 0, %v45
  %v47 = vrot.slane %v27, %v46
  %v48 = vlaneseq
  %v49 = vshrl.u32 %v48, 7
  %v50 = vsub.s32 1, %v49
  %v51 = vrot.slane %v27, %v50
  %v52 = vlaneseq
  %v53 = vshrl.u32 %v52, 7
  %v54 = vsub.s32 2, %v53
  %v55 = vrot.slane %v27, %v54
  %v56 = vlaneseq
  %v57 = vshrl.u32 %v56, 7
  %v58 = vsub.s32 3, %v57
  %v59 = vrot.slane %v27, %v58
  %v64 = vmul.f32 %v39, %v47
  %v65 = vmul.f32 %v40, %v51
  %v66 = vmul.f32 %v41, %v55
  %v67 = vmul.f32 %v42, %v59
  %v69 = vlaneseq
  %v70 = vshrl.u32 %v69, 7
  %v71 = vsub.s32 0, %v70
  %v72 = vrot.slane %v28, %v71
  %v73 = vlaneseq
  %v74 = vshrl.u32 %v73, 7
  %v75 = vsub.s32 1, %v74
  %v76 = vrot.slane %v28, %v75
  %v77 = vlaneseq
  %v78 = vshrl.u32 %v77, 7
  %v79 = vsub.s32 2, %v78
  %v80 = vrot.slane %v28, %v79
  %v81 = vlaneseq
  %v82 = vshrl.u32 %v81, 7
  %v83 = vsub.s32 3, %v82
  %v84 = vrot.slane %v28, %v83
  %v89 = vadd.f32 %v64, %v72
  %v90 = vadd.f32 %v65, %v76
  %v91 = vadd.f32 %v66, %v80
  %v92 = vadd.f32 %v67, %v84
  %v93 = vmax.f32 %v89, 0.0
  %v94 = vmax.f32 %v90, 0.0
  %v95 = vmax.f32 %v91, 0.0
  %v96 = vmax.f32 %v92, 0.0
  %v97 = vpack.c.bf16 %v93, %v93
  %v98 = vpack.c.bf16 %v94, %v94
  %v99 = vpack.c.bf16 %v95, %v95
  %v100 = vpack.c.bf16 %v96, %v96
  %v101 = vld [vmem:[%s3] sm:$0xf]
  %v102 = vld [vmem:[%s3 + $0x4] sm:$0xf]
  %v103 = vld [vmem:[%s3 + $0x8] sm:$0xf]
  %v104 = vld [vmem:[%s3 + $0xc] sm:$0xf]
  %v105 = vld [vmem:[%s3 + $0x10] sm:$0xf]
  %v106 = vld [vmem:[%s3 + $0x14] sm:$0xf]
  %v107 = vld [vmem:[%s3 + $0x18] sm:$0xf]
  %v108 = vld [vmem:[%s3 + $0x1c] sm:$0xf]
  %v109 = vld [vmem:[%s3 + $0x20] sm:$0xf]
  %v110 = vld [vmem:[%s3 + $0x24] sm:$0xf]
  %v111 = vld [vmem:[%s3 + $0x28] sm:$0xf]
  %v112 = vld [vmem:[%s3 + $0x2c] sm:$0xf]
  %v113 = vld [vmem:[%s3 + $0x30] sm:$0xf]
  %v114 = vld [vmem:[%s3 + $0x34] sm:$0xf]
  %v115 = vld [vmem:[%s3 + $0x38] sm:$0xf]
  %v116 = vld [vmem:[%s3 + $0x3c] sm:$0xf]
  %v117 = vld [vmem:[%s3 + $0x40] sm:$0xf]
  %v118 = vld [vmem:[%s3 + $0x44] sm:$0xf]
  %v119 = vld [vmem:[%s3 + $0x48] sm:$0xf]
  %v120 = vld [vmem:[%s3 + $0x4c] sm:$0xf]
  %v121 = vld [vmem:[%s3 + $0x50] sm:$0xf]
  %v122 = vld [vmem:[%s3 + $0x54] sm:$0xf]
  %v123 = vld [vmem:[%s3 + $0x58] sm:$0xf]
  %v124 = vld [vmem:[%s3 + $0x5c] sm:$0xf]
  %v125 = vld [vmem:[%s3 + $0x60] sm:$0xf]
  %v126 = vld [vmem:[%s3 + $0x64] sm:$0xf]
  %v127 = vld [vmem:[%s3 + $0x68] sm:$0xf]
  %v128 = vld [vmem:[%s3 + $0x6c] sm:$0xf]
  %v129 = vld [vmem:[%s3 + $0x70] sm:$0xf]
  %v130 = vld [vmem:[%s3 + $0x74] sm:$0xf]
  %v131 = vld [vmem:[%s3 + $0x78] sm:$0xf]
  %v132 = vld [vmem:[%s3 + $0x7c] sm:$0xf]
  %v133 = vld [vmem:[%s3 + $0x80] sm:$0xf]
  %v134 = vld [vmem:[%s3 + $0x84] sm:$0xf]
  %v135 = vld [vmem:[%s3 + $0x88] sm:$0xf]
  %v136 = vld [vmem:[%s3 + $0x8c] sm:$0xf]
  %v137 = vld [vmem:[%s3 + $0x90] sm:$0xf]
  %v138 = vld [vmem:[%s3 + $0x94] sm:$0xf]
  %v139 = vld [vmem:[%s3 + $0x98] sm:$0xf]
  %v140 = vld [vmem:[%s3 + $0x9c] sm:$0xf]
  %v141 = vld [vmem:[%s3 + $0xa0] sm:$0xf]
  %v142 = vld [vmem:[%s3 + $0xa4] sm:$0xf]
  %v143 = vld [vmem:[%s3 + $0xa8] sm:$0xf]
  %v144 = vld [vmem:[%s3 + $0xac] sm:$0xf]
  %v145 = vld [vmem:[%s3 + $0xb0] sm:$0xf]
  %v146 = vld [vmem:[%s3 + $0xb4] sm:$0xf]
  %v147 = vld [vmem:[%s3 + $0xb8] sm:$0xf]
  %v148 = vld [vmem:[%s3 + $0xbc] sm:$0xf]
  %v149 = vld [vmem:[%s3 + $0xc0] sm:$0xf]
  %v150 = vld [vmem:[%s3 + $0xc4] sm:$0xf]
  %v151 = vld [vmem:[%s3 + $0xc8] sm:$0xf]
  %v152 = vld [vmem:[%s3 + $0xcc] sm:$0xf]
  %v153 = vld [vmem:[%s3 + $0xd0] sm:$0xf]
  %v154 = vld [vmem:[%s3 + $0xd4] sm:$0xf]
  %v155 = vld [vmem:[%s3 + $0xd8] sm:$0xf]
  %v156 = vld [vmem:[%s3 + $0xdc] sm:$0xf]
  %v157 = vld [vmem:[%s3 + $0xe0] sm:$0xf]
  %v158 = vld [vmem:[%s3 + $0xe4] sm:$0xf]
  %v159 = vld [vmem:[%s3 + $0xe8] sm:$0xf]
  %v160 = vld [vmem:[%s3 + $0xec] sm:$0xf]
  %v161 = vld [vmem:[%s3 + $0xf0] sm:$0xf]
  %v162 = vld [vmem:[%s3 + $0xf4] sm:$0xf]
  %v163 = vld [vmem:[%s3 + $0xf8] sm:$0xf]
  %v164 = vld [vmem:[%s3 + $0xfc] sm:$0xf]
  %v229 = vunpack.c.l.b16 %v101
  %v230 = vunpack.c.l.b16 %v102
  %v231 = vunpack.c.l.b16 %v103
  %v232 = vunpack.c.l.b16 %v104
  %v233 = vunpack.c.l.b16 %v105
  %v234 = vunpack.c.l.b16 %v106
  %v235 = vunpack.c.l.b16 %v107
  %v236 = vunpack.c.l.b16 %v108
  %v237 = vunpack.c.l.b16 %v109
  %v238 = vunpack.c.l.b16 %v110
  %v239 = vunpack.c.l.b16 %v111
  %v240 = vunpack.c.l.b16 %v112
  %v241 = vunpack.c.l.b16 %v113
  %v242 = vunpack.c.l.b16 %v114
  %v243 = vunpack.c.l.b16 %v115
  %v244 = vunpack.c.l.b16 %v116
  %v245 = vunpack.c.l.b16 %v117
  %v246 = vunpack.c.l.b16 %v118
  %v247 = vunpack.c.l.b16 %v119
  %v248 = vunpack.c.l.b16 %v120
  %v249 = vunpack.c.l.b16 %v121
  %v250 = vunpack.c.l.b16 %v122
  %v251 = vunpack.c.l.b16 %v123
  %v252 = vunpack.c.l.b16 %v124
  %v253 = vunpack.c.l.b16 %v125
  %v254 = vunpack.c.l.b16 %v126
  %v255 = vunpack.c.l.b16 %v127
  %v256 = vunpack.c.l.b16 %v128
  %v257 = vunpack.c.l.b16 %v129
  %v258 = vunpack.c.l.b16 %v130
  %v259 = vunpack.c.l.b16 %v131
  %v260 = vunpack.c.l.b16 %v132
  %v261 = vunpack.c.l.b16 %v133
  %v262 = vunpack.c.l.b16 %v134
  %v263 = vunpack.c.l.b16 %v135
  %v264 = vunpack.c.l.b16 %v136
  %v265 = vunpack.c.l.b16 %v137
  %v266 = vunpack.c.l.b16 %v138
  %v267 = vunpack.c.l.b16 %v139
  %v268 = vunpack.c.l.b16 %v140
  %v269 = vunpack.c.l.b16 %v141
  %v270 = vunpack.c.l.b16 %v142
  %v271 = vunpack.c.l.b16 %v143
  %v272 = vunpack.c.l.b16 %v144
  %v273 = vunpack.c.l.b16 %v145
  %v274 = vunpack.c.l.b16 %v146
  %v275 = vunpack.c.l.b16 %v147
  %v276 = vunpack.c.l.b16 %v148
  %v277 = vunpack.c.l.b16 %v149
  %v278 = vunpack.c.l.b16 %v150
  %v279 = vunpack.c.l.b16 %v151
  %v280 = vunpack.c.l.b16 %v152
  %v281 = vunpack.c.l.b16 %v153
  %v282 = vunpack.c.l.b16 %v154
  %v283 = vunpack.c.l.b16 %v155
  %v284 = vunpack.c.l.b16 %v156
  %v285 = vunpack.c.l.b16 %v157
  %v286 = vunpack.c.l.b16 %v158
  %v287 = vunpack.c.l.b16 %v159
  %v288 = vunpack.c.l.b16 %v160
  %v289 = vunpack.c.l.b16 %v161
  %v290 = vunpack.c.l.b16 %v162
  %v291 = vunpack.c.l.b16 %v163
  %v292 = vunpack.c.l.b16 %v164
  %v293 = vpack.c.b16 %v230, %v229
  %v294 = vpack.c.b16 %v232, %v231
  %v295 = vpack.c.b16 %v234, %v233
  %v296 = vpack.c.b16 %v236, %v235
  %v297 = vpack.c.b16 %v238, %v237
  %v298 = vpack.c.b16 %v240, %v239
  %v299 = vpack.c.b16 %v242, %v241
  %v300 = vpack.c.b16 %v244, %v243
  %v301 = vpack.c.b16 %v246, %v245
  %v302 = vpack.c.b16 %v248, %v247
  %v303 = vpack.c.b16 %v250, %v249
  %v304 = vpack.c.b16 %v252, %v251
  %v305 = vpack.c.b16 %v254, %v253
  %v306 = vpack.c.b16 %v256, %v255
  %v307 = vpack.c.b16 %v258, %v257
  %v308 = vpack.c.b16 %v260, %v259
  %v309 = vpack.c.b16 %v262, %v261
  %v310 = vpack.c.b16 %v264, %v263
  %v311 = vpack.c.b16 %v266, %v265
  %v312 = vpack.c.b16 %v268, %v267
  %v313 = vpack.c.b16 %v270, %v269
  %v314 = vpack.c.b16 %v272, %v271
  %v315 = vpack.c.b16 %v274, %v273
  %v316 = vpack.c.b16 %v276, %v275
  %v317 = vpack.c.b16 %v278, %v277
  %v318 = vpack.c.b16 %v280, %v279
  %v319 = vpack.c.b16 %v282, %v281
  %v320 = vpack.c.b16 %v284, %v283
  %v321 = vpack.c.b16 %v286, %v285
  %v322 = vpack.c.b16 %v288, %v287
  %v323 = vpack.c.b16 %v290, %v289
  %v324 = vpack.c.b16 %v292, %v291
  %357 = vmatprep.subr.bf16.mxu0 0
  %358 = vmatpush1.bf16.msra.mxu0 %v300
  %359 = vmatprep.subr.bf16.mxu0 0
  %360 = vmatpush1.bf16.msra.mxu0 %v299
  %361 = vmatprep.subr.bf16.mxu0 0
  %362 = vmatpush1.bf16.msra.mxu0 %v298
  %363 = vmatprep.subr.bf16.mxu0 0
  %364 = vmatpush1.bf16.msra.mxu0 %v297
  %365 = vmatprep.subr.bf16.mxu0 0
  %366 = vmatpush1.bf16.msra.mxu0 %v296
  %367 = vmatprep.subr.bf16.mxu0 0
  %368 = vmatpush1.bf16.msra.mxu0 %v295
  %369 = vmatprep.subr.bf16.mxu0 0
  %370 = vmatpush1.bf16.msra.mxu0 %v294
  %371 = vmatprep.subr.bf16.mxu0 0
  %372 = vmatpush1.bf16.msra.mxu0 %v293
  %373 = vmatprep.subr.bf16.mxu0 0
  %374 = vmatpush2.bf16.msra.mxu0 %v308
  %375 = vmatprep.subr.bf16.mxu0 0
  %376 = vmatpush2.bf16.msra.mxu0 %v307
  %377 = vmatprep.subr.bf16.mxu0 0
  %378 = vmatpush2.bf16.msra.mxu0 %v306
  %379 = vmatprep.subr.bf16.mxu0 0
  %380 = vmatpush2.bf16.msra.mxu0 %v305
  %381 = vmatprep.subr.bf16.mxu0 0
  %382 = vmatpush2.bf16.msra.mxu0 %v304
  %383 = vmatprep.subr.bf16.mxu0 0
  %384 = vmatpush2.bf16.msra.mxu0 %v303
  %385 = vmatprep.subr.bf16.mxu0 0
  %386 = vmatpush2.bf16.msra.mxu0 %v302
  %387 = vmatprep.subr.bf16.mxu0 0
  %388 = vmatpush2.bf16.msra.mxu0 %v301
  %389 = vmatprep.mubr.bf16.mxu0 %v98
  %390 = vmatmul.mubr.bf16.gmra.mxu0 %v97
  %v391 = vpop.f32.mrf.mxu0
  %v392 = vadd.f32 0.0, %v391
  %v393 = vpop.f32.mrf.mxu0
  %v394 = vpop.f32.mrf.mxu0
  %v395 = vpop.f32.mrf.mxu0
  %396 = vdwg.mxu0
  %397 = vmatprep.subr.bf16.mxu0 0
  %398 = vmatpush1.bf16.msra.mxu0 %v316
  %399 = vmatprep.subr.bf16.mxu0 0
  %400 = vmatpush1.bf16.msra.mxu0 %v315
  %401 = vmatprep.subr.bf16.mxu0 0
  %402 = vmatpush1.bf16.msra.mxu0 %v314
  %403 = vmatprep.subr.bf16.mxu0 0
  %404 = vmatpush1.bf16.msra.mxu0 %v313
  %405 = vmatprep.subr.bf16.mxu0 0
  %406 = vmatpush1.bf16.msra.mxu0 %v312
  %407 = vmatprep.subr.bf16.mxu0 0
  %408 = vmatpush1.bf16.msra.mxu0 %v311
  %409 = vmatprep.subr.bf16.mxu0 0
  %410 = vmatpush1.bf16.msra.mxu0 %v310
  %411 = vmatprep.subr.bf16.mxu0 0
  %412 = vmatpush1.bf16.msra.mxu0 %v309
  %413 = vmatprep.subr.bf16.mxu0 0
  %414 = vmatpush2.bf16.msra.mxu0 %v324
  %415 = vmatprep.subr.bf16.mxu0 0
  %416 = vmatpush2.bf16.msra.mxu0 %v323
  %417 = vmatprep.subr.bf16.mxu0 0
  %418 = vmatpush2.bf16.msra.mxu0 %v322
  %419 = vmatprep.subr.bf16.mxu0 0
  %420 = vmatpush2.bf16.msra.mxu0 %v321
  %421 = vmatprep.subr.bf16.mxu0 0
  %422 = vmatpush2.bf16.msra.mxu0 %v320
  %423 = vmatprep.subr.bf16.mxu0 0
  %424 = vmatpush2.bf16.msra.mxu0 %v319
  %425 = vmatprep.subr.bf16.mxu0 0
  %426 = vmatpush2.bf16.msra.mxu0 %v318
  %427 = vmatprep.subr.bf16.mxu0 0
  %428 = vmatpush2.bf16.msra.mxu0 %v317
  %429 = vmatprep.mubr.bf16.mxu0 %v100
  %430 = vmatmul.mubr.bf16.gmra.mxu0 %v99
  %v431 = vpop.f32.mrf.mxu0
  %v432 = vadd.f32 %v392, %v431
  %v433 = vpop.f32.mrf.mxu0
  %v434 = vpop.f32.mrf.mxu0
  %v435 = vpop.f32.mrf.mxu0
  %436 = vdwg.mxu0
  %v437 = vadd.f32 %v36, %v432
  %v438 = vld [vmem:[%s0 + $0x10] sm:$0xff]
  %v439 = vld [vmem:[%s0 + $0x18] sm:$0xff]
  %v440 = vunpack.c.l.bf16 %v438
  %v441 = vunpack.c.h.bf16 %v438
  %v442 = vunpack.c.l.bf16 %v439
  %v443 = vunpack.c.h.bf16 %v439
  %v444 = vmul.f32 %v440, %v47
  %v445 = vmul.f32 %v441, %v51
  %v446 = vmul.f32 %v442, %v55
  %v447 = vmul.f32 %v443, %v59
  %v448 = vadd.f32 %v444, %v72
  %v449 = vadd.f32 %v445, %v76
  %v450 = vadd.f32 %v446, %v80
  %v451 = vadd.f32 %v447, %v84
  %v452 = vmax.f32 %v448, 0.0
  %v453 = vmax.f32 %v449, 0.0
  %v454 = vmax.f32 %v450, 0.0
  %v455 = vmax.f32 %v451, 0.0
  %v456 = vpack.c.bf16 %v452, %v452
  %v457 = vpack.c.bf16 %v453, %v453
  %v458 = vpack.c.bf16 %v454, %v454
  %v459 = vpack.c.bf16 %v455, %v455
  %v460 = vld [vmem:[%s3 + $0x100] sm:$0xf]
  %v461 = vld [vmem:[%s3 + $0x104] sm:$0xf]
  %v462 = vld [vmem:[%s3 + $0x108] sm:$0xf]
  %v463 = vld [vmem:[%s3 + $0x10c] sm:$0xf]
  %v464 = vld [vmem:[%s3 + $0x110] sm:$0xf]
  %v465 = vld [vmem:[%s3 + $0x114] sm:$0xf]
  %v466 = vld [vmem:[%s3 + $0x118] sm:$0xf]
  %v467 = vld [vmem:[%s3 + $0x11c] sm:$0xf]
  %v468 = vld [vmem:[%s3 + $0x120] sm:$0xf]
  %v469 = vld [vmem:[%s3 + $0x124] sm:$0xf]
  %v470 = vld [vmem:[%s3 + $0x128] sm:$0xf]
  %v471 = vld [vmem:[%s3 + $0x12c] sm:$0xf]
  %v472 = vld [vmem:[%s3 + $0x130] sm:$0xf]
  %v473 = vld [vmem:[%s3 + $0x134] sm:$0xf]
  %v474 = vld [vmem:[%s3 + $0x138] sm:$0xf]
  %v475 = vld [vmem:[%s3 + $0x13c] sm:$0xf]
  %v476 = vld [vmem:[%s3 + $0x140] sm:$0xf]
  %v477 = vld [vmem:[%s3 + $0x144] sm:$0xf]
  %v478 = vld [vmem:[%s3 + $0x148] sm:$0xf]
  %v479 = vld [vmem:[%s3 + $0x14c] sm:$0xf]
  %v480 = vld [vmem:[%s3 + $0x150] sm:$0xf]
  %v481 = vld [vmem:[%s3 + $0x154] sm:$0xf]
  %v482 = vld [vmem:[%s3 + $0x158] sm:$0xf]
  %v483 = vld [vmem:[%s3 + $0x15c] sm:$0xf]
  %v484 = vld [vmem:[%s3 + $0x160] sm:$0xf]
  %v485 = vld [vmem:[%s3 + $0x164] sm:$0xf]
  %v486 = vld [vmem:[%s3 + $0x168] sm:$0xf]
  %v487 = vld [vmem:[%s3 + $0x16c] sm:$0xf]
  %v488 = vld [vmem:[%s3 + $0x170] sm:$0xf]
  %v489 = vld [vmem:[%s3 + $0x174] sm:$0xf]
  %v490 = vld [vmem:[%s3 + $0x178] sm:$0xf]
  %v491 = vld [vmem:[%s3 + $0x17c] sm:$0xf]
  %v492 = vld [vmem:[%s3 + $0x180] sm:$0xf]
  %v493 = vld [vmem:[%s3 + $0x184] sm:$0xf]
  %v494 = vld [vmem:[%s3 + $0x188] sm:$0xf]
  %v495 = vld [vmem:[%s3 + $0x18c] sm:$0xf]
  %v496 = vld [vmem:[%s3 + $0x190] sm:$0xf]
  %v497 = vld [vmem:[%s3 + $0x194] sm:$0xf]
  %v498 = vld [vmem:[%s3 + $0x198] sm:$0xf]
  %v499 = vld [vmem:[%s3 + $0x19c] sm:$0xf]
  %v500 = vld [vmem:[%s3 + $0x1a0] sm:$0xf]
  %v501 = vld [vmem:[%s3 + $0x1a4] sm:$0xf]
  %v502 = vld [vmem:[%s3 + $0x1a8] sm:$0xf]
  %v503 = vld [vmem:[%s3 + $0x1ac] sm:$0xf]
  %v504 = vld [vmem:[%s3 + $0x1b0] sm:$0xf]
  %v505 = vld [vmem:[%s3 + $0x1b4] sm:$0xf]
  %v506 = vld [vmem:[%s3 + $0x1b8] sm:$0xf]
  %v507 = vld [vmem:[%s3 + $0x1bc] sm:$0xf]
  %v508 = vld [vmem:[%s3 + $0x1c0] sm:$0xf]
  %v509 = vld [vmem:[%s3 + $0x1c4] sm:$0xf]
  %v510 = vld [vmem:[%s3 + $0x1c8] sm:$0xf]
  %v511 = vld [vmem:[%s3 + $0x1cc] sm:$0xf]
  %v512 = vld [vmem:[%s3 + $0x1d0] sm:$0xf]
  %v513 = vld [vmem:[%s3 + $0x1d4] sm:$0xf]
  %v514 = vld [vmem:[%s3 + $0x1d8] sm:$0xf]
  %v515 = vld [vmem:[%s3 + $0x1dc] sm:$0xf]
  %v516 = vld [vmem:[%s3 + $0x1e0] sm:$0xf]
  %v517 = vld [vmem:[%s3 + $0x1e4] sm:$0xf]
  %v518 = vld [vmem:[%s3 + $0x1e8] sm:$0xf]
  %v519 = vld [vmem:[%s3 + $0x1ec] sm:$0xf]
  %v520 = vld [vmem:[%s3 + $0x1f0] sm:$0xf]
  %v521 = vld [vmem:[%s3 + $0x1f4] sm:$0xf]
  %v522 = vld [vmem:[%s3 + $0x1f8] sm:$0xf]
  %v523 = vld [vmem:[%s3 + $0x1fc] sm:$0xf]
  %v588 = vunpack.c.l.b16 %v460
  %v589 = vunpack.c.l.b16 %v461
  %v590 = vunpack.c.l.b16 %v462
  %v591 = vunpack.c.l.b16 %v463
  %v592 = vunpack.c.l.b16 %v464
  %v593 = vunpack.c.l.b16 %v465
  %v594 = vunpack.c.l.b16 %v466
  %v595 = vunpack.c.l.b16 %v467
  %v596 = vunpack.c.l.b16 %v468
  %v597 = vunpack.c.l.b16 %v469
  %v598 = vunpack.c.l.b16 %v470
  %v599 = vunpack.c.l.b16 %v471
  %v600 = vunpack.c.l.b16 %v472
  %v601 = vunpack.c.l.b16 %v473
  %v602 = vunpack.c.l.b16 %v474
  %v603 = vunpack.c.l.b16 %v475
  %v604 = vunpack.c.l.b16 %v476
  %v605 = vunpack.c.l.b16 %v477
  %v606 = vunpack.c.l.b16 %v478
  %v607 = vunpack.c.l.b16 %v479
  %v608 = vunpack.c.l.b16 %v480
  %v609 = vunpack.c.l.b16 %v481
  %v610 = vunpack.c.l.b16 %v482
  %v611 = vunpack.c.l.b16 %v483
  %v612 = vunpack.c.l.b16 %v484
  %v613 = vunpack.c.l.b16 %v485
  %v614 = vunpack.c.l.b16 %v486
  %v615 = vunpack.c.l.b16 %v487
  %v616 = vunpack.c.l.b16 %v488
  %v617 = vunpack.c.l.b16 %v489
  %v618 = vunpack.c.l.b16 %v490
  %v619 = vunpack.c.l.b16 %v491
  %v620 = vunpack.c.l.b16 %v492
  %v621 = vunpack.c.l.b16 %v493
  %v622 = vunpack.c.l.b16 %v494
  %v623 = vunpack.c.l.b16 %v495
  %v624 = vunpack.c.l.b16 %v496
  %v625 = vunpack.c.l.b16 %v497
  %v626 = vunpack.c.l.b16 %v498
  %v627 = vunpack.c.l.b16 %v499
  %v628 = vunpack.c.l.b16 %v500
  %v629 = vunpack.c.l.b16 %v501
  %v630 = vunpack.c.l.b16 %v502
  %v631 = vunpack.c.l.b16 %v503
  %v632 = vunpack.c.l.b16 %v504
  %v633 = vunpack.c.l.b16 %v505
  %v634 = vunpack.c.l.b16 %v506
  %v635 = vunpack.c.l.b16 %v507
  %v636 = vunpack.c.l.b16 %v508
  %v637 = vunpack.c.l.b16 %v509
  %v638 = vunpack.c.l.b16 %v510
  %v639 = vunpack.c.l.b16 %v511
  %v640 = vunpack.c.l.b16 %v512
  %v641 = vunpack.c.l.b16 %v513
  %v642 = vunpack.c.l.b16 %v514
  %v643 = vunpack.c.l.b16 %v515
  %v644 = vunpack.c.l.b16 %v516
  %v645 = vunpack.c.l.b16 %v517
  %v646 = vunpack.c.l.b16 %v518
  %v647 = vunpack.c.l.b16 %v519
  %v648 = vunpack.c.l.b16 %v520
  %v649 = vunpack.c.l.b16 %v521
  %v650 = vunpack.c.l.b16 %v522
  %v651 = vunpack.c.l.b16 %v523
  %v652 = vpack.c.b16 %v589, %v588
  %v653 = vpack.c.b16 %v591, %v590
  %v654 = vpack.c.b16 %v593, %v592
  %v655 = vpack.c.b16 %v595, %v594
  %v656 = vpack.c.b16 %v597, %v596
  %v657 = vpack.c.b16 %v599, %v598
  %v658 = vpack.c.b16 %v601, %v600
  %v659 = vpack.c.b16 %v603, %v602
  %v660 = vpack.c.b16 %v605, %v604
  %v661 = vpack.c.b16 %v607, %v606
  %v662 = vpack.c.b16 %v609, %v608
  %v663 = vpack.c.b16 %v611, %v610
  %v664 = vpack.c.b16 %v613, %v612
  %v665 = vpack.c.b16 %v615, %v614
  %v666 = vpack.c.b16 %v617, %v616
  %v667 = vpack.c.b16 %v619, %v618
  %v668 = vpack.c.b16 %v621, %v620
  %v669 = vpack.c.b16 %v623, %v622
  %v670 = vpack.c.b16 %v625, %v624
  %v671 = vpack.c.b16 %v627, %v626
  %v672 = vpack.c.b16 %v629, %v628
  %v673 = vpack.c.b16 %v631, %v630
  %v674 = vpack.c.b16 %v633, %v632
  %v675 = vpack.c.b16 %v635, %v634
  %v676 = vpack.c.b16 %v637, %v636
  %v677 = vpack.c.b16 %v639, %v638
  %v678 = vpack.c.b16 %v641, %v640
  %v679 = vpack.c.b16 %v643, %v642
  %v680 = vpack.c.b16 %v645, %v644
  %v681 = vpack.c.b16 %v647, %v646
  %v682 = vpack.c.b16 %v649, %v648
  %v683 = vpack.c.b16 %v651, %v650
  %716 = vmatprep.subr.bf16.mxu0 0
  %717 = vmatpush1.bf16.msra.mxu0 %v659
  %718 = vmatprep.subr.bf16.mxu0 0
  %719 = vmatpush1.bf16.msra.mxu0 %v658
  %720 = vmatprep.subr.bf16.mxu0 0
  %721 = vmatpush1.bf16.msra.mxu0 %v657
  %722 = vmatprep.subr.bf16.mxu0 0
  %723 = vmatpush1.bf16.msra.mxu0 %v656
  %724 = vmatprep.subr.bf16.mxu0 0
  %725 = vmatpush1.bf16.msra.mxu0 %v655
  %726 = vmatprep.subr.bf16.mxu0 0
  %727 = vmatpush1.bf16.msra.mxu0 %v654
  %728 = vmatprep.subr.bf16.mxu0 0
  %729 = vmatpush1.bf16.msra.mxu0 %v653
  %730 = vmatprep.subr.bf16.mxu0 0
  %731 = vmatpush1.bf16.msra.mxu0 %v652
  %732 = vmatprep.subr.bf16.mxu0 0
  %733 = vmatpush2.bf16.msra.mxu0 %v667
  %734 = vmatprep.subr.bf16.mxu0 0
  %735 = vmatpush2.bf16.msra.mxu0 %v666
  %736 = vmatprep.subr.bf16.mxu0 0
  %737 = vmatpush2.bf16.msra.mxu0 %v665
  %738 = vmatprep.subr.bf16.mxu0 0
  %739 = vmatpush2.bf16.msra.mxu0 %v664
  %740 = vmatprep.subr.bf16.mxu0 0
  %741 = vmatpush2.bf16.msra.mxu0 %v663
  %742 = vmatprep.subr.bf16.mxu0 0
  %743 = vmatpush2.bf16.msra.mxu0 %v662
  %744 = vmatprep.subr.bf16.mxu0 0
  %745 = vmatpush2.bf16.msra.mxu0 %v661
  %746 = vmatprep.subr.bf16.mxu0 0
  %747 = vmatpush2.bf16.msra.mxu0 %v660
  %748 = vmatprep.mubr.bf16.mxu0 %v457
  %749 = vmatmul.mubr.bf16.gmra.mxu0 %v456
  %v750 = vpop.f32.mrf.mxu0
  %v751 = vadd.f32 0.0, %v750
  %v752 = vpop.f32.mrf.mxu0
  %v753 = vpop.f32.mrf.mxu0
  %v754 = vpop.f32.mrf.mxu0
  %755 = vdwg.mxu0
  %756 = vmatprep.subr.bf16.mxu0 0
  %757 = vmatpush1.bf16.msra.mxu0 %v675
  %758 = vmatprep.subr.bf16.mxu0 0
  %759 = vmatpush1.bf16.msra.mxu0 %v674
  %760 = vmatprep.subr.bf16.mxu0 0
  %761 = vmatpush1.bf16.msra.mxu0 %v673
  %762 = vmatprep.subr.bf16.mxu0 0
  %763 = vmatpush1.bf16.msra.mxu0 %v672
  %764 = vmatprep.subr.bf16.mxu0 0
  %765 = vmatpush1.bf16.msra.mxu0 %v671
  %766 = vmatprep.subr.bf16.mxu0 0
  %767 = vmatpush1.bf16.msra.mxu0 %v670
  %768 = vmatprep.subr.bf16.mxu0 0
  %769 = vmatpush1.bf16.msra.mxu0 %v669
  %770 = vmatprep.subr.bf16.mxu0 0
  %771 = vmatpush1.bf16.msra.mxu0 %v668
  %772 = vmatprep.subr.bf16.mxu0 0
  %773 = vmatpush2.bf16.msra.mxu0 %v683
  %774 = vmatprep.subr.bf16.mxu0 0
  %775 = vmatpush2.bf16.msra.mxu0 %v682
  %776 = vmatprep.subr.bf16.mxu0 0
  %777 = vmatpush2.bf16.msra.mxu0 %v681
  %778 = vmatprep.subr.bf16.mxu0 0
  %779 = vmatpush2.bf16.msra.mxu0 %v680
  %780 = vmatprep.subr.bf16.mxu0 0
  %781 = vmatpush2.bf16.msra.mxu0 %v679
  %782 = vmatprep.subr.bf16.mxu0 0
  %783 = vmatpush2.bf16.msra.mxu0 %v678
  %784 = vmatprep.subr.bf16.mxu0 0
  %785 = vmatpush2.bf16.msra.mxu0 %v677
  %786 = vmatprep.subr.bf16.mxu0 0
  %787 = vmatpush2.bf16.msra.mxu0 %v676
  %788 = vmatprep.mubr.bf16.mxu0 %v459
  %789 = vmatmul.mubr.bf16.gmra.mxu0 %v458
  %v790 = vpop.f32.mrf.mxu0
  %v791 = vadd.f32 %v751, %v790
  %v792 = vpop.f32.mrf.mxu0
  %v793 = vpop.f32.mrf.mxu0
  %v794 = vpop.f32.mrf.mxu0
  %795 = vdwg.mxu0
  %v796 = vadd.f32 %v437, %v791
  %v797 = vld [vmem:[%s0 + $0x20] sm:$0xff]
  %v798 = vld [vmem:[%s0 + $0x28] sm:$0xff]
  %v799 = vunpack.c.l.bf16 %v797
  %v800 = vunpack.c.h.bf16 %v797
  %v801 = vunpack.c.l.bf16 %v798
  %v802 = vunpack.c.h.bf16 %v798
  %v803 = vmul.f32 %v799, %v47
  %v804 = vmul.f32 %v800, %v51
  %v805 = vmul.f32 %v801, %v55
  %v806 = vmul.f32 %v802, %v59
  %v807 = vadd.f32 %v803, %v72
  %v808 = vadd.f32 %v804, %v76
  %v809 = vadd.f32 %v805, %v80
  %v810 = vadd.f32 %v806, %v84
  %v811 = vmax.f32 %v807, 0.0
  %v812 = vmax.f32 %v808, 0.0
  %v813 = vmax.f32 %v809, 0.0
  %v814 = vmax.f32 %v810, 0.0
  %v815 = vpack.c.bf16 %v811, %v811
  %v816 = vpack.c.bf16 %v812, %v812
  %v817 = vpack.c.bf16 %v813, %v813
  %v818 = vpack.c.bf16 %v814, %v814
  %v819 = vld [vmem:[%s3 + $0x200] sm:$0xf]
  %v820 = vld [vmem:[%s3 + $0x204] sm:$0xf]
  %v821 = vld [vmem:[%s3 + $0x208] sm:$0xf]
  %v822 = vld [vmem:[%s3 + $0x20c] sm:$0xf]
  %v823 = vld [vmem:[%s3 + $0x210] sm:$0xf]
  %v824 = vld [vmem:[%s3 + $0x214] sm:$0xf]
  %v825 = vld [vmem:[%s3 + $0x218] sm:$0xf]
  %v826 = vld [vmem:[%s3 + $0x21c] sm:$0xf]
  %v827 = vld [vmem:[%s3 + $0x220] sm:$0xf]
  %v828 = vld [vmem:[%s3 + $0x224] sm:$0xf]
  %v829 = vld [vmem:[%s3 + $0x228] sm:$0xf]
  %v830 = vld [vmem:[%s3 + $0x22c] sm:$0xf]
  %v831 = vld [vmem:[%s3 + $0x230] sm:$0xf]
  %v832 = vld [vmem:[%s3 + $0x234] sm:$0xf]
  %v833 = vld [vmem:[%s3 + $0x238] sm:$0xf]
  %v834 = vld [vmem:[%s3 + $0x23c] sm:$0xf]
  %v835 = vld [vmem:[%s3 + $0x240] sm:$0xf]
  %v836 = vld [vmem:[%s3 + $0x244] sm:$0xf]
  %v837 = vld [vmem:[%s3 + $0x248] sm:$0xf]
  %v838 = vld [vmem:[%s3 + $0x24c] sm:$0xf]
  %v839 = vld [vmem:[%s3 + $0x250] sm:$0xf]
  %v840 = vld [vmem:[%s3 + $0x254] sm:$0xf]
  %v841 = vld [vmem:[%s3 + $0x258] sm:$0xf]
  %v842 = vld [vmem:[%s3 + $0x25c] sm:$0xf]
  %v843 = vld [vmem:[%s3 + $0x260] sm:$0xf]
  %v844 = vld [vmem:[%s3 + $0x264] sm:$0xf]
  %v845 = vld [vmem:[%s3 + $0x268] sm:$0xf]
  %v846 = vld [vmem:[%s3 + $0x26c] sm:$0xf]
  %v847 = vld [vmem:[%s3 + $0x270] sm:$0xf]
  %v848 = vld [vmem:[%s3 + $0x274] sm:$0xf]
  %v849 = vld [vmem:[%s3 + $0x278] sm:$0xf]
  %v850 = vld [vmem:[%s3 + $0x27c] sm:$0xf]
  %v851 = vld [vmem:[%s3 + $0x280] sm:$0xf]
  %v852 = vld [vmem:[%s3 + $0x284] sm:$0xf]
  %v853 = vld [vmem:[%s3 + $0x288] sm:$0xf]
  %v854 = vld [vmem:[%s3 + $0x28c] sm:$0xf]
  %v855 = vld [vmem:[%s3 + $0x290] sm:$0xf]
  %v856 = vld [vmem:[%s3 + $0x294] sm:$0xf]
  %v857 = vld [vmem:[%s3 + $0x298] sm:$0xf]
  %v858 = vld [vmem:[%s3 + $0x29c] sm:$0xf]
  %v859 = vld [vmem:[%s3 + $0x2a0] sm:$0xf]
  %v860 = vld [vmem:[%s3 + $0x2a4] sm:$0xf]
  %v861 = vld [vmem:[%s3 + $0x2a8] sm:$0xf]
  %v862 = vld [vmem:[%s3 + $0x2ac] sm:$0xf]
  %v863 = vld [vmem:[%s3 + $0x2b0] sm:$0xf]
  %v864 = vld [vmem:[%s3 + $0x2b4] sm:$0xf]
  %v865 = vld [vmem:[%s3 + $0x2b8] sm:$0xf]
  %v866 = vld [vmem:[%s3 + $0x2bc] sm:$0xf]
  %v867 = vld [vmem:[%s3 + $0x2c0] sm:$0xf]
  %v868 = vld [vmem:[%s3 + $0x2c4] sm:$0xf]
  %v869 = vld [vmem:[%s3 + $0x2c8] sm:$0xf]
  %v870 = vld [vmem:[%s3 + $0x2cc] sm:$0xf]
  %v871 = vld [vmem:[%s3 + $0x2d0] sm:$0xf]
  %v872 = vld [vmem:[%s3 + $0x2d4] sm:$0xf]
  %v873 = vld [vmem:[%s3 + $0x2d8] sm:$0xf]
  %v874 = vld [vmem:[%s3 + $0x2dc] sm:$0xf]
  %v875 = vld [vmem:[%s3 + $0x2e0] sm:$0xf]
  %v876 = vld [vmem:[%s3 + $0x2e4] sm:$0xf]
  %v877 = vld [vmem:[%s3 + $0x2e8] sm:$0xf]
  %v878 = vld [vmem:[%s3 + $0x2ec] sm:$0xf]
  %v879 = vld [vmem:[%s3 + $0x2f0] sm:$0xf]
  %v880 = vld [vmem:[%s3 + $0x2f4] sm:$0xf]
  %v881 = vld [vmem:[%s3 + $0x2f8] sm:$0xf]
  %v882 = vld [vmem:[%s3 + $0x2fc] sm:$0xf]
  %v947 = vunpack.c.l.b16 %v819
  %v948 = vunpack.c.l.b16 %v820
  %v949 = vunpack.c.l.b16 %v821
  %v950 = vunpack.c.l.b16 %v822
  %v951 = vunpack.c.l.b16 %v823
  %v952 = vunpack.c.l.b16 %v824
  %v953 = vunpack.c.l.b16 %v825
  %v954 = vunpack.c.l.b16 %v826
  %v955 = vunpack.c.l.b16 %v827
  %v956 = vunpack.c.l.b16 %v828
  %v957 = vunpack.c.l.b16 %v829
  %v958 = vunpack.c.l.b16 %v830
  %v959 = vunpack.c.l.b16 %v831
  %v960 = vunpack.c.l.b16 %v832
  %v961 = vunpack.c.l.b16 %v833
  %v962 = vunpack.c.l.b16 %v834
  %v963 = vunpack.c.l.b16 %v835
  %v964 = vunpack.c.l.b16 %v836
  %v965 = vunpack.c.l.b16 %v837
  %v966 = vunpack.c.l.b16 %v838
  %v967 = vunpack.c.l.b16 %v839
  %v968 = vunpack.c.l.b16 %v840
  %v969 = vunpack.c.l.b16 %v841
  %v970 = vunpack.c.l.b16 %v842
  %v971 = vunpack.c.l.b16 %v843
  %v972 = vunpack.c.l.b16 %v844
  %v973 = vunpack.c.l.b16 %v845
  %v974 = vunpack.c.l.b16 %v846
  %v975 = vunpack.c.l.b16 %v847
  %v976 = vunpack.c.l.b16 %v848
  %v977 = vunpack.c.l.b16 %v849
  %v978 = vunpack.c.l.b16 %v850
  %v979 = vunpack.c.l.b16 %v851
  %v980 = vunpack.c.l.b16 %v852
  %v981 = vunpack.c.l.b16 %v853
  %v982 = vunpack.c.l.b16 %v854
  %v983 = vunpack.c.l.b16 %v855
  %v984 = vunpack.c.l.b16 %v856
  %v985 = vunpack.c.l.b16 %v857
  %v986 = vunpack.c.l.b16 %v858
  %v987 = vunpack.c.l.b16 %v859
  %v988 = vunpack.c.l.b16 %v860
  %v989 = vunpack.c.l.b16 %v861
  %v990 = vunpack.c.l.b16 %v862
  %v991 = vunpack.c.l.b16 %v863
  %v992 = vunpack.c.l.b16 %v864
  %v993 = vunpack.c.l.b16 %v865
  %v994 = vunpack.c.l.b16 %v866
  %v995 = vunpack.c.l.b16 %v867
  %v996 = vunpack.c.l.b16 %v868
  %v997 = vunpack.c.l.b16 %v869
  %v998 = vunpack.c.l.b16 %v870
  %v999 = vunpack.c.l.b16 %v871
  %v1000 = vunpack.c.l.b16 %v872
  %v1001 = vunpack.c.l.b16 %v873
  %v1002 = vunpack.c.l.b16 %v874
  %v1003 = vunpack.c.l.b16 %v875
  %v1004 = vunpack.c.l.b16 %v876
  %v1005 = vunpack.c.l.b16 %v877
  %v1006 = vunpack.c.l.b16 %v878
  %v1007 = vunpack.c.l.b16 %v879
  %v1008 = vunpack.c.l.b16 %v880
  %v1009 = vunpack.c.l.b16 %v881
  %v1010 = vunpack.c.l.b16 %v882
  %v1011 = vpack.c.b16 %v948, %v947
  %v1012 = vpack.c.b16 %v950, %v949
  %v1013 = vpack.c.b16 %v952, %v951
  %v1014 = vpack.c.b16 %v954, %v953
  %v1015 = vpack.c.b16 %v956, %v955
  %v1016 = vpack.c.b16 %v958, %v957
  %v1017 = vpack.c.b16 %v960, %v959
  %v1018 = vpack.c.b16 %v962, %v961
  %v1019 = vpack.c.b16 %v964, %v963
  %v1020 = vpack.c.b16 %v966, %v965
  %v1021 = vpack.c.b16 %v968, %v967
  %v1022 = vpack.c.b16 %v970, %v969
  %v1023 = vpack.c.b16 %v972, %v971
  %v1024 = vpack.c.b16 %v974, %v973
  %v1025 = vpack.c.b16 %v976, %v975
  %v1026 = vpack.c.b16 %v978, %v977
  %v1027 = vpack.c.b16 %v980, %v979
  %v1028 = vpack.c.b16 %v982, %v981
  %v1029 = vpack.c.b16 %v984, %v983
  %v1030 = vpack.c.b16 %v986, %v985
  %v1031 = vpack.c.b16 %v988, %v987
  %v1032 = vpack.c.b16 %v990, %v989
  %v1033 = vpack.c.b16 %v992, %v991
  %v1034 = vpack.c.b16 %v994, %v993
  %v1035 = vpack.c.b16 %v996, %v995
  %v1036 = vpack.c.b16 %v998, %v997
  %v1037 = vpack.c.b16 %v1000, %v999
  %v1038 = vpack.c.b16 %v1002, %v1001
  %v1039 = vpack.c.b16 %v1004, %v1003
  %v1040 = vpack.c.b16 %v1006, %v1005
  %v1041 = vpack.c.b16 %v1008, %v1007
  %v1042 = vpack.c.b16 %v1010, %v1009
  %1075 = vmatprep.subr.bf16.mxu0 0
  %1076 = vmatpush1.bf16.msra.mxu0 %v1018
  %1077 = vmatprep.subr.bf16.mxu0 0
  %1078 = vmatpush1.bf16.msra.mxu0 %v1017
  %1079 = vmatprep.subr.bf16.mxu0 0
  %1080 = vmatpush1.bf16.msra.mxu0 %v1016
  %1081 = vmatprep.subr.bf16.mxu0 0
  %1082 = vmatpush1.bf16.msra.mxu0 %v1015
  %1083 = vmatprep.subr.bf16.mxu0 0
  %1084 = vmatpush1.bf16.msra.mxu0 %v1014
  %1085 = vmatprep.subr.bf16.mxu0 0
  %1086 = vmatpush1.bf16.msra.mxu0 %v1013
  %1087 = vmatprep.subr.bf16.mxu0 0
  %1088 = vmatpush1.bf16.msra.mxu0 %v1012
  %1089 = vmatprep.subr.bf16.mxu0 0
  %1090 = vmatpush1.bf16.msra.mxu0 %v1011
  %1091 = vmatprep.subr.bf16.mxu0 0
  %1092 = vmatpush2.bf16.msra.mxu0 %v1026
  %1093 = vmatprep.subr.bf16.mxu0 0
  %1094 = vmatpush2.bf16.msra.mxu0 %v1025
  %1095 = vmatprep.subr.bf16.mxu0 0
  %1096 = vmatpush2.bf16.msra.mxu0 %v1024
  %1097 = vmatprep.subr.bf16.mxu0 0
  %1098 = vmatpush2.bf16.msra.mxu0 %v1023
  %1099 = vmatprep.subr.bf16.mxu0 0
  %1100 = vmatpush2.bf16.msra.mxu0 %v1022
  %1101 = vmatprep.subr.bf16.mxu0 0
  %1102 = vmatpush2.bf16.msra.mxu0 %v1021
  %1103 = vmatprep.subr.bf16.mxu0 0
  %1104 = vmatpush2.bf16.msra.mxu0 %v1020
  %1105 = vmatprep.subr.bf16.mxu0 0
  %1106 = vmatpush2.bf16.msra.mxu0 %v1019
  %1107 = vmatprep.mubr.bf16.mxu0 %v816
  %1108 = vmatmul.mubr.bf16.gmra.mxu0 %v815
  %v1109 = vpop.f32.mrf.mxu0
  %v1110 = vadd.f32 0.0, %v1109
  %v1111 = vpop.f32.mrf.mxu0
  %v1112 = vpop.f32.mrf.mxu0
  %v1113 = vpop.f32.mrf.mxu0
  %1114 = vdwg.mxu0
  %1115 = vmatprep.subr.bf16.mxu0 0
  %1116 = vmatpush1.bf16.msra.mxu0 %v1034
  %1117 = vmatprep.subr.bf16.mxu0 0
  %1118 = vmatpush1.bf16.msra.mxu0 %v1033
  %1119 = vmatprep.subr.bf16.mxu0 0
  %1120 = vmatpush1.bf16.msra.mxu0 %v1032
  %1121 = vmatprep.subr.bf16.mxu0 0
  %1122 = vmatpush1.bf16.msra.mxu0 %v1031
  %1123 = vmatprep.subr.bf16.mxu0 0
  %1124 = vmatpush1.bf16.msra.mxu0 %v1030
  %1125 = vmatprep.subr.bf16.mxu0 0
  %1126 = vmatpush1.bf16.msra.mxu0 %v1029
  %1127 = vmatprep.subr.bf16.mxu0 0
  %1128 = vmatpush1.bf16.msra.mxu0 %v1028
  %1129 = vmatprep.subr.bf16.mxu0 0
  %1130 = vmatpush1.bf16.msra.mxu0 %v1027
  %1131 = vmatprep.subr.bf16.mxu0 0
  %1132 = vmatpush2.bf16.msra.mxu0 %v1042
  %1133 = vmatprep.subr.bf16.mxu0 0
  %1134 = vmatpush2.bf16.msra.mxu0 %v1041
  %1135 = vmatprep.subr.bf16.mxu0 0
  %1136 = vmatpush2.bf16.msra.mxu0 %v1040
  %1137 = vmatprep.subr.bf16.mxu0 0
  %1138 = vmatpush2.bf16.msra.mxu0 %v1039
  %1139 = vmatprep.subr.bf16.mxu0 0
  %1140 = vmatpush2.bf16.msra.mxu0 %v1038
  %1141 = vmatprep.subr.bf16.mxu0 0
  %1142 = vmatpush2.bf16.msra.mxu0 %v1037
  %1143 = vmatprep.subr.bf16.mxu0 0
  %1144 = vmatpush2.bf16.msra.mxu0 %v1036
  %1145 = vmatprep.subr.bf16.mxu0 0
  %1146 = vmatpush2.bf16.msra.mxu0 %v1035
  %1147 = vmatprep.mubr.bf16.mxu0 %v818
  %1148 = vmatmul.mubr.bf16.gmra.mxu0 %v817
  %v1149 = vpop.f32.mrf.mxu0
  %v1150 = vadd.f32 %v1110, %v1149
  %v1151 = vpop.f32.mrf.mxu0
  %v1152 = vpop.f32.mrf.mxu0
  %v1153 = vpop.f32.mrf.mxu0
  %1154 = vdwg.mxu0
  %v1155 = vadd.f32 %v796, %v1150
  %v1156 = vld [vmem:[%s0 + $0x30] sm:$0xff]
  %v1157 = vld [vmem:[%s0 + $0x38] sm:$0xff]
  %v1158 = vunpack.c.l.bf16 %v1156
  %v1159 = vunpack.c.h.bf16 %v1156
  %v1160 = vunpack.c.l.bf16 %v1157
  %v1161 = vunpack.c.h.bf16 %v1157
  %v1162 = vmul.f32 %v1158, %v47
  %v1163 = vmul.f32 %v1159, %v51
  %v1164 = vmul.f32 %v1160, %v55
  %v1165 = vmul.f32 %v1161, %v59
  %v1166 = vadd.f32 %v1162, %v72
  %v1167 = vadd.f32 %v1163, %v76
  %v1168 = vadd.f32 %v1164, %v80
  %v1169 = vadd.f32 %v1165, %v84
  %v1170 = vmax.f32 %v1166, 0.0
  %v1171 = vmax.f32 %v1167, 0.0
  %v1172 = vmax.f32 %v1168, 0.0
  %v1173 = vmax.f32 %v1169, 0.0
  %v1174 = vpack.c.bf16 %v1170, %v1170
  %v1175 = vpack.c.bf16 %v1171, %v1171
  %v1176 = vpack.c.bf16 %v1172, %v1172
  %v1177 = vpack.c.bf16 %v1173, %v1173
  %v1178 = vld [vmem:[%s3 + $0x300] sm:$0xf]
  %v1179 = vld [vmem:[%s3 + $0x304] sm:$0xf]
  %v1180 = vld [vmem:[%s3 + $0x308] sm:$0xf]
  %v1181 = vld [vmem:[%s3 + $0x30c] sm:$0xf]
  %v1182 = vld [vmem:[%s3 + $0x310] sm:$0xf]
  %v1183 = vld [vmem:[%s3 + $0x314] sm:$0xf]
  %v1184 = vld [vmem:[%s3 + $0x318] sm:$0xf]
  %v1185 = vld [vmem:[%s3 + $0x31c] sm:$0xf]
  %v1186 = vld [vmem:[%s3 + $0x320] sm:$0xf]
  %v1187 = vld [vmem:[%s3 + $0x324] sm:$0xf]
  %v1188 = vld [vmem:[%s3 + $0x328] sm:$0xf]
  %v1189 = vld [vmem:[%s3 + $0x32c] sm:$0xf]
  %v1190 = vld [vmem:[%s3 + $0x330] sm:$0xf]
  %v1191 = vld [vmem:[%s3 + $0x334] sm:$0xf]
  %v1192 = vld [vmem:[%s3 + $0x338] sm:$0xf]
  %v1193 = vld [vmem:[%s3 + $0x33c] sm:$0xf]
  %v1194 = vld [vmem:[%s3 + $0x340] sm:$0xf]
  %v1195 = vld [vmem:[%s3 + $0x344] sm:$0xf]
  %v1196 = vld [vmem:[%s3 + $0x348] sm:$0xf]
  %v1197 = vld [vmem:[%s3 + $0x34c] sm:$0xf]
  %v1198 = vld [vmem:[%s3 + $0x350] sm:$0xf]
  %v1199 = vld [vmem:[%s3 + $0x354] sm:$0xf]
  %v1200 = vld [vmem:[%s3 + $0x358] sm:$0xf]
  %v1201 = vld [vmem:[%s3 + $0x35c] sm:$0xf]
  %v1202 = vld [vmem:[%s3 + $0x360] sm:$0xf]
  %v1203 = vld [vmem:[%s3 + $0x364] sm:$0xf]
  %v1204 = vld [vmem:[%s3 + $0x368] sm:$0xf]
  %v1205 = vld [vmem:[%s3 + $0x36c] sm:$0xf]
  %v1206 = vld [vmem:[%s3 + $0x370] sm:$0xf]
  %v1207 = vld [vmem:[%s3 + $0x374] sm:$0xf]
  %v1208 = vld [vmem:[%s3 + $0x378] sm:$0xf]
  %v1209 = vld [vmem:[%s3 + $0x37c] sm:$0xf]
  %v1210 = vld [vmem:[%s3 + $0x380] sm:$0xf]
  %v1211 = vld [vmem:[%s3 + $0x384] sm:$0xf]
  %v1212 = vld [vmem:[%s3 + $0x388] sm:$0xf]
  %v1213 = vld [vmem:[%s3 + $0x38c] sm:$0xf]
  %v1214 = vld [vmem:[%s3 + $0x390] sm:$0xf]
  %v1215 = vld [vmem:[%s3 + $0x394] sm:$0xf]
  %v1216 = vld [vmem:[%s3 + $0x398] sm:$0xf]
  %v1217 = vld [vmem:[%s3 + $0x39c] sm:$0xf]
  %v1218 = vld [vmem:[%s3 + $0x3a0] sm:$0xf]
  %v1219 = vld [vmem:[%s3 + $0x3a4] sm:$0xf]
  %v1220 = vld [vmem:[%s3 + $0x3a8] sm:$0xf]
  %v1221 = vld [vmem:[%s3 + $0x3ac] sm:$0xf]
  %v1222 = vld [vmem:[%s3 + $0x3b0] sm:$0xf]
  %v1223 = vld [vmem:[%s3 + $0x3b4] sm:$0xf]
  %v1224 = vld [vmem:[%s3 + $0x3b8] sm:$0xf]
  %v1225 = vld [vmem:[%s3 + $0x3bc] sm:$0xf]
  %v1226 = vld [vmem:[%s3 + $0x3c0] sm:$0xf]
  %v1227 = vld [vmem:[%s3 + $0x3c4] sm:$0xf]
  %v1228 = vld [vmem:[%s3 + $0x3c8] sm:$0xf]
  %v1229 = vld [vmem:[%s3 + $0x3cc] sm:$0xf]
  %v1230 = vld [vmem:[%s3 + $0x3d0] sm:$0xf]
  %v1231 = vld [vmem:[%s3 + $0x3d4] sm:$0xf]
  %v1232 = vld [vmem:[%s3 + $0x3d8] sm:$0xf]
  %v1233 = vld [vmem:[%s3 + $0x3dc] sm:$0xf]
  %v1234 = vld [vmem:[%s3 + $0x3e0] sm:$0xf]
  %v1235 = vld [vmem:[%s3 + $0x3e4] sm:$0xf]
  %v1236 = vld [vmem:[%s3 + $0x3e8] sm:$0xf]
  %v1237 = vld [vmem:[%s3 + $0x3ec] sm:$0xf]
  %v1238 = vld [vmem:[%s3 + $0x3f0] sm:$0xf]
  %v1239 = vld [vmem:[%s3 + $0x3f4] sm:$0xf]
  %v1240 = vld [vmem:[%s3 + $0x3f8] sm:$0xf]
  %v1241 = vld [vmem:[%s3 + $0x3fc] sm:$0xf]
  %v1306 = vunpack.c.l.b16 %v1178
  %v1307 = vunpack.c.l.b16 %v1179
  %v1308 = vunpack.c.l.b16 %v1180
  %v1309 = vunpack.c.l.b16 %v1181
  %v1310 = vunpack.c.l.b16 %v1182
  %v1311 = vunpack.c.l.b16 %v1183
  %v1312 = vunpack.c.l.b16 %v1184
  %v1313 = vunpack.c.l.b16 %v1185
  %v1314 = vunpack.c.l.b16 %v1186
  %v1315 = vunpack.c.l.b16 %v1187
  %v1316 = vunpack.c.l.b16 %v1188
  %v1317 = vunpack.c.l.b16 %v1189
  %v1318 = vunpack.c.l.b16 %v1190
  %v1319 = vunpack.c.l.b16 %v1191
  %v1320 = vunpack.c.l.b16 %v1192
  %v1321 = vunpack.c.l.b16 %v1193
  %v1322 = vunpack.c.l.b16 %v1194
  %v1323 = vunpack.c.l.b16 %v1195
  %v1324 = vunpack.c.l.b16 %v1196
  %v1325 = vunpack.c.l.b16 %v1197
  %v1326 = vunpack.c.l.b16 %v1198
  %v1327 = vunpack.c.l.b16 %v1199
  %v1328 = vunpack.c.l.b16 %v1200
  %v1329 = vunpack.c.l.b16 %v1201
  %v1330 = vunpack.c.l.b16 %v1202
  %v1331 = vunpack.c.l.b16 %v1203
  %v1332 = vunpack.c.l.b16 %v1204
  %v1333 = vunpack.c.l.b16 %v1205
  %v1334 = vunpack.c.l.b16 %v1206
  %v1335 = vunpack.c.l.b16 %v1207
  %v1336 = vunpack.c.l.b16 %v1208
  %v1337 = vunpack.c.l.b16 %v1209
  %v1338 = vunpack.c.l.b16 %v1210
  %v1339 = vunpack.c.l.b16 %v1211
  %v1340 = vunpack.c.l.b16 %v1212
  %v1341 = vunpack.c.l.b16 %v1213
  %v1342 = vunpack.c.l.b16 %v1214
  %v1343 = vunpack.c.l.b16 %v1215
  %v1344 = vunpack.c.l.b16 %v1216
  %v1345 = vunpack.c.l.b16 %v1217
  %v1346 = vunpack.c.l.b16 %v1218
  %v1347 = vunpack.c.l.b16 %v1219
  %v1348 = vunpack.c.l.b16 %v1220
  %v1349 = vunpack.c.l.b16 %v1221
  %v1350 = vunpack.c.l.b16 %v1222
  %v1351 = vunpack.c.l.b16 %v1223
  %v1352 = vunpack.c.l.b16 %v1224
  %v1353 = vunpack.c.l.b16 %v1225
  %v1354 = vunpack.c.l.b16 %v1226
  %v1355 = vunpack.c.l.b16 %v1227
  %v1356 = vunpack.c.l.b16 %v1228
  %v1357 = vunpack.c.l.b16 %v1229
  %v1358 = vunpack.c.l.b16 %v1230
  %v1359 = vunpack.c.l.b16 %v1231
  %v1360 = vunpack.c.l.b16 %v1232
  %v1361 = vunpack.c.l.b16 %v1233
  %v1362 = vunpack.c.l.b16 %v1234
  %v1363 = vunpack.c.l.b16 %v1235
  %v1364 = vunpack.c.l.b16 %v1236
  %v1365 = vunpack.c.l.b16 %v1237
  %v1366 = vunpack.c.l.b16 %v1238
  %v1367 = vunpack.c.l.b16 %v1239
  %v1368 = vunpack.c.l.b16 %v1240
  %v1369 = vunpack.c.l.b16 %v1241
  %v1370 = vpack.c.b16 %v1307, %v1306
  %v1371 = vpack.c.b16 %v1309, %v1308
  %v1372 = vpack.c.b16 %v1311, %v1310
  %v1373 = vpack.c.b16 %v1313, %v1312
  %v1374 = vpack.c.b16 %v1315, %v1314
  %v1375 = vpack.c.b16 %v1317, %v1316
  %v1376 = vpack.c.b16 %v1319, %v1318
  %v1377 = vpack.c.b16 %v1321, %v1320
  %v1378 = vpack.c.b16 %v1323, %v1322
  %v1379 = vpack.c.b16 %v1325, %v1324
  %v1380 = vpack.c.b16 %v1327, %v1326
  %v1381 = vpack.c.b16 %v1329, %v1328
  %v1382 = vpack.c.b16 %v1331, %v1330
  %v1383 = vpack.c.b16 %v1333, %v1332
  %v1384 = vpack.c.b16 %v1335, %v1334
  %v1385 = vpack.c.b16 %v1337, %v1336
  %v1386 = vpack.c.b16 %v1339, %v1338
  %v1387 = vpack.c.b16 %v1341, %v1340
  %v1388 = vpack.c.b16 %v1343, %v1342
  %v1389 = vpack.c.b16 %v1345, %v1344
  %v1390 = vpack.c.b16 %v1347, %v1346
  %v1391 = vpack.c.b16 %v1349, %v1348
  %v1392 = vpack.c.b16 %v1351, %v1350
  %v1393 = vpack.c.b16 %v1353, %v1352
  %v1394 = vpack.c.b16 %v1355, %v1354
  %v1395 = vpack.c.b16 %v1357, %v1356
  %v1396 = vpack.c.b16 %v1359, %v1358
  %v1397 = vpack.c.b16 %v1361, %v1360
  %v1398 = vpack.c.b16 %v1363, %v1362
  %v1399 = vpack.c.b16 %v1365, %v1364
  %v1400 = vpack.c.b16 %v1367, %v1366
  %v1401 = vpack.c.b16 %v1369, %v1368
  %1434 = vmatprep.subr.bf16.mxu0 0
  %1435 = vmatpush1.bf16.msra.mxu0 %v1377
  %1436 = vmatprep.subr.bf16.mxu0 0
  %1437 = vmatpush1.bf16.msra.mxu0 %v1376
  %1438 = vmatprep.subr.bf16.mxu0 0
  %1439 = vmatpush1.bf16.msra.mxu0 %v1375
  %1440 = vmatprep.subr.bf16.mxu0 0
  %1441 = vmatpush1.bf16.msra.mxu0 %v1374
  %1442 = vmatprep.subr.bf16.mxu0 0
  %1443 = vmatpush1.bf16.msra.mxu0 %v1373
  %1444 = vmatprep.subr.bf16.mxu0 0
  %1445 = vmatpush1.bf16.msra.mxu0 %v1372
  %1446 = vmatprep.subr.bf16.mxu0 0
  %1447 = vmatpush1.bf16.msra.mxu0 %v1371
  %1448 = vmatprep.subr.bf16.mxu0 0
  %1449 = vmatpush1.bf16.msra.mxu0 %v1370
  %1450 = vmatprep.subr.bf16.mxu0 0
  %1451 = vmatpush2.bf16.msra.mxu0 %v1385
  %1452 = vmatprep.subr.bf16.mxu0 0
  %1453 = vmatpush2.bf16.msra.mxu0 %v1384
  %1454 = vmatprep.subr.bf16.mxu0 0
  %1455 = vmatpush2.bf16.msra.mxu0 %v1383
  %1456 = vmatprep.subr.bf16.mxu0 0
  %1457 = vmatpush2.bf16.msra.mxu0 %v1382
  %1458 = vmatprep.subr.bf16.mxu0 0
  %1459 = vmatpush2.bf16.msra.mxu0 %v1381
  %1460 = vmatprep.subr.bf16.mxu0 0
  %1461 = vmatpush2.bf16.msra.mxu0 %v1380
  %1462 = vmatprep.subr.bf16.mxu0 0
  %1463 = vmatpush2.bf16.msra.mxu0 %v1379
  %1464 = vmatprep.subr.bf16.mxu0 0
  %1465 = vmatpush2.bf16.msra.mxu0 %v1378
  %1466 = vmatprep.mubr.bf16.mxu0 %v1175
  %1467 = vmatmul.mubr.bf16.gmra.mxu0 %v1174
  %v1468 = vpop.f32.mrf.mxu0
  %v1469 = vadd.f32 0.0, %v1468
  %v1470 = vpop.f32.mrf.mxu0
  %v1471 = vpop.f32.mrf.mxu0
  %v1472 = vpop.f32.mrf.mxu0
  %1473 = vdwg.mxu0
  %1474 = vmatprep.subr.bf16.mxu0 0
  %1475 = vmatpush1.bf16.msra.mxu0 %v1393
  %1476 = vmatprep.subr.bf16.mxu0 0
  %1477 = vmatpush1.bf16.msra.mxu0 %v1392
  %1478 = vmatprep.subr.bf16.mxu0 0
  %1479 = vmatpush1.bf16.msra.mxu0 %v1391
  %1480 = vmatprep.subr.bf16.mxu0 0
  %1481 = vmatpush1.bf16.msra.mxu0 %v1390
  %1482 = vmatprep.subr.bf16.mxu0 0
  %1483 = vmatpush1.bf16.msra.mxu0 %v1389
  %1484 = vmatprep.subr.bf16.mxu0 0
  %1485 = vmatpush1.bf16.msra.mxu0 %v1388
  %1486 = vmatprep.subr.bf16.mxu0 0
  %1487 = vmatpush1.bf16.msra.mxu0 %v1387
  %1488 = vmatprep.subr.bf16.mxu0 0
  %1489 = vmatpush1.bf16.msra.mxu0 %v1386
  %1490 = vmatprep.subr.bf16.mxu0 0
  %1491 = vmatpush2.bf16.msra.mxu0 %v1401
  %1492 = vmatprep.subr.bf16.mxu0 0
  %1493 = vmatpush2.bf16.msra.mxu0 %v1400
  %1494 = vmatprep.subr.bf16.mxu0 0
  %1495 = vmatpush2.bf16.msra.mxu0 %v1399
  %1496 = vmatprep.subr.bf16.mxu0 0
  %1497 = vmatpush2.bf16.msra.mxu0 %v1398
  %1498 = vmatprep.subr.bf16.mxu0 0
  %1499 = vmatpush2.bf16.msra.mxu0 %v1397
  %1500 = vmatprep.subr.bf16.mxu0 0
  %1501 = vmatpush2.bf16.msra.mxu0 %v1396
  %1502 = vmatprep.subr.bf16.mxu0 0
  %1503 = vmatpush2.bf16.msra.mxu0 %v1395
  %1504 = vmatprep.subr.bf16.mxu0 0
  %1505 = vmatpush2.bf16.msra.mxu0 %v1394
  %1506 = vmatprep.mubr.bf16.mxu0 %v1177
  %1507 = vmatmul.mubr.bf16.gmra.mxu0 %v1176
  %v1508 = vpop.f32.mrf.mxu0
  %v1509 = vadd.f32 %v1469, %v1508
  %v1510 = vpop.f32.mrf.mxu0
  %v1511 = vpop.f32.mrf.mxu0
  %v1512 = vpop.f32.mrf.mxu0
  %1513 = vdwg.mxu0
  %v1514 = vadd.f32 %v1155, %v1509
  %v1515 = vld [vmem:[%s0 + $0x40] sm:$0xff]
  %v1516 = vld [vmem:[%s0 + $0x48] sm:$0xff]
  %v1517 = vunpack.c.l.bf16 %v1515
  %v1518 = vunpack.c.h.bf16 %v1515
  %v1519 = vunpack.c.l.bf16 %v1516
  %v1520 = vunpack.c.h.bf16 %v1516
  %v1521 = vmul.f32 %v1517, %v47
  %v1522 = vmul.f32 %v1518, %v51
  %v1523 = vmul.f32 %v1519, %v55
  %v1524 = vmul.f32 %v1520, %v59
  %v1525 = vadd.f32 %v1521, %v72
  %v1526 = vadd.f32 %v1522, %v76
  %v1527 = vadd.f32 %v1523, %v80
  %v1528 = vadd.f32 %v1524, %v84
  %v1529 = vmax.f32 %v1525, 0.0
  %v1530 = vmax.f32 %v1526, 0.0
  %v1531 = vmax.f32 %v1527, 0.0
  %v1532 = vmax.f32 %v1528, 0.0
  %v1533 = vpack.c.bf16 %v1529, %v1529
  %v1534 = vpack.c.bf16 %v1530, %v1530
  %v1535 = vpack.c.bf16 %v1531, %v1531
  %v1536 = vpack.c.bf16 %v1532, %v1532
  %v1537 = vld [vmem:[%s3 + $0x400] sm:$0xf]
  %v1538 = vld [vmem:[%s3 + $0x404] sm:$0xf]
  %v1539 = vld [vmem:[%s3 + $0x408] sm:$0xf]
  %v1540 = vld [vmem:[%s3 + $0x40c] sm:$0xf]
  %v1541 = vld [vmem:[%s3 + $0x410] sm:$0xf]
  %v1542 = vld [vmem:[%s3 + $0x414] sm:$0xf]
  %v1543 = vld [vmem:[%s3 + $0x418] sm:$0xf]
  %v1544 = vld [vmem:[%s3 + $0x41c] sm:$0xf]
  %v1545 = vld [vmem:[%s3 + $0x420] sm:$0xf]
  %v1546 = vld [vmem:[%s3 + $0x424] sm:$0xf]
  %v1547 = vld [vmem:[%s3 + $0x428] sm:$0xf]
  %v1548 = vld [vmem:[%s3 + $0x42c] sm:$0xf]
  %v1549 = vld [vmem:[%s3 + $0x430] sm:$0xf]
  %v1550 = vld [vmem:[%s3 + $0x434] sm:$0xf]
  %v1551 = vld [vmem:[%s3 + $0x438] sm:$0xf]
  %v1552 = vld [vmem:[%s3 + $0x43c] sm:$0xf]
  %v1553 = vld [vmem:[%s3 + $0x440] sm:$0xf]
  %v1554 = vld [vmem:[%s3 + $0x444] sm:$0xf]
  %v1555 = vld [vmem:[%s3 + $0x448] sm:$0xf]
  %v1556 = vld [vmem:[%s3 + $0x44c] sm:$0xf]
  %v1557 = vld [vmem:[%s3 + $0x450] sm:$0xf]
  %v1558 = vld [vmem:[%s3 + $0x454] sm:$0xf]
  %v1559 = vld [vmem:[%s3 + $0x458] sm:$0xf]
  %v1560 = vld [vmem:[%s3 + $0x45c] sm:$0xf]
  %v1561 = vld [vmem:[%s3 + $0x460] sm:$0xf]
  %v1562 = vld [vmem:[%s3 + $0x464] sm:$0xf]
  %v1563 = vld [vmem:[%s3 + $0x468] sm:$0xf]
  %v1564 = vld [vmem:[%s3 + $0x46c] sm:$0xf]
  %v1565 = vld [vmem:[%s3 + $0x470] sm:$0xf]
  %v1566 = vld [vmem:[%s3 + $0x474] sm:$0xf]
  %v1567 = vld [vmem:[%s3 + $0x478] sm:$0xf]
  %v1568 = vld [vmem:[%s3 + $0x47c] sm:$0xf]
  %v1569 = vld [vmem:[%s3 + $0x480] sm:$0xf]
  %v1570 = vld [vmem:[%s3 + $0x484] sm:$0xf]
  %v1571 = vld [vmem:[%s3 + $0x488] sm:$0xf]
  %v1572 = vld [vmem:[%s3 + $0x48c] sm:$0xf]
  %v1573 = vld [vmem:[%s3 + $0x490] sm:$0xf]
  %v1574 = vld [vmem:[%s3 + $0x494] sm:$0xf]
  %v1575 = vld [vmem:[%s3 + $0x498] sm:$0xf]
  %v1576 = vld [vmem:[%s3 + $0x49c] sm:$0xf]
  %v1577 = vld [vmem:[%s3 + $0x4a0] sm:$0xf]
  %v1578 = vld [vmem:[%s3 + $0x4a4] sm:$0xf]
  %v1579 = vld [vmem:[%s3 + $0x4a8] sm:$0xf]
  %v1580 = vld [vmem:[%s3 + $0x4ac] sm:$0xf]
  %v1581 = vld [vmem:[%s3 + $0x4b0] sm:$0xf]
  %v1582 = vld [vmem:[%s3 + $0x4b4] sm:$0xf]
  %v1583 = vld [vmem:[%s3 + $0x4b8] sm:$0xf]
  %v1584 = vld [vmem:[%s3 + $0x4bc] sm:$0xf]
  %v1585 = vld [vmem:[%s3 + $0x4c0] sm:$0xf]
  %v1586 = vld [vmem:[%s3 + $0x4c4] sm:$0xf]
  %v1587 = vld [vmem:[%s3 + $0x4c8] sm:$0xf]
  %v1588 = vld [vmem:[%s3 + $0x4cc] sm:$0xf]
  %v1589 = vld [vmem:[%s3 + $0x4d0] sm:$0xf]
  %v1590 = vld [vmem:[%s3 + $0x4d4] sm:$0xf]
  %v1591 = vld [vmem:[%s3 + $0x4d8] sm:$0xf]
  %v1592 = vld [vmem:[%s3 + $0x4dc] sm:$0xf]
  %v1593 = vld [vmem:[%s3 + $0x4e0] sm:$0xf]
  %v1594 = vld [vmem:[%s3 + $0x4e4] sm:$0xf]
  %v1595 = vld [vmem:[%s3 + $0x4e8] sm:$0xf]
  %v1596 = vld [vmem:[%s3 + $0x4ec] sm:$0xf]
  %v1597 = vld [vmem:[%s3 + $0x4f0] sm:$0xf]
  %v1598 = vld [vmem:[%s3 + $0x4f4] sm:$0xf]
  %v1599 = vld [vmem:[%s3 + $0x4f8] sm:$0xf]
  %v1600 = vld [vmem:[%s3 + $0x4fc] sm:$0xf]
  %v1665 = vunpack.c.l.b16 %v1537
  %v1666 = vunpack.c.l.b16 %v1538
  %v1667 = vunpack.c.l.b16 %v1539
  %v1668 = vunpack.c.l.b16 %v1540
  %v1669 = vunpack.c.l.b16 %v1541
  %v1670 = vunpack.c.l.b16 %v1542
  %v1671 = vunpack.c.l.b16 %v1543
  %v1672 = vunpack.c.l.b16 %v1544
  %v1673 = vunpack.c.l.b16 %v1545
  %v1674 = vunpack.c.l.b16 %v1546
  %v1675 = vunpack.c.l.b16 %v1547
  %v1676 = vunpack.c.l.b16 %v1548
  %v1677 = vunpack.c.l.b16 %v1549
  %v1678 = vunpack.c.l.b16 %v1550
  %v1679 = vunpack.c.l.b16 %v1551
  %v1680 = vunpack.c.l.b16 %v1552
  %v1681 = vunpack.c.l.b16 %v1553
  %v1682 = vunpack.c.l.b16 %v1554
  %v1683 = vunpack.c.l.b16 %v1555
  %v1684 = vunpack.c.l.b16 %v1556
  %v1685 = vunpack.c.l.b16 %v1557
  %v1686 = vunpack.c.l.b16 %v1558
  %v1687 = vunpack.c.l.b16 %v1559
  %v1688 = vunpack.c.l.b16 %v1560
  %v1689 = vunpack.c.l.b16 %v1561
  %v1690 = vunpack.c.l.b16 %v1562
  %v1691 = vunpack.c.l.b16 %v1563
  %v1692 = vunpack.c.l.b16 %v1564
  %v1693 = vunpack.c.l.b16 %v1565
  %v1694 = vunpack.c.l.b16 %v1566
  %v1695 = vunpack.c.l.b16 %v1567
  %v1696 = vunpack.c.l.b16 %v1568
  %v1697 = vunpack.c.l.b16 %v1569
  %v1698 = vunpack.c.l.b16 %v1570
  %v1699 = vunpack.c.l.b16 %v1571
  %v1700 = vunpack.c.l.b16 %v1572
  %v1701 = vunpack.c.l.b16 %v1573
  %v1702 = vunpack.c.l.b16 %v1574
  %v1703 = vunpack.c.l.b16 %v1575
  %v1704 = vunpack.c.l.b16 %v1576
  %v1705 = vunpack.c.l.b16 %v1577
  %v1706 = vunpack.c.l.b16 %v1578
  %v1707 = vunpack.c.l.b16 %v1579
  %v1708 = vunpack.c.l.b16 %v1580
  %v1709 = vunpack.c.l.b16 %v1581
  %v1710 = vunpack.c.l.b16 %v1582
  %v1711 = vunpack.c.l.b16 %v1583
  %v1712 = vunpack.c.l.b16 %v1584
  %v1713 = vunpack.c.l.b16 %v1585
  %v1714 = vunpack.c.l.b16 %v1586
  %v1715 = vunpack.c.l.b16 %v1587
  %v1716 = vunpack.c.l.b16 %v1588
  %v1717 = vunpack.c.l.b16 %v1589
  %v1718 = vunpack.c.l.b16 %v1590
  %v1719 = vunpack.c.l.b16 %v1591
  %v1720 = vunpack.c.l.b16 %v1592
  %v1721 = vunpack.c.l.b16 %v1593
  %v1722 = vunpack.c.l.b16 %v1594
  %v1723 = vunpack.c.l.b16 %v1595
  %v1724 = vunpack.c.l.b16 %v1596
  %v1725 = vunpack.c.l.b16 %v1597
  %v1726 = vunpack.c.l.b16 %v1598
  %v1727 = vunpack.c.l.b16 %v1599
  %v1728 = vunpack.c.l.b16 %v1600
  %v1729 = vpack.c.b16 %v1666, %v1665
  %v1730 = vpack.c.b16 %v1668, %v1667
  %v1731 = vpack.c.b16 %v1670, %v1669
  %v1732 = vpack.c.b16 %v1672, %v1671
  %v1733 = vpack.c.b16 %v1674, %v1673
  %v1734 = vpack.c.b16 %v1676, %v1675
  %v1735 = vpack.c.b16 %v1678, %v1677
  %v1736 = vpack.c.b16 %v1680, %v1679
  %v1737 = vpack.c.b16 %v1682, %v1681
  %v1738 = vpack.c.b16 %v1684, %v1683
  %v1739 = vpack.c.b16 %v1686, %v1685
  %v1740 = vpack.c.b16 %v1688, %v1687
  %v1741 = vpack.c.b16 %v1690, %v1689
  %v1742 = vpack.c.b16 %v1692, %v1691
  %v1743 = vpack.c.b16 %v1694, %v1693
  %v1744 = vpack.c.b16 %v1696, %v1695
  %v1745 = vpack.c.b16 %v1698, %v1697
  %v1746 = vpack.c.b16 %v1700, %v1699
  %v1747 = vpack.c.b16 %v1702, %v1701
  %v1748 = vpack.c.b16 %v1704, %v1703
  %v1749 = vpack.c.b16 %v1706, %v1705
  %v1750 = vpack.c.b16 %v1708, %v1707
  %v1751 = vpack.c.b16 %v1710, %v1709
  %v1752 = vpack.c.b16 %v1712, %v1711
  %v1753 = vpack.c.b16 %v1714, %v1713
  %v1754 = vpack.c.b16 %v1716, %v1715
  %v1755 = vpack.c.b16 %v1718, %v1717
  %v1756 = vpack.c.b16 %v1720, %v1719
  %v1757 = vpack.c.b16 %v1722, %v1721
  %v1758 = vpack.c.b16 %v1724, %v1723
  %v1759 = vpack.c.b16 %v1726, %v1725
  %v1760 = vpack.c.b16 %v1728, %v1727
  %1793 = vmatprep.subr.bf16.mxu0 0
  %1794 = vmatpush1.bf16.msra.mxu0 %v1736
  %1795 = vmatprep.subr.bf16.mxu0 0
  %1796 = vmatpush1.bf16.msra.mxu0 %v1735
  %1797 = vmatprep.subr.bf16.mxu0 0
  %1798 = vmatpush1.bf16.msra.mxu0 %v1734
  %1799 = vmatprep.subr.bf16.mxu0 0
  %1800 = vmatpush1.bf16.msra.mxu0 %v1733
  %1801 = vmatprep.subr.bf16.mxu0 0
  %1802 = vmatpush1.bf16.msra.mxu0 %v1732
  %1803 = vmatprep.subr.bf16.mxu0 0
  %1804 = vmatpush1.bf16.msra.mxu0 %v1731
  %1805 = vmatprep.subr.bf16.mxu0 0
  %1806 = vmatpush1.bf16.msra.mxu0 %v1730
  %1807 = vmatprep.subr.bf16.mxu0 0
  %1808 = vmatpush1.bf16.msra.mxu0 %v1729
  %1809 = vmatprep.subr.bf16.mxu0 0
  %1810 = vmatpush2.bf16.msra.mxu0 %v1744
  %1811 = vmatprep.subr.bf16.mxu0 0
  %1812 = vmatpush2.bf16.msra.mxu0 %v1743
  %1813 = vmatprep.subr.bf16.mxu0 0
  %1814 = vmatpush2.bf16.msra.mxu0 %v1742
  %1815 = vmatprep.subr.bf16.mxu0 0
  %1816 = vmatpush2.bf16.msra.mxu0 %v1741
  %1817 = vmatprep.subr.bf16.mxu0 0
  %1818 = vmatpush2.bf16.msra.mxu0 %v1740
  %1819 = vmatprep.subr.bf16.mxu0 0
  %1820 = vmatpush2.bf16.msra.mxu0 %v1739
  %1821 = vmatprep.subr.bf16.mxu0 0
  %1822 = vmatpush2.bf16.msra.mxu0 %v1738
  %1823 = vmatprep.subr.bf16.mxu0 0
  %1824 = vmatpush2.bf16.msra.mxu0 %v1737
  %1825 = vmatprep.mubr.bf16.mxu0 %v1534
  %1826 = vmatmul.mubr.bf16.gmra.mxu0 %v1533
  %v1827 = vpop.f32.mrf.mxu0
  %v1828 = vadd.f32 0.0, %v1827
  %v1829 = vpop.f32.mrf.mxu0
  %v1830 = vpop.f32.mrf.mxu0
  %v1831 = vpop.f32.mrf.mxu0
  %1832 = vdwg.mxu0
  %1833 = vmatprep.subr.bf16.mxu0 0
  %1834 = vmatpush1.bf16.msra.mxu0 %v1752
  %1835 = vmatprep.subr.bf16.mxu0 0
  %1836 = vmatpush1.bf16.msra.mxu0 %v1751
  %1837 = vmatprep.subr.bf16.mxu0 0
  %1838 = vmatpush1.bf16.msra.mxu0 %v1750
  %1839 = vmatprep.subr.bf16.mxu0 0
  %1840 = vmatpush1.bf16.msra.mxu0 %v1749
  %1841 = vmatprep.subr.bf16.mxu0 0
  %1842 = vmatpush1.bf16.msra.mxu0 %v1748
  %1843 = vmatprep.subr.bf16.mxu0 0
  %1844 = vmatpush1.bf16.msra.mxu0 %v1747
  %1845 = vmatprep.subr.bf16.mxu0 0
  %1846 = vmatpush1.bf16.msra.mxu0 %v1746
  %1847 = vmatprep.subr.bf16.mxu0 0
  %1848 = vmatpush1.bf16.msra.mxu0 %v1745
  %1849 = vmatprep.subr.bf16.mxu0 0
  %1850 = vmatpush2.bf16.msra.mxu0 %v1760
  %1851 = vmatprep.subr.bf16.mxu0 0
  %1852 = vmatpush2.bf16.msra.mxu0 %v1759
  %1853 = vmatprep.subr.bf16.mxu0 0
  %1854 = vmatpush2.bf16.msra.mxu0 %v1758
  %1855 = vmatprep.subr.bf16.mxu0 0
  %1856 = vmatpush2.bf16.msra.mxu0 %v1757
  %1857 = vmatprep.subr.bf16.mxu0 0
  %1858 = vmatpush2.bf16.msra.mxu0 %v1756
  %1859 = vmatprep.subr.bf16.mxu0 0
  %1860 = vmatpush2.bf16.msra.mxu0 %v1755
  %1861 = vmatprep.subr.bf16.mxu0 0
  %1862 = vmatpush2.bf16.msra.mxu0 %v1754
  %1863 = vmatprep.subr.bf16.mxu0 0
  %1864 = vmatpush2.bf16.msra.mxu0 %v1753
  %1865 = vmatprep.mubr.bf16.mxu0 %v1536
  %1866 = vmatmul.mubr.bf16.gmra.mxu0 %v1535
  %v1867 = vpop.f32.mrf.mxu0
  %v1868 = vadd.f32 %v1828, %v1867
  %v1869 = vpop.f32.mrf.mxu0
  %v1870 = vpop.f32.mrf.mxu0
  %v1871 = vpop.f32.mrf.mxu0
  %1872 = vdwg.mxu0
  %v1873 = vadd.f32 %v1514, %v1868
  %v1874 = vld [vmem:[%s0 + $0x50] sm:$0xff]
  %v1875 = vld [vmem:[%s0 + $0x58] sm:$0xff]
  %v1876 = vunpack.c.l.bf16 %v1874
  %v1877 = vunpack.c.h.bf16 %v1874
  %v1878 = vunpack.c.l.bf16 %v1875
  %v1879 = vunpack.c.h.bf16 %v1875
  %v1880 = vmul.f32 %v1876, %v47
  %v1881 = vmul.f32 %v1877, %v51
  %v1882 = vmul.f32 %v1878, %v55
  %v1883 = vmul.f32 %v1879, %v59
  %v1884 = vadd.f32 %v1880, %v72
  %v1885 = vadd.f32 %v1881, %v76
  %v1886 = vadd.f32 %v1882, %v80
  %v1887 = vadd.f32 %v1883, %v84
  %v1888 = vmax.f32 %v1884, 0.0
  %v1889 = vmax.f32 %v1885, 0.0
  %v1890 = vmax.f32 %v1886, 0.0
  %v1891 = vmax.f32 %v1887, 0.0
  %v1892 = vpack.c.bf16 %v1888, %v1888
  %v1893 = vpack.c.bf16 %v1889, %v1889
  %v1894 = vpack.c.bf16 %v1890, %v1890
  %v1895 = vpack.c.bf16 %v1891, %v1891
  %v1896 = vld [vmem:[%s3 + $0x500] sm:$0xf]
  %v1897 = vld [vmem:[%s3 + $0x504] sm:$0xf]
  %v1898 = vld [vmem:[%s3 + $0x508] sm:$0xf]
  %v1899 = vld [vmem:[%s3 + $0x50c] sm:$0xf]
  %v1900 = vld [vmem:[%s3 + $0x510] sm:$0xf]
  %v1901 = vld [vmem:[%s3 + $0x514] sm:$0xf]
  %v1902 = vld [vmem:[%s3 + $0x518] sm:$0xf]
  %v1903 = vld [vmem:[%s3 + $0x51c] sm:$0xf]
  %v1904 = vld [vmem:[%s3 + $0x520] sm:$0xf]
  %v1905 = vld [vmem:[%s3 + $0x524] sm:$0xf]
  %v1906 = vld [vmem:[%s3 + $0x528] sm:$0xf]
  %v1907 = vld [vmem:[%s3 + $0x52c] sm:$0xf]
  %v1908 = vld [vmem:[%s3 + $0x530] sm:$0xf]
  %v1909 = vld [vmem:[%s3 + $0x534] sm:$0xf]
  %v1910 = vld [vmem:[%s3 + $0x538] sm:$0xf]
  %v1911 = vld [vmem:[%s3 + $0x53c] sm:$0xf]
  %v1912 = vld [vmem:[%s3 + $0x540] sm:$0xf]
  %v1913 = vld [vmem:[%s3 + $0x544] sm:$0xf]
  %v1914 = vld [vmem:[%s3 + $0x548] sm:$0xf]
  %v1915 = vld [vmem:[%s3 + $0x54c] sm:$0xf]
  %v1916 = vld [vmem:[%s3 + $0x550] sm:$0xf]
  %v1917 = vld [vmem:[%s3 + $0x554] sm:$0xf]
  %v1918 = vld [vmem:[%s3 + $0x558] sm:$0xf]
  %v1919 = vld [vmem:[%s3 + $0x55c] sm:$0xf]
  %v1920 = vld [vmem:[%s3 + $0x560] sm:$0xf]
  %v1921 = vld [vmem:[%s3 + $0x564] sm:$0xf]
  %v1922 = vld [vmem:[%s3 + $0x568] sm:$0xf]
  %v1923 = vld [vmem:[%s3 + $0x56c] sm:$0xf]
  %v1924 = vld [vmem:[%s3 + $0x570] sm:$0xf]
  %v1925 = vld [vmem:[%s3 + $0x574] sm:$0xf]
  %v1926 = vld [vmem:[%s3 + $0x578] sm:$0xf]
  %v1927 = vld [vmem:[%s3 + $0x57c] sm:$0xf]
  %v1928 = vld [vmem:[%s3 + $0x580] sm:$0xf]
  %v1929 = vld [vmem:[%s3 + $0x584] sm:$0xf]
  %v1930 = vld [vmem:[%s3 + $0x588] sm:$0xf]
  %v1931 = vld [vmem:[%s3 + $0x58c] sm:$0xf]
  %v1932 = vld [vmem:[%s3 + $0x590] sm:$0xf]
  %v1933 = vld [vmem:[%s3 + $0x594] sm:$0xf]
  %v1934 = vld [vmem:[%s3 + $0x598] sm:$0xf]
  %v1935 = vld [vmem:[%s3 + $0x59c] sm:$0xf]
  %v1936 = vld [vmem:[%s3 + $0x5a0] sm:$0xf]
  %v1937 = vld [vmem:[%s3 + $0x5a4] sm:$0xf]
  %v1938 = vld [vmem:[%s3 + $0x5a8] sm:$0xf]
  %v1939 = vld [vmem:[%s3 + $0x5ac] sm:$0xf]
  %v1940 = vld [vmem:[%s3 + $0x5b0] sm:$0xf]
  %v1941 = vld [vmem:[%s3 + $0x5b4] sm:$0xf]
  %v1942 = vld [vmem:[%s3 + $0x5b8] sm:$0xf]
  %v1943 = vld [vmem:[%s3 + $0x5bc] sm:$0xf]
  %v1944 = vld [vmem:[%s3 + $0x5c0] sm:$0xf]
  %v1945 = vld [vmem:[%s3 + $0x5c4] sm:$0xf]
  %v1946 = vld [vmem:[%s3 + $0x5c8] sm:$0xf]
  %v1947 = vld [vmem:[%s3 + $0x5cc] sm:$0xf]
  %v1948 = vld [vmem:[%s3 + $0x5d0] sm:$0xf]
  %v1949 = vld [vmem:[%s3 + $0x5d4] sm:$0xf]
  %v1950 = vld [vmem:[%s3 + $0x5d8] sm:$0xf]
  %v1951 = vld [vmem:[%s3 + $0x5dc] sm:$0xf]
  %v1952 = vld [vmem:[%s3 + $0x5e0] sm:$0xf]
  %v1953 = vld [vmem:[%s3 + $0x5e4] sm:$0xf]
  %v1954 = vld [vmem:[%s3 + $0x5e8] sm:$0xf]
  %v1955 = vld [vmem:[%s3 + $0x5ec] sm:$0xf]
  %v1956 = vld [vmem:[%s3 + $0x5f0] sm:$0xf]
  %v1957 = vld [vmem:[%s3 + $0x5f4] sm:$0xf]
  %v1958 = vld [vmem:[%s3 + $0x5f8] sm:$0xf]
  %v1959 = vld [vmem:[%s3 + $0x5fc] sm:$0xf]
  %v2024 = vunpack.c.l.b16 %v1896
  %v2025 = vunpack.c.l.b16 %v1897
  %v2026 = vunpack.c.l.b16 %v1898
  %v2027 = vunpack.c.l.b16 %v1899
  %v2028 = vunpack.c.l.b16 %v1900
  %v2029 = vunpack.c.l.b16 %v1901
  %v2030 = vunpack.c.l.b16 %v1902
  %v2031 = vunpack.c.l.b16 %v1903
  %v2032 = vunpack.c.l.b16 %v1904
  %v2033 = vunpack.c.l.b16 %v1905
  %v2034 = vunpack.c.l.b16 %v1906
  %v2035 = vunpack.c.l.b16 %v1907
  %v2036 = vunpack.c.l.b16 %v1908
  %v2037 = vunpack.c.l.b16 %v1909
  %v2038 = vunpack.c.l.b16 %v1910
  %v2039 = vunpack.c.l.b16 %v1911
  %v2040 = vunpack.c.l.b16 %v1912
  %v2041 = vunpack.c.l.b16 %v1913
  %v2042 = vunpack.c.l.b16 %v1914
  %v2043 = vunpack.c.l.b16 %v1915
  %v2044 = vunpack.c.l.b16 %v1916
  %v2045 = vunpack.c.l.b16 %v1917
  %v2046 = vunpack.c.l.b16 %v1918
  %v2047 = vunpack.c.l.b16 %v1919
  %v2048 = vunpack.c.l.b16 %v1920
  %v2049 = vunpack.c.l.b16 %v1921
  %v2050 = vunpack.c.l.b16 %v1922
  %v2051 = vunpack.c.l.b16 %v1923
  %v2052 = vunpack.c.l.b16 %v1924
  %v2053 = vunpack.c.l.b16 %v1925
  %v2054 = vunpack.c.l.b16 %v1926
  %v2055 = vunpack.c.l.b16 %v1927
  %v2056 = vunpack.c.l.b16 %v1928
  %v2057 = vunpack.c.l.b16 %v1929
  %v2058 = vunpack.c.l.b16 %v1930
  %v2059 = vunpack.c.l.b16 %v1931
  %v2060 = vunpack.c.l.b16 %v1932
  %v2061 = vunpack.c.l.b16 %v1933
  %v2062 = vunpack.c.l.b16 %v1934
  %v2063 = vunpack.c.l.b16 %v1935
  %v2064 = vunpack.c.l.b16 %v1936
  %v2065 = vunpack.c.l.b16 %v1937
  %v2066 = vunpack.c.l.b16 %v1938
  %v2067 = vunpack.c.l.b16 %v1939
  %v2068 = vunpack.c.l.b16 %v1940
  %v2069 = vunpack.c.l.b16 %v1941
  %v2070 = vunpack.c.l.b16 %v1942
  %v2071 = vunpack.c.l.b16 %v1943
  %v2072 = vunpack.c.l.b16 %v1944
  %v2073 = vunpack.c.l.b16 %v1945
  %v2074 = vunpack.c.l.b16 %v1946
  %v2075 = vunpack.c.l.b16 %v1947
  %v2076 = vunpack.c.l.b16 %v1948
  %v2077 = vunpack.c.l.b16 %v1949
  %v2078 = vunpack.c.l.b16 %v1950
  %v2079 = vunpack.c.l.b16 %v1951
  %v2080 = vunpack.c.l.b16 %v1952
  %v2081 = vunpack.c.l.b16 %v1953
  %v2082 = vunpack.c.l.b16 %v1954
  %v2083 = vunpack.c.l.b16 %v1955
  %v2084 = vunpack.c.l.b16 %v1956
  %v2085 = vunpack.c.l.b16 %v1957
  %v2086 = vunpack.c.l.b16 %v1958
  %v2087 = vunpack.c.l.b16 %v1959
  %v2088 = vpack.c.b16 %v2025, %v2024
  %v2089 = vpack.c.b16 %v2027, %v2026
  %v2090 = vpack.c.b16 %v2029, %v2028
  %v2091 = vpack.c.b16 %v2031, %v2030
  %v2092 = vpack.c.b16 %v2033, %v2032
  %v2093 = vpack.c.b16 %v2035, %v2034
  %v2094 = vpack.c.b16 %v2037, %v2036
  %v2095 = vpack.c.b16 %v2039, %v2038
  %v2096 = vpack.c.b16 %v2041, %v2040
  %v2097 = vpack.c.b16 %v2043, %v2042
  %v2098 = vpack.c.b16 %v2045, %v2044
  %v2099 = vpack.c.b16 %v2047, %v2046
  %v2100 = vpack.c.b16 %v2049, %v2048
  %v2101 = vpack.c.b16 %v2051, %v2050
  %v2102 = vpack.c.b16 %v2053, %v2052
  %v2103 = vpack.c.b16 %v2055, %v2054
  %v2104 = vpack.c.b16 %v2057, %v2056
  %v2105 = vpack.c.b16 %v2059, %v2058
  %v2106 = vpack.c.b16 %v2061, %v2060
  %v2107 = vpack.c.b16 %v2063, %v2062
  %v2108 = vpack.c.b16 %v2065, %v2064
  %v2109 = vpack.c.b16 %v2067, %v2066
  %v2110 = vpack.c.b16 %v2069, %v2068
  %v2111 = vpack.c.b16 %v2071, %v2070
  %v2112 = vpack.c.b16 %v2073, %v2072
  %v2113 = vpack.c.b16 %v2075, %v2074
  %v2114 = vpack.c.b16 %v2077, %v2076
  %v2115 = vpack.c.b16 %v2079, %v2078
  %v2116 = vpack.c.b16 %v2081, %v2080
  %v2117 = vpack.c.b16 %v2083, %v2082
  %v2118 = vpack.c.b16 %v2085, %v2084
  %v2119 = vpack.c.b16 %v2087, %v2086
  %2152 = vmatprep.subr.bf16.mxu0 0
  %2153 = vmatpush1.bf16.msra.mxu0 %v2095
  %2154 = vmatprep.subr.bf16.mxu0 0
  %2155 = vmatpush1.bf16.msra.mxu0 %v2094
  %2156 = vmatprep.subr.bf16.mxu0 0
  %2157 = vmatpush1.bf16.msra.mxu0 %v2093
  %2158 = vmatprep.subr.bf16.mxu0 0
  %2159 = vmatpush1.bf16.msra.mxu0 %v2092
  %2160 = vmatprep.subr.bf16.mxu0 0
  %2161 = vmatpush1.bf16.msra.mxu0 %v2091
  %2162 = vmatprep.subr.bf16.mxu0 0
  %2163 = vmatpush1.bf16.msra.mxu0 %v2090
  %2164 = vmatprep.subr.bf16.mxu0 0
  %2165 = vmatpush1.bf16.msra.mxu0 %v2089
  %2166 = vmatprep.subr.bf16.mxu0 0
  %2167 = vmatpush1.bf16.msra.mxu0 %v2088
  %2168 = vmatprep.subr.bf16.mxu0 0
  %2169 = vmatpush2.bf16.msra.mxu0 %v2103
  %2170 = vmatprep.subr.bf16.mxu0 0
  %2171 = vmatpush2.bf16.msra.mxu0 %v2102
  %2172 = vmatprep.subr.bf16.mxu0 0
  %2173 = vmatpush2.bf16.msra.mxu0 %v2101
  %2174 = vmatprep.subr.bf16.mxu0 0
  %2175 = vmatpush2.bf16.msra.mxu0 %v2100
  %2176 = vmatprep.subr.bf16.mxu0 0
  %2177 = vmatpush2.bf16.msra.mxu0 %v2099
  %2178 = vmatprep.subr.bf16.mxu0 0
  %2179 = vmatpush2.bf16.msra.mxu0 %v2098
  %2180 = vmatprep.subr.bf16.mxu0 0
  %2181 = vmatpush2.bf16.msra.mxu0 %v2097
  %2182 = vmatprep.subr.bf16.mxu0 0
  %2183 = vmatpush2.bf16.msra.mxu0 %v2096
  %2184 = vmatprep.mubr.bf16.mxu0 %v1893
  %2185 = vmatmul.mubr.bf16.gmra.mxu0 %v1892
  %v2186 = vpop.f32.mrf.mxu0
  %v2187 = vadd.f32 0.0, %v2186
  %v2188 = vpop.f32.mrf.mxu0
  %v2189 = vpop.f32.mrf.mxu0
  %v2190 = vpop.f32.mrf.mxu0
  %2191 = vdwg.mxu0
  %2192 = vmatprep.subr.bf16.mxu0 0
  %2193 = vmatpush1.bf16.msra.mxu0 %v2111
  %2194 = vmatprep.subr.bf16.mxu0 0
  %2195 = vmatpush1.bf16.msra.mxu0 %v2110
  %2196 = vmatprep.subr.bf16.mxu0 0
  %2197 = vmatpush1.bf16.msra.mxu0 %v2109
  %2198 = vmatprep.subr.bf16.mxu0 0
  %2199 = vmatpush1.bf16.msra.mxu0 %v2108
  %2200 = vmatprep.subr.bf16.mxu0 0
  %2201 = vmatpush1.bf16.msra.mxu0 %v2107
  %2202 = vmatprep.subr.bf16.mxu0 0
  %2203 = vmatpush1.bf16.msra.mxu0 %v2106
  %2204 = vmatprep.subr.bf16.mxu0 0
  %2205 = vmatpush1.bf16.msra.mxu0 %v2105
  %2206 = vmatprep.subr.bf16.mxu0 0
  %2207 = vmatpush1.bf16.msra.mxu0 %v2104
  %2208 = vmatprep.subr.bf16.mxu0 0
  %2209 = vmatpush2.bf16.msra.mxu0 %v2119
  %2210 = vmatprep.subr.bf16.mxu0 0
  %2211 = vmatpush2.bf16.msra.mxu0 %v2118
  %2212 = vmatprep.subr.bf16.mxu0 0
  %2213 = vmatpush2.bf16.msra.mxu0 %v2117
  %2214 = vmatprep.subr.bf16.mxu0 0
  %2215 = vmatpush2.bf16.msra.mxu0 %v2116
  %2216 = vmatprep.subr.bf16.mxu0 0
  %2217 = vmatpush2.bf16.msra.mxu0 %v2115
  %2218 = vmatprep.subr.bf16.mxu0 0
  %2219 = vmatpush2.bf16.msra.mxu0 %v2114
  %2220 = vmatprep.subr.bf16.mxu0 0
  %2221 = vmatpush2.bf16.msra.mxu0 %v2113
  %2222 = vmatprep.subr.bf16.mxu0 0
  %2223 = vmatpush2.bf16.msra.mxu0 %v2112
  %2224 = vmatprep.mubr.bf16.mxu0 %v1895
  %2225 = vmatmul.mubr.bf16.gmra.mxu0 %v1894
  %v2226 = vpop.f32.mrf.mxu0
  %v2227 = vadd.f32 %v2187, %v2226
  %v2228 = vpop.f32.mrf.mxu0
  %v2229 = vpop.f32.mrf.mxu0
  %v2230 = vpop.f32.mrf.mxu0
  %2231 = vdwg.mxu0
  %v2232 = vadd.f32 %v1873, %v2227
  %v2233 = vld [vmem:[%s0 + $0x60] sm:$0xff]
  %v2234 = vld [vmem:[%s0 + $0x68] sm:$0xff]
  %v2235 = vunpack.c.l.bf16 %v2233
  %v2236 = vunpack.c.h.bf16 %v2233
  %v2237 = vunpack.c.l.bf16 %v2234
  %v2238 = vunpack.c.h.bf16 %v2234
  %v2239 = vmul.f32 %v2235, %v47
  %v2240 = vmul.f32 %v2236, %v51
  %v2241 = vmul.f32 %v2237, %v55
  %v2242 = vmul.f32 %v2238, %v59
  %v2243 = vadd.f32 %v2239, %v72
  %v2244 = vadd.f32 %v2240, %v76
  %v2245 = vadd.f32 %v2241, %v80
  %v2246 = vadd.f32 %v2242, %v84
  %v2247 = vmax.f32 %v2243, 0.0
  %v2248 = vmax.f32 %v2244, 0.0
  %v2249 = vmax.f32 %v2245, 0.0
  %v2250 = vmax.f32 %v2246, 0.0
  %v2251 = vpack.c.bf16 %v2247, %v2247
  %v2252 = vpack.c.bf16 %v2248, %v2248
  %v2253 = vpack.c.bf16 %v2249, %v2249
  %v2254 = vpack.c.bf16 %v2250, %v2250
  %v2255 = vld [vmem:[%s3 + $0x600] sm:$0xf]
  %v2256 = vld [vmem:[%s3 + $0x604] sm:$0xf]
  %v2257 = vld [vmem:[%s3 + $0x608] sm:$0xf]
  %v2258 = vld [vmem:[%s3 + $0x60c] sm:$0xf]
  %v2259 = vld [vmem:[%s3 + $0x610] sm:$0xf]
  %v2260 = vld [vmem:[%s3 + $0x614] sm:$0xf]
  %v2261 = vld [vmem:[%s3 + $0x618] sm:$0xf]
  %v2262 = vld [vmem:[%s3 + $0x61c] sm:$0xf]
  %v2263 = vld [vmem:[%s3 + $0x620] sm:$0xf]
  %v2264 = vld [vmem:[%s3 + $0x624] sm:$0xf]
  %v2265 = vld [vmem:[%s3 + $0x628] sm:$0xf]
  %v2266 = vld [vmem:[%s3 + $0x62c] sm:$0xf]
  %v2267 = vld [vmem:[%s3 + $0x630] sm:$0xf]
  %v2268 = vld [vmem:[%s3 + $0x634] sm:$0xf]
  %v2269 = vld [vmem:[%s3 + $0x638] sm:$0xf]
  %v2270 = vld [vmem:[%s3 + $0x63c] sm:$0xf]
  %v2271 = vld [vmem:[%s3 + $0x640] sm:$0xf]
  %v2272 = vld [vmem:[%s3 + $0x644] sm:$0xf]
  %v2273 = vld [vmem:[%s3 + $0x648] sm:$0xf]
  %v2274 = vld [vmem:[%s3 + $0x64c] sm:$0xf]
  %v2275 = vld [vmem:[%s3 + $0x650] sm:$0xf]
  %v2276 = vld [vmem:[%s3 + $0x654] sm:$0xf]
  %v2277 = vld [vmem:[%s3 + $0x658] sm:$0xf]
  %v2278 = vld [vmem:[%s3 + $0x65c] sm:$0xf]
  %v2279 = vld [vmem:[%s3 + $0x660] sm:$0xf]
  %v2280 = vld [vmem:[%s3 + $0x664] sm:$0xf]
  %v2281 = vld [vmem:[%s3 + $0x668] sm:$0xf]
  %v2282 = vld [vmem:[%s3 + $0x66c] sm:$0xf]
  %v2283 = vld [vmem:[%s3 + $0x670] sm:$0xf]
  %v2284 = vld [vmem:[%s3 + $0x674] sm:$0xf]
  %v2285 = vld [vmem:[%s3 + $0x678] sm:$0xf]
  %v2286 = vld [vmem:[%s3 + $0x67c] sm:$0xf]
  %v2287 = vld [vmem:[%s3 + $0x680] sm:$0xf]
  %v2288 = vld [vmem:[%s3 + $0x684] sm:$0xf]
  %v2289 = vld [vmem:[%s3 + $0x688] sm:$0xf]
  %v2290 = vld [vmem:[%s3 + $0x68c] sm:$0xf]
  %v2291 = vld [vmem:[%s3 + $0x690] sm:$0xf]
  %v2292 = vld [vmem:[%s3 + $0x694] sm:$0xf]
  %v2293 = vld [vmem:[%s3 + $0x698] sm:$0xf]
  %v2294 = vld [vmem:[%s3 + $0x69c] sm:$0xf]
  %v2295 = vld [vmem:[%s3 + $0x6a0] sm:$0xf]
  %v2296 = vld [vmem:[%s3 + $0x6a4] sm:$0xf]
  %v2297 = vld [vmem:[%s3 + $0x6a8] sm:$0xf]
  %v2298 = vld [vmem:[%s3 + $0x6ac] sm:$0xf]
  %v2299 = vld [vmem:[%s3 + $0x6b0] sm:$0xf]
  %v2300 = vld [vmem:[%s3 + $0x6b4] sm:$0xf]
  %v2301 = vld [vmem:[%s3 + $0x6b8] sm:$0xf]
  %v2302 = vld [vmem:[%s3 + $0x6bc] sm:$0xf]
  %v2303 = vld [vmem:[%s3 + $0x6c0] sm:$0xf]
  %v2304 = vld [vmem:[%s3 + $0x6c4] sm:$0xf]
  %v2305 = vld [vmem:[%s3 + $0x6c8] sm:$0xf]
  %v2306 = vld [vmem:[%s3 + $0x6cc] sm:$0xf]
  %v2307 = vld [vmem:[%s3 + $0x6d0] sm:$0xf]
  %v2308 = vld [vmem:[%s3 + $0x6d4] sm:$0xf]
  %v2309 = vld [vmem:[%s3 + $0x6d8] sm:$0xf]
  %v2310 = vld [vmem:[%s3 + $0x6dc] sm:$0xf]
  %v2311 = vld [vmem:[%s3 + $0x6e0] sm:$0xf]
  %v2312 = vld [vmem:[%s3 + $0x6e4] sm:$0xf]
  %v2313 = vld [vmem:[%s3 + $0x6e8] sm:$0xf]
  %v2314 = vld [vmem:[%s3 + $0x6ec] sm:$0xf]
  %v2315 = vld [vmem:[%s3 + $0x6f0] sm:$0xf]
  %v2316 = vld [vmem:[%s3 + $0x6f4] sm:$0xf]
  %v2317 = vld [vmem:[%s3 + $0x6f8] sm:$0xf]
  %v2318 = vld [vmem:[%s3 + $0x6fc] sm:$0xf]
  %v2383 = vunpack.c.l.b16 %v2255
  %v2384 = vunpack.c.l.b16 %v2256
  %v2385 = vunpack.c.l.b16 %v2257
  %v2386 = vunpack.c.l.b16 %v2258
  %v2387 = vunpack.c.l.b16 %v2259
  %v2388 = vunpack.c.l.b16 %v2260
  %v2389 = vunpack.c.l.b16 %v2261
  %v2390 = vunpack.c.l.b16 %v2262
  %v2391 = vunpack.c.l.b16 %v2263
  %v2392 = vunpack.c.l.b16 %v2264
  %v2393 = vunpack.c.l.b16 %v2265
  %v2394 = vunpack.c.l.b16 %v2266
  %v2395 = vunpack.c.l.b16 %v2267
  %v2396 = vunpack.c.l.b16 %v2268
  %v2397 = vunpack.c.l.b16 %v2269
  %v2398 = vunpack.c.l.b16 %v2270
  %v2399 = vunpack.c.l.b16 %v2271
  %v2400 = vunpack.c.l.b16 %v2272
  %v2401 = vunpack.c.l.b16 %v2273
  %v2402 = vunpack.c.l.b16 %v2274
  %v2403 = vunpack.c.l.b16 %v2275
  %v2404 = vunpack.c.l.b16 %v2276
  %v2405 = vunpack.c.l.b16 %v2277
  %v2406 = vunpack.c.l.b16 %v2278
  %v2407 = vunpack.c.l.b16 %v2279
  %v2408 = vunpack.c.l.b16 %v2280
  %v2409 = vunpack.c.l.b16 %v2281
  %v2410 = vunpack.c.l.b16 %v2282
  %v2411 = vunpack.c.l.b16 %v2283
  %v2412 = vunpack.c.l.b16 %v2284
  %v2413 = vunpack.c.l.b16 %v2285
  %v2414 = vunpack.c.l.b16 %v2286
  %v2415 = vunpack.c.l.b16 %v2287
  %v2416 = vunpack.c.l.b16 %v2288
  %v2417 = vunpack.c.l.b16 %v2289
  %v2418 = vunpack.c.l.b16 %v2290
  %v2419 = vunpack.c.l.b16 %v2291
  %v2420 = vunpack.c.l.b16 %v2292
  %v2421 = vunpack.c.l.b16 %v2293
  %v2422 = vunpack.c.l.b16 %v2294
  %v2423 = vunpack.c.l.b16 %v2295
  %v2424 = vunpack.c.l.b16 %v2296
  %v2425 = vunpack.c.l.b16 %v2297
  %v2426 = vunpack.c.l.b16 %v2298
  %v2427 = vunpack.c.l.b16 %v2299
  %v2428 = vunpack.c.l.b16 %v2300
  %v2429 = vunpack.c.l.b16 %v2301
  %v2430 = vunpack.c.l.b16 %v2302
  %v2431 = vunpack.c.l.b16 %v2303
  %v2432 = vunpack.c.l.b16 %v2304
  %v2433 = vunpack.c.l.b16 %v2305
  %v2434 = vunpack.c.l.b16 %v2306
  %v2435 = vunpack.c.l.b16 %v2307
  %v2436 = vunpack.c.l.b16 %v2308
  %v2437 = vunpack.c.l.b16 %v2309
  %v2438 = vunpack.c.l.b16 %v2310
  %v2439 = vunpack.c.l.b16 %v2311
  %v2440 = vunpack.c.l.b16 %v2312
  %v2441 = vunpack.c.l.b16 %v2313
  %v2442 = vunpack.c.l.b16 %v2314
  %v2443 = vunpack.c.l.b16 %v2315
  %v2444 = vunpack.c.l.b16 %v2316
  %v2445 = vunpack.c.l.b16 %v2317
  %v2446 = vunpack.c.l.b16 %v2318
  %v2447 = vpack.c.b16 %v2384, %v2383
  %v2448 = vpack.c.b16 %v2386, %v2385
  %v2449 = vpack.c.b16 %v2388, %v2387
  %v2450 = vpack.c.b16 %v2390, %v2389
  %v2451 = vpack.c.b16 %v2392, %v2391
  %v2452 = vpack.c.b16 %v2394, %v2393
  %v2453 = vpack.c.b16 %v2396, %v2395
  %v2454 = vpack.c.b16 %v2398, %v2397
  %v2455 = vpack.c.b16 %v2400, %v2399
  %v2456 = vpack.c.b16 %v2402, %v2401
  %v2457 = vpack.c.b16 %v2404, %v2403
  %v2458 = vpack.c.b16 %v2406, %v2405
  %v2459 = vpack.c.b16 %v2408, %v2407
  %v2460 = vpack.c.b16 %v2410, %v2409
  %v2461 = vpack.c.b16 %v2412, %v2411
  %v2462 = vpack.c.b16 %v2414, %v2413
  %v2463 = vpack.c.b16 %v2416, %v2415
  %v2464 = vpack.c.b16 %v2418, %v2417
  %v2465 = vpack.c.b16 %v2420, %v2419
  %v2466 = vpack.c.b16 %v2422, %v2421
  %v2467 = vpack.c.b16 %v2424, %v2423
  %v2468 = vpack.c.b16 %v2426, %v2425
  %v2469 = vpack.c.b16 %v2428, %v2427
  %v2470 = vpack.c.b16 %v2430, %v2429
  %v2471 = vpack.c.b16 %v2432, %v2431
  %v2472 = vpack.c.b16 %v2434, %v2433
  %v2473 = vpack.c.b16 %v2436, %v2435
  %v2474 = vpack.c.b16 %v2438, %v2437
  %v2475 = vpack.c.b16 %v2440, %v2439
  %v2476 = vpack.c.b16 %v2442, %v2441
  %v2477 = vpack.c.b16 %v2444, %v2443
  %v2478 = vpack.c.b16 %v2446, %v2445
  %2511 = vmatprep.subr.bf16.mxu0 0
  %2512 = vmatpush1.bf16.msra.mxu0 %v2454
  %2513 = vmatprep.subr.bf16.mxu0 0
  %2514 = vmatpush1.bf16.msra.mxu0 %v2453
  %2515 = vmatprep.subr.bf16.mxu0 0
  %2516 = vmatpush1.bf16.msra.mxu0 %v2452
  %2517 = vmatprep.subr.bf16.mxu0 0
  %2518 = vmatpush1.bf16.msra.mxu0 %v2451
  %2519 = vmatprep.subr.bf16.mxu0 0
  %2520 = vmatpush1.bf16.msra.mxu0 %v2450
  %2521 = vmatprep.subr.bf16.mxu0 0
  %2522 = vmatpush1.bf16.msra.mxu0 %v2449
  %2523 = vmatprep.subr.bf16.mxu0 0
  %2524 = vmatpush1.bf16.msra.mxu0 %v2448
  %2525 = vmatprep.subr.bf16.mxu0 0
  %2526 = vmatpush1.bf16.msra.mxu0 %v2447
  %2527 = vmatprep.subr.bf16.mxu0 0
  %2528 = vmatpush2.bf16.msra.mxu0 %v2462
  %2529 = vmatprep.subr.bf16.mxu0 0
  %2530 = vmatpush2.bf16.msra.mxu0 %v2461
  %2531 = vmatprep.subr.bf16.mxu0 0
  %2532 = vmatpush2.bf16.msra.mxu0 %v2460
  %2533 = vmatprep.subr.bf16.mxu0 0
  %2534 = vmatpush2.bf16.msra.mxu0 %v2459
  %2535 = vmatprep.subr.bf16.mxu0 0
  %2536 = vmatpush2.bf16.msra.mxu0 %v2458
  %2537 = vmatprep.subr.bf16.mxu0 0
  %2538 = vmatpush2.bf16.msra.mxu0 %v2457
  %2539 = vmatprep.subr.bf16.mxu0 0
  %2540 = vmatpush2.bf16.msra.mxu0 %v2456
  %2541 = vmatprep.subr.bf16.mxu0 0
  %2542 = vmatpush2.bf16.msra.mxu0 %v2455
  %2543 = vmatprep.mubr.bf16.mxu0 %v2252
  %2544 = vmatmul.mubr.bf16.gmra.mxu0 %v2251
  %v2545 = vpop.f32.mrf.mxu0
  %v2546 = vadd.f32 0.0, %v2545
  %v2547 = vpop.f32.mrf.mxu0
  %v2548 = vpop.f32.mrf.mxu0
  %v2549 = vpop.f32.mrf.mxu0
  %2550 = vdwg.mxu0
  %2551 = vmatprep.subr.bf16.mxu0 0
  %2552 = vmatpush1.bf16.msra.mxu0 %v2470
  %2553 = vmatprep.subr.bf16.mxu0 0
  %2554 = vmatpush1.bf16.msra.mxu0 %v2469
  %2555 = vmatprep.subr.bf16.mxu0 0
  %2556 = vmatpush1.bf16.msra.mxu0 %v2468
  %2557 = vmatprep.subr.bf16.mxu0 0
  %2558 = vmatpush1.bf16.msra.mxu0 %v2467
  %2559 = vmatprep.subr.bf16.mxu0 0
  %2560 = vmatpush1.bf16.msra.mxu0 %v2466
  %2561 = vmatprep.subr.bf16.mxu0 0
  %2562 = vmatpush1.bf16.msra.mxu0 %v2465
  %2563 = vmatprep.subr.bf16.mxu0 0
  %2564 = vmatpush1.bf16.msra.mxu0 %v2464
  %2565 = vmatprep.subr.bf16.mxu0 0
  %2566 = vmatpush1.bf16.msra.mxu0 %v2463
  %2567 = vmatprep.subr.bf16.mxu0 0
  %2568 = vmatpush2.bf16.msra.mxu0 %v2478
  %2569 = vmatprep.subr.bf16.mxu0 0
  %2570 = vmatpush2.bf16.msra.mxu0 %v2477
  %2571 = vmatprep.subr.bf16.mxu0 0
  %2572 = vmatpush2.bf16.msra.mxu0 %v2476
  %2573 = vmatprep.subr.bf16.mxu0 0
  %2574 = vmatpush2.bf16.msra.mxu0 %v2475
  %2575 = vmatprep.subr.bf16.mxu0 0
  %2576 = vmatpush2.bf16.msra.mxu0 %v2474
  %2577 = vmatprep.subr.bf16.mxu0 0
  %2578 = vmatpush2.bf16.msra.mxu0 %v2473
  %2579 = vmatprep.subr.bf16.mxu0 0
  %2580 = vmatpush2.bf16.msra.mxu0 %v2472
  %2581 = vmatprep.subr.bf16.mxu0 0
  %2582 = vmatpush2.bf16.msra.mxu0 %v2471
  %2583 = vmatprep.mubr.bf16.mxu0 %v2254
  %2584 = vmatmul.mubr.bf16.gmra.mxu0 %v2253
  %v2585 = vpop.f32.mrf.mxu0
  %v2586 = vadd.f32 %v2546, %v2585
  %v2587 = vpop.f32.mrf.mxu0
  %v2588 = vpop.f32.mrf.mxu0
  %v2589 = vpop.f32.mrf.mxu0
  %2590 = vdwg.mxu0
  %v2591 = vadd.f32 %v2232, %v2586
  %v2592 = vld [vmem:[%s0 + $0x70] sm:$0xff]
  %v2593 = vld [vmem:[%s0 + $0x78] sm:$0xff]
  %v2594 = vunpack.c.l.bf16 %v2592
  %v2595 = vunpack.c.h.bf16 %v2592
  %v2596 = vunpack.c.l.bf16 %v2593
  %v2597 = vunpack.c.h.bf16 %v2593
  %v2598 = vmul.f32 %v2594, %v47
  %v2599 = vmul.f32 %v2595, %v51
  %v2600 = vmul.f32 %v2596, %v55
  %v2601 = vmul.f32 %v2597, %v59
  %v2602 = vadd.f32 %v2598, %v72
  %v2603 = vadd.f32 %v2599, %v76
  %v2604 = vadd.f32 %v2600, %v80
  %v2605 = vadd.f32 %v2601, %v84
  %v2606 = vmax.f32 %v2602, 0.0
  %v2607 = vmax.f32 %v2603, 0.0
  %v2608 = vmax.f32 %v2604, 0.0
  %v2609 = vmax.f32 %v2605, 0.0
  %v2610 = vpack.c.bf16 %v2606, %v2606
  %v2611 = vpack.c.bf16 %v2607, %v2607
  %v2612 = vpack.c.bf16 %v2608, %v2608
  %v2613 = vpack.c.bf16 %v2609, %v2609
  %v2614 = vld [vmem:[%s3 + $0x700] sm:$0xf]
  %v2615 = vld [vmem:[%s3 + $0x704] sm:$0xf]
  %v2616 = vld [vmem:[%s3 + $0x708] sm:$0xf]
  %v2617 = vld [vmem:[%s3 + $0x70c] sm:$0xf]
  %v2618 = vld [vmem:[%s3 + $0x710] sm:$0xf]
  %v2619 = vld [vmem:[%s3 + $0x714] sm:$0xf]
  %v2620 = vld [vmem:[%s3 + $0x718] sm:$0xf]
  %v2621 = vld [vmem:[%s3 + $0x71c] sm:$0xf]
  %v2622 = vld [vmem:[%s3 + $0x720] sm:$0xf]
  %v2623 = vld [vmem:[%s3 + $0x724] sm:$0xf]
  %v2624 = vld [vmem:[%s3 + $0x728] sm:$0xf]
  %v2625 = vld [vmem:[%s3 + $0x72c] sm:$0xf]
  %v2626 = vld [vmem:[%s3 + $0x730] sm:$0xf]
  %v2627 = vld [vmem:[%s3 + $0x734] sm:$0xf]
  %v2628 = vld [vmem:[%s3 + $0x738] sm:$0xf]
  %v2629 = vld [vmem:[%s3 + $0x73c] sm:$0xf]
  %v2630 = vld [vmem:[%s3 + $0x740] sm:$0xf]
  %v2631 = vld [vmem:[%s3 + $0x744] sm:$0xf]
  %v2632 = vld [vmem:[%s3 + $0x748] sm:$0xf]
  %v2633 = vld [vmem:[%s3 + $0x74c] sm:$0xf]
  %v2634 = vld [vmem:[%s3 + $0x750] sm:$0xf]
  %v2635 = vld [vmem:[%s3 + $0x754] sm:$0xf]
  %v2636 = vld [vmem:[%s3 + $0x758] sm:$0xf]
  %v2637 = vld [vmem:[%s3 + $0x75c] sm:$0xf]
  %v2638 = vld [vmem:[%s3 + $0x760] sm:$0xf]
  %v2639 = vld [vmem:[%s3 + $0x764] sm:$0xf]
  %v2640 = vld [vmem:[%s3 + $0x768] sm:$0xf]
  %v2641 = vld [vmem:[%s3 + $0x76c] sm:$0xf]
  %v2642 = vld [vmem:[%s3 + $0x770] sm:$0xf]
  %v2643 = vld [vmem:[%s3 + $0x774] sm:$0xf]
  %v2644 = vld [vmem:[%s3 + $0x778] sm:$0xf]
  %v2645 = vld [vmem:[%s3 + $0x77c] sm:$0xf]
  %v2646 = vld [vmem:[%s3 + $0x780] sm:$0xf]
  %v2647 = vld [vmem:[%s3 + $0x784] sm:$0xf]
  %v2648 = vld [vmem:[%s3 + $0x788] sm:$0xf]
  %v2649 = vld [vmem:[%s3 + $0x78c] sm:$0xf]
  %v2650 = vld [vmem:[%s3 + $0x790] sm:$0xf]
  %v2651 = vld [vmem:[%s3 + $0x794] sm:$0xf]
  %v2652 = vld [vmem:[%s3 + $0x798] sm:$0xf]
  %v2653 = vld [vmem:[%s3 + $0x79c] sm:$0xf]
  %v2654 = vld [vmem:[%s3 + $0x7a0] sm:$0xf]
  %v2655 = vld [vmem:[%s3 + $0x7a4] sm:$0xf]
  %v2656 = vld [vmem:[%s3 + $0x7a8] sm:$0xf]
  %v2657 = vld [vmem:[%s3 + $0x7ac] sm:$0xf]
  %v2658 = vld [vmem:[%s3 + $0x7b0] sm:$0xf]
  %v2659 = vld [vmem:[%s3 + $0x7b4] sm:$0xf]
  %v2660 = vld [vmem:[%s3 + $0x7b8] sm:$0xf]
  %v2661 = vld [vmem:[%s3 + $0x7bc] sm:$0xf]
  %v2662 = vld [vmem:[%s3 + $0x7c0] sm:$0xf]
  %v2663 = vld [vmem:[%s3 + $0x7c4] sm:$0xf]
  %v2664 = vld [vmem:[%s3 + $0x7c8] sm:$0xf]
  %v2665 = vld [vmem:[%s3 + $0x7cc] sm:$0xf]
  %v2666 = vld [vmem:[%s3 + $0x7d0] sm:$0xf]
  %v2667 = vld [vmem:[%s3 + $0x7d4] sm:$0xf]
  %v2668 = vld [vmem:[%s3 + $0x7d8] sm:$0xf]
  %v2669 = vld [vmem:[%s3 + $0x7dc] sm:$0xf]
  %v2670 = vld [vmem:[%s3 + $0x7e0] sm:$0xf]
  %v2671 = vld [vmem:[%s3 + $0x7e4] sm:$0xf]
  %v2672 = vld [vmem:[%s3 + $0x7e8] sm:$0xf]
  %v2673 = vld [vmem:[%s3 + $0x7ec] sm:$0xf]
  %v2674 = vld [vmem:[%s3 + $0x7f0] sm:$0xf]
  %v2675 = vld [vmem:[%s3 + $0x7f4] sm:$0xf]
  %v2676 = vld [vmem:[%s3 + $0x7f8] sm:$0xf]
  %v2677 = vld [vmem:[%s3 + $0x7fc] sm:$0xf]
  %v2742 = vunpack.c.l.b16 %v2614
  %v2743 = vunpack.c.l.b16 %v2615
  %v2744 = vunpack.c.l.b16 %v2616
  %v2745 = vunpack.c.l.b16 %v2617
  %v2746 = vunpack.c.l.b16 %v2618
  %v2747 = vunpack.c.l.b16 %v2619
  %v2748 = vunpack.c.l.b16 %v2620
  %v2749 = vunpack.c.l.b16 %v2621
  %v2750 = vunpack.c.l.b16 %v2622
  %v2751 = vunpack.c.l.b16 %v2623
  %v2752 = vunpack.c.l.b16 %v2624
  %v2753 = vunpack.c.l.b16 %v2625
  %v2754 = vunpack.c.l.b16 %v2626
  %v2755 = vunpack.c.l.b16 %v2627
  %v2756 = vunpack.c.l.b16 %v2628
  %v2757 = vunpack.c.l.b16 %v2629
  %v2758 = vunpack.c.l.b16 %v2630
  %v2759 = vunpack.c.l.b16 %v2631
  %v2760 = vunpack.c.l.b16 %v2632
  %v2761 = vunpack.c.l.b16 %v2633
  %v2762 = vunpack.c.l.b16 %v2634
  %v2763 = vunpack.c.l.b16 %v2635
  %v2764 = vunpack.c.l.b16 %v2636
  %v2765 = vunpack.c.l.b16 %v2637
  %v2766 = vunpack.c.l.b16 %v2638
  %v2767 = vunpack.c.l.b16 %v2639
  %v2768 = vunpack.c.l.b16 %v2640
  %v2769 = vunpack.c.l.b16 %v2641
  %v2770 = vunpack.c.l.b16 %v2642
  %v2771 = vunpack.c.l.b16 %v2643
  %v2772 = vunpack.c.l.b16 %v2644
  %v2773 = vunpack.c.l.b16 %v2645
  %v2774 = vunpack.c.l.b16 %v2646
  %v2775 = vunpack.c.l.b16 %v2647
  %v2776 = vunpack.c.l.b16 %v2648
  %v2777 = vunpack.c.l.b16 %v2649
  %v2778 = vunpack.c.l.b16 %v2650
  %v2779 = vunpack.c.l.b16 %v2651
  %v2780 = vunpack.c.l.b16 %v2652
  %v2781 = vunpack.c.l.b16 %v2653
  %v2782 = vunpack.c.l.b16 %v2654
  %v2783 = vunpack.c.l.b16 %v2655
  %v2784 = vunpack.c.l.b16 %v2656
  %v2785 = vunpack.c.l.b16 %v2657
  %v2786 = vunpack.c.l.b16 %v2658
  %v2787 = vunpack.c.l.b16 %v2659
  %v2788 = vunpack.c.l.b16 %v2660
  %v2789 = vunpack.c.l.b16 %v2661
  %v2790 = vunpack.c.l.b16 %v2662
  %v2791 = vunpack.c.l.b16 %v2663
  %v2792 = vunpack.c.l.b16 %v2664
  %v2793 = vunpack.c.l.b16 %v2665
  %v2794 = vunpack.c.l.b16 %v2666
  %v2795 = vunpack.c.l.b16 %v2667
  %v2796 = vunpack.c.l.b16 %v2668
  %v2797 = vunpack.c.l.b16 %v2669
  %v2798 = vunpack.c.l.b16 %v2670
  %v2799 = vunpack.c.l.b16 %v2671
  %v2800 = vunpack.c.l.b16 %v2672
  %v2801 = vunpack.c.l.b16 %v2673
  %v2802 = vunpack.c.l.b16 %v2674
  %v2803 = vunpack.c.l.b16 %v2675
  %v2804 = vunpack.c.l.b16 %v2676
  %v2805 = vunpack.c.l.b16 %v2677
  %v2806 = vpack.c.b16 %v2743, %v2742
  %v2807 = vpack.c.b16 %v2745, %v2744
  %v2808 = vpack.c.b16 %v2747, %v2746
  %v2809 = vpack.c.b16 %v2749, %v2748
  %v2810 = vpack.c.b16 %v2751, %v2750
  %v2811 = vpack.c.b16 %v2753, %v2752
  %v2812 = vpack.c.b16 %v2755, %v2754
  %v2813 = vpack.c.b16 %v2757, %v2756
  %v2814 = vpack.c.b16 %v2759, %v2758
  %v2815 = vpack.c.b16 %v2761, %v2760
  %v2816 = vpack.c.b16 %v2763, %v2762
  %v2817 = vpack.c.b16 %v2765, %v2764
  %v2818 = vpack.c.b16 %v2767, %v2766
  %v2819 = vpack.c.b16 %v2769, %v2768
  %v2820 = vpack.c.b16 %v2771, %v2770
  %v2821 = vpack.c.b16 %v2773, %v2772
  %v2822 = vpack.c.b16 %v2775, %v2774
  %v2823 = vpack.c.b16 %v2777, %v2776
  %v2824 = vpack.c.b16 %v2779, %v2778
  %v2825 = vpack.c.b16 %v2781, %v2780
  %v2826 = vpack.c.b16 %v2783, %v2782
  %v2827 = vpack.c.b16 %v2785, %v2784
  %v2828 = vpack.c.b16 %v2787, %v2786
  %v2829 = vpack.c.b16 %v2789, %v2788
  %v2830 = vpack.c.b16 %v2791, %v2790
  %v2831 = vpack.c.b16 %v2793, %v2792
  %v2832 = vpack.c.b16 %v2795, %v2794
  %v2833 = vpack.c.b16 %v2797, %v2796
  %v2834 = vpack.c.b16 %v2799, %v2798
  %v2835 = vpack.c.b16 %v2801, %v2800
  %v2836 = vpack.c.b16 %v2803, %v2802
  %v2837 = vpack.c.b16 %v2805, %v2804
  %2870 = vmatprep.subr.bf16.mxu0 0
  %2871 = vmatpush1.bf16.msra.mxu0 %v2813
  %2872 = vmatprep.subr.bf16.mxu0 0
  %2873 = vmatpush1.bf16.msra.mxu0 %v2812
  %2874 = vmatprep.subr.bf16.mxu0 0
  %2875 = vmatpush1.bf16.msra.mxu0 %v2811
  %2876 = vmatprep.subr.bf16.mxu0 0
  %2877 = vmatpush1.bf16.msra.mxu0 %v2810
  %2878 = vmatprep.subr.bf16.mxu0 0
  %2879 = vmatpush1.bf16.msra.mxu0 %v2809
  %2880 = vmatprep.subr.bf16.mxu0 0
  %2881 = vmatpush1.bf16.msra.mxu0 %v2808
  %2882 = vmatprep.subr.bf16.mxu0 0
  %2883 = vmatpush1.bf16.msra.mxu0 %v2807
  %2884 = vmatprep.subr.bf16.mxu0 0
  %2885 = vmatpush1.bf16.msra.mxu0 %v2806
  %2886 = vmatprep.subr.bf16.mxu0 0
  %2887 = vmatpush2.bf16.msra.mxu0 %v2821
  %2888 = vmatprep.subr.bf16.mxu0 0
  %2889 = vmatpush2.bf16.msra.mxu0 %v2820
  %2890 = vmatprep.subr.bf16.mxu0 0
  %2891 = vmatpush2.bf16.msra.mxu0 %v2819
  %2892 = vmatprep.subr.bf16.mxu0 0
  %2893 = vmatpush2.bf16.msra.mxu0 %v2818
  %2894 = vmatprep.subr.bf16.mxu0 0
  %2895 = vmatpush2.bf16.msra.mxu0 %v2817
  %2896 = vmatprep.subr.bf16.mxu0 0
  %2897 = vmatpush2.bf16.msra.mxu0 %v2816
  %2898 = vmatprep.subr.bf16.mxu0 0
  %2899 = vmatpush2.bf16.msra.mxu0 %v2815
  %2900 = vmatprep.subr.bf16.mxu0 0
  %2901 = vmatpush2.bf16.msra.mxu0 %v2814
  %2902 = vmatprep.mubr.bf16.mxu0 %v2611
  %2903 = vmatmul.mubr.bf16.gmra.mxu0 %v2610
  %v2904 = vpop.f32.mrf.mxu0
  %v2905 = vadd.f32 0.0, %v2904
  %v2906 = vpop.f32.mrf.mxu0
  %v2907 = vpop.f32.mrf.mxu0
  %v2908 = vpop.f32.mrf.mxu0
  %2909 = vdwg.mxu0
  %2910 = vmatprep.subr.bf16.mxu0 0
  %2911 = vmatpush1.bf16.msra.mxu0 %v2829
  %2912 = vmatprep.subr.bf16.mxu0 0
  %2913 = vmatpush1.bf16.msra.mxu0 %v2828
  %2914 = vmatprep.subr.bf16.mxu0 0
  %2915 = vmatpush1.bf16.msra.mxu0 %v2827
  %2916 = vmatprep.subr.bf16.mxu0 0
  %2917 = vmatpush1.bf16.msra.mxu0 %v2826
  %2918 = vmatprep.subr.bf16.mxu0 0
  %2919 = vmatpush1.bf16.msra.mxu0 %v2825
  %2920 = vmatprep.subr.bf16.mxu0 0
  %2921 = vmatpush1.bf16.msra.mxu0 %v2824
  %2922 = vmatprep.subr.bf16.mxu0 0
  %2923 = vmatpush1.bf16.msra.mxu0 %v2823
  %2924 = vmatprep.subr.bf16.mxu0 0
  %2925 = vmatpush1.bf16.msra.mxu0 %v2822
  %2926 = vmatprep.subr.bf16.mxu0 0
  %2927 = vmatpush2.bf16.msra.mxu0 %v2837
  %2928 = vmatprep.subr.bf16.mxu0 0
  %2929 = vmatpush2.bf16.msra.mxu0 %v2836
  %2930 = vmatprep.subr.bf16.mxu0 0
  %2931 = vmatpush2.bf16.msra.mxu0 %v2835
  %2932 = vmatprep.subr.bf16.mxu0 0
  %2933 = vmatpush2.bf16.msra.mxu0 %v2834
  %2934 = vmatprep.subr.bf16.mxu0 0
  %2935 = vmatpush2.bf16.msra.mxu0 %v2833
  %2936 = vmatprep.subr.bf16.mxu0 0
  %2937 = vmatpush2.bf16.msra.mxu0 %v2832
  %2938 = vmatprep.subr.bf16.mxu0 0
  %2939 = vmatpush2.bf16.msra.mxu0 %v2831
  %2940 = vmatprep.subr.bf16.mxu0 0
  %2941 = vmatpush2.bf16.msra.mxu0 %v2830
  %2942 = vmatprep.mubr.bf16.mxu0 %v2613
  %2943 = vmatmul.mubr.bf16.gmra.mxu0 %v2612
  %v2944 = vpop.f32.mrf.mxu0
  %v2945 = vadd.f32 %v2905, %v2944
  %v2946 = vpop.f32.mrf.mxu0
  %v2947 = vpop.f32.mrf.mxu0
  %v2948 = vpop.f32.mrf.mxu0
  %2949 = vdwg.mxu0
  %v2950 = vadd.f32 %v2591, %v2945
  %v2951 = vld [vmem:[%s0 + $0x80] sm:$0xff]
  %v2952 = vld [vmem:[%s0 + $0x88] sm:$0xff]
  %v2953 = vunpack.c.l.bf16 %v2951
  %v2954 = vunpack.c.h.bf16 %v2951
  %v2955 = vunpack.c.l.bf16 %v2952
  %v2956 = vunpack.c.h.bf16 %v2952
  %v2957 = vmul.f32 %v2953, %v47
  %v2958 = vmul.f32 %v2954, %v51
  %v2959 = vmul.f32 %v2955, %v55
  %v2960 = vmul.f32 %v2956, %v59
  %v2961 = vadd.f32 %v2957, %v72
  %v2962 = vadd.f32 %v2958, %v76
  %v2963 = vadd.f32 %v2959, %v80
  %v2964 = vadd.f32 %v2960, %v84
  %v2965 = vmax.f32 %v2961, 0.0
  %v2966 = vmax.f32 %v2962, 0.0
  %v2967 = vmax.f32 %v2963, 0.0
  %v2968 = vmax.f32 %v2964, 0.0
  %v2969 = vpack.c.bf16 %v2965, %v2965
  %v2970 = vpack.c.bf16 %v2966, %v2966
  %v2971 = vpack.c.bf16 %v2967, %v2967
  %v2972 = vpack.c.bf16 %v2968, %v2968
  %v2973 = vld [vmem:[%s3 + $0x800] sm:$0xf]
  %v2974 = vld [vmem:[%s3 + $0x804] sm:$0xf]
  %v2975 = vld [vmem:[%s3 + $0x808] sm:$0xf]
  %v2976 = vld [vmem:[%s3 + $0x80c] sm:$0xf]
  %v2977 = vld [vmem:[%s3 + $0x810] sm:$0xf]
  %v2978 = vld [vmem:[%s3 + $0x814] sm:$0xf]
  %v2979 = vld [vmem:[%s3 + $0x818] sm:$0xf]
  %v2980 = vld [vmem:[%s3 + $0x81c] sm:$0xf]
  %v2981 = vld [vmem:[%s3 + $0x820] sm:$0xf]
  %v2982 = vld [vmem:[%s3 + $0x824] sm:$0xf]
  %v2983 = vld [vmem:[%s3 + $0x828] sm:$0xf]
  %v2984 = vld [vmem:[%s3 + $0x82c] sm:$0xf]
  %v2985 = vld [vmem:[%s3 + $0x830] sm:$0xf]
  %v2986 = vld [vmem:[%s3 + $0x834] sm:$0xf]
  %v2987 = vld [vmem:[%s3 + $0x838] sm:$0xf]
  %v2988 = vld [vmem:[%s3 + $0x83c] sm:$0xf]
  %v2989 = vld [vmem:[%s3 + $0x840] sm:$0xf]
  %v2990 = vld [vmem:[%s3 + $0x844] sm:$0xf]
  %v2991 = vld [vmem:[%s3 + $0x848] sm:$0xf]
  %v2992 = vld [vmem:[%s3 + $0x84c] sm:$0xf]
  %v2993 = vld [vmem:[%s3 + $0x850] sm:$0xf]
  %v2994 = vld [vmem:[%s3 + $0x854] sm:$0xf]
  %v2995 = vld [vmem:[%s3 + $0x858] sm:$0xf]
  %v2996 = vld [vmem:[%s3 + $0x85c] sm:$0xf]
  %v2997 = vld [vmem:[%s3 + $0x860] sm:$0xf]
  %v2998 = vld [vmem:[%s3 + $0x864] sm:$0xf]
  %v2999 = vld [vmem:[%s3 + $0x868] sm:$0xf]
  %v3000 = vld [vmem:[%s3 + $0x86c] sm:$0xf]
  %v3001 = vld [vmem:[%s3 + $0x870] sm:$0xf]
  %v3002 = vld [vmem:[%s3 + $0x874] sm:$0xf]
  %v3003 = vld [vmem:[%s3 + $0x878] sm:$0xf]
  %v3004 = vld [vmem:[%s3 + $0x87c] sm:$0xf]
  %v3005 = vld [vmem:[%s3 + $0x880] sm:$0xf]
  %v3006 = vld [vmem:[%s3 + $0x884] sm:$0xf]
  %v3007 = vld [vmem:[%s3 + $0x888] sm:$0xf]
  %v3008 = vld [vmem:[%s3 + $0x88c] sm:$0xf]
  %v3009 = vld [vmem:[%s3 + $0x890] sm:$0xf]
  %v3010 = vld [vmem:[%s3 + $0x894] sm:$0xf]
  %v3011 = vld [vmem:[%s3 + $0x898] sm:$0xf]
  %v3012 = vld [vmem:[%s3 + $0x89c] sm:$0xf]
  %v3013 = vld [vmem:[%s3 + $0x8a0] sm:$0xf]
  %v3014 = vld [vmem:[%s3 + $0x8a4] sm:$0xf]
  %v3015 = vld [vmem:[%s3 + $0x8a8] sm:$0xf]
  %v3016 = vld [vmem:[%s3 + $0x8ac] sm:$0xf]
  %v3017 = vld [vmem:[%s3 + $0x8b0] sm:$0xf]
  %v3018 = vld [vmem:[%s3 + $0x8b4] sm:$0xf]
  %v3019 = vld [vmem:[%s3 + $0x8b8] sm:$0xf]
  %v3020 = vld [vmem:[%s3 + $0x8bc] sm:$0xf]
  %v3021 = vld [vmem:[%s3 + $0x8c0] sm:$0xf]
  %v3022 = vld [vmem:[%s3 + $0x8c4] sm:$0xf]
  %v3023 = vld [vmem:[%s3 + $0x8c8] sm:$0xf]
  %v3024 = vld [vmem:[%s3 + $0x8cc] sm:$0xf]
  %v3025 = vld [vmem:[%s3 + $0x8d0] sm:$0xf]
  %v3026 = vld [vmem:[%s3 + $0x8d4] sm:$0xf]
  %v3027 = vld [vmem:[%s3 + $0x8d8] sm:$0xf]
  %v3028 = vld [vmem:[%s3 + $0x8dc] sm:$0xf]
  %v3029 = vld [vmem:[%s3 + $0x8e0] sm:$0xf]
  %v3030 = vld [vmem:[%s3 + $0x8e4] sm:$0xf]
  %v3031 = vld [vmem:[%s3 + $0x8e8] sm:$0xf]
  %v3032 = vld [vmem:[%s3 + $0x8ec] sm:$0xf]
  %v3033 = vld [vmem:[%s3 + $0x8f0] sm:$0xf]
  %v3034 = vld [vmem:[%s3 + $0x8f4] sm:$0xf]
  %v3035 = vld [vmem:[%s3 + $0x8f8] sm:$0xf]
  %v3036 = vld [vmem:[%s3 + $0x8fc] sm:$0xf]
  %v3101 = vunpack.c.l.b16 %v2973
  %v3102 = vunpack.c.l.b16 %v2974
  %v3103 = vunpack.c.l.b16 %v2975
  %v3104 = vunpack.c.l.b16 %v2976
  %v3105 = vunpack.c.l.b16 %v2977
  %v3106 = vunpack.c.l.b16 %v2978
  %v3107 = vunpack.c.l.b16 %v2979
  %v3108 = vunpack.c.l.b16 %v2980
  %v3109 = vunpack.c.l.b16 %v2981
  %v3110 = vunpack.c.l.b16 %v2982
  %v3111 = vunpack.c.l.b16 %v2983
  %v3112 = vunpack.c.l.b16 %v2984
  %v3113 = vunpack.c.l.b16 %v2985
  %v3114 = vunpack.c.l.b16 %v2986
  %v3115 = vunpack.c.l.b16 %v2987
  %v3116 = vunpack.c.l.b16 %v2988
  %v3117 = vunpack.c.l.b16 %v2989
  %v3118 = vunpack.c.l.b16 %v2990
  %v3119 = vunpack.c.l.b16 %v2991
  %v3120 = vunpack.c.l.b16 %v2992
  %v3121 = vunpack.c.l.b16 %v2993
  %v3122 = vunpack.c.l.b16 %v2994
  %v3123 = vunpack.c.l.b16 %v2995
  %v3124 = vunpack.c.l.b16 %v2996
  %v3125 = vunpack.c.l.b16 %v2997
  %v3126 = vunpack.c.l.b16 %v2998
  %v3127 = vunpack.c.l.b16 %v2999
  %v3128 = vunpack.c.l.b16 %v3000
  %v3129 = vunpack.c.l.b16 %v3001
  %v3130 = vunpack.c.l.b16 %v3002
  %v3131 = vunpack.c.l.b16 %v3003
  %v3132 = vunpack.c.l.b16 %v3004
  %v3133 = vunpack.c.l.b16 %v3005
  %v3134 = vunpack.c.l.b16 %v3006
  %v3135 = vunpack.c.l.b16 %v3007
  %v3136 = vunpack.c.l.b16 %v3008
  %v3137 = vunpack.c.l.b16 %v3009
  %v3138 = vunpack.c.l.b16 %v3010
  %v3139 = vunpack.c.l.b16 %v3011
  %v3140 = vunpack.c.l.b16 %v3012
  %v3141 = vunpack.c.l.b16 %v3013
  %v3142 = vunpack.c.l.b16 %v3014
  %v3143 = vunpack.c.l.b16 %v3015
  %v3144 = vunpack.c.l.b16 %v3016
  %v3145 = vunpack.c.l.b16 %v3017
  %v3146 = vunpack.c.l.b16 %v3018
  %v3147 = vunpack.c.l.b16 %v3019
  %v3148 = vunpack.c.l.b16 %v3020
  %v3149 = vunpack.c.l.b16 %v3021
  %v3150 = vunpack.c.l.b16 %v3022
  %v3151 = vunpack.c.l.b16 %v3023
  %v3152 = vunpack.c.l.b16 %v3024
  %v3153 = vunpack.c.l.b16 %v3025
  %v3154 = vunpack.c.l.b16 %v3026
  %v3155 = vunpack.c.l.b16 %v3027
  %v3156 = vunpack.c.l.b16 %v3028
  %v3157 = vunpack.c.l.b16 %v3029
  %v3158 = vunpack.c.l.b16 %v3030
  %v3159 = vunpack.c.l.b16 %v3031
  %v3160 = vunpack.c.l.b16 %v3032
  %v3161 = vunpack.c.l.b16 %v3033
  %v3162 = vunpack.c.l.b16 %v3034
  %v3163 = vunpack.c.l.b16 %v3035
  %v3164 = vunpack.c.l.b16 %v3036
  %v3165 = vpack.c.b16 %v3102, %v3101
  %v3166 = vpack.c.b16 %v3104, %v3103
  %v3167 = vpack.c.b16 %v3106, %v3105
  %v3168 = vpack.c.b16 %v3108, %v3107
  %v3169 = vpack.c.b16 %v3110, %v3109
  %v3170 = vpack.c.b16 %v3112, %v3111
  %v3171 = vpack.c.b16 %v3114, %v3113
  %v3172 = vpack.c.b16 %v3116, %v3115
  %v3173 = vpack.c.b16 %v3118, %v3117
  %v3174 = vpack.c.b16 %v3120, %v3119
  %v3175 = vpack.c.b16 %v3122, %v3121
  %v3176 = vpack.c.b16 %v3124, %v3123
  %v3177 = vpack.c.b16 %v3126, %v3125
  %v3178 = vpack.c.b16 %v3128, %v3127
  %v3179 = vpack.c.b16 %v3130, %v3129
  %v3180 = vpack.c.b16 %v3132, %v3131
  %v3181 = vpack.c.b16 %v3134, %v3133
  %v3182 = vpack.c.b16 %v3136, %v3135
  %v3183 = vpack.c.b16 %v3138, %v3137
  %v3184 = vpack.c.b16 %v3140, %v3139
  %v3185 = vpack.c.b16 %v3142, %v3141
  %v3186 = vpack.c.b16 %v3144, %v3143
  %v3187 = vpack.c.b16 %v3146, %v3145
  %v3188 = vpack.c.b16 %v3148, %v3147
  %v3189 = vpack.c.b16 %v3150, %v3149
  %v3190 = vpack.c.b16 %v3152, %v3151
  %v3191 = vpack.c.b16 %v3154, %v3153
  %v3192 = vpack.c.b16 %v3156, %v3155
  %v3193 = vpack.c.b16 %v3158, %v3157
  %v3194 = vpack.c.b16 %v3160, %v3159
  %v3195 = vpack.c.b16 %v3162, %v3161
  %v3196 = vpack.c.b16 %v3164, %v3163
  %3229 = vmatprep.subr.bf16.mxu0 0
  %3230 = vmatpush1.bf16.msra.mxu0 %v3172
  %3231 = vmatprep.subr.bf16.mxu0 0
  %3232 = vmatpush1.bf16.msra.mxu0 %v3171
  %3233 = vmatprep.subr.bf16.mxu0 0
  %3234 = vmatpush1.bf16.msra.mxu0 %v3170
  %3235 = vmatprep.subr.bf16.mxu0 0
  %3236 = vmatpush1.bf16.msra.mxu0 %v3169
  %3237 = vmatprep.subr.bf16.mxu0 0
  %3238 = vmatpush1.bf16.msra.mxu0 %v3168
  %3239 = vmatprep.subr.bf16.mxu0 0
  %3240 = vmatpush1.bf16.msra.mxu0 %v3167
  %3241 = vmatprep.subr.bf16.mxu0 0
  %3242 = vmatpush1.bf16.msra.mxu0 %v3166
  %3243 = vmatprep.subr.bf16.mxu0 0
  %3244 = vmatpush1.bf16.msra.mxu0 %v3165
  %3245 = vmatprep.subr.bf16.mxu0 0
  %3246 = vmatpush2.bf16.msra.mxu0 %v3180
  %3247 = vmatprep.subr.bf16.mxu0 0
  %3248 = vmatpush2.bf16.msra.mxu0 %v3179
  %3249 = vmatprep.subr.bf16.mxu0 0
  %3250 = vmatpush2.bf16.msra.mxu0 %v3178
  %3251 = vmatprep.subr.bf16.mxu0 0
  %3252 = vmatpush2.bf16.msra.mxu0 %v3177
  %3253 = vmatprep.subr.bf16.mxu0 0
  %3254 = vmatpush2.bf16.msra.mxu0 %v3176
  %3255 = vmatprep.subr.bf16.mxu0 0
  %3256 = vmatpush2.bf16.msra.mxu0 %v3175
  %3257 = vmatprep.subr.bf16.mxu0 0
  %3258 = vmatpush2.bf16.msra.mxu0 %v3174
  %3259 = vmatprep.subr.bf16.mxu0 0
  %3260 = vmatpush2.bf16.msra.mxu0 %v3173
  %3261 = vmatprep.mubr.bf16.mxu0 %v2970
  %3262 = vmatmul.mubr.bf16.gmra.mxu0 %v2969
  %v3263 = vpop.f32.mrf.mxu0
  %v3264 = vadd.f32 0.0, %v3263
  %v3265 = vpop.f32.mrf.mxu0
  %v3266 = vpop.f32.mrf.mxu0
  %v3267 = vpop.f32.mrf.mxu0
  %3268 = vdwg.mxu0
  %3269 = vmatprep.subr.bf16.mxu0 0
  %3270 = vmatpush1.bf16.msra.mxu0 %v3188
  %3271 = vmatprep.subr.bf16.mxu0 0
  %3272 = vmatpush1.bf16.msra.mxu0 %v3187
  %3273 = vmatprep.subr.bf16.mxu0 0
  %3274 = vmatpush1.bf16.msra.mxu0 %v3186
  %3275 = vmatprep.subr.bf16.mxu0 0
  %3276 = vmatpush1.bf16.msra.mxu0 %v3185
  %3277 = vmatprep.subr.bf16.mxu0 0
  %3278 = vmatpush1.bf16.msra.mxu0 %v3184
  %3279 = vmatprep.subr.bf16.mxu0 0
  %3280 = vmatpush1.bf16.msra.mxu0 %v3183
  %3281 = vmatprep.subr.bf16.mxu0 0
  %3282 = vmatpush1.bf16.msra.mxu0 %v3182
  %3283 = vmatprep.subr.bf16.mxu0 0
  %3284 = vmatpush1.bf16.msra.mxu0 %v3181
  %3285 = vmatprep.subr.bf16.mxu0 0
  %3286 = vmatpush2.bf16.msra.mxu0 %v3196
  %3287 = vmatprep.subr.bf16.mxu0 0
  %3288 = vmatpush2.bf16.msra.mxu0 %v3195
  %3289 = vmatprep.subr.bf16.mxu0 0
  %3290 = vmatpush2.bf16.msra.mxu0 %v3194
  %3291 = vmatprep.subr.bf16.mxu0 0
  %3292 = vmatpush2.bf16.msra.mxu0 %v3193
  %3293 = vmatprep.subr.bf16.mxu0 0
  %3294 = vmatpush2.bf16.msra.mxu0 %v3192
  %3295 = vmatprep.subr.bf16.mxu0 0
  %3296 = vmatpush2.bf16.msra.mxu0 %v3191
  %3297 = vmatprep.subr.bf16.mxu0 0
  %3298 = vmatpush2.bf16.msra.mxu0 %v3190
  %3299 = vmatprep.subr.bf16.mxu0 0
  %3300 = vmatpush2.bf16.msra.mxu0 %v3189
  %3301 = vmatprep.mubr.bf16.mxu0 %v2972
  %3302 = vmatmul.mubr.bf16.gmra.mxu0 %v2971
  %v3303 = vpop.f32.mrf.mxu0
  %v3304 = vadd.f32 %v3264, %v3303
  %v3305 = vpop.f32.mrf.mxu0
  %v3306 = vpop.f32.mrf.mxu0
  %v3307 = vpop.f32.mrf.mxu0
  %3308 = vdwg.mxu0
  %v3309 = vadd.f32 %v2950, %v3304
  %v3310 = vld [vmem:[%s0 + $0x90] sm:$0xff]
  %v3311 = vld [vmem:[%s0 + $0x98] sm:$0xff]
  %v3312 = vunpack.c.l.bf16 %v3310
  %v3313 = vunpack.c.h.bf16 %v3310
  %v3314 = vunpack.c.l.bf16 %v3311
  %v3315 = vunpack.c.h.bf16 %v3311
  %v3316 = vmul.f32 %v3312, %v47
  %v3317 = vmul.f32 %v3313, %v51
  %v3318 = vmul.f32 %v3314, %v55
  %v3319 = vmul.f32 %v3315, %v59
  %v3320 = vadd.f32 %v3316, %v72
  %v3321 = vadd.f32 %v3317, %v76
  %v3322 = vadd.f32 %v3318, %v80
  %v3323 = vadd.f32 %v3319, %v84
  %v3324 = vmax.f32 %v3320, 0.0
  %v3325 = vmax.f32 %v3321, 0.0
  %v3326 = vmax.f32 %v3322, 0.0
  %v3327 = vmax.f32 %v3323, 0.0
  %v3328 = vpack.c.bf16 %v3324, %v3324
  %v3329 = vpack.c.bf16 %v3325, %v3325
  %v3330 = vpack.c.bf16 %v3326, %v3326
  %v3331 = vpack.c.bf16 %v3327, %v3327
  %v3332 = vld [vmem:[%s3 + $0x900] sm:$0xf]
  %v3333 = vld [vmem:[%s3 + $0x904] sm:$0xf]
  %v3334 = vld [vmem:[%s3 + $0x908] sm:$0xf]
  %v3335 = vld [vmem:[%s3 + $0x90c] sm:$0xf]
  %v3336 = vld [vmem:[%s3 + $0x910] sm:$0xf]
  %v3337 = vld [vmem:[%s3 + $0x914] sm:$0xf]
  %v3338 = vld [vmem:[%s3 + $0x918] sm:$0xf]
  %v3339 = vld [vmem:[%s3 + $0x91c] sm:$0xf]
  %v3340 = vld [vmem:[%s3 + $0x920] sm:$0xf]
  %v3341 = vld [vmem:[%s3 + $0x924] sm:$0xf]
  %v3342 = vld [vmem:[%s3 + $0x928] sm:$0xf]
  %v3343 = vld [vmem:[%s3 + $0x92c] sm:$0xf]
  %v3344 = vld [vmem:[%s3 + $0x930] sm:$0xf]
  %v3345 = vld [vmem:[%s3 + $0x934] sm:$0xf]
  %v3346 = vld [vmem:[%s3 + $0x938] sm:$0xf]
  %v3347 = vld [vmem:[%s3 + $0x93c] sm:$0xf]
  %v3348 = vld [vmem:[%s3 + $0x940] sm:$0xf]
  %v3349 = vld [vmem:[%s3 + $0x944] sm:$0xf]
  %v3350 = vld [vmem:[%s3 + $0x948] sm:$0xf]
  %v3351 = vld [vmem:[%s3 + $0x94c] sm:$0xf]
  %v3352 = vld [vmem:[%s3 + $0x950] sm:$0xf]
  %v3353 = vld [vmem:[%s3 + $0x954] sm:$0xf]
  %v3354 = vld [vmem:[%s3 + $0x958] sm:$0xf]
  %v3355 = vld [vmem:[%s3 + $0x95c] sm:$0xf]
  %v3356 = vld [vmem:[%s3 + $0x960] sm:$0xf]
  %v3357 = vld [vmem:[%s3 + $0x964] sm:$0xf]
  %v3358 = vld [vmem:[%s3 + $0x968] sm:$0xf]
  %v3359 = vld [vmem:[%s3 + $0x96c] sm:$0xf]
  %v3360 = vld [vmem:[%s3 + $0x970] sm:$0xf]
  %v3361 = vld [vmem:[%s3 + $0x974] sm:$0xf]
  %v3362 = vld [vmem:[%s3 + $0x978] sm:$0xf]
  %v3363 = vld [vmem:[%s3 + $0x97c] sm:$0xf]
  %v3364 = vld [vmem:[%s3 + $0x980] sm:$0xf]
  %v3365 = vld [vmem:[%s3 + $0x984] sm:$0xf]
  %v3366 = vld [vmem:[%s3 + $0x988] sm:$0xf]
  %v3367 = vld [vmem:[%s3 + $0x98c] sm:$0xf]
  %v3368 = vld [vmem:[%s3 + $0x990] sm:$0xf]
  %v3369 = vld [vmem:[%s3 + $0x994] sm:$0xf]
  %v3370 = vld [vmem:[%s3 + $0x998] sm:$0xf]
  %v3371 = vld [vmem:[%s3 + $0x99c] sm:$0xf]
  %v3372 = vld [vmem:[%s3 + $0x9a0] sm:$0xf]
  %v3373 = vld [vmem:[%s3 + $0x9a4] sm:$0xf]
  %v3374 = vld [vmem:[%s3 + $0x9a8] sm:$0xf]
  %v3375 = vld [vmem:[%s3 + $0x9ac] sm:$0xf]
  %v3376 = vld [vmem:[%s3 + $0x9b0] sm:$0xf]
  %v3377 = vld [vmem:[%s3 + $0x9b4] sm:$0xf]
  %v3378 = vld [vmem:[%s3 + $0x9b8] sm:$0xf]
  %v3379 = vld [vmem:[%s3 + $0x9bc] sm:$0xf]
  %v3380 = vld [vmem:[%s3 + $0x9c0] sm:$0xf]
  %v3381 = vld [vmem:[%s3 + $0x9c4] sm:$0xf]
  %v3382 = vld [vmem:[%s3 + $0x9c8] sm:$0xf]
  %v3383 = vld [vmem:[%s3 + $0x9cc] sm:$0xf]
  %v3384 = vld [vmem:[%s3 + $0x9d0] sm:$0xf]
  %v3385 = vld [vmem:[%s3 + $0x9d4] sm:$0xf]
  %v3386 = vld [vmem:[%s3 + $0x9d8] sm:$0xf]
  %v3387 = vld [vmem:[%s3 + $0x9dc] sm:$0xf]
  %v3388 = vld [vmem:[%s3 + $0x9e0] sm:$0xf]
  %v3389 = vld [vmem:[%s3 + $0x9e4] sm:$0xf]
  %v3390 = vld [vmem:[%s3 + $0x9e8] sm:$0xf]
  %v3391 = vld [vmem:[%s3 + $0x9ec] sm:$0xf]
  %v3392 = vld [vmem:[%s3 + $0x9f0] sm:$0xf]
  %v3393 = vld [vmem:[%s3 + $0x9f4] sm:$0xf]
  %v3394 = vld [vmem:[%s3 + $0x9f8] sm:$0xf]
  %v3395 = vld [vmem:[%s3 + $0x9fc] sm:$0xf]
  %v3460 = vunpack.c.l.b16 %v3332
  %v3461 = vunpack.c.l.b16 %v3333
  %v3462 = vunpack.c.l.b16 %v3334
  %v3463 = vunpack.c.l.b16 %v3335
  %v3464 = vunpack.c.l.b16 %v3336
  %v3465 = vunpack.c.l.b16 %v3337
  %v3466 = vunpack.c.l.b16 %v3338
  %v3467 = vunpack.c.l.b16 %v3339
  %v3468 = vunpack.c.l.b16 %v3340
  %v3469 = vunpack.c.l.b16 %v3341
  %v3470 = vunpack.c.l.b16 %v3342
  %v3471 = vunpack.c.l.b16 %v3343
  %v3472 = vunpack.c.l.b16 %v3344
  %v3473 = vunpack.c.l.b16 %v3345
  %v3474 = vunpack.c.l.b16 %v3346
  %v3475 = vunpack.c.l.b16 %v3347
  %v3476 = vunpack.c.l.b16 %v3348
  %v3477 = vunpack.c.l.b16 %v3349
  %v3478 = vunpack.c.l.b16 %v3350
  %v3479 = vunpack.c.l.b16 %v3351
  %v3480 = vunpack.c.l.b16 %v3352
  %v3481 = vunpack.c.l.b16 %v3353
  %v3482 = vunpack.c.l.b16 %v3354
  %v3483 = vunpack.c.l.b16 %v3355
  %v3484 = vunpack.c.l.b16 %v3356
  %v3485 = vunpack.c.l.b16 %v3357
  %v3486 = vunpack.c.l.b16 %v3358
  %v3487 = vunpack.c.l.b16 %v3359
  %v3488 = vunpack.c.l.b16 %v3360
  %v3489 = vunpack.c.l.b16 %v3361
  %v3490 = vunpack.c.l.b16 %v3362
  %v3491 = vunpack.c.l.b16 %v3363
  %v3492 = vunpack.c.l.b16 %v3364
  %v3493 = vunpack.c.l.b16 %v3365
  %v3494 = vunpack.c.l.b16 %v3366
  %v3495 = vunpack.c.l.b16 %v3367
  %v3496 = vunpack.c.l.b16 %v3368
  %v3497 = vunpack.c.l.b16 %v3369
  %v3498 = vunpack.c.l.b16 %v3370
  %v3499 = vunpack.c.l.b16 %v3371
  %v3500 = vunpack.c.l.b16 %v3372
  %v3501 = vunpack.c.l.b16 %v3373
  %v3502 = vunpack.c.l.b16 %v3374
  %v3503 = vunpack.c.l.b16 %v3375
  %v3504 = vunpack.c.l.b16 %v3376
  %v3505 = vunpack.c.l.b16 %v3377
  %v3506 = vunpack.c.l.b16 %v3378
  %v3507 = vunpack.c.l.b16 %v3379
  %v3508 = vunpack.c.l.b16 %v3380
  %v3509 = vunpack.c.l.b16 %v3381
  %v3510 = vunpack.c.l.b16 %v3382
  %v3511 = vunpack.c.l.b16 %v3383
  %v3512 = vunpack.c.l.b16 %v3384
  %v3513 = vunpack.c.l.b16 %v3385
  %v3514 = vunpack.c.l.b16 %v3386
  %v3515 = vunpack.c.l.b16 %v3387
  %v3516 = vunpack.c.l.b16 %v3388
  %v3517 = vunpack.c.l.b16 %v3389
  %v3518 = vunpack.c.l.b16 %v3390
  %v3519 = vunpack.c.l.b16 %v3391
  %v3520 = vunpack.c.l.b16 %v3392
  %v3521 = vunpack.c.l.b16 %v3393
  %v3522 = vunpack.c.l.b16 %v3394
  %v3523 = vunpack.c.l.b16 %v3395
  %v3524 = vpack.c.b16 %v3461, %v3460
  %v3525 = vpack.c.b16 %v3463, %v3462
  %v3526 = vpack.c.b16 %v3465, %v3464
  %v3527 = vpack.c.b16 %v3467, %v3466
  %v3528 = vpack.c.b16 %v3469, %v3468
  %v3529 = vpack.c.b16 %v3471, %v3470
  %v3530 = vpack.c.b16 %v3473, %v3472
  %v3531 = vpack.c.b16 %v3475, %v3474
  %v3532 = vpack.c.b16 %v3477, %v3476
  %v3533 = vpack.c.b16 %v3479, %v3478
  %v3534 = vpack.c.b16 %v3481, %v3480
  %v3535 = vpack.c.b16 %v3483, %v3482
  %v3536 = vpack.c.b16 %v3485, %v3484
  %v3537 = vpack.c.b16 %v3487, %v3486
  %v3538 = vpack.c.b16 %v3489, %v3488
  %v3539 = vpack.c.b16 %v3491, %v3490
  %v3540 = vpack.c.b16 %v3493, %v3492
  %v3541 = vpack.c.b16 %v3495, %v3494
  %v3542 = vpack.c.b16 %v3497, %v3496
  %v3543 = vpack.c.b16 %v3499, %v3498
  %v3544 = vpack.c.b16 %v3501, %v3500
  %v3545 = vpack.c.b16 %v3503, %v3502
  %v3546 = vpack.c.b16 %v3505, %v3504
  %v3547 = vpack.c.b16 %v3507, %v3506
  %v3548 = vpack.c.b16 %v3509, %v3508
  %v3549 = vpack.c.b16 %v3511, %v3510
  %v3550 = vpack.c.b16 %v3513, %v3512
  %v3551 = vpack.c.b16 %v3515, %v3514
  %v3552 = vpack.c.b16 %v3517, %v3516
  %v3553 = vpack.c.b16 %v3519, %v3518
  %v3554 = vpack.c.b16 %v3521, %v3520
  %v3555 = vpack.c.b16 %v3523, %v3522
  %3588 = vmatprep.subr.bf16.mxu0 0
  %3589 = vmatpush1.bf16.msra.mxu0 %v3531
  %3590 = vmatprep.subr.bf16.mxu0 0
  %3591 = vmatpush1.bf16.msra.mxu0 %v3530
  %3592 = vmatprep.subr.bf16.mxu0 0
  %3593 = vmatpush1.bf16.msra.mxu0 %v3529
  %3594 = vmatprep.subr.bf16.mxu0 0
  %3595 = vmatpush1.bf16.msra.mxu0 %v3528
  %3596 = vmatprep.subr.bf16.mxu0 0
  %3597 = vmatpush1.bf16.msra.mxu0 %v3527
  %3598 = vmatprep.subr.bf16.mxu0 0
  %3599 = vmatpush1.bf16.msra.mxu0 %v3526
  %3600 = vmatprep.subr.bf16.mxu0 0
  %3601 = vmatpush1.bf16.msra.mxu0 %v3525
  %3602 = vmatprep.subr.bf16.mxu0 0
  %3603 = vmatpush1.bf16.msra.mxu0 %v3524
  %3604 = vmatprep.subr.bf16.mxu0 0
  %3605 = vmatpush2.bf16.msra.mxu0 %v3539
  %3606 = vmatprep.subr.bf16.mxu0 0
  %3607 = vmatpush2.bf16.msra.mxu0 %v3538
  %3608 = vmatprep.subr.bf16.mxu0 0
  %3609 = vmatpush2.bf16.msra.mxu0 %v3537
  %3610 = vmatprep.subr.bf16.mxu0 0
  %3611 = vmatpush2.bf16.msra.mxu0 %v3536
  %3612 = vmatprep.subr.bf16.mxu0 0
  %3613 = vmatpush2.bf16.msra.mxu0 %v3535
  %3614 = vmatprep.subr.bf16.mxu0 0
  %3615 = vmatpush2.bf16.msra.mxu0 %v3534
  %3616 = vmatprep.subr.bf16.mxu0 0
  %3617 = vmatpush2.bf16.msra.mxu0 %v3533
  %3618 = vmatprep.subr.bf16.mxu0 0
  %3619 = vmatpush2.bf16.msra.mxu0 %v3532
  %3620 = vmatprep.mubr.bf16.mxu0 %v3329
  %3621 = vmatmul.mubr.bf16.gmra.mxu0 %v3328
  %v3622 = vpop.f32.mrf.mxu0
  %v3623 = vadd.f32 0.0, %v3622
  %v3624 = vpop.f32.mrf.mxu0
  %v3625 = vpop.f32.mrf.mxu0
  %v3626 = vpop.f32.mrf.mxu0
  %3627 = vdwg.mxu0
  %3628 = vmatprep.subr.bf16.mxu0 0
  %3629 = vmatpush1.bf16.msra.mxu0 %v3547
  %3630 = vmatprep.subr.bf16.mxu0 0
  %3631 = vmatpush1.bf16.msra.mxu0 %v3546
  %3632 = vmatprep.subr.bf16.mxu0 0
  %3633 = vmatpush1.bf16.msra.mxu0 %v3545
  %3634 = vmatprep.subr.bf16.mxu0 0
  %3635 = vmatpush1.bf16.msra.mxu0 %v3544
  %3636 = vmatprep.subr.bf16.mxu0 0
  %3637 = vmatpush1.bf16.msra.mxu0 %v3543
  %3638 = vmatprep.subr.bf16.mxu0 0
  %3639 = vmatpush1.bf16.msra.mxu0 %v3542
  %3640 = vmatprep.subr.bf16.mxu0 0
  %3641 = vmatpush1.bf16.msra.mxu0 %v3541
  %3642 = vmatprep.subr.bf16.mxu0 0
  %3643 = vmatpush1.bf16.msra.mxu0 %v3540
  %3644 = vmatprep.subr.bf16.mxu0 0
  %3645 = vmatpush2.bf16.msra.mxu0 %v3555
  %3646 = vmatprep.subr.bf16.mxu0 0
  %3647 = vmatpush2.bf16.msra.mxu0 %v3554
  %3648 = vmatprep.subr.bf16.mxu0 0
  %3649 = vmatpush2.bf16.msra.mxu0 %v3553
  %3650 = vmatprep.subr.bf16.mxu0 0
  %3651 = vmatpush2.bf16.msra.mxu0 %v3552
  %3652 = vmatprep.subr.bf16.mxu0 0
  %3653 = vmatpush2.bf16.msra.mxu0 %v3551
  %3654 = vmatprep.subr.bf16.mxu0 0
  %3655 = vmatpush2.bf16.msra.mxu0 %v3550
  %3656 = vmatprep.subr.bf16.mxu0 0
  %3657 = vmatpush2.bf16.msra.mxu0 %v3549
  %3658 = vmatprep.subr.bf16.mxu0 0
  %3659 = vmatpush2.bf16.msra.mxu0 %v3548
  %3660 = vmatprep.mubr.bf16.mxu0 %v3331
  %3661 = vmatmul.mubr.bf16.gmra.mxu0 %v3330
  %v3662 = vpop.f32.mrf.mxu0
  %v3663 = vadd.f32 %v3623, %v3662
  %v3664 = vpop.f32.mrf.mxu0
  %v3665 = vpop.f32.mrf.mxu0
  %v3666 = vpop.f32.mrf.mxu0
  %3667 = vdwg.mxu0
  %v3668 = vadd.f32 %v3309, %v3663
  %v3669 = vld [vmem:[%s0 + $0xa0] sm:$0xff]
  %v3670 = vld [vmem:[%s0 + $0xa8] sm:$0xff]
  %v3671 = vunpack.c.l.bf16 %v3669
  %v3672 = vunpack.c.h.bf16 %v3669
  %v3673 = vunpack.c.l.bf16 %v3670
  %v3674 = vunpack.c.h.bf16 %v3670
  %v3675 = vmul.f32 %v3671, %v47
  %v3676 = vmul.f32 %v3672, %v51
  %v3677 = vmul.f32 %v3673, %v55
  %v3678 = vmul.f32 %v3674, %v59
  %v3679 = vadd.f32 %v3675, %v72
  %v3680 = vadd.f32 %v3676, %v76
  %v3681 = vadd.f32 %v3677, %v80
  %v3682 = vadd.f32 %v3678, %v84
  %v3683 = vmax.f32 %v3679, 0.0
  %v3684 = vmax.f32 %v3680, 0.0
  %v3685 = vmax.f32 %v3681, 0.0
  %v3686 = vmax.f32 %v3682, 0.0
  %v3687 = vpack.c.bf16 %v3683, %v3683
  %v3688 = vpack.c.bf16 %v3684, %v3684
  %v3689 = vpack.c.bf16 %v3685, %v3685
  %v3690 = vpack.c.bf16 %v3686, %v3686
  %v3691 = vld [vmem:[%s3 + $0xa00] sm:$0xf]
  %v3692 = vld [vmem:[%s3 + $0xa04] sm:$0xf]
  %v3693 = vld [vmem:[%s3 + $0xa08] sm:$0xf]
  %v3694 = vld [vmem:[%s3 + $0xa0c] sm:$0xf]
  %v3695 = vld [vmem:[%s3 + $0xa10] sm:$0xf]
  %v3696 = vld [vmem:[%s3 + $0xa14] sm:$0xf]
  %v3697 = vld [vmem:[%s3 + $0xa18] sm:$0xf]
  %v3698 = vld [vmem:[%s3 + $0xa1c] sm:$0xf]
  %v3699 = vld [vmem:[%s3 + $0xa20] sm:$0xf]
  %v3700 = vld [vmem:[%s3 + $0xa24] sm:$0xf]
  %v3701 = vld [vmem:[%s3 + $0xa28] sm:$0xf]
  %v3702 = vld [vmem:[%s3 + $0xa2c] sm:$0xf]
  %v3703 = vld [vmem:[%s3 + $0xa30] sm:$0xf]
  %v3704 = vld [vmem:[%s3 + $0xa34] sm:$0xf]
  %v3705 = vld [vmem:[%s3 + $0xa38] sm:$0xf]
  %v3706 = vld [vmem:[%s3 + $0xa3c] sm:$0xf]
  %v3707 = vld [vmem:[%s3 + $0xa40] sm:$0xf]
  %v3708 = vld [vmem:[%s3 + $0xa44] sm:$0xf]
  %v3709 = vld [vmem:[%s3 + $0xa48] sm:$0xf]
  %v3710 = vld [vmem:[%s3 + $0xa4c] sm:$0xf]
  %v3711 = vld [vmem:[%s3 + $0xa50] sm:$0xf]
  %v3712 = vld [vmem:[%s3 + $0xa54] sm:$0xf]
  %v3713 = vld [vmem:[%s3 + $0xa58] sm:$0xf]
  %v3714 = vld [vmem:[%s3 + $0xa5c] sm:$0xf]
  %v3715 = vld [vmem:[%s3 + $0xa60] sm:$0xf]
  %v3716 = vld [vmem:[%s3 + $0xa64] sm:$0xf]
  %v3717 = vld [vmem:[%s3 + $0xa68] sm:$0xf]
  %v3718 = vld [vmem:[%s3 + $0xa6c] sm:$0xf]
  %v3719 = vld [vmem:[%s3 + $0xa70] sm:$0xf]
  %v3720 = vld [vmem:[%s3 + $0xa74] sm:$0xf]
  %v3721 = vld [vmem:[%s3 + $0xa78] sm:$0xf]
  %v3722 = vld [vmem:[%s3 + $0xa7c] sm:$0xf]
  %v3723 = vld [vmem:[%s3 + $0xa80] sm:$0xf]
  %v3724 = vld [vmem:[%s3 + $0xa84] sm:$0xf]
  %v3725 = vld [vmem:[%s3 + $0xa88] sm:$0xf]
  %v3726 = vld [vmem:[%s3 + $0xa8c] sm:$0xf]
  %v3727 = vld [vmem:[%s3 + $0xa90] sm:$0xf]
  %v3728 = vld [vmem:[%s3 + $0xa94] sm:$0xf]
  %v3729 = vld [vmem:[%s3 + $0xa98] sm:$0xf]
  %v3730 = vld [vmem:[%s3 + $0xa9c] sm:$0xf]
  %v3731 = vld [vmem:[%s3 + $0xaa0] sm:$0xf]
  %v3732 = vld [vmem:[%s3 + $0xaa4] sm:$0xf]
  %v3733 = vld [vmem:[%s3 + $0xaa8] sm:$0xf]
  %v3734 = vld [vmem:[%s3 + $0xaac] sm:$0xf]
  %v3735 = vld [vmem:[%s3 + $0xab0] sm:$0xf]
  %v3736 = vld [vmem:[%s3 + $0xab4] sm:$0xf]
  %v3737 = vld [vmem:[%s3 + $0xab8] sm:$0xf]
  %v3738 = vld [vmem:[%s3 + $0xabc] sm:$0xf]
  %v3739 = vld [vmem:[%s3 + $0xac0] sm:$0xf]
  %v3740 = vld [vmem:[%s3 + $0xac4] sm:$0xf]
  %v3741 = vld [vmem:[%s3 + $0xac8] sm:$0xf]
  %v3742 = vld [vmem:[%s3 + $0xacc] sm:$0xf]
  %v3743 = vld [vmem:[%s3 + $0xad0] sm:$0xf]
  %v3744 = vld [vmem:[%s3 + $0xad4] sm:$0xf]
  %v3745 = vld [vmem:[%s3 + $0xad8] sm:$0xf]
  %v3746 = vld [vmem:[%s3 + $0xadc] sm:$0xf]
  %v3747 = vld [vmem:[%s3 + $0xae0] sm:$0xf]
  %v3748 = vld [vmem:[%s3 + $0xae4] sm:$0xf]
  %v3749 = vld [vmem:[%s3 + $0xae8] sm:$0xf]
  %v3750 = vld [vmem:[%s3 + $0xaec] sm:$0xf]
  %v3751 = vld [vmem:[%s3 + $0xaf0] sm:$0xf]
  %v3752 = vld [vmem:[%s3 + $0xaf4] sm:$0xf]
  %v3753 = vld [vmem:[%s3 + $0xaf8] sm:$0xf]
  %v3754 = vld [vmem:[%s3 + $0xafc] sm:$0xf]
  %v3819 = vunpack.c.l.b16 %v3691
  %v3820 = vunpack.c.l.b16 %v3692
  %v3821 = vunpack.c.l.b16 %v3693
  %v3822 = vunpack.c.l.b16 %v3694
  %v3823 = vunpack.c.l.b16 %v3695
  %v3824 = vunpack.c.l.b16 %v3696
  %v3825 = vunpack.c.l.b16 %v3697
  %v3826 = vunpack.c.l.b16 %v3698
  %v3827 = vunpack.c.l.b16 %v3699
  %v3828 = vunpack.c.l.b16 %v3700
  %v3829 = vunpack.c.l.b16 %v3701
  %v3830 = vunpack.c.l.b16 %v3702
  %v3831 = vunpack.c.l.b16 %v3703
  %v3832 = vunpack.c.l.b16 %v3704
  %v3833 = vunpack.c.l.b16 %v3705
  %v3834 = vunpack.c.l.b16 %v3706
  %v3835 = vunpack.c.l.b16 %v3707
  %v3836 = vunpack.c.l.b16 %v3708
  %v3837 = vunpack.c.l.b16 %v3709
  %v3838 = vunpack.c.l.b16 %v3710
  %v3839 = vunpack.c.l.b16 %v3711
  %v3840 = vunpack.c.l.b16 %v3712
  %v3841 = vunpack.c.l.b16 %v3713
  %v3842 = vunpack.c.l.b16 %v3714
  %v3843 = vunpack.c.l.b16 %v3715
  %v3844 = vunpack.c.l.b16 %v3716
  %v3845 = vunpack.c.l.b16 %v3717
  %v3846 = vunpack.c.l.b16 %v3718
  %v3847 = vunpack.c.l.b16 %v3719
  %v3848 = vunpack.c.l.b16 %v3720
  %v3849 = vunpack.c.l.b16 %v3721
  %v3850 = vunpack.c.l.b16 %v3722
  %v3851 = vunpack.c.l.b16 %v3723
  %v3852 = vunpack.c.l.b16 %v3724
  %v3853 = vunpack.c.l.b16 %v3725
  %v3854 = vunpack.c.l.b16 %v3726
  %v3855 = vunpack.c.l.b16 %v3727
  %v3856 = vunpack.c.l.b16 %v3728
  %v3857 = vunpack.c.l.b16 %v3729
  %v3858 = vunpack.c.l.b16 %v3730
  %v3859 = vunpack.c.l.b16 %v3731
  %v3860 = vunpack.c.l.b16 %v3732
  %v3861 = vunpack.c.l.b16 %v3733
  %v3862 = vunpack.c.l.b16 %v3734
  %v3863 = vunpack.c.l.b16 %v3735
  %v3864 = vunpack.c.l.b16 %v3736
  %v3865 = vunpack.c.l.b16 %v3737
  %v3866 = vunpack.c.l.b16 %v3738
  %v3867 = vunpack.c.l.b16 %v3739
  %v3868 = vunpack.c.l.b16 %v3740
  %v3869 = vunpack.c.l.b16 %v3741
  %v3870 = vunpack.c.l.b16 %v3742
  %v3871 = vunpack.c.l.b16 %v3743
  %v3872 = vunpack.c.l.b16 %v3744
  %v3873 = vunpack.c.l.b16 %v3745
  %v3874 = vunpack.c.l.b16 %v3746
  %v3875 = vunpack.c.l.b16 %v3747
  %v3876 = vunpack.c.l.b16 %v3748
  %v3877 = vunpack.c.l.b16 %v3749
  %v3878 = vunpack.c.l.b16 %v3750
  %v3879 = vunpack.c.l.b16 %v3751
  %v3880 = vunpack.c.l.b16 %v3752
  %v3881 = vunpack.c.l.b16 %v3753
  %v3882 = vunpack.c.l.b16 %v3754
  %v3883 = vpack.c.b16 %v3820, %v3819
  %v3884 = vpack.c.b16 %v3822, %v3821
  %v3885 = vpack.c.b16 %v3824, %v3823
  %v3886 = vpack.c.b16 %v3826, %v3825
  %v3887 = vpack.c.b16 %v3828, %v3827
  %v3888 = vpack.c.b16 %v3830, %v3829
  %v3889 = vpack.c.b16 %v3832, %v3831
  %v3890 = vpack.c.b16 %v3834, %v3833
  %v3891 = vpack.c.b16 %v3836, %v3835
  %v3892 = vpack.c.b16 %v3838, %v3837
  %v3893 = vpack.c.b16 %v3840, %v3839
  %v3894 = vpack.c.b16 %v3842, %v3841
  %v3895 = vpack.c.b16 %v3844, %v3843
  %v3896 = vpack.c.b16 %v3846, %v3845
  %v3897 = vpack.c.b16 %v3848, %v3847
  %v3898 = vpack.c.b16 %v3850, %v3849
  %v3899 = vpack.c.b16 %v3852, %v3851
  %v3900 = vpack.c.b16 %v3854, %v3853
  %v3901 = vpack.c.b16 %v3856, %v3855
  %v3902 = vpack.c.b16 %v3858, %v3857
  %v3903 = vpack.c.b16 %v3860, %v3859
  %v3904 = vpack.c.b16 %v3862, %v3861
  %v3905 = vpack.c.b16 %v3864, %v3863
  %v3906 = vpack.c.b16 %v3866, %v3865
  %v3907 = vpack.c.b16 %v3868, %v3867
  %v3908 = vpack.c.b16 %v3870, %v3869
  %v3909 = vpack.c.b16 %v3872, %v3871
  %v3910 = vpack.c.b16 %v3874, %v3873
  %v3911 = vpack.c.b16 %v3876, %v3875
  %v3912 = vpack.c.b16 %v3878, %v3877
  %v3913 = vpack.c.b16 %v3880, %v3879
  %v3914 = vpack.c.b16 %v3882, %v3881
  %3947 = vmatprep.subr.bf16.mxu0 0
  %3948 = vmatpush1.bf16.msra.mxu0 %v3890
  %3949 = vmatprep.subr.bf16.mxu0 0
  %3950 = vmatpush1.bf16.msra.mxu0 %v3889
  %3951 = vmatprep.subr.bf16.mxu0 0
  %3952 = vmatpush1.bf16.msra.mxu0 %v3888
  %3953 = vmatprep.subr.bf16.mxu0 0
  %3954 = vmatpush1.bf16.msra.mxu0 %v3887
  %3955 = vmatprep.subr.bf16.mxu0 0
  %3956 = vmatpush1.bf16.msra.mxu0 %v3886
  %3957 = vmatprep.subr.bf16.mxu0 0
  %3958 = vmatpush1.bf16.msra.mxu0 %v3885
  %3959 = vmatprep.subr.bf16.mxu0 0
  %3960 = vmatpush1.bf16.msra.mxu0 %v3884
  %3961 = vmatprep.subr.bf16.mxu0 0
  %3962 = vmatpush1.bf16.msra.mxu0 %v3883
  %3963 = vmatprep.subr.bf16.mxu0 0
  %3964 = vmatpush2.bf16.msra.mxu0 %v3898
  %3965 = vmatprep.subr.bf16.mxu0 0
  %3966 = vmatpush2.bf16.msra.mxu0 %v3897
  %3967 = vmatprep.subr.bf16.mxu0 0
  %3968 = vmatpush2.bf16.msra.mxu0 %v3896
  %3969 = vmatprep.subr.bf16.mxu0 0
  %3970 = vmatpush2.bf16.msra.mxu0 %v3895
  %3971 = vmatprep.subr.bf16.mxu0 0
  %3972 = vmatpush2.bf16.msra.mxu0 %v3894
  %3973 = vmatprep.subr.bf16.mxu0 0
  %3974 = vmatpush2.bf16.msra.mxu0 %v3893
  %3975 = vmatprep.subr.bf16.mxu0 0
  %3976 = vmatpush2.bf16.msra.mxu0 %v3892
  %3977 = vmatprep.subr.bf16.mxu0 0
  %3978 = vmatpush2.bf16.msra.mxu0 %v3891
  %3979 = vmatprep.mubr.bf16.mxu0 %v3688
  %3980 = vmatmul.mubr.bf16.gmra.mxu0 %v3687
  %v3981 = vpop.f32.mrf.mxu0
  %v3982 = vadd.f32 0.0, %v3981
  %v3983 = vpop.f32.mrf.mxu0
  %v3984 = vpop.f32.mrf.mxu0
  %v3985 = vpop.f32.mrf.mxu0
  %3986 = vdwg.mxu0
  %3987 = vmatprep.subr.bf16.mxu0 0
  %3988 = vmatpush1.bf16.msra.mxu0 %v3906
  %3989 = vmatprep.subr.bf16.mxu0 0
  %3990 = vmatpush1.bf16.msra.mxu0 %v3905
  %3991 = vmatprep.subr.bf16.mxu0 0
  %3992 = vmatpush1.bf16.msra.mxu0 %v3904
  %3993 = vmatprep.subr.bf16.mxu0 0
  %3994 = vmatpush1.bf16.msra.mxu0 %v3903
  %3995 = vmatprep.subr.bf16.mxu0 0
  %3996 = vmatpush1.bf16.msra.mxu0 %v3902
  %3997 = vmatprep.subr.bf16.mxu0 0
  %3998 = vmatpush1.bf16.msra.mxu0 %v3901
  %3999 = vmatprep.subr.bf16.mxu0 0
  %4000 = vmatpush1.bf16.msra.mxu0 %v3900
  %4001 = vmatprep.subr.bf16.mxu0 0
  %4002 = vmatpush1.bf16.msra.mxu0 %v3899
  %4003 = vmatprep.subr.bf16.mxu0 0
  %4004 = vmatpush2.bf16.msra.mxu0 %v3914
  %4005 = vmatprep.subr.bf16.mxu0 0
  %4006 = vmatpush2.bf16.msra.mxu0 %v3913
  %4007 = vmatprep.subr.bf16.mxu0 0
  %4008 = vmatpush2.bf16.msra.mxu0 %v3912
  %4009 = vmatprep.subr.bf16.mxu0 0
  %4010 = vmatpush2.bf16.msra.mxu0 %v3911
  %4011 = vmatprep.subr.bf16.mxu0 0
  %4012 = vmatpush2.bf16.msra.mxu0 %v3910
  %4013 = vmatprep.subr.bf16.mxu0 0
  %4014 = vmatpush2.bf16.msra.mxu0 %v3909
  %4015 = vmatprep.subr.bf16.mxu0 0
  %4016 = vmatpush2.bf16.msra.mxu0 %v3908
  %4017 = vmatprep.subr.bf16.mxu0 0
  %4018 = vmatpush2.bf16.msra.mxu0 %v3907
  %4019 = vmatprep.mubr.bf16.mxu0 %v3690
  %4020 = vmatmul.mubr.bf16.gmra.mxu0 %v3689
  %v4021 = vpop.f32.mrf.mxu0
  %v4022 = vadd.f32 %v3982, %v4021
  %v4023 = vpop.f32.mrf.mxu0
  %v4024 = vpop.f32.mrf.mxu0
  %v4025 = vpop.f32.mrf.mxu0
  %4026 = vdwg.mxu0
  %v4027 = vadd.f32 %v3668, %v4022
  %v4028 = vld [vmem:[%s0 + $0xb0] sm:$0xff]
  %v4029 = vld [vmem:[%s0 + $0xb8] sm:$0xff]
  %v4030 = vunpack.c.l.bf16 %v4028
  %v4031 = vunpack.c.h.bf16 %v4028
  %v4032 = vunpack.c.l.bf16 %v4029
  %v4033 = vunpack.c.h.bf16 %v4029
  %v4034 = vmul.f32 %v4030, %v47
  %v4035 = vmul.f32 %v4031, %v51
  %v4036 = vmul.f32 %v4032, %v55
  %v4037 = vmul.f32 %v4033, %v59
  %v4038 = vadd.f32 %v4034, %v72
  %v4039 = vadd.f32 %v4035, %v76
  %v4040 = vadd.f32 %v4036, %v80
  %v4041 = vadd.f32 %v4037, %v84
  %v4042 = vmax.f32 %v4038, 0.0
  %v4043 = vmax.f32 %v4039, 0.0
  %v4044 = vmax.f32 %v4040, 0.0
  %v4045 = vmax.f32 %v4041, 0.0
  %v4046 = vpack.c.bf16 %v4042, %v4042
  %v4047 = vpack.c.bf16 %v4043, %v4043
  %v4048 = vpack.c.bf16 %v4044, %v4044
  %v4049 = vpack.c.bf16 %v4045, %v4045
  %v4050 = vld [vmem:[%s3 + $0xb00] sm:$0xf]
  %v4051 = vld [vmem:[%s3 + $0xb04] sm:$0xf]
  %v4052 = vld [vmem:[%s3 + $0xb08] sm:$0xf]
  %v4053 = vld [vmem:[%s3 + $0xb0c] sm:$0xf]
  %v4054 = vld [vmem:[%s3 + $0xb10] sm:$0xf]
  %v4055 = vld [vmem:[%s3 + $0xb14] sm:$0xf]
  %v4056 = vld [vmem:[%s3 + $0xb18] sm:$0xf]
  %v4057 = vld [vmem:[%s3 + $0xb1c] sm:$0xf]
  %v4058 = vld [vmem:[%s3 + $0xb20] sm:$0xf]
  %v4059 = vld [vmem:[%s3 + $0xb24] sm:$0xf]
  %v4060 = vld [vmem:[%s3 + $0xb28] sm:$0xf]
  %v4061 = vld [vmem:[%s3 + $0xb2c] sm:$0xf]
  %v4062 = vld [vmem:[%s3 + $0xb30] sm:$0xf]
  %v4063 = vld [vmem:[%s3 + $0xb34] sm:$0xf]
  %v4064 = vld [vmem:[%s3 + $0xb38] sm:$0xf]
  %v4065 = vld [vmem:[%s3 + $0xb3c] sm:$0xf]
  %v4066 = vld [vmem:[%s3 + $0xb40] sm:$0xf]
  %v4067 = vld [vmem:[%s3 + $0xb44] sm:$0xf]
  %v4068 = vld [vmem:[%s3 + $0xb48] sm:$0xf]
  %v4069 = vld [vmem:[%s3 + $0xb4c] sm:$0xf]
  %v4070 = vld [vmem:[%s3 + $0xb50] sm:$0xf]
  %v4071 = vld [vmem:[%s3 + $0xb54] sm:$0xf]
  %v4072 = vld [vmem:[%s3 + $0xb58] sm:$0xf]
  %v4073 = vld [vmem:[%s3 + $0xb5c] sm:$0xf]
  %v4074 = vld [vmem:[%s3 + $0xb60] sm:$0xf]
  %v4075 = vld [vmem:[%s3 + $0xb64] sm:$0xf]
  %v4076 = vld [vmem:[%s3 + $0xb68] sm:$0xf]
  %v4077 = vld [vmem:[%s3 + $0xb6c] sm:$0xf]
  %v4078 = vld [vmem:[%s3 + $0xb70] sm:$0xf]
  %v4079 = vld [vmem:[%s3 + $0xb74] sm:$0xf]
  %v4080 = vld [vmem:[%s3 + $0xb78] sm:$0xf]
  %v4081 = vld [vmem:[%s3 + $0xb7c] sm:$0xf]
  %v4082 = vld [vmem:[%s3 + $0xb80] sm:$0xf]
  %v4083 = vld [vmem:[%s3 + $0xb84] sm:$0xf]
  %v4084 = vld [vmem:[%s3 + $0xb88] sm:$0xf]
  %v4085 = vld [vmem:[%s3 + $0xb8c] sm:$0xf]
  %v4086 = vld [vmem:[%s3 + $0xb90] sm:$0xf]
  %v4087 = vld [vmem:[%s3 + $0xb94] sm:$0xf]
  %v4088 = vld [vmem:[%s3 + $0xb98] sm:$0xf]
  %v4089 = vld [vmem:[%s3 + $0xb9c] sm:$0xf]
  %v4090 = vld [vmem:[%s3 + $0xba0] sm:$0xf]
  %v4091 = vld [vmem:[%s3 + $0xba4] sm:$0xf]
  %v4092 = vld [vmem:[%s3 + $0xba8] sm:$0xf]
  %v4093 = vld [vmem:[%s3 + $0xbac] sm:$0xf]
  %v4094 = vld [vmem:[%s3 + $0xbb0] sm:$0xf]
  %v4095 = vld [vmem:[%s3 + $0xbb4] sm:$0xf]
  %v4096 = vld [vmem:[%s3 + $0xbb8] sm:$0xf]
  %v4097 = vld [vmem:[%s3 + $0xbbc] sm:$0xf]
  %v4098 = vld [vmem:[%s3 + $0xbc0] sm:$0xf]
  %v4099 = vld [vmem:[%s3 + $0xbc4] sm:$0xf]
  %v4100 = vld [vmem:[%s3 + $0xbc8] sm:$0xf]
  %v4101 = vld [vmem:[%s3 + $0xbcc] sm:$0xf]
  %v4102 = vld [vmem:[%s3 + $0xbd0] sm:$0xf]
  %v4103 = vld [vmem:[%s3 + $0xbd4] sm:$0xf]
  %v4104 = vld [vmem:[%s3 + $0xbd8] sm:$0xf]
  %v4105 = vld [vmem:[%s3 + $0xbdc] sm:$0xf]
  %v4106 = vld [vmem:[%s3 + $0xbe0] sm:$0xf]
  %v4107 = vld [vmem:[%s3 + $0xbe4] sm:$0xf]
  %v4108 = vld [vmem:[%s3 + $0xbe8] sm:$0xf]
  %v4109 = vld [vmem:[%s3 + $0xbec] sm:$0xf]
  %v4110 = vld [vmem:[%s3 + $0xbf0] sm:$0xf]
  %v4111 = vld [vmem:[%s3 + $0xbf4] sm:$0xf]
  %v4112 = vld [vmem:[%s3 + $0xbf8] sm:$0xf]
  %v4113 = vld [vmem:[%s3 + $0xbfc] sm:$0xf]
  %v4178 = vunpack.c.l.b16 %v4050
  %v4179 = vunpack.c.l.b16 %v4051
  %v4180 = vunpack.c.l.b16 %v4052
  %v4181 = vunpack.c.l.b16 %v4053
  %v4182 = vunpack.c.l.b16 %v4054
  %v4183 = vunpack.c.l.b16 %v4055
  %v4184 = vunpack.c.l.b16 %v4056
  %v4185 = vunpack.c.l.b16 %v4057
  %v4186 = vunpack.c.l.b16 %v4058
  %v4187 = vunpack.c.l.b16 %v4059
  %v4188 = vunpack.c.l.b16 %v4060
  %v4189 = vunpack.c.l.b16 %v4061
  %v4190 = vunpack.c.l.b16 %v4062
  %v4191 = vunpack.c.l.b16 %v4063
  %v4192 = vunpack.c.l.b16 %v4064
  %v4193 = vunpack.c.l.b16 %v4065
  %v4194 = vunpack.c.l.b16 %v4066
  %v4195 = vunpack.c.l.b16 %v4067
  %v4196 = vunpack.c.l.b16 %v4068
  %v4197 = vunpack.c.l.b16 %v4069
  %v4198 = vunpack.c.l.b16 %v4070
  %v4199 = vunpack.c.l.b16 %v4071
  %v4200 = vunpack.c.l.b16 %v4072
  %v4201 = vunpack.c.l.b16 %v4073
  %v4202 = vunpack.c.l.b16 %v4074
  %v4203 = vunpack.c.l.b16 %v4075
  %v4204 = vunpack.c.l.b16 %v4076
  %v4205 = vunpack.c.l.b16 %v4077
  %v4206 = vunpack.c.l.b16 %v4078
  %v4207 = vunpack.c.l.b16 %v4079
  %v4208 = vunpack.c.l.b16 %v4080
  %v4209 = vunpack.c.l.b16 %v4081
  %v4210 = vunpack.c.l.b16 %v4082
  %v4211 = vunpack.c.l.b16 %v4083
  %v4212 = vunpack.c.l.b16 %v4084
  %v4213 = vunpack.c.l.b16 %v4085
  %v4214 = vunpack.c.l.b16 %v4086
  %v4215 = vunpack.c.l.b16 %v4087
  %v4216 = vunpack.c.l.b16 %v4088
  %v4217 = vunpack.c.l.b16 %v4089
  %v4218 = vunpack.c.l.b16 %v4090
  %v4219 = vunpack.c.l.b16 %v4091
  %v4220 = vunpack.c.l.b16 %v4092
  %v4221 = vunpack.c.l.b16 %v4093
  %v4222 = vunpack.c.l.b16 %v4094
  %v4223 = vunpack.c.l.b16 %v4095
  %v4224 = vunpack.c.l.b16 %v4096
  %v4225 = vunpack.c.l.b16 %v4097
  %v4226 = vunpack.c.l.b16 %v4098
  %v4227 = vunpack.c.l.b16 %v4099
  %v4228 = vunpack.c.l.b16 %v4100
  %v4229 = vunpack.c.l.b16 %v4101
  %v4230 = vunpack.c.l.b16 %v4102
  %v4231 = vunpack.c.l.b16 %v4103
  %v4232 = vunpack.c.l.b16 %v4104
  %v4233 = vunpack.c.l.b16 %v4105
  %v4234 = vunpack.c.l.b16 %v4106
  %v4235 = vunpack.c.l.b16 %v4107
  %v4236 = vunpack.c.l.b16 %v4108
  %v4237 = vunpack.c.l.b16 %v4109
  %v4238 = vunpack.c.l.b16 %v4110
  %v4239 = vunpack.c.l.b16 %v4111
  %v4240 = vunpack.c.l.b16 %v4112
  %v4241 = vunpack.c.l.b16 %v4113
  %v4242 = vpack.c.b16 %v4179, %v4178
  %v4243 = vpack.c.b16 %v4181, %v4180
  %v4244 = vpack.c.b16 %v4183, %v4182
  %v4245 = vpack.c.b16 %v4185, %v4184
  %v4246 = vpack.c.b16 %v4187, %v4186
  %v4247 = vpack.c.b16 %v4189, %v4188
  %v4248 = vpack.c.b16 %v4191, %v4190
  %v4249 = vpack.c.b16 %v4193, %v4192
  %v4250 = vpack.c.b16 %v4195, %v4194
  %v4251 = vpack.c.b16 %v4197, %v4196
  %v4252 = vpack.c.b16 %v4199, %v4198
  %v4253 = vpack.c.b16 %v4201, %v4200
  %v4254 = vpack.c.b16 %v4203, %v4202
  %v4255 = vpack.c.b16 %v4205, %v4204
  %v4256 = vpack.c.b16 %v4207, %v4206
  %v4257 = vpack.c.b16 %v4209, %v4208
  %v4258 = vpack.c.b16 %v4211, %v4210
  %v4259 = vpack.c.b16 %v4213, %v4212
  %v4260 = vpack.c.b16 %v4215, %v4214
  %v4261 = vpack.c.b16 %v4217, %v4216
  %v4262 = vpack.c.b16 %v4219, %v4218
  %v4263 = vpack.c.b16 %v4221, %v4220
  %v4264 = vpack.c.b16 %v4223, %v4222
  %v4265 = vpack.c.b16 %v4225, %v4224
  %v4266 = vpack.c.b16 %v4227, %v4226
  %v4267 = vpack.c.b16 %v4229, %v4228
  %v4268 = vpack.c.b16 %v4231, %v4230
  %v4269 = vpack.c.b16 %v4233, %v4232
  %v4270 = vpack.c.b16 %v4235, %v4234
  %v4271 = vpack.c.b16 %v4237, %v4236
  %v4272 = vpack.c.b16 %v4239, %v4238
  %v4273 = vpack.c.b16 %v4241, %v4240
  %4306 = vmatprep.subr.bf16.mxu0 0
  %4307 = vmatpush1.bf16.msra.mxu0 %v4249
  %4308 = vmatprep.subr.bf16.mxu0 0
  %4309 = vmatpush1.bf16.msra.mxu0 %v4248
  %4310 = vmatprep.subr.bf16.mxu0 0
  %4311 = vmatpush1.bf16.msra.mxu0 %v4247
  %4312 = vmatprep.subr.bf16.mxu0 0
  %4313 = vmatpush1.bf16.msra.mxu0 %v4246
  %4314 = vmatprep.subr.bf16.mxu0 0
  %4315 = vmatpush1.bf16.msra.mxu0 %v4245
  %4316 = vmatprep.subr.bf16.mxu0 0
  %4317 = vmatpush1.bf16.msra.mxu0 %v4244
  %4318 = vmatprep.subr.bf16.mxu0 0
  %4319 = vmatpush1.bf16.msra.mxu0 %v4243
  %4320 = vmatprep.subr.bf16.mxu0 0
  %4321 = vmatpush1.bf16.msra.mxu0 %v4242
  %4322 = vmatprep.subr.bf16.mxu0 0
  %4323 = vmatpush2.bf16.msra.mxu0 %v4257
  %4324 = vmatprep.subr.bf16.mxu0 0
  %4325 = vmatpush2.bf16.msra.mxu0 %v4256
  %4326 = vmatprep.subr.bf16.mxu0 0
  %4327 = vmatpush2.bf16.msra.mxu0 %v4255
  %4328 = vmatprep.subr.bf16.mxu0 0
  %4329 = vmatpush2.bf16.msra.mxu0 %v4254
  %4330 = vmatprep.subr.bf16.mxu0 0
  %4331 = vmatpush2.bf16.msra.mxu0 %v4253
  %4332 = vmatprep.subr.bf16.mxu0 0
  %4333 = vmatpush2.bf16.msra.mxu0 %v4252
  %4334 = vmatprep.subr.bf16.mxu0 0
  %4335 = vmatpush2.bf16.msra.mxu0 %v4251
  %4336 = vmatprep.subr.bf16.mxu0 0
  %4337 = vmatpush2.bf16.msra.mxu0 %v4250
  %4338 = vmatprep.mubr.bf16.mxu0 %v4047
  %4339 = vmatmul.mubr.bf16.gmra.mxu0 %v4046
  %v4340 = vpop.f32.mrf.mxu0
  %v4341 = vadd.f32 0.0, %v4340
  %v4342 = vpop.f32.mrf.mxu0
  %v4343 = vpop.f32.mrf.mxu0
  %v4344 = vpop.f32.mrf.mxu0
  %4345 = vdwg.mxu0
  %4346 = vmatprep.subr.bf16.mxu0 0
  %4347 = vmatpush1.bf16.msra.mxu0 %v4265
  %4348 = vmatprep.subr.bf16.mxu0 0
  %4349 = vmatpush1.bf16.msra.mxu0 %v4264
  %4350 = vmatprep.subr.bf16.mxu0 0
  %4351 = vmatpush1.bf16.msra.mxu0 %v4263
  %4352 = vmatprep.subr.bf16.mxu0 0
  %4353 = vmatpush1.bf16.msra.mxu0 %v4262
  %4354 = vmatprep.subr.bf16.mxu0 0
  %4355 = vmatpush1.bf16.msra.mxu0 %v4261
  %4356 = vmatprep.subr.bf16.mxu0 0
  %4357 = vmatpush1.bf16.msra.mxu0 %v4260
  %4358 = vmatprep.subr.bf16.mxu0 0
  %4359 = vmatpush1.bf16.msra.mxu0 %v4259
  %4360 = vmatprep.subr.bf16.mxu0 0
  %4361 = vmatpush1.bf16.msra.mxu0 %v4258
  %4362 = vmatprep.subr.bf16.mxu0 0
  %4363 = vmatpush2.bf16.msra.mxu0 %v4273
  %4364 = vmatprep.subr.bf16.mxu0 0
  %4365 = vmatpush2.bf16.msra.mxu0 %v4272
  %4366 = vmatprep.subr.bf16.mxu0 0
  %4367 = vmatpush2.bf16.msra.mxu0 %v4271
  %4368 = vmatprep.subr.bf16.mxu0 0
  %4369 = vmatpush2.bf16.msra.mxu0 %v4270
  %4370 = vmatprep.subr.bf16.mxu0 0
  %4371 = vmatpush2.bf16.msra.mxu0 %v4269
  %4372 = vmatprep.subr.bf16.mxu0 0
  %4373 = vmatpush2.bf16.msra.mxu0 %v4268
  %4374 = vmatprep.subr.bf16.mxu0 0
  %4375 = vmatpush2.bf16.msra.mxu0 %v4267
  %4376 = vmatprep.subr.bf16.mxu0 0
  %4377 = vmatpush2.bf16.msra.mxu0 %v4266
  %4378 = vmatprep.mubr.bf16.mxu0 %v4049
  %4379 = vmatmul.mubr.bf16.gmra.mxu0 %v4048
  %v4380 = vpop.f32.mrf.mxu0
  %v4381 = vadd.f32 %v4341, %v4380
  %v4382 = vpop.f32.mrf.mxu0
  %v4383 = vpop.f32.mrf.mxu0
  %v4384 = vpop.f32.mrf.mxu0
  %4385 = vdwg.mxu0
  %v4386 = vadd.f32 %v4027, %v4381
  %v4387 = vld [vmem:[%s0 + $0xc0] sm:$0xff]
  %v4388 = vld [vmem:[%s0 + $0xc8] sm:$0xff]
  %v4389 = vunpack.c.l.bf16 %v4387
  %v4390 = vunpack.c.h.bf16 %v4387
  %v4391 = vunpack.c.l.bf16 %v4388
  %v4392 = vunpack.c.h.bf16 %v4388
  %v4393 = vmul.f32 %v4389, %v47
  %v4394 = vmul.f32 %v4390, %v51
  %v4395 = vmul.f32 %v4391, %v55
  %v4396 = vmul.f32 %v4392, %v59
  %v4397 = vadd.f32 %v4393, %v72
  %v4398 = vadd.f32 %v4394, %v76
  %v4399 = vadd.f32 %v4395, %v80
  %v4400 = vadd.f32 %v4396, %v84
  %v4401 = vmax.f32 %v4397, 0.0
  %v4402 = vmax.f32 %v4398, 0.0
  %v4403 = vmax.f32 %v4399, 0.0
  %v4404 = vmax.f32 %v4400, 0.0
  %v4405 = vpack.c.bf16 %v4401, %v4401
  %v4406 = vpack.c.bf16 %v4402, %v4402
  %v4407 = vpack.c.bf16 %v4403, %v4403
  %v4408 = vpack.c.bf16 %v4404, %v4404
  %v4409 = vld [vmem:[%s3 + $0xc00] sm:$0xf]
  %v4410 = vld [vmem:[%s3 + $0xc04] sm:$0xf]
  %v4411 = vld [vmem:[%s3 + $0xc08] sm:$0xf]
  %v4412 = vld [vmem:[%s3 + $0xc0c] sm:$0xf]
  %v4413 = vld [vmem:[%s3 + $0xc10] sm:$0xf]
  %v4414 = vld [vmem:[%s3 + $0xc14] sm:$0xf]
  %v4415 = vld [vmem:[%s3 + $0xc18] sm:$0xf]
  %v4416 = vld [vmem:[%s3 + $0xc1c] sm:$0xf]
  %v4417 = vld [vmem:[%s3 + $0xc20] sm:$0xf]
  %v4418 = vld [vmem:[%s3 + $0xc24] sm:$0xf]
  %v4419 = vld [vmem:[%s3 + $0xc28] sm:$0xf]
  %v4420 = vld [vmem:[%s3 + $0xc2c] sm:$0xf]
  %v4421 = vld [vmem:[%s3 + $0xc30] sm:$0xf]
  %v4422 = vld [vmem:[%s3 + $0xc34] sm:$0xf]
  %v4423 = vld [vmem:[%s3 + $0xc38] sm:$0xf]
  %v4424 = vld [vmem:[%s3 + $0xc3c] sm:$0xf]
  %v4425 = vld [vmem:[%s3 + $0xc40] sm:$0xf]
  %v4426 = vld [vmem:[%s3 + $0xc44] sm:$0xf]
  %v4427 = vld [vmem:[%s3 + $0xc48] sm:$0xf]
  %v4428 = vld [vmem:[%s3 + $0xc4c] sm:$0xf]
  %v4429 = vld [vmem:[%s3 + $0xc50] sm:$0xf]
  %v4430 = vld [vmem:[%s3 + $0xc54] sm:$0xf]
  %v4431 = vld [vmem:[%s3 + $0xc58] sm:$0xf]
  %v4432 = vld [vmem:[%s3 + $0xc5c] sm:$0xf]
  %v4433 = vld [vmem:[%s3 + $0xc60] sm:$0xf]
  %v4434 = vld [vmem:[%s3 + $0xc64] sm:$0xf]
  %v4435 = vld [vmem:[%s3 + $0xc68] sm:$0xf]
  %v4436 = vld [vmem:[%s3 + $0xc6c] sm:$0xf]
  %v4437 = vld [vmem:[%s3 + $0xc70] sm:$0xf]
  %v4438 = vld [vmem:[%s3 + $0xc74] sm:$0xf]
  %v4439 = vld [vmem:[%s3 + $0xc78] sm:$0xf]
  %v4440 = vld [vmem:[%s3 + $0xc7c] sm:$0xf]
  %v4441 = vld [vmem:[%s3 + $0xc80] sm:$0xf]
  %v4442 = vld [vmem:[%s3 + $0xc84] sm:$0xf]
  %v4443 = vld [vmem:[%s3 + $0xc88] sm:$0xf]
  %v4444 = vld [vmem:[%s3 + $0xc8c] sm:$0xf]
  %v4445 = vld [vmem:[%s3 + $0xc90] sm:$0xf]
  %v4446 = vld [vmem:[%s3 + $0xc94] sm:$0xf]
  %v4447 = vld [vmem:[%s3 + $0xc98] sm:$0xf]
  %v4448 = vld [vmem:[%s3 + $0xc9c] sm:$0xf]
  %v4449 = vld [vmem:[%s3 + $0xca0] sm:$0xf]
  %v4450 = vld [vmem:[%s3 + $0xca4] sm:$0xf]
  %v4451 = vld [vmem:[%s3 + $0xca8] sm:$0xf]
  %v4452 = vld [vmem:[%s3 + $0xcac] sm:$0xf]
  %v4453 = vld [vmem:[%s3 + $0xcb0] sm:$0xf]
  %v4454 = vld [vmem:[%s3 + $0xcb4] sm:$0xf]
  %v4455 = vld [vmem:[%s3 + $0xcb8] sm:$0xf]
  %v4456 = vld [vmem:[%s3 + $0xcbc] sm:$0xf]
  %v4457 = vld [vmem:[%s3 + $0xcc0] sm:$0xf]
  %v4458 = vld [vmem:[%s3 + $0xcc4] sm:$0xf]
  %v4459 = vld [vmem:[%s3 + $0xcc8] sm:$0xf]
  %v4460 = vld [vmem:[%s3 + $0xccc] sm:$0xf]
  %v4461 = vld [vmem:[%s3 + $0xcd0] sm:$0xf]
  %v4462 = vld [vmem:[%s3 + $0xcd4] sm:$0xf]
  %v4463 = vld [vmem:[%s3 + $0xcd8] sm:$0xf]
  %v4464 = vld [vmem:[%s3 + $0xcdc] sm:$0xf]
  %v4465 = vld [vmem:[%s3 + $0xce0] sm:$0xf]
  %v4466 = vld [vmem:[%s3 + $0xce4] sm:$0xf]
  %v4467 = vld [vmem:[%s3 + $0xce8] sm:$0xf]
  %v4468 = vld [vmem:[%s3 + $0xcec] sm:$0xf]
  %v4469 = vld [vmem:[%s3 + $0xcf0] sm:$0xf]
  %v4470 = vld [vmem:[%s3 + $0xcf4] sm:$0xf]
  %v4471 = vld [vmem:[%s3 + $0xcf8] sm:$0xf]
  %v4472 = vld [vmem:[%s3 + $0xcfc] sm:$0xf]
  %v4537 = vunpack.c.l.b16 %v4409
  %v4538 = vunpack.c.l.b16 %v4410
  %v4539 = vunpack.c.l.b16 %v4411
  %v4540 = vunpack.c.l.b16 %v4412
  %v4541 = vunpack.c.l.b16 %v4413
  %v4542 = vunpack.c.l.b16 %v4414
  %v4543 = vunpack.c.l.b16 %v4415
  %v4544 = vunpack.c.l.b16 %v4416
  %v4545 = vunpack.c.l.b16 %v4417
  %v4546 = vunpack.c.l.b16 %v4418
  %v4547 = vunpack.c.l.b16 %v4419
  %v4548 = vunpack.c.l.b16 %v4420
  %v4549 = vunpack.c.l.b16 %v4421
  %v4550 = vunpack.c.l.b16 %v4422
  %v4551 = vunpack.c.l.b16 %v4423
  %v4552 = vunpack.c.l.b16 %v4424
  %v4553 = vunpack.c.l.b16 %v4425
  %v4554 = vunpack.c.l.b16 %v4426
  %v4555 = vunpack.c.l.b16 %v4427
  %v4556 = vunpack.c.l.b16 %v4428
  %v4557 = vunpack.c.l.b16 %v4429
  %v4558 = vunpack.c.l.b16 %v4430
  %v4559 = vunpack.c.l.b16 %v4431
  %v4560 = vunpack.c.l.b16 %v4432
  %v4561 = vunpack.c.l.b16 %v4433
  %v4562 = vunpack.c.l.b16 %v4434
  %v4563 = vunpack.c.l.b16 %v4435
  %v4564 = vunpack.c.l.b16 %v4436
  %v4565 = vunpack.c.l.b16 %v4437
  %v4566 = vunpack.c.l.b16 %v4438
  %v4567 = vunpack.c.l.b16 %v4439
  %v4568 = vunpack.c.l.b16 %v4440
  %v4569 = vunpack.c.l.b16 %v4441
  %v4570 = vunpack.c.l.b16 %v4442
  %v4571 = vunpack.c.l.b16 %v4443
  %v4572 = vunpack.c.l.b16 %v4444
  %v4573 = vunpack.c.l.b16 %v4445
  %v4574 = vunpack.c.l.b16 %v4446
  %v4575 = vunpack.c.l.b16 %v4447
  %v4576 = vunpack.c.l.b16 %v4448
  %v4577 = vunpack.c.l.b16 %v4449
  %v4578 = vunpack.c.l.b16 %v4450
  %v4579 = vunpack.c.l.b16 %v4451
  %v4580 = vunpack.c.l.b16 %v4452
  %v4581 = vunpack.c.l.b16 %v4453
  %v4582 = vunpack.c.l.b16 %v4454
  %v4583 = vunpack.c.l.b16 %v4455
  %v4584 = vunpack.c.l.b16 %v4456
  %v4585 = vunpack.c.l.b16 %v4457
  %v4586 = vunpack.c.l.b16 %v4458
  %v4587 = vunpack.c.l.b16 %v4459
  %v4588 = vunpack.c.l.b16 %v4460
  %v4589 = vunpack.c.l.b16 %v4461
  %v4590 = vunpack.c.l.b16 %v4462
  %v4591 = vunpack.c.l.b16 %v4463
  %v4592 = vunpack.c.l.b16 %v4464
  %v4593 = vunpack.c.l.b16 %v4465
  %v4594 = vunpack.c.l.b16 %v4466
  %v4595 = vunpack.c.l.b16 %v4467
  %v4596 = vunpack.c.l.b16 %v4468
  %v4597 = vunpack.c.l.b16 %v4469
  %v4598 = vunpack.c.l.b16 %v4470
  %v4599 = vunpack.c.l.b16 %v4471
  %v4600 = vunpack.c.l.b16 %v4472
  %v4601 = vpack.c.b16 %v4538, %v4537
  %v4602 = vpack.c.b16 %v4540, %v4539
  %v4603 = vpack.c.b16 %v4542, %v4541
  %v4604 = vpack.c.b16 %v4544, %v4543
  %v4605 = vpack.c.b16 %v4546, %v4545
  %v4606 = vpack.c.b16 %v4548, %v4547
  %v4607 = vpack.c.b16 %v4550, %v4549
  %v4608 = vpack.c.b16 %v4552, %v4551
  %v4609 = vpack.c.b16 %v4554, %v4553
  %v4610 = vpack.c.b16 %v4556, %v4555
  %v4611 = vpack.c.b16 %v4558, %v4557
  %v4612 = vpack.c.b16 %v4560, %v4559
  %v4613 = vpack.c.b16 %v4562, %v4561
  %v4614 = vpack.c.b16 %v4564, %v4563
  %v4615 = vpack.c.b16 %v4566, %v4565
  %v4616 = vpack.c.b16 %v4568, %v4567
  %v4617 = vpack.c.b16 %v4570, %v4569
  %v4618 = vpack.c.b16 %v4572, %v4571
  %v4619 = vpack.c.b16 %v4574, %v4573
  %v4620 = vpack.c.b16 %v4576, %v4575
  %v4621 = vpack.c.b16 %v4578, %v4577
  %v4622 = vpack.c.b16 %v4580, %v4579
  %v4623 = vpack.c.b16 %v4582, %v4581
  %v4624 = vpack.c.b16 %v4584, %v4583
  %v4625 = vpack.c.b16 %v4586, %v4585
  %v4626 = vpack.c.b16 %v4588, %v4587
  %v4627 = vpack.c.b16 %v4590, %v4589
  %v4628 = vpack.c.b16 %v4592, %v4591
  %v4629 = vpack.c.b16 %v4594, %v4593
  %v4630 = vpack.c.b16 %v4596, %v4595
  %v4631 = vpack.c.b16 %v4598, %v4597
  %v4632 = vpack.c.b16 %v4600, %v4599
  %4665 = vmatprep.subr.bf16.mxu0 0
  %4666 = vmatpush1.bf16.msra.mxu0 %v4608
  %4667 = vmatprep.subr.bf16.mxu0 0
  %4668 = vmatpush1.bf16.msra.mxu0 %v4607
  %4669 = vmatprep.subr.bf16.mxu0 0
  %4670 = vmatpush1.bf16.msra.mxu0 %v4606
  %4671 = vmatprep.subr.bf16.mxu0 0
  %4672 = vmatpush1.bf16.msra.mxu0 %v4605
  %4673 = vmatprep.subr.bf16.mxu0 0
  %4674 = vmatpush1.bf16.msra.mxu0 %v4604
  %4675 = vmatprep.subr.bf16.mxu0 0
  %4676 = vmatpush1.bf16.msra.mxu0 %v4603
  %4677 = vmatprep.subr.bf16.mxu0 0
  %4678 = vmatpush1.bf16.msra.mxu0 %v4602
  %4679 = vmatprep.subr.bf16.mxu0 0
  %4680 = vmatpush1.bf16.msra.mxu0 %v4601
  %4681 = vmatprep.subr.bf16.mxu0 0
  %4682 = vmatpush2.bf16.msra.mxu0 %v4616
  %4683 = vmatprep.subr.bf16.mxu0 0
  %4684 = vmatpush2.bf16.msra.mxu0 %v4615
  %4685 = vmatprep.subr.bf16.mxu0 0
  %4686 = vmatpush2.bf16.msra.mxu0 %v4614
  %4687 = vmatprep.subr.bf16.mxu0 0
  %4688 = vmatpush2.bf16.msra.mxu0 %v4613
  %4689 = vmatprep.subr.bf16.mxu0 0
  %4690 = vmatpush2.bf16.msra.mxu0 %v4612
  %4691 = vmatprep.subr.bf16.mxu0 0
  %4692 = vmatpush2.bf16.msra.mxu0 %v4611
  %4693 = vmatprep.subr.bf16.mxu0 0
  %4694 = vmatpush2.bf16.msra.mxu0 %v4610
  %4695 = vmatprep.subr.bf16.mxu0 0
  %4696 = vmatpush2.bf16.msra.mxu0 %v4609
  %4697 = vmatprep.mubr.bf16.mxu0 %v4406
  %4698 = vmatmul.mubr.bf16.gmra.mxu0 %v4405
  %v4699 = vpop.f32.mrf.mxu0
  %v4700 = vadd.f32 0.0, %v4699
  %v4701 = vpop.f32.mrf.mxu0
  %v4702 = vpop.f32.mrf.mxu0
  %v4703 = vpop.f32.mrf.mxu0
  %4704 = vdwg.mxu0
  %4705 = vmatprep.subr.bf16.mxu0 0
  %4706 = vmatpush1.bf16.msra.mxu0 %v4624
  %4707 = vmatprep.subr.bf16.mxu0 0
  %4708 = vmatpush1.bf16.msra.mxu0 %v4623
  %4709 = vmatprep.subr.bf16.mxu0 0
  %4710 = vmatpush1.bf16.msra.mxu0 %v4622
  %4711 = vmatprep.subr.bf16.mxu0 0
  %4712 = vmatpush1.bf16.msra.mxu0 %v4621
  %4713 = vmatprep.subr.bf16.mxu0 0
  %4714 = vmatpush1.bf16.msra.mxu0 %v4620
  %4715 = vmatprep.subr.bf16.mxu0 0
  %4716 = vmatpush1.bf16.msra.mxu0 %v4619
  %4717 = vmatprep.subr.bf16.mxu0 0
  %4718 = vmatpush1.bf16.msra.mxu0 %v4618
  %4719 = vmatprep.subr.bf16.mxu0 0
  %4720 = vmatpush1.bf16.msra.mxu0 %v4617
  %4721 = vmatprep.subr.bf16.mxu0 0
  %4722 = vmatpush2.bf16.msra.mxu0 %v4632
  %4723 = vmatprep.subr.bf16.mxu0 0
  %4724 = vmatpush2.bf16.msra.mxu0 %v4631
  %4725 = vmatprep.subr.bf16.mxu0 0
  %4726 = vmatpush2.bf16.msra.mxu0 %v4630
  %4727 = vmatprep.subr.bf16.mxu0 0
  %4728 = vmatpush2.bf16.msra.mxu0 %v4629
  %4729 = vmatprep.subr.bf16.mxu0 0
  %4730 = vmatpush2.bf16.msra.mxu0 %v4628
  %4731 = vmatprep.subr.bf16.mxu0 0
  %4732 = vmatpush2.bf16.msra.mxu0 %v4627
  %4733 = vmatprep.subr.bf16.mxu0 0
  %4734 = vmatpush2.bf16.msra.mxu0 %v4626
  %4735 = vmatprep.subr.bf16.mxu0 0
  %4736 = vmatpush2.bf16.msra.mxu0 %v4625
  %4737 = vmatprep.mubr.bf16.mxu0 %v4408
  %4738 = vmatmul.mubr.bf16.gmra.mxu0 %v4407
  %v4739 = vpop.f32.mrf.mxu0
  %v4740 = vadd.f32 %v4700, %v4739
  %v4741 = vpop.f32.mrf.mxu0
  %v4742 = vpop.f32.mrf.mxu0
  %v4743 = vpop.f32.mrf.mxu0
  %4744 = vdwg.mxu0
  %v4745 = vadd.f32 %v4386, %v4740
  %v4746 = vld [vmem:[%s0 + $0xd0] sm:$0xff]
  %v4747 = vld [vmem:[%s0 + $0xd8] sm:$0xff]
  %v4748 = vunpack.c.l.bf16 %v4746
  %v4749 = vunpack.c.h.bf16 %v4746
  %v4750 = vunpack.c.l.bf16 %v4747
  %v4751 = vunpack.c.h.bf16 %v4747
  %v4752 = vmul.f32 %v4748, %v47
  %v4753 = vmul.f32 %v4749, %v51
  %v4754 = vmul.f32 %v4750, %v55
  %v4755 = vmul.f32 %v4751, %v59
  %v4756 = vadd.f32 %v4752, %v72
  %v4757 = vadd.f32 %v4753, %v76
  %v4758 = vadd.f32 %v4754, %v80
  %v4759 = vadd.f32 %v4755, %v84
  %v4760 = vmax.f32 %v4756, 0.0
  %v4761 = vmax.f32 %v4757, 0.0
  %v4762 = vmax.f32 %v4758, 0.0
  %v4763 = vmax.f32 %v4759, 0.0
  %v4764 = vpack.c.bf16 %v4760, %v4760
  %v4765 = vpack.c.bf16 %v4761, %v4761
  %v4766 = vpack.c.bf16 %v4762, %v4762
  %v4767 = vpack.c.bf16 %v4763, %v4763
  %v4768 = vld [vmem:[%s3 + $0xd00] sm:$0xf]
  %v4769 = vld [vmem:[%s3 + $0xd04] sm:$0xf]
  %v4770 = vld [vmem:[%s3 + $0xd08] sm:$0xf]
  %v4771 = vld [vmem:[%s3 + $0xd0c] sm:$0xf]
  %v4772 = vld [vmem:[%s3 + $0xd10] sm:$0xf]
  %v4773 = vld [vmem:[%s3 + $0xd14] sm:$0xf]
  %v4774 = vld [vmem:[%s3 + $0xd18] sm:$0xf]
  %v4775 = vld [vmem:[%s3 + $0xd1c] sm:$0xf]
  %v4776 = vld [vmem:[%s3 + $0xd20] sm:$0xf]
  %v4777 = vld [vmem:[%s3 + $0xd24] sm:$0xf]
  %v4778 = vld [vmem:[%s3 + $0xd28] sm:$0xf]
  %v4779 = vld [vmem:[%s3 + $0xd2c] sm:$0xf]
  %v4780 = vld [vmem:[%s3 + $0xd30] sm:$0xf]
  %v4781 = vld [vmem:[%s3 + $0xd34] sm:$0xf]
  %v4782 = vld [vmem:[%s3 + $0xd38] sm:$0xf]
  %v4783 = vld [vmem:[%s3 + $0xd3c] sm:$0xf]
  %v4784 = vld [vmem:[%s3 + $0xd40] sm:$0xf]
  %v4785 = vld [vmem:[%s3 + $0xd44] sm:$0xf]
  %v4786 = vld [vmem:[%s3 + $0xd48] sm:$0xf]
  %v4787 = vld [vmem:[%s3 + $0xd4c] sm:$0xf]
  %v4788 = vld [vmem:[%s3 + $0xd50] sm:$0xf]
  %v4789 = vld [vmem:[%s3 + $0xd54] sm:$0xf]
  %v4790 = vld [vmem:[%s3 + $0xd58] sm:$0xf]
  %v4791 = vld [vmem:[%s3 + $0xd5c] sm:$0xf]
  %v4792 = vld [vmem:[%s3 + $0xd60] sm:$0xf]
  %v4793 = vld [vmem:[%s3 + $0xd64] sm:$0xf]
  %v4794 = vld [vmem:[%s3 + $0xd68] sm:$0xf]
  %v4795 = vld [vmem:[%s3 + $0xd6c] sm:$0xf]
  %v4796 = vld [vmem:[%s3 + $0xd70] sm:$0xf]
  %v4797 = vld [vmem:[%s3 + $0xd74] sm:$0xf]
  %v4798 = vld [vmem:[%s3 + $0xd78] sm:$0xf]
  %v4799 = vld [vmem:[%s3 + $0xd7c] sm:$0xf]
  %v4800 = vld [vmem:[%s3 + $0xd80] sm:$0xf]
  %v4801 = vld [vmem:[%s3 + $0xd84] sm:$0xf]
  %v4802 = vld [vmem:[%s3 + $0xd88] sm:$0xf]
  %v4803 = vld [vmem:[%s3 + $0xd8c] sm:$0xf]
  %v4804 = vld [vmem:[%s3 + $0xd90] sm:$0xf]
  %v4805 = vld [vmem:[%s3 + $0xd94] sm:$0xf]
  %v4806 = vld [vmem:[%s3 + $0xd98] sm:$0xf]
  %v4807 = vld [vmem:[%s3 + $0xd9c] sm:$0xf]
  %v4808 = vld [vmem:[%s3 + $0xda0] sm:$0xf]
  %v4809 = vld [vmem:[%s3 + $0xda4] sm:$0xf]
  %v4810 = vld [vmem:[%s3 + $0xda8] sm:$0xf]
  %v4811 = vld [vmem:[%s3 + $0xdac] sm:$0xf]
  %v4812 = vld [vmem:[%s3 + $0xdb0] sm:$0xf]
  %v4813 = vld [vmem:[%s3 + $0xdb4] sm:$0xf]
  %v4814 = vld [vmem:[%s3 + $0xdb8] sm:$0xf]
  %v4815 = vld [vmem:[%s3 + $0xdbc] sm:$0xf]
  %v4816 = vld [vmem:[%s3 + $0xdc0] sm:$0xf]
  %v4817 = vld [vmem:[%s3 + $0xdc4] sm:$0xf]
  %v4818 = vld [vmem:[%s3 + $0xdc8] sm:$0xf]
  %v4819 = vld [vmem:[%s3 + $0xdcc] sm:$0xf]
  %v4820 = vld [vmem:[%s3 + $0xdd0] sm:$0xf]
  %v4821 = vld [vmem:[%s3 + $0xdd4] sm:$0xf]
  %v4822 = vld [vmem:[%s3 + $0xdd8] sm:$0xf]
  %v4823 = vld [vmem:[%s3 + $0xddc] sm:$0xf]
  %v4824 = vld [vmem:[%s3 + $0xde0] sm:$0xf]
  %v4825 = vld [vmem:[%s3 + $0xde4] sm:$0xf]
  %v4826 = vld [vmem:[%s3 + $0xde8] sm:$0xf]
  %v4827 = vld [vmem:[%s3 + $0xdec] sm:$0xf]
  %v4828 = vld [vmem:[%s3 + $0xdf0] sm:$0xf]
  %v4829 = vld [vmem:[%s3 + $0xdf4] sm:$0xf]
  %v4830 = vld [vmem:[%s3 + $0xdf8] sm:$0xf]
  %v4831 = vld [vmem:[%s3 + $0xdfc] sm:$0xf]
  %v4896 = vunpack.c.l.b16 %v4768
  %v4897 = vunpack.c.l.b16 %v4769
  %v4898 = vunpack.c.l.b16 %v4770
  %v4899 = vunpack.c.l.b16 %v4771
  %v4900 = vunpack.c.l.b16 %v4772
  %v4901 = vunpack.c.l.b16 %v4773
  %v4902 = vunpack.c.l.b16 %v4774
  %v4903 = vunpack.c.l.b16 %v4775
  %v4904 = vunpack.c.l.b16 %v4776
  %v4905 = vunpack.c.l.b16 %v4777
  %v4906 = vunpack.c.l.b16 %v4778
  %v4907 = vunpack.c.l.b16 %v4779
  %v4908 = vunpack.c.l.b16 %v4780
  %v4909 = vunpack.c.l.b16 %v4781
  %v4910 = vunpack.c.l.b16 %v4782
  %v4911 = vunpack.c.l.b16 %v4783
  %v4912 = vunpack.c.l.b16 %v4784
  %v4913 = vunpack.c.l.b16 %v4785
  %v4914 = vunpack.c.l.b16 %v4786
  %v4915 = vunpack.c.l.b16 %v4787
  %v4916 = vunpack.c.l.b16 %v4788
  %v4917 = vunpack.c.l.b16 %v4789
  %v4918 = vunpack.c.l.b16 %v4790
  %v4919 = vunpack.c.l.b16 %v4791
  %v4920 = vunpack.c.l.b16 %v4792
  %v4921 = vunpack.c.l.b16 %v4793
  %v4922 = vunpack.c.l.b16 %v4794
  %v4923 = vunpack.c.l.b16 %v4795
  %v4924 = vunpack.c.l.b16 %v4796
  %v4925 = vunpack.c.l.b16 %v4797
  %v4926 = vunpack.c.l.b16 %v4798
  %v4927 = vunpack.c.l.b16 %v4799
  %v4928 = vunpack.c.l.b16 %v4800
  %v4929 = vunpack.c.l.b16 %v4801
  %v4930 = vunpack.c.l.b16 %v4802
  %v4931 = vunpack.c.l.b16 %v4803
  %v4932 = vunpack.c.l.b16 %v4804
  %v4933 = vunpack.c.l.b16 %v4805
  %v4934 = vunpack.c.l.b16 %v4806
  %v4935 = vunpack.c.l.b16 %v4807
  %v4936 = vunpack.c.l.b16 %v4808
  %v4937 = vunpack.c.l.b16 %v4809
  %v4938 = vunpack.c.l.b16 %v4810
  %v4939 = vunpack.c.l.b16 %v4811
  %v4940 = vunpack.c.l.b16 %v4812
  %v4941 = vunpack.c.l.b16 %v4813
  %v4942 = vunpack.c.l.b16 %v4814
  %v4943 = vunpack.c.l.b16 %v4815
  %v4944 = vunpack.c.l.b16 %v4816
  %v4945 = vunpack.c.l.b16 %v4817
  %v4946 = vunpack.c.l.b16 %v4818
  %v4947 = vunpack.c.l.b16 %v4819
  %v4948 = vunpack.c.l.b16 %v4820
  %v4949 = vunpack.c.l.b16 %v4821
  %v4950 = vunpack.c.l.b16 %v4822
  %v4951 = vunpack.c.l.b16 %v4823
  %v4952 = vunpack.c.l.b16 %v4824
  %v4953 = vunpack.c.l.b16 %v4825
  %v4954 = vunpack.c.l.b16 %v4826
  %v4955 = vunpack.c.l.b16 %v4827
  %v4956 = vunpack.c.l.b16 %v4828
  %v4957 = vunpack.c.l.b16 %v4829
  %v4958 = vunpack.c.l.b16 %v4830
  %v4959 = vunpack.c.l.b16 %v4831
  %v4960 = vpack.c.b16 %v4897, %v4896
  %v4961 = vpack.c.b16 %v4899, %v4898
  %v4962 = vpack.c.b16 %v4901, %v4900
  %v4963 = vpack.c.b16 %v4903, %v4902
  %v4964 = vpack.c.b16 %v4905, %v4904
  %v4965 = vpack.c.b16 %v4907, %v4906
  %v4966 = vpack.c.b16 %v4909, %v4908
  %v4967 = vpack.c.b16 %v4911, %v4910
  %v4968 = vpack.c.b16 %v4913, %v4912
  %v4969 = vpack.c.b16 %v4915, %v4914
  %v4970 = vpack.c.b16 %v4917, %v4916
  %v4971 = vpack.c.b16 %v4919, %v4918
  %v4972 = vpack.c.b16 %v4921, %v4920
  %v4973 = vpack.c.b16 %v4923, %v4922
  %v4974 = vpack.c.b16 %v4925, %v4924
  %v4975 = vpack.c.b16 %v4927, %v4926
  %v4976 = vpack.c.b16 %v4929, %v4928
  %v4977 = vpack.c.b16 %v4931, %v4930
  %v4978 = vpack.c.b16 %v4933, %v4932
  %v4979 = vpack.c.b16 %v4935, %v4934
  %v4980 = vpack.c.b16 %v4937, %v4936
  %v4981 = vpack.c.b16 %v4939, %v4938
  %v4982 = vpack.c.b16 %v4941, %v4940
  %v4983 = vpack.c.b16 %v4943, %v4942
  %v4984 = vpack.c.b16 %v4945, %v4944
  %v4985 = vpack.c.b16 %v4947, %v4946
  %v4986 = vpack.c.b16 %v4949, %v4948
  %v4987 = vpack.c.b16 %v4951, %v4950
  %v4988 = vpack.c.b16 %v4953, %v4952
  %v4989 = vpack.c.b16 %v4955, %v4954
  %v4990 = vpack.c.b16 %v4957, %v4956
  %v4991 = vpack.c.b16 %v4959, %v4958
  %5024 = vmatprep.subr.bf16.mxu0 0
  %5025 = vmatpush1.bf16.msra.mxu0 %v4967
  %5026 = vmatprep.subr.bf16.mxu0 0
  %5027 = vmatpush1.bf16.msra.mxu0 %v4966
  %5028 = vmatprep.subr.bf16.mxu0 0
  %5029 = vmatpush1.bf16.msra.mxu0 %v4965
  %5030 = vmatprep.subr.bf16.mxu0 0
  %5031 = vmatpush1.bf16.msra.mxu0 %v4964
  %5032 = vmatprep.subr.bf16.mxu0 0
  %5033 = vmatpush1.bf16.msra.mxu0 %v4963
  %5034 = vmatprep.subr.bf16.mxu0 0
  %5035 = vmatpush1.bf16.msra.mxu0 %v4962
  %5036 = vmatprep.subr.bf16.mxu0 0
  %5037 = vmatpush1.bf16.msra.mxu0 %v4961
  %5038 = vmatprep.subr.bf16.mxu0 0
  %5039 = vmatpush1.bf16.msra.mxu0 %v4960
  %5040 = vmatprep.subr.bf16.mxu0 0
  %5041 = vmatpush2.bf16.msra.mxu0 %v4975
  %5042 = vmatprep.subr.bf16.mxu0 0
  %5043 = vmatpush2.bf16.msra.mxu0 %v4974
  %5044 = vmatprep.subr.bf16.mxu0 0
  %5045 = vmatpush2.bf16.msra.mxu0 %v4973
  %5046 = vmatprep.subr.bf16.mxu0 0
  %5047 = vmatpush2.bf16.msra.mxu0 %v4972
  %5048 = vmatprep.subr.bf16.mxu0 0
  %5049 = vmatpush2.bf16.msra.mxu0 %v4971
  %5050 = vmatprep.subr.bf16.mxu0 0
  %5051 = vmatpush2.bf16.msra.mxu0 %v4970
  %5052 = vmatprep.subr.bf16.mxu0 0
  %5053 = vmatpush2.bf16.msra.mxu0 %v4969
  %5054 = vmatprep.subr.bf16.mxu0 0
  %5055 = vmatpush2.bf16.msra.mxu0 %v4968
  %5056 = vmatprep.mubr.bf16.mxu0 %v4765
  %5057 = vmatmul.mubr.bf16.gmra.mxu0 %v4764
  %v5058 = vpop.f32.mrf.mxu0
  %v5059 = vadd.f32 0.0, %v5058
  %v5060 = vpop.f32.mrf.mxu0
  %v5061 = vpop.f32.mrf.mxu0
  %v5062 = vpop.f32.mrf.mxu0
  %5063 = vdwg.mxu0
  %5064 = vmatprep.subr.bf16.mxu0 0
  %5065 = vmatpush1.bf16.msra.mxu0 %v4983
  %5066 = vmatprep.subr.bf16.mxu0 0
  %5067 = vmatpush1.bf16.msra.mxu0 %v4982
  %5068 = vmatprep.subr.bf16.mxu0 0
  %5069 = vmatpush1.bf16.msra.mxu0 %v4981
  %5070 = vmatprep.subr.bf16.mxu0 0
  %5071 = vmatpush1.bf16.msra.mxu0 %v4980
  %5072 = vmatprep.subr.bf16.mxu0 0
  %5073 = vmatpush1.bf16.msra.mxu0 %v4979
  %5074 = vmatprep.subr.bf16.mxu0 0
  %5075 = vmatpush1.bf16.msra.mxu0 %v4978
  %5076 = vmatprep.subr.bf16.mxu0 0
  %5077 = vmatpush1.bf16.msra.mxu0 %v4977
  %5078 = vmatprep.subr.bf16.mxu0 0
  %5079 = vmatpush1.bf16.msra.mxu0 %v4976
  %5080 = vmatprep.subr.bf16.mxu0 0
  %5081 = vmatpush2.bf16.msra.mxu0 %v4991
  %5082 = vmatprep.subr.bf16.mxu0 0
  %5083 = vmatpush2.bf16.msra.mxu0 %v4990
  %5084 = vmatprep.subr.bf16.mxu0 0
  %5085 = vmatpush2.bf16.msra.mxu0 %v4989
  %5086 = vmatprep.subr.bf16.mxu0 0
  %5087 = vmatpush2.bf16.msra.mxu0 %v4988
  %5088 = vmatprep.subr.bf16.mxu0 0
  %5089 = vmatpush2.bf16.msra.mxu0 %v4987
  %5090 = vmatprep.subr.bf16.mxu0 0
  %5091 = vmatpush2.bf16.msra.mxu0 %v4986
  %5092 = vmatprep.subr.bf16.mxu0 0
  %5093 = vmatpush2.bf16.msra.mxu0 %v4985
  %5094 = vmatprep.subr.bf16.mxu0 0
  %5095 = vmatpush2.bf16.msra.mxu0 %v4984
  %5096 = vmatprep.mubr.bf16.mxu0 %v4767
  %5097 = vmatmul.mubr.bf16.gmra.mxu0 %v4766
  %v5098 = vpop.f32.mrf.mxu0
  %v5099 = vadd.f32 %v5059, %v5098
  %v5100 = vpop.f32.mrf.mxu0
  %v5101 = vpop.f32.mrf.mxu0
  %v5102 = vpop.f32.mrf.mxu0
  %5103 = vdwg.mxu0
  %v5104 = vadd.f32 %v4745, %v5099
  %v5105 = vmax.f32 %v5104, 0.0
  %v5106 = vld [vmem:[%s5] sm:$0xff]
  %v5107 = vld [vmem:[%s5 + $0x8] sm:$0xff]
  %v5108 = vld [vmem:[%s5 + $0x10] sm:$0xff]
  %v5109 = vld [vmem:[%s5 + $0x18] sm:$0xff]
  %v5110 = vld [vmem:[%s5 + $0x20] sm:$0xff]
  %v5111 = vld [vmem:[%s5 + $0x28] sm:$0xff]
  %v5112 = vld [vmem:[%s5 + $0x30] sm:$0xff]
  %v5113 = vld [vmem:[%s5 + $0x38] sm:$0xff]
  %v5114 = vld [vmem:[%s5 + $0x40] sm:$0xff]
  %v5115 = vld [vmem:[%s5 + $0x48] sm:$0xff]
  %v5116 = vld [vmem:[%s5 + $0x50] sm:$0xff]
  %v5117 = vld [vmem:[%s5 + $0x58] sm:$0xff]
  %v5118 = vld [vmem:[%s5 + $0x60] sm:$0xff]
  %v5119 = vld [vmem:[%s5 + $0x68] sm:$0xff]
  %v5120 = vld [vmem:[%s5 + $0x70] sm:$0xff]
  %v5121 = vld [vmem:[%s5 + $0x78] sm:$0xff]
  %v5122 = vld [vmem:[%s6] sm:$0x1]
  %v5124 = vlaneseq
  %v5125 = vshrl.u32 %v5124, 7
  %v5126 = vsub.s32 0, %v5125
  %v5127 = vrot.slane %v5122, %v5126
  %5129 = vmatprep.subr.mxu0 0.0
  %5130 = vmatpush1.msra.mxu0 %v5121
  %5131 = vmatprep.subr.mxu0 0.0
  %5132 = vmatpush1.msra.mxu0 %v5120
  %5133 = vmatprep.subr.mxu0 0.0
  %5134 = vmatpush1.msra.mxu0 %v5119
  %5135 = vmatprep.subr.mxu0 0.0
  %5136 = vmatpush1.msra.mxu0 %v5118
  %5137 = vmatprep.subr.mxu0 0.0
  %5138 = vmatpush1.msra.mxu0 %v5117
  %5139 = vmatprep.subr.mxu0 0.0
  %5140 = vmatpush1.msra.mxu0 %v5116
  %5141 = vmatprep.subr.mxu0 0.0
  %5142 = vmatpush1.msra.mxu0 %v5115
  %5143 = vmatprep.subr.mxu0 0.0
  %5144 = vmatpush1.msra.mxu0 %v5114
  %5145 = vmatprep.subr.mxu0 0.0
  %5146 = vmatpush1.msra.mxu0 %v5113
  %5147 = vmatprep.subr.mxu0 0.0
  %5148 = vmatpush1.msra.mxu0 %v5112
  %5149 = vmatprep.subr.mxu0 0.0
  %5150 = vmatpush1.msra.mxu0 %v5111
  %5151 = vmatprep.subr.mxu0 0.0
  %5152 = vmatpush1.msra.mxu0 %v5110
  %5153 = vmatprep.subr.mxu0 0.0
  %5154 = vmatpush1.msra.mxu0 %v5109
  %5155 = vmatprep.subr.mxu0 0.0
  %5156 = vmatpush1.msra.mxu0 %v5108
  %5157 = vmatprep.subr.mxu0 0.0
  %5158 = vmatpush1.msra.mxu0 %v5107
  %5159 = vmatprep.subr.mxu0 0.0
  %5160 = vmatpush1.msra.mxu0 %v5106
  %5161 = vmatprep.subr.mxu0 0.0
  %5162 = vmatpush2.msra.mxu0 0.0
  %5163 = vmatprep.subr.mxu0 0.0
  %5164 = vmatpush2.msra.mxu0 0.0
  %5165 = vmatprep.subr.mxu0 0.0
  %5166 = vmatpush2.msra.mxu0 0.0
  %5167 = vmatprep.subr.mxu0 0.0
  %5168 = vmatpush2.msra.mxu0 0.0
  %5169 = vmatprep.subr.mxu0 0.0
  %5170 = vmatpush2.msra.mxu0 0.0
  %5171 = vmatprep.subr.mxu0 0.0
  %5172 = vmatpush2.msra.mxu0 0.0
  %5173 = vmatprep.subr.mxu0 0.0
  %5174 = vmatpush2.msra.mxu0 0.0
  %5175 = vmatprep.subr.mxu0 0.0
  %5176 = vmatpush2.msra.mxu0 0.0
  %5177 = vmatprep.subr.mxu0 0.0
  %5178 = vmatpush2.msra.mxu0 0.0
  %5179 = vmatprep.subr.mxu0 0.0
  %5180 = vmatpush2.msra.mxu0 0.0
  %5181 = vmatprep.subr.mxu0 0.0
  %5182 = vmatpush2.msra.mxu0 0.0
  %5183 = vmatprep.subr.mxu0 0.0
  %5184 = vmatpush2.msra.mxu0 0.0
  %5185 = vmatprep.subr.mxu0 0.0
  %5186 = vmatpush2.msra.mxu0 0.0
  %5187 = vmatprep.subr.mxu0 0.0
  %5188 = vmatpush2.msra.mxu0 0.0
  %5189 = vmatprep.subr.mxu0 0.0
  %5190 = vmatpush2.msra.mxu0 0.0
  %5191 = vmatprep.subr.mxu0 0.0
  %5192 = vmatpush2.msra.mxu0 0.0
  %5193 = vmatprep.mubr.f32.mxu0 0.0
  %5194 = vmatmul.mubr.f32.gmra.mxu0 %v5105
  %v5195 = vpop.f32.mrf.mxu0
  %v5196 = vadd.f32 %v5127, %v5195
  %v5197 = vpop.f32.mrf.mxu0
  %5198 = vdwg.mxu0
  %vm5199 = vcmask 80896
  %5200 = vst.msk [vmem:[%s7] sm:$0xff] %vm5199, %v5196
  // Predicated region
  $region30: #{method_cnn_mnist_forward.5} parent=0 // pred_check
    _
  $region31: #{method_cnn_mnist_forward.5} parent=0 // pred_check_branch
    %5202 = sbr.rel (0) target = $region33
  $region32: #{method_cnn_mnist_forward.5} parent=0 // pred_region
    _
  $region33: #{method_cnn_mnist_forward.5} parent=0 // pred_fallthru
    _
  // Predicated region
  $region34: #{method_cnn_mnist_forward.5} parent=0 // pred_check
    _
  $region35: #{method_cnn_mnist_forward.5} parent=0 // pred_check_branch
    %5204 = sbr.rel (0) target = $region37
  $region36: #{method_cnn_mnist_forward.5} parent=0 // pred_region
    _
  $region37: #{method_cnn_mnist_forward.5} parent=0 // pred_fallthru
    _

</llo_original>
